<compile_context>
chip_gen: v6e
topology: v6e:2x2x1
jax: 0.10.0
libtpu: 0.0.40
codegen_flags: <defaults>
</compile_context>

<pallas_src>
import numpy as np
import jax
import jax.numpy as jnp
from jax.experimental import pallas as pl
from jax.experimental.pallas import tpu as pltpu


# ------------------------------- Pallas kernel ------------------------------


def _fused_cnn_kernel(lhs1_ref, b1e_ref, w1c_ref, w2m_ref, b2_ref,
                      fc1w_hbm, fc1b_ref, fc2w_ref, fc2b_ref,
                      out_ref,
                      y1s, lhs2, y2s, flat, fc1w_vmem, dma_sem):
    """Whole CNN for one image: conv1+pool -> conv2+pool -> fc1+ReLU -> fc2."""
    # ---- prefetch fc1 weights (largest HBM transfer) behind the conv work ---
    fc1_copy = pltpu.make_async_copy(fc1w_hbm, fc1w_vmem, dma_sem)
    fc1_copy.start()

    # ---- stage 1: conv1 + bias + ReLU + 2x2 max-pool (one MXU dot) ----------
    # lhs1: (320,16) parity-blocked stride-4 windows of the padded input.
    # w1c : (16,128) = 4 pool-corner weight matrices stacked on N.
    c1 = jnp.dot(lhs1_ref[0], w1c_ref[...],
                 preferred_element_type=jnp.float32)          # (320, 128)
    m1 = jnp.maximum(jnp.maximum(c1[:, 0:32], c1[:, 32:64]),
                     jnp.maximum(c1[:, 64:96], c1[:, 96:128]))  # corner max
    # b1e has zeros on the padding rows, so those rows stay exactly 0 after
    # ReLU and serve as conv2's SAME zero border.
    y1s[...] = jnp.maximum(m1 + b1e_ref[...], 0.0)            # (320, 32) f32

    # ---- stage 2: assemble (224, 288) im2col LHS from y1s -------------------
    # Rows: 4 pool corners x 56 (7x8; every 8th row is don't-care).
    # Cols: 9 taps x 32 input channels.
    for c2 in range(4):
        dh, dw = divmod(c2, 2)
        for kh in range(3):
            for kw in range(3):
                r, s = dh + kh, dw + kw
                g = ((r - 1) % 2) * 2 + ((s - 1) % 2)
                start = (g * 80 + ((r - 1) // 2 + 1) * 8
                         + ((s - 1) // 2 + 1))
                t = kh * 3 + kw
                lhs2[c2 * 56:(c2 + 1) * 56, t * 32:(t + 1) * 32] = (
                    y1s[start:start + 56, :])

    # conv2 + bias + ReLU + 2x2 max-pool: one K=288 MXU dot + corner max.
    c2a = jnp.dot(lhs2[...], w2m_ref[...],
                  preferred_element_type=jnp.float32)          # (224, 64)
    m2 = jnp.maximum(jnp.maximum(c2a[0:56], c2a[56:112]),
                     jnp.maximum(c2a[112:168], c2a[168:224]))  # (56, 64)
    y2s[...] = jnp.maximum(m2 + b2_ref[...], 0.0)              # rows %8==7 junk

    # ---- flatten the 49 valid rows into a lane-dense (1, 3136) fc1 input ----
    # (NHWC (h,w,c) order; matches fc1_w's row order.)
    for a in range(7):
        for b in range(7):
            k = a * 7 + b
            flat[0:1, k * 64:(k + 1) * 64] = y2s[a * 8 + b:a * 8 + b + 1, :]

    # ---- MLP head: fc1 + ReLU + fc2 (fc1_w arrives via the prefetched DMA) --
    fc1_copy.wait()
    fl = flat[0:1, :].astype(jnp.bfloat16)                     # (1, 3136)
    h = jnp.dot(fl, fc1w_vmem[...],
                preferred_element_type=jnp.float32)            # (1, 128)
    h = jnp.maximum(h + fc1b_ref[...], 0.0)
    logits = jnp.dot(h, fc2w_ref[...],
                     preferred_element_type=jnp.float32) + fc2b_ref[...]
    out_ref[0] = logits                                        # (1, 10)


def fused_cnn(lhs1, b1e, w1c, w2m, b2, fc1w_bf16, fc1b, fc2w, fc2b):
    """lhs1: (B, 320, 16) -> logits (B, 10). One kernel for the whole net."""
    Bn = lhs1.shape[0]
    out = pl.pallas_call(
        _fused_cnn_kernel,
        out_shape=jax.ShapeDtypeStruct((Bn, 1, 10), jnp.float32),
        grid_spec=pltpu.PrefetchScalarGridSpec(
            num_scalar_prefetch=0,
            grid=(Bn,),
            in_specs=[
                pl.BlockSpec((1, 320, 16), lambda i: (i, 0, 0)),   # stage-1 LHS
                pl.BlockSpec((320, 32), lambda i: (0, 0)),         # b1 expanded
                pl.BlockSpec((16, 128), lambda i: (0, 0)),         # w1 corners
                pl.BlockSpec((288, 64), lambda i: (0, 0)),         # w2 (288,64)
                pl.BlockSpec((1, 64), lambda i: (0, 0)),           # b2
                pl.BlockSpec(memory_space=pl.ANY),                 # fc1_w (HBM)
                pl.BlockSpec((1, 128), lambda i: (0, 0)),          # fc1_b
                pl.BlockSpec((128, 10), lambda i: (0, 0)),         # fc2_w
                pl.BlockSpec((1, 10), lambda i: (0, 0)),           # fc2_b
            ],
            out_specs=pl.BlockSpec((1, 1, 10), lambda i: (i, 0, 0)),
            scratch_shapes=[
                pltpu.VMEM((320, 32), jnp.float32),    # y1, stage-2-ready layout
                pltpu.VMEM((224, 288), jnp.float32),   # stage-2 im2col LHS
                pltpu.VMEM((56, 64), jnp.float32),     # y2 (with junk rows)
                pltpu.VMEM((1, 3136), jnp.float32),    # flattened fc1 input
                pltpu.VMEM((3136, 128), jnp.bfloat16), # prefetched fc1 weight
                pltpu.SemaphoreType.DMA(()),
            ],
        ),
        compiler_params=pltpu.CompilerParams(
            dimension_semantics=("parallel",)),
    )(lhs1, b1e, w1c, w2m, b2, fc1w_bf16, fc1b, fc2w, fc2b)
    return out.reshape(Bn, 10)


# ------------------------------ JAX-side glue --------------------------------


def build_stage1_lhs(x):
    """(B, 28, 28) -> (B, 320, 16) stage-1 LHS, parity-blocked with zero pads.

    Group g=(pi,pj) occupies rows [g*80, (g+1)*80); pooled pixel (2A+pi,2B+pj)
    sits at row g*80 + (A+1)*8 + (B+1); column r*4+s holds
    xpad[4A + 2*pi + r, 4B + 2*pj + s]."""
    Bn = x.shape[0]
    xp = jnp.pad(x, ((0, 0), (1, 1), (1, 1)))                 # (B, 30, 30)
    blocks = []
    for pi in range(2):
        for pj in range(2):
            cols = [xp[:, 2 * pi + r: 2 * pi + r + 25: 4,
                       2 * pj + s: 2 * pj + s + 25: 4]
                    for r in range(4) for s in range(4)]      # 16 x (B, 7, 7)
            t16 = jnp.stack(cols, axis=-1)                    # (B, 7, 7, 16)
            blk = jnp.zeros((Bn, 10, 8, 16), x.dtype)
            blk = blk.at[:, 1:8, 1:8, :].set(t16)
            blocks.append(blk.reshape(Bn, 80, 16))
    return jnp.concatenate(blocks, axis=1)                    # (B, 320, 16)


def build_w1_corners(w1):
    """(3,3,1,32) -> (16,128): 4 pool-corner conv1 weight matrices on N."""
    blocks = []
    for dh in range(2):
        for dw in range(2):
            m = jnp.zeros((4, 4, 32), w1.dtype)
            m = m.at[dh:dh + 3, dw:dw + 3, :].set(w1[:, :, 0, :])
            blocks.append(m.reshape(16, 32))
    return jnp.concatenate(blocks, axis=1)


_STAGE1_ROW_MASK = np.zeros((4, 10, 8, 1), np.float32)
_STAGE1_ROW_MASK[:, 1:8, 1:8, :] = 1.0
_STAGE1_ROW_MASK = _STAGE1_ROW_MASK.reshape(320, 1)


def expand_bias1(b1):
    """(32,) -> (320,32) with zeros on padding rows (keeps the zero border)."""
    return jnp.asarray(_STAGE1_ROW_MASK) * b1.reshape(1, 32)


def init_params(key):
    """Deterministic init mirroring the nn.Module shapes (torch-default-like).

    fc1_w rows are stored in NHWC (h, w, c) flatten order so the forward pass
    needs no runtime transpose; to load torch weights, permute fc1.weight.T
    rows from torch's (c, h, w) flatten order."""
    ks = jax.random.split(key, 8)

    def u(k, shape, fan_in):
        bound = 1.0 / float(np.sqrt(fan_in))
        return jax.random.uniform(k, shape, jnp.float32, -bound, bound)

    p = {}
    p["conv1_w"] = u(ks[0], (3, 3, 1, 32), 1 * 9)     # (KH, KW, Cin, Cout)
    p["conv1_b"] = u(ks[1], (32,), 1 * 9)
    p["conv2_w"] = u(ks[2], (3, 3, 32, 64), 32 * 9)
    p["conv2_b"] = u(ks[3], (64,), 32 * 9)
    p["fc1_w"] = u(ks[4], (64 * 7 * 7, 128), 64 * 7 * 7)
    p["fc1_b"] = u(ks[5], (128,), 64 * 7 * 7)
    p["fc2_w"] = u(ks[6], (128, 10), 128)
    p["fc2_b"] = u(ks[7], (10,), 128)
    return p


def cnn_forward(params, x_nchw):
    x = x_nchw[:, 0, :, :].astype(jnp.float32)               # (B, 28, 28), Cin=1
    lhs1 = build_stage1_lhs(x)                                # (B, 320, 16)
    b1e = expand_bias1(params["conv1_b"])                     # (320, 32)
    w1c = build_w1_corners(params["conv1_w"])                 # (16, 128)
    w2m = params["conv2_w"].reshape(288, 64)                  # (288, 64)
    return fused_cnn(
        lhs1, b1e, w1c, w2m,
        params["conv2_b"].reshape(1, 64),
        params["fc1_w"].astype(jnp.bfloat16),
        params["fc1_b"].reshape(1, 128),
        params["fc2_w"],
        params["fc2_b"].reshape(1, 10))


def reference_forward(params, x_nchw):
    """Pure-JAX f32 reference of the same forward pass (sanity check)."""
    x = jnp.transpose(x_nchw, (0, 2, 3, 1))

    def conv(x, w, b):
        y = jax.lax.conv_general_dilated(
            x, w, window_strides=(1, 1), padding="SAME",
            dimension_numbers=("NHWC", "HWIO", "NHWC"),
            preferred_element_type=jnp.float32)
        return jax.nn.relu(y + b)

    def pool(x):
        return jax.lax.reduce_window(x, -jnp.inf, jax.lax.max,
                                     (1, 2, 2, 1), (1, 2, 2, 1), "VALID")

    y = pool(conv(x, params["conv1_w"], params["conv1_b"]))
    y = pool(conv(y, params["conv2_w"], params["conv2_b"]))
    flat = y.reshape(y.shape[0], -1)    # NHWC flatten; same order as fc1_w rows
    h = jax.nn.relu(flat @ params["fc1_w"] + params["fc1_b"])
    return h @ params["fc2_w"] + params["fc2_b"]


if __name__ == "__main__":
    key = jax.random.PRNGKey(0)
    pkey, xkey = jax.random.split(key)
    params = init_params(pkey)

    # Spatial size is fixed at 28x28 by fc1's 64*7*7 input; batch kept small.
    x = jax.random.normal(xkey, (2, 1, 28, 28), jnp.float32)  # NCHW like torch

    fwd = jax.jit(cnn_forward)
    out = jax.block_until_ready(fwd(params, x))
    assert out.shape == (2, 10) and out.dtype == jnp.float32

    ref = jax.block_until_ready(reference_forward(params, x))
    # 2e-2 tolerance absorbs the bf16 fc1 weight / fc1 input cast.
    if not np.allclose(np.asarray(out), np.asarray(ref), atol=2e-2, rtol=2e-2):
        raise AssertionError("Pallas CNN output mismatch vs JAX reference")

    print("KERNEL_OK")
</pallas_src>

<mosaic_0001>
module attributes {stable_mosaic.version = 11 : i64} {
  func.func @_fused_cnn_kernel(%arg0: i32, %arg1: memref<1x320x16xf32, #tpu.memory_space<vmem>>, %arg2: memref<320x32xf32, #tpu.memory_space<vmem>>, %arg3: memref<16x128xf32, #tpu.memory_space<vmem>>, %arg4: memref<288x64xf32, #tpu.memory_space<vmem>>, %arg5: memref<1x64xf32, #tpu.memory_space<vmem>>, %arg6: memref<3136x128xbf16, #tpu.memory_space<any>>, %arg7: memref<1x128xf32, #tpu.memory_space<vmem>>, %arg8: memref<128x10xf32, #tpu.memory_space<vmem>>, %arg9: memref<1x10xf32, #tpu.memory_space<vmem>>, %arg10: memref<1x1x10xf32, #tpu.memory_space<vmem>>, %arg11: memref<320x32xf32, #tpu.memory_space<vmem>>, %arg12: memref<224x288xf32, #tpu.memory_space<vmem>>, %arg13: memref<56x64xf32, #tpu.memory_space<vmem>>, %arg14: memref<1x3136xf32, #tpu.memory_space<vmem>>, %arg15: memref<3136x128xbf16, #tpu.memory_space<vmem>>, %arg16: memref<!tpu.dma_semaphore, #tpu.memory_space<semaphore_mem>>) attributes {dimension_semantics = [#tpu.dimension_semantics<parallel>], iteration_bounds = array<i64: 2>, scalar_prefetch = 0 : i64, scratch_operands = 6 : i64, tpu.core_type = #tpu.core_type<tc>, window_params = [{transform_indices = @transform_0, window_bounds = array<i64: 1, 320, 16>}, {pipeline_mode = #tpu.pipeline_mode<synchronous>, transform_indices = @transform_1, window_bounds = array<i64: 320, 32>}, {pipeline_mode = #tpu.pipeline_mode<synchronous>, transform_indices = @transform_2, window_bounds = array<i64: 16, 128>}, {pipeline_mode = #tpu.pipeline_mode<synchronous>, transform_indices = @transform_3, window_bounds = array<i64: 288, 64>}, {pipeline_mode = #tpu.pipeline_mode<synchronous>, transform_indices = @transform_4, window_bounds = array<i64: 1, 64>}, {}, {pipeline_mode = #tpu.pipeline_mode<synchronous>, transform_indices = @transform_6, window_bounds = array<i64: 1, 128>}, {pipeline_mode = #tpu.pipeline_mode<synchronous>, transform_indices = @transform_7, window_bounds = array<i64: 128, 10>}, {pipeline_mode = #tpu.pipeline_mode<synchronous>, transform_indices = @transform_8, window_bounds = array<i64: 1, 10>}, {transform_indices = @transform_9, window_bounds = array<i64: 1, 1, 10>}]} {
    tpu.enqueue_dma source(%arg6 : memref<3136x128xbf16, #tpu.memory_space<any>>) target(%arg15 : memref<3136x128xbf16, #tpu.memory_space<vmem>>) target_semaphore(%arg16 : memref<!tpu.dma_semaphore, #tpu.memory_space<semaphore_mem>>)
    %c0 = arith.constant 0 : index
    %c0_0 = arith.constant 0 : index
    %c0_1 = arith.constant 0 : index
    %0 = vector.load %arg1[%c0, %c0_0, %c0_1] : memref<1x320x16xf32, #tpu.memory_space<vmem>>, vector<1x320x16xf32>
    %1 = vector.shape_cast %0 : vector<1x320x16xf32> to vector<320x16xf32>
    %c0_2 = arith.constant 0 : index
    %c0_3 = arith.constant 0 : index
    %2 = vector.load %arg3[%c0_2, %c0_3] : memref<16x128xf32, #tpu.memory_space<vmem>>, vector<16x128xf32>
    %cst = arith.constant dense<0.000000e+00> : vector<320x128xf32>
    %3 = tpu.matmul %1, %2, %cst {dimension_numbers = #tpu.dot_dimension_numbers<[1], [0], [0], [1], [0, 0, 1, 1], [], []>} : vector<320x16xf32>, vector<16x128xf32>, vector<320x128xf32> -> vector<320x128xf32>
    %4 = vector.extract_strided_slice %3 {offsets = [0, 0], sizes = [320, 32], strides = [1, 1]} : vector<320x128xf32> to vector<320x32xf32>
    %5 = vector.extract_strided_slice %3 {offsets = [0, 32], sizes = [320, 32], strides = [1, 1]} : vector<320x128xf32> to vector<320x32xf32>
    %6 = arith.maximumf %4, %5 : vector<320x32xf32>
    %7 = vector.extract_strided_slice %3 {offsets = [0, 64], sizes = [320, 32], strides = [1, 1]} : vector<320x128xf32> to vector<320x32xf32>
    %8 = vector.extract_strided_slice %3 {offsets = [0, 96], sizes = [320, 32], strides = [1, 1]} : vector<320x128xf32> to vector<320x32xf32>
    %9 = arith.maximumf %7, %8 : vector<320x32xf32>
    %10 = arith.maximumf %6, %9 : vector<320x32xf32>
    %c0_4 = arith.constant 0 : index
    %c0_5 = arith.constant 0 : index
    %11 = vector.load %arg2[%c0_4, %c0_5] : memref<320x32xf32, #tpu.memory_space<vmem>>, vector<320x32xf32>
    %12 = arith.addf %10, %11 : vector<320x32xf32>
    %cst_6 = arith.constant 0.000000e+00 : f32
    %13 = vector.broadcast %cst_6 : f32 to vector<320x32xf32>
    %14 = arith.maximumf %12, %13 : vector<320x32xf32>
    %c0_7 = arith.constant 0 : index
    %c0_8 = arith.constant 0 : index
    %15 = vector.load %arg11[%c0_7, %c0_8] : memref<320x32xf32, #tpu.memory_space<vmem>>, vector<320x32xf32>
    tpu.vector_store %arg11[%c0_7, %c0_8], %14 {strides = array<i32>} : memref<320x32xf32, #tpu.memory_space<vmem>>, vector<320x32xf32>,
    %c240 = arith.constant 240 : index
    %c0_9 = arith.constant 0 : index
    %16 = vector.load %arg11[%c240, %c0_9] : memref<320x32xf32, #tpu.memory_space<vmem>>, vector<56x32xf32>
    %c0_10 = arith.constant 0 : index
    %c0_11 = arith.constant 0 : index
    %17 = vector.load %arg12[%c0_10, %c0_11] : memref<224x288xf32, #tpu.memory_space<vmem>>, vector<56x32xf32>
    tpu.vector_store %arg12[%c0_10, %c0_11], %16 {strides = array<i32>} : memref<224x288xf32, #tpu.memory_space<vmem>>, vector<56x32xf32>,
    %c161 = arith.constant 161 : index
    %c0_12 = arith.constant 0 : index
    %18 = vector.load %arg11[%c161, %c0_12] : memref<320x32xf32, #tpu.memory_space<vmem>>, vector<56x32xf32>
    %c0_13 = arith.constant 0 : index
    %c32 = arith.constant 32 : index
    %19 = vector.load %arg12[%c0_13, %c32] : memref<224x288xf32, #tpu.memory_space<vmem>>, vector<56x32xf32>
    tpu.vector_store %arg12[%c0_13, %c32], %18 {strides = array<i32>} : memref<224x288xf32, #tpu.memory_space<vmem>>, vector<56x32xf32>,
    %c241 = arith.constant 241 : index
    %c0_14 = arith.constant 0 : index
    %20 = vector.load %arg11[%c241, %c0_14] : memref<320x32xf32, #tpu.memory_space<vmem>>, vector<56x32xf32>
    %c0_15 = arith.constant 0 : index
    %c64 = arith.constant 64 : index
    %21 = vector.load %arg12[%c0_15, %c64] : memref<224x288xf32, #tpu.memory_space<vmem>>, vector<56x32xf32>
    tpu.vector_store %arg12[%c0_15, %c64], %20 {strides = array<i32>} : memref<224x288xf32, #tpu.memory_space<vmem>>, vector<56x32xf32>,
    %c88 = arith.constant 88 : index
    %c0_16 = arith.constant 0 : index
    %22 = vector.load %arg11[%c88, %c0_16] : memref<320x32xf32, #tpu.memory_space<vmem>>, vector<56x32xf32>
    %c0_17 = arith.constant 0 : index
    %c96 = arith.constant 96 : index
    %23 = vector.load %arg12[%c0_17, %c96] : memref<224x288xf32, #tpu.memory_space<vmem>>, vector<56x32xf32>
    tpu.vector_store %arg12[%c0_17, %c96], %22 {strides = array<i32>} : memref<224x288xf32, #tpu.memory_space<vmem>>, vector<56x32xf32>,
    %c9 = arith.constant 9 : index
    %c0_18 = arith.constant 0 : index
    %24 = vector.load %arg11[%c9, %c0_18] : memref<320x32xf32, #tpu.memory_space<vmem>>, vector<56x32xf32>
    %c0_19 = arith.constant 0 : index
    %c128 = arith.constant 128 : index
    %25 = vector.load %arg12[%c0_19, %c128] : memref<224x288xf32, #tpu.memory_space<vmem>>, vector<56x32xf32>
    tpu.vector_store %arg12[%c0_19, %c128], %24 {strides = array<i32>} : memref<224x288xf32, #tpu.memory_space<vmem>>, vector<56x32xf32>,
    %c89 = arith.constant 89 : index
    %c0_20 = arith.constant 0 : index
    %26 = vector.load %arg11[%c89, %c0_20] : memref<320x32xf32, #tpu.memory_space<vmem>>, vector<56x32xf32>
    %c0_21 = arith.constant 0 : index
    %c160 = arith.constant 160 : index
    %27 = vector.load %arg12[%c0_21, %c160] : memref<224x288xf32, #tpu.memory_space<vmem>>, vector<56x32xf32>
    tpu.vector_store %arg12[%c0_21, %c160], %26 {strides = array<i32>} : memref<224x288xf32, #tpu.memory_space<vmem>>, vector<56x32xf32>,
    %c248 = arith.constant 248 : index
    %c0_22 = arith.constant 0 : index
    %28 = vector.load %arg11[%c248, %c0_22] : memref<320x32xf32, #tpu.memory_space<vmem>>, vector<56x32xf32>
    %c0_23 = arith.constant 0 : index
    %c192 = arith.constant 192 : index
    %29 = vector.load %arg12[%c0_23, %c192] : memref<224x288xf32, #tpu.memory_space<vmem>>, vector<56x32xf32>
    tpu.vector_store %arg12[%c0_23, %c192], %28 {strides = array<i32>} : memref<224x288xf32, #tpu.memory_space<vmem>>, vector<56x32xf32>,
    %c169 = arith.constant 169 : index
    %c0_24 = arith.constant 0 : index
    %30 = vector.load %arg11[%c169, %c0_24] : memref<320x32xf32, #tpu.memory_space<vmem>>, vector<56x32xf32>
    %c0_25 = arith.constant 0 : index
    %c224 = arith.constant 224 : index
    %31 = vector.load %arg12[%c0_25, %c224] : memref<224x288xf32, #tpu.memory_space<vmem>>, vector<56x32xf32>
    tpu.vector_store %arg12[%c0_25, %c224], %30 {strides = array<i32>} : memref<224x288xf32, #tpu.memory_space<vmem>>, vector<56x32xf32>,
    %c249 = arith.constant 249 : index
    %c0_26 = arith.constant 0 : index
    %32 = vector.load %arg11[%c249, %c0_26] : memref<320x32xf32, #tpu.memory_space<vmem>>, vector<56x32xf32>
    %c0_27 = arith.constant 0 : index
    %c256 = arith.constant 256 : index
    %33 = vector.load %arg12[%c0_27, %c256] : memref<224x288xf32, #tpu.memory_space<vmem>>, vector<56x32xf32>
    tpu.vector_store %arg12[%c0_27, %c256], %32 {strides = array<i32>} : memref<224x288xf32, #tpu.memory_space<vmem>>, vector<56x32xf32>,
    %c161_28 = arith.constant 161 : index
    %c0_29 = arith.constant 0 : index
    %34 = vector.load %arg11[%c161_28, %c0_29] : memref<320x32xf32, #tpu.memory_space<vmem>>, vector<56x32xf32>
    %c56 = arith.constant 56 : index
    %c0_30 = arith.constant 0 : index
    %35 = vector.load %arg12[%c56, %c0_30] : memref<224x288xf32, #tpu.memory_space<vmem>>, vector<56x32xf32>
    tpu.vector_store %arg12[%c56, %c0_30], %34 {strides = array<i32>} : memref<224x288xf32, #tpu.memory_space<vmem>>, vector<56x32xf32>,
    %c241_31 = arith.constant 241 : index
    %c0_32 = arith.constant 0 : index
    %36 = vector.load %arg11[%c241_31, %c0_32] : memref<320x32xf32, #tpu.memory_space<vmem>>, vector<56x32xf32>
    %c56_33 = arith.constant 56 : index
    %c32_34 = arith.constant 32 : index
    %37 = vector.load %arg12[%c56_33, %c32_34] : memref<224x288xf32, #tpu.memory_space<vmem>>, vector<56x32xf32>
    tpu.vector_store %arg12[%c56_33, %c32_34], %36 {strides = array<i32>} : memref<224x288xf32, #tpu.memory_space<vmem>>, vector<56x32xf32>,
    %c162 = arith.constant 162 : index
    %c0_35 = arith.constant 0 : index
    %38 = vector.load %arg11[%c162, %c0_35] : memref<320x32xf32, #tpu.memory_space<vmem>>, vector<56x32xf32>
    %c56_36 = arith.constant 56 : index
    %c64_37 = arith.constant 64 : index
    %39 = vector.load %arg12[%c56_36, %c64_37] : memref<224x288xf32, #tpu.memory_space<vmem>>, vector<56x32xf32>
    tpu.vector_store %arg12[%c56_36, %c64_37], %38 {strides = array<i32>} : memref<224x288xf32, #tpu.memory_space<vmem>>, vector<56x32xf32>,
    %c9_38 = arith.constant 9 : index
    %c0_39 = arith.constant 0 : index
    %40 = vector.load %arg11[%c9_38, %c0_39] : memref<320x32xf32, #tpu.memory_space<vmem>>, vector<56x32xf32>
    %c56_40 = arith.constant 56 : index
    %c96_41 = arith.constant 96 : index
    %41 = vector.load %arg12[%c56_40, %c96_41] : memref<224x288xf32, #tpu.memory_space<vmem>>, vector<56x32xf32>
    tpu.vector_store %arg12[%c56_40, %c96_41], %40 {strides = array<i32>} : memref<224x288xf32, #tpu.memory_space<vmem>>, vector<56x32xf32>,
    %c89_42 = arith.constant 89 : index
    %c0_43 = arith.constant 0 : index
    %42 = vector.load %arg11[%c89_42, %c0_43] : memref<320x32xf32, #tpu.memory_space<vmem>>, vector<56x32xf32>
    %c56_44 = arith.constant 56 : index
    %c128_45 = arith.constant 128 : index
    %43 = vector.load %arg12[%c56_44, %c128_45] : memref<224x288xf32, #tpu.memory_space<vmem>>, vector<56x32xf32>
    tpu.vector_store %arg12[%c56_44, %c128_45], %42 {strides = array<i32>} : memref<224x288xf32, #tpu.memory_space<vmem>>, vector<56x32xf32>,
    %c10 = arith.constant 10 : index
    %c0_46 = arith.constant 0 : index
    %44 = vector.load %arg11[%c10, %c0_46] : memref<320x32xf32, #tpu.memory_space<vmem>>, vector<56x32xf32>
    %c56_47 = arith.constant 56 : index
    %c160_48 = arith.constant 160 : index
    %45 = vector.load %arg12[%c56_47, %c160_48] : memref<224x288xf32, #tpu.memory_space<vmem>>, vector<56x32xf32>
    tpu.vector_store %arg12[%c56_47, %c160_48], %44 {strides = array<i32>} : memref<224x288xf32, #tpu.memory_space<vmem>>, vector<56x32xf32>,
    %c169_49 = arith.constant 169 : index
    %c0_50 = arith.constant 0 : index
    %46 = vector.load %arg11[%c169_49, %c0_50] : memref<320x32xf32, #tpu.memory_space<vmem>>, vector<56x32xf32>
    %c56_51 = arith.constant 56 : index
    %c192_52 = arith.constant 192 : index
    %47 = vector.load %arg12[%c56_51, %c192_52] : memref<224x288xf32, #tpu.memory_space<vmem>>, vector<56x32xf32>
    tpu.vector_store %arg12[%c56_51, %c192_52], %46 {strides = array<i32>} : memref<224x288xf32, #tpu.memory_space<vmem>>, vector<56x32xf32>,
    %c249_53 = arith.constant 249 : index
    %c0_54 = arith.constant 0 : index
    %48 = vector.load %arg11[%c249_53, %c0_54] : memref<320x32xf32, #tpu.memory_space<vmem>>, vector<56x32xf32>
    %c56_55 = arith.constant 56 : index
    %c224_56 = arith.constant 224 : index
    %49 = vector.load %arg12[%c56_55, %c224_56] : memref<224x288xf32, #tpu.memory_space<vmem>>, vector<56x32xf32>
    tpu.vector_store %arg12[%c56_55, %c224_56], %48 {strides = array<i32>} : memref<224x288xf32, #tpu.memory_space<vmem>>, vector<56x32xf32>,
    %c170 = arith.constant 170 : index
    %c0_57 = arith.constant 0 : index
    %50 = vector.load %arg11[%c170, %c0_57] : memref<320x32xf32, #tpu.memory_space<vmem>>, vector<56x32xf32>
    %c56_58 = arith.constant 56 : index
    %c256_59 = arith.constant 256 : index
    %51 = vector.load %arg12[%c56_58, %c256_59] : memref<224x288xf32, #tpu.memory_space<vmem>>, vector<56x32xf32>
    tpu.vector_store %arg12[%c56_58, %c256_59], %50 {strides = array<i32>} : memref<224x288xf32, #tpu.memory_space<vmem>>, vector<56x32xf32>,
    %c88_60 = arith.constant 88 : index
    %c0_61 = arith.constant 0 : index
    %52 = vector.load %arg11[%c88_60, %c0_61] : memref<320x32xf32, #tpu.memory_space<vmem>>, vector<56x32xf32>
    %c112 = arith.constant 112 : index
    %c0_62 = arith.constant 0 : index
    %53 = vector.load %arg12[%c112, %c0_62] : memref<224x288xf32, #tpu.memory_space<vmem>>, vector<56x32xf32>
    tpu.vector_store %arg12[%c112, %c0_62], %52 {strides = array<i32>} : memref<224x288xf32, #tpu.memory_space<vmem>>, vector<56x32xf32>,
    %c9_63 = arith.constant 9 : index
    %c0_64 = arith.constant 0 : index
    %54 = vector.load %arg11[%c9_63, %c0_64] : memref<320x32xf32, #tpu.memory_space<vmem>>, vector<56x32xf32>
    %c112_65 = arith.constant 112 : index
    %c32_66 = arith.constant 32 : index
    %55 = vector.load %arg12[%c112_65, %c32_66] : memref<224x288xf32, #tpu.memory_space<vmem>>, vector<56x32xf32>
    tpu.vector_store %arg12[%c112_65, %c32_66], %54 {strides = array<i32>} : memref<224x288xf32, #tpu.memory_space<vmem>>, vector<56x32xf32>,
    %c89_67 = arith.constant 89 : index
    %c0_68 = arith.constant 0 : index
    %56 = vector.load %arg11[%c89_67, %c0_68] : memref<320x32xf32, #tpu.memory_space<vmem>>, vector<56x32xf32>
    %c112_69 = arith.constant 112 : index
    %c64_70 = arith.constant 64 : index
    %57 = vector.load %arg12[%c112_69, %c64_70] : memref<224x288xf32, #tpu.memory_space<vmem>>, vector<56x32xf32>
    tpu.vector_store %arg12[%c112_69, %c64_70], %56 {strides = array<i32>} : memref<224x288xf32, #tpu.memory_space<vmem>>, vector<56x32xf32>,
    %c248_71 = arith.constant 248 : index
    %c0_72 = arith.constant 0 : index
    %58 = vector.load %arg11[%c248_71, %c0_72] : memref<320x32xf32, #tpu.memory_space<vmem>>, vector<56x32xf32>
    %c112_73 = arith.constant 112 : index
    %c96_74 = arith.constant 96 : index
    %59 = vector.load %arg12[%c112_73, %c96_74] : memref<224x288xf32, #tpu.memory_space<vmem>>, vector<56x32xf32>
    tpu.vector_store %arg12[%c112_73, %c96_74], %58 {strides = array<i32>} : memref<224x288xf32, #tpu.memory_space<vmem>>, vector<56x32xf32>,
    %c169_75 = arith.constant 169 : index
    %c0_76 = arith.constant 0 : index
    %60 = vector.load %arg11[%c169_75, %c0_76] : memref<320x32xf32, #tpu.memory_space<vmem>>, vector<56x32xf32>
    %c112_77 = arith.constant 112 : index
    %c128_78 = arith.constant 128 : index
    %61 = vector.load %arg12[%c112_77, %c128_78] : memref<224x288xf32, #tpu.memory_space<vmem>>, vector<56x32xf32>
    tpu.vector_store %arg12[%c112_77, %c128_78], %60 {strides = array<i32>} : memref<224x288xf32, #tpu.memory_space<vmem>>, vector<56x32xf32>,
    %c249_79 = arith.constant 249 : index
    %c0_80 = arith.constant 0 : index
    %62 = vector.load %arg11[%c249_79, %c0_80] : memref<320x32xf32, #tpu.memory_space<vmem>>, vector<56x32xf32>
    %c112_81 = arith.constant 112 : index
    %c160_82 = arith.constant 160 : index
    %63 = vector.load %arg12[%c112_81, %c160_82] : memref<224x288xf32, #tpu.memory_space<vmem>>, vector<56x32xf32>
    tpu.vector_store %arg12[%c112_81, %c160_82], %62 {strides = array<i32>} : memref<224x288xf32, #tpu.memory_space<vmem>>, vector<56x32xf32>,
    %c96_83 = arith.constant 96 : index
    %c0_84 = arith.constant 0 : index
    %64 = vector.load %arg11[%c96_83, %c0_84] : memref<320x32xf32, #tpu.memory_space<vmem>>, vector<56x32xf32>
    %c112_85 = arith.constant 112 : index
    %c192_86 = arith.constant 192 : index
    %65 = vector.load %arg12[%c112_85, %c192_86] : memref<224x288xf32, #tpu.memory_space<vmem>>, vector<56x32xf32>
    tpu.vector_store %arg12[%c112_85, %c192_86], %64 {strides = array<i32>} : memref<224x288xf32, #tpu.memory_space<vmem>>, vector<56x32xf32>,
    %c17 = arith.constant 17 : index
    %c0_87 = arith.constant 0 : index
    %66 = vector.load %arg11[%c17, %c0_87] : memref<320x32xf32, #tpu.memory_space<vmem>>, vector<56x32xf32>
    %c112_88 = arith.constant 112 : index
    %c224_89 = arith.constant 224 : index
    %67 = vector.load %arg12[%c112_88, %c224_89] : memref<224x288xf32, #tpu.memory_space<vmem>>, vector<56x32xf32>
    tpu.vector_store %arg12[%c112_88, %c224_89], %66 {strides = array<i32>} : memref<224x288xf32, #tpu.memory_space<vmem>>, vector<56x32xf32>,
    %c97 = arith.constant 97 : index
    %c0_90 = arith.constant 0 : index
    %68 = vector.load %arg11[%c97, %c0_90] : memref<320x32xf32, #tpu.memory_space<vmem>>, vector<56x32xf32>
    %c112_91 = arith.constant 112 : index
    %c256_92 = arith.constant 256 : index
    %69 = vector.load %arg12[%c112_91, %c256_92] : memref<224x288xf32, #tpu.memory_space<vmem>>, vector<56x32xf32>
    tpu.vector_store %arg12[%c112_91, %c256_92], %68 {strides = array<i32>} : memref<224x288xf32, #tpu.memory_space<vmem>>, vector<56x32xf32>,
    %c9_93 = arith.constant 9 : index
    %c0_94 = arith.constant 0 : index
    %70 = vector.load %arg11[%c9_93, %c0_94] : memref<320x32xf32, #tpu.memory_space<vmem>>, vector<56x32xf32>
    %c168 = arith.constant 168 : index
    %c0_95 = arith.constant 0 : index
    %71 = vector.load %arg12[%c168, %c0_95] : memref<224x288xf32, #tpu.memory_space<vmem>>, vector<56x32xf32>
    tpu.vector_store %arg12[%c168, %c0_95], %70 {strides = array<i32>} : memref<224x288xf32, #tpu.memory_space<vmem>>, vector<56x32xf32>,
    %c89_96 = arith.constant 89 : index
    %c0_97 = arith.constant 0 : index
    %72 = vector.load %arg11[%c89_96, %c0_97] : memref<320x32xf32, #tpu.memory_space<vmem>>, vector<56x32xf32>
    %c168_98 = arith.constant 168 : index
    %c32_99 = arith.constant 32 : index
    %73 = vector.load %arg12[%c168_98, %c32_99] : memref<224x288xf32, #tpu.memory_space<vmem>>, vector<56x32xf32>
    tpu.vector_store %arg12[%c168_98, %c32_99], %72 {strides = array<i32>} : memref<224x288xf32, #tpu.memory_space<vmem>>, vector<56x32xf32>,
    %c10_100 = arith.constant 10 : index
    %c0_101 = arith.constant 0 : index
    %74 = vector.load %arg11[%c10_100, %c0_101] : memref<320x32xf32, #tpu.memory_space<vmem>>, vector<56x32xf32>
    %c168_102 = arith.constant 168 : index
    %c64_103 = arith.constant 64 : index
    %75 = vector.load %arg12[%c168_102, %c64_103] : memref<224x288xf32, #tpu.memory_space<vmem>>, vector<56x32xf32>
    tpu.vector_store %arg12[%c168_102, %c64_103], %74 {strides = array<i32>} : memref<224x288xf32, #tpu.memory_space<vmem>>, vector<56x32xf32>,
    %c169_104 = arith.constant 169 : index
    %c0_105 = arith.constant 0 : index
    %76 = vector.load %arg11[%c169_104, %c0_105] : memref<320x32xf32, #tpu.memory_space<vmem>>, vector<56x32xf32>
    %c168_106 = arith.constant 168 : index
    %c96_107 = arith.constant 96 : index
    %77 = vector.load %arg12[%c168_106, %c96_107] : memref<224x288xf32, #tpu.memory_space<vmem>>, vector<56x32xf32>
    tpu.vector_store %arg12[%c168_106, %c96_107], %76 {strides = array<i32>} : memref<224x288xf32, #tpu.memory_space<vmem>>, vector<56x32xf32>,
    %c249_108 = arith.constant 249 : index
    %c0_109 = arith.constant 0 : index
    %78 = vector.load %arg11[%c249_108, %c0_109] : memref<320x32xf32, #tpu.memory_space<vmem>>, vector<56x32xf32>
    %c168_110 = arith.constant 168 : index
    %c128_111 = arith.constant 128 : index
    %79 = vector.load %arg12[%c168_110, %c128_111] : memref<224x288xf32, #tpu.memory_space<vmem>>, vector<56x32xf32>
    tpu.vector_store %arg12[%c168_110, %c128_111], %78 {strides = array<i32>} : memref<224x288xf32, #tpu.memory_space<vmem>>, vector<56x32xf32>,
    %c170_112 = arith.constant 170 : index
    %c0_113 = arith.constant 0 : index
    %80 = vector.load %arg11[%c170_112, %c0_113] : memref<320x32xf32, #tpu.memory_space<vmem>>, vector<56x32xf32>
    %c168_114 = arith.constant 168 : index
    %c160_115 = arith.constant 160 : index
    %81 = vector.load %arg12[%c168_114, %c160_115] : memref<224x288xf32, #tpu.memory_space<vmem>>, vector<56x32xf32>
    tpu.vector_store %arg12[%c168_114, %c160_115], %80 {strides = array<i32>} : memref<224x288xf32, #tpu.memory_space<vmem>>, vector<56x32xf32>,
    %c17_116 = arith.constant 17 : index
    %c0_117 = arith.constant 0 : index
    %82 = vector.load %arg11[%c17_116, %c0_117] : memref<320x32xf32, #tpu.memory_space<vmem>>, vector<56x32xf32>
    %c168_118 = arith.constant 168 : index
    %c192_119 = arith.constant 192 : index
    %83 = vector.load %arg12[%c168_118, %c192_119] : memref<224x288xf32, #tpu.memory_space<vmem>>, vector<56x32xf32>
    tpu.vector_store %arg12[%c168_118, %c192_119], %82 {strides = array<i32>} : memref<224x288xf32, #tpu.memory_space<vmem>>, vector<56x32xf32>,
    %c97_120 = arith.constant 97 : index
    %c0_121 = arith.constant 0 : index
    %84 = vector.load %arg11[%c97_120, %c0_121] : memref<320x32xf32, #tpu.memory_space<vmem>>, vector<56x32xf32>
    %c168_122 = arith.constant 168 : index
    %c224_123 = arith.constant 224 : index
    %85 = vector.load %arg12[%c168_122, %c224_123] : memref<224x288xf32, #tpu.memory_space<vmem>>, vector<56x32xf32>
    tpu.vector_store %arg12[%c168_122, %c224_123], %84 {strides = array<i32>} : memref<224x288xf32, #tpu.memory_space<vmem>>, vector<56x32xf32>,
    %c18 = arith.constant 18 : index
    %c0_124 = arith.constant 0 : index
    %86 = vector.load %arg11[%c18, %c0_124] : memref<320x32xf32, #tpu.memory_space<vmem>>, vector<56x32xf32>
    %c168_125 = arith.constant 168 : index
    %c256_126 = arith.constant 256 : index
    %87 = vector.load %arg12[%c168_125, %c256_126] : memref<224x288xf32, #tpu.memory_space<vmem>>, vector<56x32xf32>
    tpu.vector_store %arg12[%c168_125, %c256_126], %86 {strides = array<i32>} : memref<224x288xf32, #tpu.memory_space<vmem>>, vector<56x32xf32>,
    %c0_127 = arith.constant 0 : index
    %c0_128 = arith.constant 0 : index
    %88 = vector.load %arg12[%c0_127, %c0_128] : memref<224x288xf32, #tpu.memory_space<vmem>>, vector<224x288xf32>
    %c0_129 = arith.constant 0 : index
    %c0_130 = arith.constant 0 : index
    %89 = vector.load %arg4[%c0_129, %c0_130] : memref<288x64xf32, #tpu.memory_space<vmem>>, vector<288x64xf32>
    %cst_131 = arith.constant dense<0.000000e+00> : vector<224x64xf32>
    %90 = tpu.matmul %88, %89, %cst_131 {dimension_numbers = #tpu.dot_dimension_numbers<[1], [0], [0], [1], [0, 0, 1, 1], [], []>} : vector<224x288xf32>, vector<288x64xf32>, vector<224x64xf32> -> vector<224x64xf32>
    %91 = vector.extract_strided_slice %90 {offsets = [0, 0], sizes = [56, 64], strides = [1, 1]} : vector<224x64xf32> to vector<56x64xf32>
    %92 = vector.extract_strided_slice %90 {offsets = [56, 0], sizes = [56, 64], strides = [1, 1]} : vector<224x64xf32> to vector<56x64xf32>
    %93 = arith.maximumf %91, %92 : vector<56x64xf32>
    %94 = vector.extract_strided_slice %90 {offsets = [112, 0], sizes = [56, 64], strides = [1, 1]} : vector<224x64xf32> to vector<56x64xf32>
    %95 = vector.extract_strided_slice %90 {offsets = [168, 0], sizes = [56, 64], strides = [1, 1]} : vector<224x64xf32> to vector<56x64xf32>
    %96 = arith.maximumf %94, %95 : vector<56x64xf32>
    %97 = arith.maximumf %93, %96 : vector<56x64xf32>
    %c0_132 = arith.constant 0 : index
    %c0_133 = arith.constant 0 : index
    %98 = vector.load %arg5[%c0_132, %c0_133] : memref<1x64xf32, #tpu.memory_space<vmem>>, vector<1x64xf32>
    %99 = vector.broadcast %98 : vector<1x64xf32> to vector<56x64xf32>
    %100 = arith.addf %97, %99 : vector<56x64xf32>
    %cst_134 = arith.constant 0.000000e+00 : f32
    %101 = vector.broadcast %cst_134 : f32 to vector<56x64xf32>
    %102 = arith.maximumf %100, %101 : vector<56x64xf32>
    %c0_135 = arith.constant 0 : index
    %c0_136 = arith.constant 0 : index
    %103 = vector.load %arg13[%c0_135, %c0_136] : memref<56x64xf32, #tpu.memory_space<vmem>>, vector<56x64xf32>
    tpu.vector_store %arg13[%c0_135, %c0_136], %102 {strides = array<i32>} : memref<56x64xf32, #tpu.memory_space<vmem>>, vector<56x64xf32>,
    %c0_137 = arith.constant 0 : index
    %c0_138 = arith.constant 0 : index
    %104 = vector.load %arg13[%c0_137, %c0_138] : memref<56x64xf32, #tpu.memory_space<vmem>>, vector<1x64xf32>
    %c0_139 = arith.constant 0 : index
    %c0_140 = arith.constant 0 : index
    %105 = vector.load %arg14[%c0_139, %c0_140] : memref<1x3136xf32, #tpu.memory_space<vmem>>, vector<1x64xf32>
    tpu.vector_store %arg14[%c0_139, %c0_140], %104 {strides = array<i32>} : memref<1x3136xf32, #tpu.memory_space<vmem>>, vector<1x64xf32>,
    %c1 = arith.constant 1 : index
    %c0_141 = arith.constant 0 : index
    %106 = vector.load %arg13[%c1, %c0_141] : memref<56x64xf32, #tpu.memory_space<vmem>>, vector<1x64xf32>
    %c0_142 = arith.constant 0 : index
    %c64_143 = arith.constant 64 : index
    %107 = vector.load %arg14[%c0_142, %c64_143] : memref<1x3136xf32, #tpu.memory_space<vmem>>, vector<1x64xf32>
    tpu.vector_store %arg14[%c0_142, %c64_143], %106 {strides = array<i32>} : memref<1x3136xf32, #tpu.memory_space<vmem>>, vector<1x64xf32>,
    %c2 = arith.constant 2 : index
    %c0_144 = arith.constant 0 : index
    %108 = vector.load %arg13[%c2, %c0_144] : memref<56x64xf32, #tpu.memory_space<vmem>>, vector<1x64xf32>
    %c0_145 = arith.constant 0 : index
    %c128_146 = arith.constant 128 : index
    %109 = vector.load %arg14[%c0_145, %c128_146] : memref<1x3136xf32, #tpu.memory_space<vmem>>, vector<1x64xf32>
    tpu.vector_store %arg14[%c0_145, %c128_146], %108 {strides = array<i32>} : memref<1x3136xf32, #tpu.memory_space<vmem>>, vector<1x64xf32>,
    %c3 = arith.constant 3 : index
    %c0_147 = arith.constant 0 : index
    %110 = vector.load %arg13[%c3, %c0_147] : memref<56x64xf32, #tpu.memory_space<vmem>>, vector<1x64xf32>
    %c0_148 = arith.constant 0 : index
    %c192_149 = arith.constant 192 : index
    %111 = vector.load %arg14[%c0_148, %c192_149] : memref<1x3136xf32, #tpu.memory_space<vmem>>, vector<1x64xf32>
    tpu.vector_store %arg14[%c0_148, %c192_149], %110 {strides = array<i32>} : memref<1x3136xf32, #tpu.memory_space<vmem>>, vector<1x64xf32>,
    %c4 = arith.constant 4 : index
    %c0_150 = arith.constant 0 : index
    %112 = vector.load %arg13[%c4, %c0_150] : memref<56x64xf32, #tpu.memory_space<vmem>>, vector<1x64xf32>
    %c0_151 = arith.constant 0 : index
    %c256_152 = arith.constant 256 : index
    %113 = vector.load %arg14[%c0_151, %c256_152] : memref<1x3136xf32, #tpu.memory_space<vmem>>, vector<1x64xf32>
    tpu.vector_store %arg14[%c0_151, %c256_152], %112 {strides = array<i32>} : memref<1x3136xf32, #tpu.memory_space<vmem>>, vector<1x64xf32>,
    %c5 = arith.constant 5 : index
    %c0_153 = arith.constant 0 : index
    %114 = vector.load %arg13[%c5, %c0_153] : memref<56x64xf32, #tpu.memory_space<vmem>>, vector<1x64xf32>
    %c0_154 = arith.constant 0 : index
    %c320 = arith.constant 320 : index
    %115 = vector.load %arg14[%c0_154, %c320] : memref<1x3136xf32, #tpu.memory_space<vmem>>, vector<1x64xf32>
    tpu.vector_store %arg14[%c0_154, %c320], %114 {strides = array<i32>} : memref<1x3136xf32, #tpu.memory_space<vmem>>, vector<1x64xf32>,
    %c6 = arith.constant 6 : index
    %c0_155 = arith.constant 0 : index
    %116 = vector.load %arg13[%c6, %c0_155] : memref<56x64xf32, #tpu.memory_space<vmem>>, vector<1x64xf32>
    %c0_156 = arith.constant 0 : index
    %c384 = arith.constant 384 : index
    %117 = vector.load %arg14[%c0_156, %c384] : memref<1x3136xf32, #tpu.memory_space<vmem>>, vector<1x64xf32>
    tpu.vector_store %arg14[%c0_156, %c384], %116 {strides = array<i32>} : memref<1x3136xf32, #tpu.memory_space<vmem>>, vector<1x64xf32>,
    %c8 = arith.constant 8 : index
    %c0_157 = arith.constant 0 : index
    %118 = vector.load %arg13[%c8, %c0_157] : memref<56x64xf32, #tpu.memory_space<vmem>>, vector<1x64xf32>
    %c0_158 = arith.constant 0 : index
    %c448 = arith.constant 448 : index
    %119 = vector.load %arg14[%c0_158, %c448] : memref<1x3136xf32, #tpu.memory_space<vmem>>, vector<1x64xf32>
    tpu.vector_store %arg14[%c0_158, %c448], %118 {strides = array<i32>} : memref<1x3136xf32, #tpu.memory_space<vmem>>, vector<1x64xf32>,
    %c9_159 = arith.constant 9 : index
    %c0_160 = arith.constant 0 : index
    %120 = vector.load %arg13[%c9_159, %c0_160] : memref<56x64xf32, #tpu.memory_space<vmem>>, vector<1x64xf32>
    %c0_161 = arith.constant 0 : index
    %c512 = arith.constant 512 : index
    %121 = vector.load %arg14[%c0_161, %c512] : memref<1x3136xf32, #tpu.memory_space<vmem>>, vector<1x64xf32>
    tpu.vector_store %arg14[%c0_161, %c512], %120 {strides = array<i32>} : memref<1x3136xf32, #tpu.memory_space<vmem>>, vector<1x64xf32>,
    %c10_162 = arith.constant 10 : index
    %c0_163 = arith.constant 0 : index
    %122 = vector.load %arg13[%c10_162, %c0_163] : memref<56x64xf32, #tpu.memory_space<vmem>>, vector<1x64xf32>
    %c0_164 = arith.constant 0 : index
    %c576 = arith.constant 576 : index
    %123 = vector.load %arg14[%c0_164, %c576] : memref<1x3136xf32, #tpu.memory_space<vmem>>, vector<1x64xf32>
    tpu.vector_store %arg14[%c0_164, %c576], %122 {strides = array<i32>} : memref<1x3136xf32, #tpu.memory_space<vmem>>, vector<1x64xf32>,
    %c11 = arith.constant 11 : index
    %c0_165 = arith.constant 0 : index
    %124 = vector.load %arg13[%c11, %c0_165] : memref<56x64xf32, #tpu.memory_space<vmem>>, vector<1x64xf32>
    %c0_166 = arith.constant 0 : index
    %c640 = arith.constant 640 : index
    %125 = vector.load %arg14[%c0_166, %c640] : memref<1x3136xf32, #tpu.memory_space<vmem>>, vector<1x64xf32>
    tpu.vector_store %arg14[%c0_166, %c640], %124 {strides = array<i32>} : memref<1x3136xf32, #tpu.memory_space<vmem>>, vector<1x64xf32>,
    %c12 = arith.constant 12 : index
    %c0_167 = arith.constant 0 : index
    %126 = vector.load %arg13[%c12, %c0_167] : memref<56x64xf32, #tpu.memory_space<vmem>>, vector<1x64xf32>
    %c0_168 = arith.constant 0 : index
    %c704 = arith.constant 704 : index
    %127 = vector.load %arg14[%c0_168, %c704] : memref<1x3136xf32, #tpu.memory_space<vmem>>, vector<1x64xf32>
    tpu.vector_store %arg14[%c0_168, %c704], %126 {strides = array<i32>} : memref<1x3136xf32, #tpu.memory_space<vmem>>, vector<1x64xf32>,
    %c13 = arith.constant 13 : index
    %c0_169 = arith.constant 0 : index
    %128 = vector.load %arg13[%c13, %c0_169] : memref<56x64xf32, #tpu.memory_space<vmem>>, vector<1x64xf32>
    %c0_170 = arith.constant 0 : index
    %c768 = arith.constant 768 : index
    %129 = vector.load %arg14[%c0_170, %c768] : memref<1x3136xf32, #tpu.memory_space<vmem>>, vector<1x64xf32>
    tpu.vector_store %arg14[%c0_170, %c768], %128 {strides = array<i32>} : memref<1x3136xf32, #tpu.memory_space<vmem>>, vector<1x64xf32>,
    %c14 = arith.constant 14 : index
    %c0_171 = arith.constant 0 : index
    %130 = vector.load %arg13[%c14, %c0_171] : memref<56x64xf32, #tpu.memory_space<vmem>>, vector<1x64xf32>
    %c0_172 = arith.constant 0 : index
    %c832 = arith.constant 832 : index
    %131 = vector.load %arg14[%c0_172, %c832] : memref<1x3136xf32, #tpu.memory_space<vmem>>, vector<1x64xf32>
    tpu.vector_store %arg14[%c0_172, %c832], %130 {strides = array<i32>} : memref<1x3136xf32, #tpu.memory_space<vmem>>, vector<1x64xf32>,
    %c16 = arith.constant 16 : index
    %c0_173 = arith.constant 0 : index
    %132 = vector.load %arg13[%c16, %c0_173] : memref<56x64xf32, #tpu.memory_space<vmem>>, vector<1x64xf32>
    %c0_174 = arith.constant 0 : index
    %c896 = arith.constant 896 : index
    %133 = vector.load %arg14[%c0_174, %c896] : memref<1x3136xf32, #tpu.memory_space<vmem>>, vector<1x64xf32>
    tpu.vector_store %arg14[%c0_174, %c896], %132 {strides = array<i32>} : memref<1x3136xf32, #tpu.memory_space<vmem>>, vector<1x64xf32>,
    %c17_175 = arith.constant 17 : index
    %c0_176 = arith.constant 0 : index
    %134 = vector.load %arg13[%c17_175, %c0_176] : memref<56x64xf32, #tpu.memory_space<vmem>>, vector<1x64xf32>
    %c0_177 = arith.constant 0 : index
    %c960 = arith.constant 960 : index
    %135 = vector.load %arg14[%c0_177, %c960] : memref<1x3136xf32, #tpu.memory_space<vmem>>, vector<1x64xf32>
    tpu.vector_store %arg14[%c0_177, %c960], %134 {strides = array<i32>} : memref<1x3136xf32, #tpu.memory_space<vmem>>, vector<1x64xf32>,
    %c18_178 = arith.constant 18 : index
    %c0_179 = arith.constant 0 : index
    %136 = vector.load %arg13[%c18_178, %c0_179] : memref<56x64xf32, #tpu.memory_space<vmem>>, vector<1x64xf32>
    %c0_180 = arith.constant 0 : index
    %c1024 = arith.constant 1024 : index
    %137 = vector.load %arg14[%c0_180, %c1024] : memref<1x3136xf32, #tpu.memory_space<vmem>>, vector<1x64xf32>
    tpu.vector_store %arg14[%c0_180, %c1024], %136 {strides = array<i32>} : memref<1x3136xf32, #tpu.memory_space<vmem>>, vector<1x64xf32>,
    %c19 = arith.constant 19 : index
    %c0_181 = arith.constant 0 : index
    %138 = vector.load %arg13[%c19, %c0_181] : memref<56x64xf32, #tpu.memory_space<vmem>>, vector<1x64xf32>
    %c0_182 = arith.constant 0 : index
    %c1088 = arith.constant 1088 : index
    %139 = vector.load %arg14[%c0_182, %c1088] : memref<1x3136xf32, #tpu.memory_space<vmem>>, vector<1x64xf32>
    tpu.vector_store %arg14[%c0_182, %c1088], %138 {strides = array<i32>} : memref<1x3136xf32, #tpu.memory_space<vmem>>, vector<1x64xf32>,
    %c20 = arith.constant 20 : index
    %c0_183 = arith.constant 0 : index
    %140 = vector.load %arg13[%c20, %c0_183] : memref<56x64xf32, #tpu.memory_space<vmem>>, vector<1x64xf32>
    %c0_184 = arith.constant 0 : index
    %c1152 = arith.constant 1152 : index
    %141 = vector.load %arg14[%c0_184, %c1152] : memref<1x3136xf32, #tpu.memory_space<vmem>>, vector<1x64xf32>
    tpu.vector_store %arg14[%c0_184, %c1152], %140 {strides = array<i32>} : memref<1x3136xf32, #tpu.memory_space<vmem>>, vector<1x64xf32>,
    %c21 = arith.constant 21 : index
    %c0_185 = arith.constant 0 : index
    %142 = vector.load %arg13[%c21, %c0_185] : memref<56x64xf32, #tpu.memory_space<vmem>>, vector<1x64xf32>
    %c0_186 = arith.constant 0 : index
    %c1216 = arith.constant 1216 : index
    %143 = vector.load %arg14[%c0_186, %c1216] : memref<1x3136xf32, #tpu.memory_space<vmem>>, vector<1x64xf32>
    tpu.vector_store %arg14[%c0_186, %c1216], %142 {strides = array<i32>} : memref<1x3136xf32, #tpu.memory_space<vmem>>, vector<1x64xf32>,
    %c22 = arith.constant 22 : index
    %c0_187 = arith.constant 0 : index
    %144 = vector.load %arg13[%c22, %c0_187] : memref<56x64xf32, #tpu.memory_space<vmem>>, vector<1x64xf32>
    %c0_188 = arith.constant 0 : index
    %c1280 = arith.constant 1280 : index
    %145 = vector.load %arg14[%c0_188, %c1280] : memref<1x3136xf32, #tpu.memory_space<vmem>>, vector<1x64xf32>
    tpu.vector_store %arg14[%c0_188, %c1280], %144 {strides = array<i32>} : memref<1x3136xf32, #tpu.memory_space<vmem>>, vector<1x64xf32>,
    %c24 = arith.constant 24 : index
    %c0_189 = arith.constant 0 : index
    %146 = vector.load %arg13[%c24, %c0_189] : memref<56x64xf32, #tpu.memory_space<vmem>>, vector<1x64xf32>
    %c0_190 = arith.constant 0 : index
    %c1344 = arith.constant 1344 : index
    %147 = vector.load %arg14[%c0_190, %c1344] : memref<1x3136xf32, #tpu.memory_space<vmem>>, vector<1x64xf32>
    tpu.vector_store %arg14[%c0_190, %c1344], %146 {strides = array<i32>} : memref<1x3136xf32, #tpu.memory_space<vmem>>, vector<1x64xf32>,
    %c25 = arith.constant 25 : index
    %c0_191 = arith.constant 0 : index
    %148 = vector.load %arg13[%c25, %c0_191] : memref<56x64xf32, #tpu.memory_space<vmem>>, vector<1x64xf32>
    %c0_192 = arith.constant 0 : index
    %c1408 = arith.constant 1408 : index
    %149 = vector.load %arg14[%c0_192, %c1408] : memref<1x3136xf32, #tpu.memory_space<vmem>>, vector<1x64xf32>
    tpu.vector_store %arg14[%c0_192, %c1408], %148 {strides = array<i32>} : memref<1x3136xf32, #tpu.memory_space<vmem>>, vector<1x64xf32>,
    %c26 = arith.constant 26 : index
    %c0_193 = arith.constant 0 : index
    %150 = vector.load %arg13[%c26, %c0_193] : memref<56x64xf32, #tpu.memory_space<vmem>>, vector<1x64xf32>
    %c0_194 = arith.constant 0 : index
    %c1472 = arith.constant 1472 : index
    %151 = vector.load %arg14[%c0_194, %c1472] : memref<1x3136xf32, #tpu.memory_space<vmem>>, vector<1x64xf32>
    tpu.vector_store %arg14[%c0_194, %c1472], %150 {strides = array<i32>} : memref<1x3136xf32, #tpu.memory_space<vmem>>, vector<1x64xf32>,
    %c27 = arith.constant 27 : index
    %c0_195 = arith.constant 0 : index
    %152 = vector.load %arg13[%c27, %c0_195] : memref<56x64xf32, #tpu.memory_space<vmem>>, vector<1x64xf32>
    %c0_196 = arith.constant 0 : index
    %c1536 = arith.constant 1536 : index
    %153 = vector.load %arg14[%c0_196, %c1536] : memref<1x3136xf32, #tpu.memory_space<vmem>>, vector<1x64xf32>
    tpu.vector_store %arg14[%c0_196, %c1536], %152 {strides = array<i32>} : memref<1x3136xf32, #tpu.memory_space<vmem>>, vector<1x64xf32>,
    %c28 = arith.constant 28 : index
    %c0_197 = arith.constant 0 : index
    %154 = vector.load %arg13[%c28, %c0_197] : memref<56x64xf32, #tpu.memory_space<vmem>>, vector<1x64xf32>
    %c0_198 = arith.constant 0 : index
    %c1600 = arith.constant 1600 : index
    %155 = vector.load %arg14[%c0_198, %c1600] : memref<1x3136xf32, #tpu.memory_space<vmem>>, vector<1x64xf32>
    tpu.vector_store %arg14[%c0_198, %c1600], %154 {strides = array<i32>} : memref<1x3136xf32, #tpu.memory_space<vmem>>, vector<1x64xf32>,
    %c29 = arith.constant 29 : index
    %c0_199 = arith.constant 0 : index
    %156 = vector.load %arg13[%c29, %c0_199] : memref<56x64xf32, #tpu.memory_space<vmem>>, vector<1x64xf32>
    %c0_200 = arith.constant 0 : index
    %c1664 = arith.constant 1664 : index
    %157 = vector.load %arg14[%c0_200, %c1664] : memref<1x3136xf32, #tpu.memory_space<vmem>>, vector<1x64xf32>
    tpu.vector_store %arg14[%c0_200, %c1664], %156 {strides = array<i32>} : memref<1x3136xf32, #tpu.memory_space<vmem>>, vector<1x64xf32>,
    %c30 = arith.constant 30 : index
    %c0_201 = arith.constant 0 : index
    %158 = vector.load %arg13[%c30, %c0_201] : memref<56x64xf32, #tpu.memory_space<vmem>>, vector<1x64xf32>
    %c0_202 = arith.constant 0 : index
    %c1728 = arith.constant 1728 : index
    %159 = vector.load %arg14[%c0_202, %c1728] : memref<1x3136xf32, #tpu.memory_space<vmem>>, vector<1x64xf32>
    tpu.vector_store %arg14[%c0_202, %c1728], %158 {strides = array<i32>} : memref<1x3136xf32, #tpu.memory_space<vmem>>, vector<1x64xf32>,
    %c32_203 = arith.constant 32 : index
    %c0_204 = arith.constant 0 : index
    %160 = vector.load %arg13[%c32_203, %c0_204] : memref<56x64xf32, #tpu.memory_space<vmem>>, vector<1x64xf32>
    %c0_205 = arith.constant 0 : index
    %c1792 = arith.constant 1792 : index
    %161 = vector.load %arg14[%c0_205, %c1792] : memref<1x3136xf32, #tpu.memory_space<vmem>>, vector<1x64xf32>
    tpu.vector_store %arg14[%c0_205, %c1792], %160 {strides = array<i32>} : memref<1x3136xf32, #tpu.memory_space<vmem>>, vector<1x64xf32>,
    %c33 = arith.constant 33 : index
    %c0_206 = arith.constant 0 : index
    %162 = vector.load %arg13[%c33, %c0_206] : memref<56x64xf32, #tpu.memory_space<vmem>>, vector<1x64xf32>
    %c0_207 = arith.constant 0 : index
    %c1856 = arith.constant 1856 : index
    %163 = vector.load %arg14[%c0_207, %c1856] : memref<1x3136xf32, #tpu.memory_space<vmem>>, vector<1x64xf32>
    tpu.vector_store %arg14[%c0_207, %c1856], %162 {strides = array<i32>} : memref<1x3136xf32, #tpu.memory_space<vmem>>, vector<1x64xf32>,
    %c34 = arith.constant 34 : index
    %c0_208 = arith.constant 0 : index
    %164 = vector.load %arg13[%c34, %c0_208] : memref<56x64xf32, #tpu.memory_space<vmem>>, vector<1x64xf32>
    %c0_209 = arith.constant 0 : index
    %c1920 = arith.constant 1920 : index
    %165 = vector.load %arg14[%c0_209, %c1920] : memref<1x3136xf32, #tpu.memory_space<vmem>>, vector<1x64xf32>
    tpu.vector_store %arg14[%c0_209, %c1920], %164 {strides = array<i32>} : memref<1x3136xf32, #tpu.memory_space<vmem>>, vector<1x64xf32>,
    %c35 = arith.constant 35 : index
    %c0_210 = arith.constant 0 : index
    %166 = vector.load %arg13[%c35, %c0_210] : memref<56x64xf32, #tpu.memory_space<vmem>>, vector<1x64xf32>
    %c0_211 = arith.constant 0 : index
    %c1984 = arith.constant 1984 : index
    %167 = vector.load %arg14[%c0_211, %c1984] : memref<1x3136xf32, #tpu.memory_space<vmem>>, vector<1x64xf32>
    tpu.vector_store %arg14[%c0_211, %c1984], %166 {strides = array<i32>} : memref<1x3136xf32, #tpu.memory_space<vmem>>, vector<1x64xf32>,
    %c36 = arith.constant 36 : index
    %c0_212 = arith.constant 0 : index
    %168 = vector.load %arg13[%c36, %c0_212] : memref<56x64xf32, #tpu.memory_space<vmem>>, vector<1x64xf32>
    %c0_213 = arith.constant 0 : index
    %c2048 = arith.constant 2048 : index
    %169 = vector.load %arg14[%c0_213, %c2048] : memref<1x3136xf32, #tpu.memory_space<vmem>>, vector<1x64xf32>
    tpu.vector_store %arg14[%c0_213, %c2048], %168 {strides = array<i32>} : memref<1x3136xf32, #tpu.memory_space<vmem>>, vector<1x64xf32>,
    %c37 = arith.constant 37 : index
    %c0_214 = arith.constant 0 : index
    %170 = vector.load %arg13[%c37, %c0_214] : memref<56x64xf32, #tpu.memory_space<vmem>>, vector<1x64xf32>
    %c0_215 = arith.constant 0 : index
    %c2112 = arith.constant 2112 : index
    %171 = vector.load %arg14[%c0_215, %c2112] : memref<1x3136xf32, #tpu.memory_space<vmem>>, vector<1x64xf32>
    tpu.vector_store %arg14[%c0_215, %c2112], %170 {strides = array<i32>} : memref<1x3136xf32, #tpu.memory_space<vmem>>, vector<1x64xf32>,
    %c38 = arith.constant 38 : index
    %c0_216 = arith.constant 0 : index
    %172 = vector.load %arg13[%c38, %c0_216] : memref<56x64xf32, #tpu.memory_space<vmem>>, vector<1x64xf32>
    %c0_217 = arith.constant 0 : index
    %c2176 = arith.constant 2176 : index
    %173 = vector.load %arg14[%c0_217, %c2176] : memref<1x3136xf32, #tpu.memory_space<vmem>>, vector<1x64xf32>
    tpu.vector_store %arg14[%c0_217, %c2176], %172 {strides = array<i32>} : memref<1x3136xf32, #tpu.memory_space<vmem>>, vector<1x64xf32>,
    %c40 = arith.constant 40 : index
    %c0_218 = arith.constant 0 : index
    %174 = vector.load %arg13[%c40, %c0_218] : memref<56x64xf32, #tpu.memory_space<vmem>>, vector<1x64xf32>
    %c0_219 = arith.constant 0 : index
    %c2240 = arith.constant 2240 : index
    %175 = vector.load %arg14[%c0_219, %c2240] : memref<1x3136xf32, #tpu.memory_space<vmem>>, vector<1x64xf32>
    tpu.vector_store %arg14[%c0_219, %c2240], %174 {strides = array<i32>} : memref<1x3136xf32, #tpu.memory_space<vmem>>, vector<1x64xf32>,
    %c41 = arith.constant 41 : index
    %c0_220 = arith.constant 0 : index
    %176 = vector.load %arg13[%c41, %c0_220] : memref<56x64xf32, #tpu.memory_space<vmem>>, vector<1x64xf32>
    %c0_221 = arith.constant 0 : index
    %c2304 = arith.constant 2304 : index
    %177 = vector.load %arg14[%c0_221, %c2304] : memref<1x3136xf32, #tpu.memory_space<vmem>>, vector<1x64xf32>
    tpu.vector_store %arg14[%c0_221, %c2304], %176 {strides = array<i32>} : memref<1x3136xf32, #tpu.memory_space<vmem>>, vector<1x64xf32>,
    %c42 = arith.constant 42 : index
    %c0_222 = arith.constant 0 : index
    %178 = vector.load %arg13[%c42, %c0_222] : memref<56x64xf32, #tpu.memory_space<vmem>>, vector<1x64xf32>
    %c0_223 = arith.constant 0 : index
    %c2368 = arith.constant 2368 : index
    %179 = vector.load %arg14[%c0_223, %c2368] : memref<1x3136xf32, #tpu.memory_space<vmem>>, vector<1x64xf32>
    tpu.vector_store %arg14[%c0_223, %c2368], %178 {strides = array<i32>} : memref<1x3136xf32, #tpu.memory_space<vmem>>, vector<1x64xf32>,
    %c43 = arith.constant 43 : index
    %c0_224 = arith.constant 0 : index
    %180 = vector.load %arg13[%c43, %c0_224] : memref<56x64xf32, #tpu.memory_space<vmem>>, vector<1x64xf32>
    %c0_225 = arith.constant 0 : index
    %c2432 = arith.constant 2432 : index
    %181 = vector.load %arg14[%c0_225, %c2432] : memref<1x3136xf32, #tpu.memory_space<vmem>>, vector<1x64xf32>
    tpu.vector_store %arg14[%c0_225, %c2432], %180 {strides = array<i32>} : memref<1x3136xf32, #tpu.memory_space<vmem>>, vector<1x64xf32>,
    %c44 = arith.constant 44 : index
    %c0_226 = arith.constant 0 : index
    %182 = vector.load %arg13[%c44, %c0_226] : memref<56x64xf32, #tpu.memory_space<vmem>>, vector<1x64xf32>
    %c0_227 = arith.constant 0 : index
    %c2496 = arith.constant 2496 : index
    %183 = vector.load %arg14[%c0_227, %c2496] : memref<1x3136xf32, #tpu.memory_space<vmem>>, vector<1x64xf32>
    tpu.vector_store %arg14[%c0_227, %c2496], %182 {strides = array<i32>} : memref<1x3136xf32, #tpu.memory_space<vmem>>, vector<1x64xf32>,
    %c45 = arith.constant 45 : index
    %c0_228 = arith.constant 0 : index
    %184 = vector.load %arg13[%c45, %c0_228] : memref<56x64xf32, #tpu.memory_space<vmem>>, vector<1x64xf32>
    %c0_229 = arith.constant 0 : index
    %c2560 = arith.constant 2560 : index
    %185 = vector.load %arg14[%c0_229, %c2560] : memref<1x3136xf32, #tpu.memory_space<vmem>>, vector<1x64xf32>
    tpu.vector_store %arg14[%c0_229, %c2560], %184 {strides = array<i32>} : memref<1x3136xf32, #tpu.memory_space<vmem>>, vector<1x64xf32>,
    %c46 = arith.constant 46 : index
    %c0_230 = arith.constant 0 : index
    %186 = vector.load %arg13[%c46, %c0_230] : memref<56x64xf32, #tpu.memory_space<vmem>>, vector<1x64xf32>
    %c0_231 = arith.constant 0 : index
    %c2624 = arith.constant 2624 : index
    %187 = vector.load %arg14[%c0_231, %c2624] : memref<1x3136xf32, #tpu.memory_space<vmem>>, vector<1x64xf32>
    tpu.vector_store %arg14[%c0_231, %c2624], %186 {strides = array<i32>} : memref<1x3136xf32, #tpu.memory_space<vmem>>, vector<1x64xf32>,
    %c48 = arith.constant 48 : index
    %c0_232 = arith.constant 0 : index
    %188 = vector.load %arg13[%c48, %c0_232] : memref<56x64xf32, #tpu.memory_space<vmem>>, vector<1x64xf32>
    %c0_233 = arith.constant 0 : index
    %c2688 = arith.constant 2688 : index
    %189 = vector.load %arg14[%c0_233, %c2688] : memref<1x3136xf32, #tpu.memory_space<vmem>>, vector<1x64xf32>
    tpu.vector_store %arg14[%c0_233, %c2688], %188 {strides = array<i32>} : memref<1x3136xf32, #tpu.memory_space<vmem>>, vector<1x64xf32>,
    %c49 = arith.constant 49 : index
    %c0_234 = arith.constant 0 : index
    %190 = vector.load %arg13[%c49, %c0_234] : memref<56x64xf32, #tpu.memory_space<vmem>>, vector<1x64xf32>
    %c0_235 = arith.constant 0 : index
    %c2752 = arith.constant 2752 : index
    %191 = vector.load %arg14[%c0_235, %c2752] : memref<1x3136xf32, #tpu.memory_space<vmem>>, vector<1x64xf32>
    tpu.vector_store %arg14[%c0_235, %c2752], %190 {strides = array<i32>} : memref<1x3136xf32, #tpu.memory_space<vmem>>, vector<1x64xf32>,
    %c50 = arith.constant 50 : index
    %c0_236 = arith.constant 0 : index
    %192 = vector.load %arg13[%c50, %c0_236] : memref<56x64xf32, #tpu.memory_space<vmem>>, vector<1x64xf32>
    %c0_237 = arith.constant 0 : index
    %c2816 = arith.constant 2816 : index
    %193 = vector.load %arg14[%c0_237, %c2816] : memref<1x3136xf32, #tpu.memory_space<vmem>>, vector<1x64xf32>
    tpu.vector_store %arg14[%c0_237, %c2816], %192 {strides = array<i32>} : memref<1x3136xf32, #tpu.memory_space<vmem>>, vector<1x64xf32>,
    %c51 = arith.constant 51 : index
    %c0_238 = arith.constant 0 : index
    %194 = vector.load %arg13[%c51, %c0_238] : memref<56x64xf32, #tpu.memory_space<vmem>>, vector<1x64xf32>
    %c0_239 = arith.constant 0 : index
    %c2880 = arith.constant 2880 : index
    %195 = vector.load %arg14[%c0_239, %c2880] : memref<1x3136xf32, #tpu.memory_space<vmem>>, vector<1x64xf32>
    tpu.vector_store %arg14[%c0_239, %c2880], %194 {strides = array<i32>} : memref<1x3136xf32, #tpu.memory_space<vmem>>, vector<1x64xf32>,
    %c52 = arith.constant 52 : index
    %c0_240 = arith.constant 0 : index
    %196 = vector.load %arg13[%c52, %c0_240] : memref<56x64xf32, #tpu.memory_space<vmem>>, vector<1x64xf32>
    %c0_241 = arith.constant 0 : index
    %c2944 = arith.constant 2944 : index
    %197 = vector.load %arg14[%c0_241, %c2944] : memref<1x3136xf32, #tpu.memory_space<vmem>>, vector<1x64xf32>
    tpu.vector_store %arg14[%c0_241, %c2944], %196 {strides = array<i32>} : memref<1x3136xf32, #tpu.memory_space<vmem>>, vector<1x64xf32>,
    %c53 = arith.constant 53 : index
    %c0_242 = arith.constant 0 : index
    %198 = vector.load %arg13[%c53, %c0_242] : memref<56x64xf32, #tpu.memory_space<vmem>>, vector<1x64xf32>
    %c0_243 = arith.constant 0 : index
    %c3008 = arith.constant 3008 : index
    %199 = vector.load %arg14[%c0_243, %c3008] : memref<1x3136xf32, #tpu.memory_space<vmem>>, vector<1x64xf32>
    tpu.vector_store %arg14[%c0_243, %c3008], %198 {strides = array<i32>} : memref<1x3136xf32, #tpu.memory_space<vmem>>, vector<1x64xf32>,
    %c54 = arith.constant 54 : index
    %c0_244 = arith.constant 0 : index
    %200 = vector.load %arg13[%c54, %c0_244] : memref<56x64xf32, #tpu.memory_space<vmem>>, vector<1x64xf32>
    %c0_245 = arith.constant 0 : index
    %c3072 = arith.constant 3072 : index
    %201 = vector.load %arg14[%c0_245, %c3072] : memref<1x3136xf32, #tpu.memory_space<vmem>>, vector<1x64xf32>
    tpu.vector_store %arg14[%c0_245, %c3072], %200 {strides = array<i32>} : memref<1x3136xf32, #tpu.memory_space<vmem>>, vector<1x64xf32>,
    tpu.wait_dma2 semaphore(%arg16 : memref<!tpu.dma_semaphore, #tpu.memory_space<semaphore_mem>>) src(%arg6 : memref<3136x128xbf16, #tpu.memory_space<any>>) dst(%arg15 : memref<3136x128xbf16, #tpu.memory_space<vmem>>)
    %c0_246 = arith.constant 0 : index
    %c0_247 = arith.constant 0 : index
    %202 = vector.load %arg14[%c0_246, %c0_247] : memref<1x3136xf32, #tpu.memory_space<vmem>>, vector<1x3136xf32>
    %203 = arith.truncf %202 : vector<1x3136xf32> to vector<1x3136xbf16>
    %c0_248 = arith.constant 0 : index
    %c0_249 = arith.constant 0 : index
    %204 = vector.load %arg15[%c0_248, %c0_249] : memref<3136x128xbf16, #tpu.memory_space<vmem>>, vector<3136x128xbf16>
    %cst_250 = arith.constant dense<0.000000e+00> : vector<1x128xf32>
    %205 = tpu.matmul %203, %204, %cst_250 {dimension_numbers = #tpu.dot_dimension_numbers<[1], [0], [0], [1], [0, 0, 1, 1], [], []>} : vector<1x3136xbf16>, vector<3136x128xbf16>, vector<1x128xf32> -> vector<1x128xf32>
    %c0_251 = arith.constant 0 : index
    %c0_252 = arith.constant 0 : index
    %206 = vector.load %arg7[%c0_251, %c0_252] : memref<1x128xf32, #tpu.memory_space<vmem>>, vector<1x128xf32>
    %207 = arith.addf %205, %206 : vector<1x128xf32>
    %cst_253 = arith.constant 0.000000e+00 : f32
    %208 = vector.broadcast %cst_253 : f32 to vector<1x128xf32>
    %209 = arith.maximumf %207, %208 : vector<1x128xf32>
    %c0_254 = arith.constant 0 : index
    %c0_255 = arith.constant 0 : index
    %210 = vector.load %arg8[%c0_254, %c0_255] : memref<128x10xf32, #tpu.memory_space<vmem>>, vector<128x10xf32>
    %cst_256 = arith.constant dense<0.000000e+00> : vector<1x10xf32>
    %211 = tpu.matmul %209, %210, %cst_256 {dimension_numbers = #tpu.dot_dimension_numbers<[1], [0], [0], [1], [0, 0, 1, 1], [], []>} : vector<1x128xf32>, vector<128x10xf32>, vector<1x10xf32> -> vector<1x10xf32>
    %c0_257 = arith.constant 0 : index
    %c0_258 = arith.constant 0 : index
    %212 = vector.load %arg9[%c0_257, %c0_258] : memref<1x10xf32, #tpu.memory_space<vmem>>, vector<1x10xf32>
    %213 = arith.addf %211, %212 : vector<1x10xf32>
    %c0_259 = arith.constant 0 : index
    %c0_260 = arith.constant 0 : index
    %c0_261 = arith.constant 0 : index
    %214 = vector.load %arg10[%c0_259, %c0_260, %c0_261] : memref<1x1x10xf32, #tpu.memory_space<vmem>>, vector<1x1x10xf32>
    %215 = vector.shape_cast %214 : vector<1x1x10xf32> to vector<1x10xf32>
    %216 = vector.shape_cast %213 : vector<1x10xf32> to vector<1x1x10xf32>
    tpu.vector_store %arg10[%c0_259, %c0_260, %c0_261], %216 {strides = array<i32>} : memref<1x1x10xf32, #tpu.memory_space<vmem>>, vector<1x1x10xf32>,
    return
  }
  func.func @transform_0(%arg0: i32) -> (i32, i32, i32) {
    %c0_i32 = arith.constant 0 : i32
    %c0_i32_0 = arith.constant 0 : i32
    %c0_i32_1 = arith.constant 0 : i32
    return %arg0, %c0_i32, %c0_i32_0 : i32, i32, i32
  }
  func.func @transform_1(%arg0: i32) -> (i32, i32) {
    %c0_i32 = arith.constant 0 : i32
    %c0_i32_0 = arith.constant 0 : i32
    %c0_i32_1 = arith.constant 0 : i32
    return %c0_i32, %c0_i32_0 : i32, i32
  }
  func.func @transform_2(%arg0: i32) -> (i32, i32) {
    %c0_i32 = arith.constant 0 : i32
    %c0_i32_0 = arith.constant 0 : i32
    %c0_i32_1 = arith.constant 0 : i32
    return %c0_i32, %c0_i32_0 : i32, i32
  }
  func.func @transform_3(%arg0: i32) -> (i32, i32) {
    %c0_i32 = arith.constant 0 : i32
    %c0_i32_0 = arith.constant 0 : i32
    %c0_i32_1 = arith.constant 0 : i32
    return %c0_i32, %c0_i32_0 : i32, i32
  }
  func.func @transform_4(%arg0: i32) -> (i32, i32) {
    %c0_i32 = arith.constant 0 : i32
    %c0_i32_0 = arith.constant 0 : i32
    %c0_i32_1 = arith.constant 0 : i32
    return %c0_i32, %c0_i32_0 : i32, i32
  }
  func.func @transform_6(%arg0: i32) -> (i32, i32) {
    %c0_i32 = arith.constant 0 : i32
    %c0_i32_0 = arith.constant 0 : i32
    %c0_i32_1 = arith.constant 0 : i32
    return %c0_i32, %c0_i32_0 : i32, i32
  }
  func.func @transform_7(%arg0: i32) -> (i32, i32) {
    %c0_i32 = arith.constant 0 : i32
    %c0_i32_0 = arith.constant 0 : i32
    %c0_i32_1 = arith.constant 0 : i32
    return %c0_i32, %c0_i32_0 : i32, i32
  }
  func.func @transform_8(%arg0: i32) -> (i32, i32) {
    %c0_i32 = arith.constant 0 : i32
    %c0_i32_0 = arith.constant 0 : i32
    %c0_i32_1 = arith.constant 0 : i32
    return %c0_i32, %c0_i32_0 : i32, i32
  }
  func.func @transform_9(%arg0: i32) -> (i32, i32, i32) {
    %c0_i32 = arith.constant 0 : i32
    %c0_i32_0 = arith.constant 0 : i32
    %c0_i32_1 = arith.constant 0 : i32
    return %arg0, %c0_i32, %c0_i32_0 : i32, i32, i32
  }
}

</mosaic_0001>

<llo_original>
// kernel: cnn_forward.1
$region0: #{cnn_forward.1}
  #allocation0 [shape = 'u32[]', space=smem, size = 0x4, offset = 0x4, fixed_abs, tag = 'smem constant byte address 0x4 - core index']
  #allocation1 [shape = 'u32[144,128]{1,0:T(1,128)}', space=vmem, size = 0x12000, scoped, tag = 'internal scratch']
  #allocation2 [shape = 'f32[320,32]{1,0:T(8,128)}', space=vmem, size = 0x28000, scoped, tag = 'scratch operand']
  #allocation3 [shape = 'f32[224,288]{1,0:T(8,128)}', space=vmem, size = 0x54000, scoped, tag = 'scratch operand']
  #allocation4 [shape = 'f32[56,64]{1,0:T(8,128)}', space=vmem, size = 0x7000, scoped, tag = 'scratch operand']
  #allocation5 [shape = 'f32[1,3136]{1,0:T(1,128)}', space=vmem, size = 0x3200, scoped, tag = 'scratch operand']
  #allocation6 [shape = 'bf16[3136,128]{1,0:T(8,128)(2,1)}', space=vmem, size = 0xc4000, scoped, tag = 'scratch operand']
  #allocation7 [shape = 's32[1]{0}', space=sflag, size = 0x4, scoped, tag = 'scratch operand']
  #allocation10 [shape = 's32[]', space=sflag, size = 0x4, offset = 0, fixed_abs, tag = 'sflag constant byte address 0x0 - dummy sync flag']
  %s0 = inlined_call_operand.vmem [shape: f32[2,320,16], index: 0, kind: input, shape index: {}]
  %s1 = inlined_call_operand.vmem [shape: f32[320,32], index: 1, kind: input, shape index: {}]
  %s2 = inlined_call_operand.vmem [shape: f32[16,128], index: 2, kind: input, shape index: {}]
  %s3 = inlined_call_operand.vmem [shape: f32[288,64], index: 3, kind: input, shape index: {}]
  %s4 = inlined_call_operand.vmem [shape: f32[1,64], index: 4, kind: input, shape index: {}]
  %s5 = inlined_call_operand.vmem [shape: bf16[3136,128], index: 5, kind: input, shape index: {}]
  %s6 = inlined_call_operand.vmem [shape: f32[1,128], index: 6, kind: input, shape index: {}]
  %s7 = inlined_call_operand.vmem [shape: f32[128,10], index: 7, kind: input, shape index: {}]
  %s8 = inlined_call_operand.vmem [shape: f32[1,10], index: 8, kind: input, shape index: {}]
  %s9 = inlined_call_operand.hbm [shape: f32[2,1,10], index: 9, kind: output, shape index: {}]
  %s10 = sld [smem:[#allocation0]]
  $region99: #{cnn_forward.1} parent=0
    _
  %s12 = ssub.s32 1, %s10
  %s13 = scalar_select 0, %s12, %s10
  $region1: #{cnn_forward.1} parent=0
    #allocation8 [shape = 'u8[1024]{0}', space=vmem, size = 0x400, scoped, tag = 'output window, operand 0']
    #allocation9 [shape = 's32[2]{0}', space=sflag, size = 0x8, scoped, tag = 'scoped memory for cnn_forward.1']
    %14 = vsyncpa [#allocation9], 0
    %s15 = scalar_lea.sflag [#allocation9], 1
    %16 = vsyncpa %s15, 0
    loop: start=0, step=1, limit=4
    $region2: #{cnn_forward.1} parent=1 // loop_pre_header
      _
    $region3: #{cnn_forward.1} parent=1 // loop_header
      %s18 = sphi 0, %s22
      %p19 = scmp.ge.s32.totalorder %s18, 4
      %s28 = sphi 0, %s30
      %s31 = sphi 0, %s28
      %s32 = sphi 0, %s31
      %s48 = sphi 0, %s32
      %s52 = sphi 0, %s52
      %s54 = sphi 0, %s52
      %s55 = sphi 0, %s54
      %s69 = sphi 0, %s55
      %s73 = sphi 0, %s73
      %s75 = sphi 0, %s73
      %s76 = sphi 0, %s75
      %s90 = sphi 0, %s76
      %s94 = sphi 0, %s94
      %s96 = sphi 0, %s94
      %s97 = sphi 0, %s96
      %s111 = sphi 0, %s97
      %s115 = sphi 0, %s115
      %s117 = sphi 0, %s115
      %s118 = sphi 0, %s117
      %s132 = sphi 0, %s118
      %s136 = sphi 0, %s136
      %s138 = sphi 0, %s136
      %s139 = sphi 0, %s138
      %s153 = sphi 0, %s139
      %s157 = sphi 0, %s157
      %s159 = sphi 0, %s157
      %s160 = sphi 0, %s159
      %s174 = sphi 0, %s160
      %s178 = sphi 0, %s178
      %s180 = sphi 0, %s178
      %s181 = sphi 0, %s180
      %s195 = sphi 0, %s181
      %s201 = sphi 0, %s203
      %s204 = sphi 0, %s201
      %s205 = sphi 0, %s204
      %s221 = sphi 0, %s205
    $region4: #{cnn_forward.1} parent=1 // loop_header_branch
      %21 = sbr.rel (%p19) target = $region8
    $region5: #{cnn_forward.1} parent=1 // loop_body
      %s23 = ssub.s32 %s18, 1
      %s24 = ssub.s32 %s18, 2
      %s25 = sadd.s32 %s18, 1
      %s26 = ssub.s32 %s18, %s25
      %p27 = scmp.eq.s32.totalorder %s26, 0
      %s29 = sadd.s32 %s28, 1
      %s30 = scalar_select %p27, %s28, %s29
      %p33 = pneg %p27
      %p34 = scmp.eq.s32.totalorder %s18, 1
      %p35 = por %p33, %p34
      %p36 = scmp.ne.s32.totalorder %s28, %s31
      %p37 = scmp.eq.s32.totalorder %s18, 0
      %p38 = por %p36, %p37
      %p39 = scmp.ne.s32.totalorder %s28, %s31
      %p40 = scmp.eq.s32.totalorder %s23, 1
      %p41 = por %p39, %p40
      %p42 = scmp.ne.s32.totalorder %s31, %s32
      %p43 = scmp.eq.s32.totalorder %s23, 0
      %p44 = por %p42, %p43
      %p45 = scmp.ne.s32.totalorder %s31, %s32
      %p46 = scmp.eq.s32.totalorder %s24, 1
      %p47 = por %p45, %p46
      %p49 = scmp.ne.s32.totalorder %s32, %s48
      %p50 = scmp.eq.s32.totalorder %s24, 0
      %p51 = por %p49, %p50
      %s53 = sadd.s32 %s52, 1
      %p56 = scmp.eq.s32.totalorder %s18, 1
      %p57 = scmp.ne.s32.totalorder %s52, %s54
      %p58 = scmp.eq.s32.totalorder %s18, 0
      %p59 = por %p57, %p58
      %p60 = scmp.ne.s32.totalorder %s52, %s54
      %p61 = scmp.eq.s32.totalorder %s23, 1
      %p62 = por %p60, %p61
      %p63 = scmp.ne.s32.totalorder %s54, %s55
      %p64 = scmp.eq.s32.totalorder %s23, 0
      %p65 = por %p63, %p64
      %p66 = scmp.ne.s32.totalorder %s54, %s55
      %p67 = scmp.eq.s32.totalorder %s24, 1
      %p68 = por %p66, %p67
      %p70 = scmp.ne.s32.totalorder %s55, %s69
      %p71 = scmp.eq.s32.totalorder %s24, 0
      %p72 = por %p70, %p71
      %s74 = sadd.s32 %s73, 1
      %p77 = scmp.eq.s32.totalorder %s18, 1
      %p78 = scmp.ne.s32.totalorder %s73, %s75
      %p79 = scmp.eq.s32.totalorder %s18, 0
      %p80 = por %p78, %p79
      %p81 = scmp.ne.s32.totalorder %s73, %s75
      %p82 = scmp.eq.s32.totalorder %s23, 1
      %p83 = por %p81, %p82
      %p84 = scmp.ne.s32.totalorder %s75, %s76
      %p85 = scmp.eq.s32.totalorder %s23, 0
      %p86 = por %p84, %p85
      %p87 = scmp.ne.s32.totalorder %s75, %s76
      %p88 = scmp.eq.s32.totalorder %s24, 1
      %p89 = por %p87, %p88
      %p91 = scmp.ne.s32.totalorder %s76, %s90
      %p92 = scmp.eq.s32.totalorder %s24, 0
      %p93 = por %p91, %p92
      %s95 = sadd.s32 %s94, 1
      %p98 = scmp.eq.s32.totalorder %s18, 1
      %p99 = scmp.ne.s32.totalorder %s94, %s96
      %p100 = scmp.eq.s32.totalorder %s18, 0
      %p101 = por %p99, %p100
      %p102 = scmp.ne.s32.totalorder %s94, %s96
      %p103 = scmp.eq.s32.totalorder %s23, 1
      %p104 = por %p102, %p103
      %p105 = scmp.ne.s32.totalorder %s96, %s97
      %p106 = scmp.eq.s32.totalorder %s23, 0
      %p107 = por %p105, %p106
      %p108 = scmp.ne.s32.totalorder %s96, %s97
      %p109 = scmp.eq.s32.totalorder %s24, 1
      %p110 = por %p108, %p109
      %p112 = scmp.ne.s32.totalorder %s97, %s111
      %p113 = scmp.eq.s32.totalorder %s24, 0
      %p114 = por %p112, %p113
      %s116 = sadd.s32 %s115, 1
      %p119 = scmp.eq.s32.totalorder %s18, 1
      %p120 = scmp.ne.s32.totalorder %s115, %s117
      %p121 = scmp.eq.s32.totalorder %s18, 0
      %p122 = por %p120, %p121
      %p123 = scmp.ne.s32.totalorder %s115, %s117
      %p124 = scmp.eq.s32.totalorder %s23, 1
      %p125 = por %p123, %p124
      %p126 = scmp.ne.s32.totalorder %s117, %s118
      %p127 = scmp.eq.s32.totalorder %s23, 0
      %p128 = por %p126, %p127
      %p129 = scmp.ne.s32.totalorder %s117, %s118
      %p130 = scmp.eq.s32.totalorder %s24, 1
      %p131 = por %p129, %p130
      %p133 = scmp.ne.s32.totalorder %s118, %s132
      %p134 = scmp.eq.s32.totalorder %s24, 0
      %p135 = por %p133, %p134
      %s137 = sadd.s32 %s136, 1
      %p140 = scmp.eq.s32.totalorder %s18, 1
      %p141 = scmp.ne.s32.totalorder %s136, %s138
      %p142 = scmp.eq.s32.totalorder %s18, 0
      %p143 = por %p141, %p142
      %p144 = scmp.ne.s32.totalorder %s136, %s138
      %p145 = scmp.eq.s32.totalorder %s23, 1
      %p146 = por %p144, %p145
      %p147 = scmp.ne.s32.totalorder %s138, %s139
      %p148 = scmp.eq.s32.totalorder %s23, 0
      %p149 = por %p147, %p148
      %p150 = scmp.ne.s32.totalorder %s138, %s139
      %p151 = scmp.eq.s32.totalorder %s24, 1
      %p152 = por %p150, %p151
      %p154 = scmp.ne.s32.totalorder %s139, %s153
      %p155 = scmp.eq.s32.totalorder %s24, 0
      %p156 = por %p154, %p155
      %s158 = sadd.s32 %s157, 1
      %p161 = scmp.eq.s32.totalorder %s18, 1
      %p162 = scmp.ne.s32.totalorder %s157, %s159
      %p163 = scmp.eq.s32.totalorder %s18, 0
      %p164 = por %p162, %p163
      %p165 = scmp.ne.s32.totalorder %s157, %s159
      %p166 = scmp.eq.s32.totalorder %s23, 1
      %p167 = por %p165, %p166
      %p168 = scmp.ne.s32.totalorder %s159, %s160
      %p169 = scmp.eq.s32.totalorder %s23, 0
      %p170 = por %p168, %p169
      %p171 = scmp.ne.s32.totalorder %s159, %s160
      %p172 = scmp.eq.s32.totalorder %s24, 1
      %p173 = por %p171, %p172
      %p175 = scmp.ne.s32.totalorder %s160, %s174
      %p176 = scmp.eq.s32.totalorder %s24, 0
      %p177 = por %p175, %p176
      %s179 = sadd.s32 %s178, 1
      %p182 = scmp.eq.s32.totalorder %s18, 1
      %p183 = scmp.ne.s32.totalorder %s178, %s180
      %p184 = scmp.eq.s32.totalorder %s18, 0
      %p185 = por %p183, %p184
      %p186 = scmp.ne.s32.totalorder %s178, %s180
      %p187 = scmp.eq.s32.totalorder %s23, 1
      %p188 = por %p186, %p187
      %p189 = scmp.ne.s32.totalorder %s180, %s181
      %p190 = scmp.eq.s32.totalorder %s23, 0
      %p191 = por %p189, %p190
      %p192 = scmp.ne.s32.totalorder %s180, %s181
      %p193 = scmp.eq.s32.totalorder %s24, 1
      %p194 = por %p192, %p193
      %p196 = scmp.ne.s32.totalorder %s181, %s195
      %p197 = scmp.eq.s32.totalorder %s24, 0
      %p198 = por %p196, %p197
      %s199 = ssub.s32 %s18, %s25
      %p200 = scmp.eq.s32.totalorder %s199, 0
      %s202 = sadd.s32 %s201, 1
      %s203 = scalar_select %p200, %s201, %s202
      %p206 = pneg %p200
      %p207 = scmp.eq.s32.totalorder %s18, 1
      %p208 = por %p206, %p207
      %p209 = scmp.ne.s32.totalorder %s201, %s204
      %p210 = scmp.eq.s32.totalorder %s18, 0
      %p211 = por %p209, %p210
      %p212 = scmp.ne.s32.totalorder %s201, %s204
      %p213 = scmp.eq.s32.totalorder %s23, 1
      %p214 = por %p212, %p213
      %p215 = scmp.ne.s32.totalorder %s204, %s205
      %p216 = scmp.eq.s32.totalorder %s23, 0
      %p217 = por %p215, %p216
      %p218 = scmp.ne.s32.totalorder %s204, %s205
      %p219 = scmp.eq.s32.totalorder %s24, 1
      %p220 = por %p218, %p219
      %p222 = scmp.ne.s32.totalorder %s205, %s221
      %p223 = scmp.eq.s32.totalorder %s24, 0
      %p224 = por %p222, %p223
      %p225 = scmp.le.s32.totalorder 1, %s18
      %p226 = scmp.lt.s32.totalorder %s18, 3
      %p227 = pnand %p225, %p226
      %p228 = pneg %p227
      // Predicated region
      $region9: #{cnn_forward.1} parent=5 // pred_check
        _
      $region10: #{cnn_forward.1} parent=5 // pred_check_branch
        %230 = sbr.rel (%p227) target = $region12
      $region11: #{cnn_forward.1} parent=5 // pred_region
        %s231 = ssub.s32 %s18, 1
        // Predicated region
        $region13: #{cnn_forward.1} parent=11 // pred_check
          %p232 = pneg %p65
        $region14: #{cnn_forward.1} parent=11 // pred_check_branch
          %234 = sbr.rel (%p232) target = $region16
        $region15: #{cnn_forward.1} parent=11 // pred_region
          _
        $region16: #{cnn_forward.1} parent=11 // pred_fallthru
          _
        // Predicated region
        $region17: #{cnn_forward.1} parent=11 // pred_check
          %p235 = pneg %p86
        $region18: #{cnn_forward.1} parent=11 // pred_check_branch
          %237 = sbr.rel (%p235) target = $region20
        $region19: #{cnn_forward.1} parent=11 // pred_region
          _
        $region20: #{cnn_forward.1} parent=11 // pred_fallthru
          _
        // Predicated region
        $region21: #{cnn_forward.1} parent=11 // pred_check
          %p238 = pneg %p107
        $region22: #{cnn_forward.1} parent=11 // pred_check_branch
          %240 = sbr.rel (%p238) target = $region24
        $region23: #{cnn_forward.1} parent=11 // pred_region
          _
        $region24: #{cnn_forward.1} parent=11 // pred_fallthru
          _
        // Predicated region
        $region25: #{cnn_forward.1} parent=11 // pred_check
          %p241 = pneg %p128
        $region26: #{cnn_forward.1} parent=11 // pred_check_branch
          %243 = sbr.rel (%p241) target = $region28
        $region27: #{cnn_forward.1} parent=11 // pred_region
          _
        $region28: #{cnn_forward.1} parent=11 // pred_fallthru
          _
        // Predicated region
        $region29: #{cnn_forward.1} parent=11 // pred_check
          %p244 = pneg %p149
        $region30: #{cnn_forward.1} parent=11 // pred_check_branch
          %246 = sbr.rel (%p244) target = $region32
        $region31: #{cnn_forward.1} parent=11 // pred_region
          _
        $region32: #{cnn_forward.1} parent=11 // pred_fallthru
          _
        // Predicated region
        $region33: #{cnn_forward.1} parent=11 // pred_check
          %p247 = pneg %p170
        $region34: #{cnn_forward.1} parent=11 // pred_check_branch
          %249 = sbr.rel (%p247) target = $region36
        $region35: #{cnn_forward.1} parent=11 // pred_region
          _
        $region36: #{cnn_forward.1} parent=11 // pred_fallthru
          _
        // Predicated region
        $region37: #{cnn_forward.1} parent=11 // pred_check
          %p250 = pneg %p191
        $region38: #{cnn_forward.1} parent=11 // pred_check_branch
          %252 = sbr.rel (%p250) target = $region40
        $region39: #{cnn_forward.1} parent=11 // pred_region
          _
        $region40: #{cnn_forward.1} parent=11 // pred_fallthru
          _
      $region12: #{cnn_forward.1} parent=5 // pred_fallthru
        _
      %p253 = scmp.lt.s32.totalorder %s18, 2
      // Predicated region
      $region41: #{cnn_forward.1} parent=5 // pred_check
        %p254 = pneg %p253
      $region42: #{cnn_forward.1} parent=5 // pred_check_branch
        %256 = sbr.rel (%p254) target = $region44
      $region43: #{cnn_forward.1} parent=5 // pred_region
        // Predicated region
        $region45: #{cnn_forward.1} parent=43 // pred_check
          %p257 = pneg %p38
        $region46: #{cnn_forward.1} parent=43 // pred_check_branch
          %259 = sbr.rel (%p257) target = $region48
        $region47: #{cnn_forward.1} parent=43 // pred_region
          %p260 = scmp.lt.s32.totalorder %s18, 1
          %s261 = scalar_select %p260, %s18, 1
          %s262 = smul.addr %s261, 40
          %s263 = smul.addr %s262, 8
          %s264 = scalar_lea.vmem %s0, %s263
        $region48: #{cnn_forward.1} parent=43 // pred_fallthru
          _
      $region44: #{cnn_forward.1} parent=5 // pred_fallthru
        _
      %p265 = scmp.le.s32.totalorder 1, %s18
      %p266 = scmp.lt.s32.totalorder %s18, 3
      %p267 = pnand %p265, %p266
      %p268 = pneg %p267
      // Predicated region
      $region49: #{cnn_forward.1} parent=5 // pred_check
        _
      $region50: #{cnn_forward.1} parent=5 // pred_check_branch
        %270 = sbr.rel (%p267) target = $region52
      $region51: #{cnn_forward.1} parent=5 // pred_region
        %s271 = ssub.s32 %s18, 1
        %p272 = scmp.lt.s32.totalorder %s23, 1
        %s273 = scalar_select %p272, %s23, 1
        %s274 = smul.addr %s273, 40
        %s275 = smul.addr %s274, 8
        %s276 = scalar_lea.vmem %s0, %s275
        %p277 = pneg %p44
        %p278 = pneg %p41
        %p279 = pneg %p65
        %p280 = pneg %p62
        %p281 = pneg %p86
        %p282 = pneg %p83
        %p283 = pneg %p107
        %p284 = pneg %p104
        %p285 = pneg %p128
        %p286 = pneg %p125
        %p287 = pneg %p149
        %p288 = pneg %p146
        %p289 = pneg %p170
        %p290 = pneg %p167
        %p291 = pneg %p191
        %p292 = pneg %p188
        %p293 = pneg %p217
        %p294 = pneg %p214
        %s295 = sand.u32 %s204, 1
        %s296 = scalar_lea.sflag [#allocation9], %s295
        %s297 = sand.u32 %s204, 1
        %s298 = scalar_lea.vmem [#allocation8], %s297
        %p299 = scmp.lt.s32.totalorder %s23, 1
        %s300 = scalar_select %p299, %s23, 1
        %s301 = smul.addr %s300, 40
        %s302 = smul.addr %s301, 8
        %s303 = scalar_lea.vmem %s0, %s302
        %p306 = scmp.lt.u32.totalorder 1568, 8
        %p307 = pneg %p306
        // Predicated region
        $region53: #{cnn_forward.1} parent=51 // pred_check
          _
        $region54: #{cnn_forward.1} parent=51 // pred_check_branch
          %309 = sbr.rel (%p306) target = $region56
        $region55: #{cnn_forward.1} parent=51 // pred_region
          %s325 = sand.u32 1568, 7
          %p326 = scmp.eq.s32.totalorder %s325, 0
          // Predicated region
          $region68: #{cnn_forward.1} parent=55 // pred_check
            %p327 = pneg %p326
          $region69: #{cnn_forward.1} parent=55 // pred_check_branch
            %329 = sbr.rel (%p327) target = $region71
          $region70: #{cnn_forward.1} parent=55 // pred_region
            loop: start=0, step=1, limit=1
            $region72: #{cnn_forward.1} parent=70 // loop_pre_header
              _
            $region73: #{cnn_forward.1} parent=70 // loop_header
              %s331 = sphi 0, %s335
              %p332 = scmp.ge.s32.totalorder %s331, 1
              %s336 = sphi %s5, %s5
              %s337 = sphi [#allocation6], [#allocation6]
            $region74: #{cnn_forward.1} parent=70 // loop_header_branch
              %334 = sbr.rel (%p332) target = $region78
            $region75: #{cnn_forward.1} parent=70 // loop_body
              %v338 = vld [vmem:[%s336] sm:$0xff]
              %339 = vst [vmem:[%s337] sm:$0xff] %v338
              %v340 = vld [vmem:[%s336 + $0x8] sm:$0xff]
              %341 = vst [vmem:[%s337 + $0x8] sm:$0xff] %v340
              %v342 = vld [vmem:[%s336 + $0x10] sm:$0xff]
              %343 = vst [vmem:[%s337 + $0x10] sm:$0xff] %v342
              %v344 = vld [vmem:[%s336 + $0x18] sm:$0xff]
              %345 = vst [vmem:[%s337 + $0x18] sm:$0xff] %v344
              %v346 = vld [vmem:[%s336 + $0x20] sm:$0xff]
              %347 = vst [vmem:[%s337 + $0x20] sm:$0xff] %v346
              %v348 = vld [vmem:[%s336 + $0x28] sm:$0xff]
              %349 = vst [vmem:[%s337 + $0x28] sm:$0xff] %v348
              %v350 = vld [vmem:[%s336 + $0x30] sm:$0xff]
              %351 = vst [vmem:[%s337 + $0x30] sm:$0xff] %v350
              %v352 = vld [vmem:[%s336 + $0x38] sm:$0xff]
              %353 = vst [vmem:[%s337 + $0x38] sm:$0xff] %v352
              %v354 = vld [vmem:[%s336 + $0x40] sm:$0xff]
              %355 = vst [vmem:[%s337 + $0x40] sm:$0xff] %v354
              %v356 = vld [vmem:[%s336 + $0x48] sm:$0xff]
              %357 = vst [vmem:[%s337 + $0x48] sm:$0xff] %v356
              %v358 = vld [vmem:[%s336 + $0x50] sm:$0xff]
              %359 = vst [vmem:[%s337 + $0x50] sm:$0xff] %v358
              %v360 = vld [vmem:[%s336 + $0x58] sm:$0xff]
              %361 = vst [vmem:[%s337 + $0x58] sm:$0xff] %v360
              %v362 = vld [vmem:[%s336 + $0x60] sm:$0xff]
              %363 = vst [vmem:[%s337 + $0x60] sm:$0xff] %v362
              %v364 = vld [vmem:[%s336 + $0x68] sm:$0xff]
              %365 = vst [vmem:[%s337 + $0x68] sm:$0xff] %v364
              %v366 = vld [vmem:[%s336 + $0x70] sm:$0xff]
              %367 = vst [vmem:[%s337 + $0x70] sm:$0xff] %v366
              %v368 = vld [vmem:[%s336 + $0x78] sm:$0xff]
              %369 = vst [vmem:[%s337 + $0x78] sm:$0xff] %v368
              %v370 = vld [vmem:[%s336 + $0x80] sm:$0xff]
              %371 = vst [vmem:[%s337 + $0x80] sm:$0xff] %v370
              %v372 = vld [vmem:[%s336 + $0x88] sm:$0xff]
              %373 = vst [vmem:[%s337 + $0x88] sm:$0xff] %v372
              %v374 = vld [vmem:[%s336 + $0x90] sm:$0xff]
              %375 = vst [vmem:[%s337 + $0x90] sm:$0xff] %v374
              %v376 = vld [vmem:[%s336 + $0x98] sm:$0xff]
              %377 = vst [vmem:[%s337 + $0x98] sm:$0xff] %v376
              %v378 = vld [vmem:[%s336 + $0xa0] sm:$0xff]
              %379 = vst [vmem:[%s337 + $0xa0] sm:$0xff] %v378
              %v380 = vld [vmem:[%s336 + $0xa8] sm:$0xff]
              %381 = vst [vmem:[%s337 + $0xa8] sm:$0xff] %v380
              %v382 = vld [vmem:[%s336 + $0xb0] sm:$0xff]
              %383 = vst [vmem:[%s337 + $0xb0] sm:$0xff] %v382
              %v384 = vld [vmem:[%s336 + $0xb8] sm:$0xff]
              %385 = vst [vmem:[%s337 + $0xb8] sm:$0xff] %v384
              %v386 = vld [vmem:[%s336 + $0xc0] sm:$0xff]
              %387 = vst [vmem:[%s337 + $0xc0] sm:$0xff] %v386
              %v388 = vld [vmem:[%s336 + $0xc8] sm:$0xff]
              %389 = vst [vmem:[%s337 + $0xc8] sm:$0xff] %v388
              %v390 = vld [vmem:[%s336 + $0xd0] sm:$0xff]
              %391 = vst [vmem:[%s337 + $0xd0] sm:$0xff] %v390
              %v392 = vld [vmem:[%s336 + $0xd8] sm:$0xff]
              %393 = vst [vmem:[%s337 + $0xd8] sm:$0xff] %v392
              %v394 = vld [vmem:[%s336 + $0xe0] sm:$0xff]
              %395 = vst [vmem:[%s337 + $0xe0] sm:$0xff] %v394
              %v396 = vld [vmem:[%s336 + $0xe8] sm:$0xff]
              %397 = vst [vmem:[%s337 + $0xe8] sm:$0xff] %v396
              %v398 = vld [vmem:[%s336 + $0xf0] sm:$0xff]
              %399 = vst [vmem:[%s337 + $0xf0] sm:$0xff] %v398
              %v400 = vld [vmem:[%s336 + $0xf8] sm:$0xff]
              %401 = vst [vmem:[%s337 + $0xf8] sm:$0xff] %v400
              %v402 = vld [vmem:[%s336 + $0x100] sm:$0xff]
              %403 = vst [vmem:[%s337 + $0x100] sm:$0xff] %v402
              %v404 = vld [vmem:[%s336 + $0x108] sm:$0xff]
              %405 = vst [vmem:[%s337 + $0x108] sm:$0xff] %v404
              %v406 = vld [vmem:[%s336 + $0x110] sm:$0xff]
              %407 = vst [vmem:[%s337 + $0x110] sm:$0xff] %v406
              %v408 = vld [vmem:[%s336 + $0x118] sm:$0xff]
              %409 = vst [vmem:[%s337 + $0x118] sm:$0xff] %v408
              %v410 = vld [vmem:[%s336 + $0x120] sm:$0xff]
              %411 = vst [vmem:[%s337 + $0x120] sm:$0xff] %v410
              %v412 = vld [vmem:[%s336 + $0x128] sm:$0xff]
              %413 = vst [vmem:[%s337 + $0x128] sm:$0xff] %v412
              %v414 = vld [vmem:[%s336 + $0x130] sm:$0xff]
              %415 = vst [vmem:[%s337 + $0x130] sm:$0xff] %v414
              %v416 = vld [vmem:[%s336 + $0x138] sm:$0xff]
              %417 = vst [vmem:[%s337 + $0x138] sm:$0xff] %v416
              %v418 = vld [vmem:[%s336 + $0x140] sm:$0xff]
              %419 = vst [vmem:[%s337 + $0x140] sm:$0xff] %v418
              %v420 = vld [vmem:[%s336 + $0x148] sm:$0xff]
              %421 = vst [vmem:[%s337 + $0x148] sm:$0xff] %v420
              %v422 = vld [vmem:[%s336 + $0x150] sm:$0xff]
              %423 = vst [vmem:[%s337 + $0x150] sm:$0xff] %v422
              %v424 = vld [vmem:[%s336 + $0x158] sm:$0xff]
              %425 = vst [vmem:[%s337 + $0x158] sm:$0xff] %v424
              %v426 = vld [vmem:[%s336 + $0x160] sm:$0xff]
              %427 = vst [vmem:[%s337 + $0x160] sm:$0xff] %v426
              %v428 = vld [vmem:[%s336 + $0x168] sm:$0xff]
              %429 = vst [vmem:[%s337 + $0x168] sm:$0xff] %v428
              %v430 = vld [vmem:[%s336 + $0x170] sm:$0xff]
              %431 = vst [vmem:[%s337 + $0x170] sm:$0xff] %v430
              %v432 = vld [vmem:[%s336 + $0x178] sm:$0xff]
              %433 = vst [vmem:[%s337 + $0x178] sm:$0xff] %v432
              %v434 = vld [vmem:[%s336 + $0x180] sm:$0xff]
              %435 = vst [vmem:[%s337 + $0x180] sm:$0xff] %v434
              %v436 = vld [vmem:[%s336 + $0x188] sm:$0xff]
              %437 = vst [vmem:[%s337 + $0x188] sm:$0xff] %v436
              %v438 = vld [vmem:[%s336 + $0x190] sm:$0xff]
              %439 = vst [vmem:[%s337 + $0x190] sm:$0xff] %v438
              %v440 = vld [vmem:[%s336 + $0x198] sm:$0xff]
              %441 = vst [vmem:[%s337 + $0x198] sm:$0xff] %v440
              %v442 = vld [vmem:[%s336 + $0x1a0] sm:$0xff]
              %443 = vst [vmem:[%s337 + $0x1a0] sm:$0xff] %v442
              %v444 = vld [vmem:[%s336 + $0x1a8] sm:$0xff]
              %445 = vst [vmem:[%s337 + $0x1a8] sm:$0xff] %v444
              %v446 = vld [vmem:[%s336 + $0x1b0] sm:$0xff]
              %447 = vst [vmem:[%s337 + $0x1b0] sm:$0xff] %v446
              %v448 = vld [vmem:[%s336 + $0x1b8] sm:$0xff]
              %449 = vst [vmem:[%s337 + $0x1b8] sm:$0xff] %v448
              %v450 = vld [vmem:[%s336 + $0x1c0] sm:$0xff]
              %451 = vst [vmem:[%s337 + $0x1c0] sm:$0xff] %v450
              %v452 = vld [vmem:[%s336 + $0x1c8] sm:$0xff]
              %453 = vst [vmem:[%s337 + $0x1c8] sm:$0xff] %v452
              %v454 = vld [vmem:[%s336 + $0x1d0] sm:$0xff]
              %455 = vst [vmem:[%s337 + $0x1d0] sm:$0xff] %v454
              %v456 = vld [vmem:[%s336 + $0x1d8] sm:$0xff]
              %457 = vst [vmem:[%s337 + $0x1d8] sm:$0xff] %v456
              %v458 = vld [vmem:[%s336 + $0x1e0] sm:$0xff]
              %459 = vst [vmem:[%s337 + $0x1e0] sm:$0xff] %v458
              %v460 = vld [vmem:[%s336 + $0x1e8] sm:$0xff]
              %461 = vst [vmem:[%s337 + $0x1e8] sm:$0xff] %v460
              %v462 = vld [vmem:[%s336 + $0x1f0] sm:$0xff]
              %463 = vst [vmem:[%s337 + $0x1f0] sm:$0xff] %v462
              %v464 = vld [vmem:[%s336 + $0x1f8] sm:$0xff]
              %465 = vst [vmem:[%s337 + $0x1f8] sm:$0xff] %v464
              %v466 = vld [vmem:[%s336 + $0x200] sm:$0xff]
              %467 = vst [vmem:[%s337 + $0x200] sm:$0xff] %v466
              %v468 = vld [vmem:[%s336 + $0x208] sm:$0xff]
              %469 = vst [vmem:[%s337 + $0x208] sm:$0xff] %v468
              %v470 = vld [vmem:[%s336 + $0x210] sm:$0xff]
              %471 = vst [vmem:[%s337 + $0x210] sm:$0xff] %v470
              %v472 = vld [vmem:[%s336 + $0x218] sm:$0xff]
              %473 = vst [vmem:[%s337 + $0x218] sm:$0xff] %v472
              %v474 = vld [vmem:[%s336 + $0x220] sm:$0xff]
              %475 = vst [vmem:[%s337 + $0x220] sm:$0xff] %v474
              %v476 = vld [vmem:[%s336 + $0x228] sm:$0xff]
              %477 = vst [vmem:[%s337 + $0x228] sm:$0xff] %v476
              %v478 = vld [vmem:[%s336 + $0x230] sm:$0xff]
              %479 = vst [vmem:[%s337 + $0x230] sm:$0xff] %v478
              %v480 = vld [vmem:[%s336 + $0x238] sm:$0xff]
              %481 = vst [vmem:[%s337 + $0x238] sm:$0xff] %v480
              %v482 = vld [vmem:[%s336 + $0x240] sm:$0xff]
              %483 = vst [vmem:[%s337 + $0x240] sm:$0xff] %v482
              %v484 = vld [vmem:[%s336 + $0x248] sm:$0xff]
              %485 = vst [vmem:[%s337 + $0x248] sm:$0xff] %v484
              %v486 = vld [vmem:[%s336 + $0x250] sm:$0xff]
              %487 = vst [vmem:[%s337 + $0x250] sm:$0xff] %v486
              %v488 = vld [vmem:[%s336 + $0x258] sm:$0xff]
              %489 = vst [vmem:[%s337 + $0x258] sm:$0xff] %v488
              %v490 = vld [vmem:[%s336 + $0x260] sm:$0xff]
              %491 = vst [vmem:[%s337 + $0x260] sm:$0xff] %v490
              %v492 = vld [vmem:[%s336 + $0x268] sm:$0xff]
              %493 = vst [vmem:[%s337 + $0x268] sm:$0xff] %v492
              %v494 = vld [vmem:[%s336 + $0x270] sm:$0xff]
              %495 = vst [vmem:[%s337 + $0x270] sm:$0xff] %v494
              %v496 = vld [vmem:[%s336 + $0x278] sm:$0xff]
              %497 = vst [vmem:[%s337 + $0x278] sm:$0xff] %v496
              %v498 = vld [vmem:[%s336 + $0x280] sm:$0xff]
              %499 = vst [vmem:[%s337 + $0x280] sm:$0xff] %v498
              %v500 = vld [vmem:[%s336 + $0x288] sm:$0xff]
              %501 = vst [vmem:[%s337 + $0x288] sm:$0xff] %v500
              %v502 = vld [vmem:[%s336 + $0x290] sm:$0xff]
              %503 = vst [vmem:[%s337 + $0x290] sm:$0xff] %v502
              %v504 = vld [vmem:[%s336 + $0x298] sm:$0xff]
              %505 = vst [vmem:[%s337 + $0x298] sm:$0xff] %v504
              %v506 = vld [vmem:[%s336 + $0x2a0] sm:$0xff]
              %507 = vst [vmem:[%s337 + $0x2a0] sm:$0xff] %v506
              %v508 = vld [vmem:[%s336 + $0x2a8] sm:$0xff]
              %509 = vst [vmem:[%s337 + $0x2a8] sm:$0xff] %v508
              %v510 = vld [vmem:[%s336 + $0x2b0] sm:$0xff]
              %511 = vst [vmem:[%s337 + $0x2b0] sm:$0xff] %v510
              %v512 = vld [vmem:[%s336 + $0x2b8] sm:$0xff]
              %513 = vst [vmem:[%s337 + $0x2b8] sm:$0xff] %v512
              %v514 = vld [vmem:[%s336 + $0x2c0] sm:$0xff]
              %515 = vst [vmem:[%s337 + $0x2c0] sm:$0xff] %v514
              %v516 = vld [vmem:[%s336 + $0x2c8] sm:$0xff]
              %517 = vst [vmem:[%s337 + $0x2c8] sm:$0xff] %v516
              %v518 = vld [vmem:[%s336 + $0x2d0] sm:$0xff]
              %519 = vst [vmem:[%s337 + $0x2d0] sm:$0xff] %v518
              %v520 = vld [vmem:[%s336 + $0x2d8] sm:$0xff]
              %521 = vst [vmem:[%s337 + $0x2d8] sm:$0xff] %v520
              %v522 = vld [vmem:[%s336 + $0x2e0] sm:$0xff]
              %523 = vst [vmem:[%s337 + $0x2e0] sm:$0xff] %v522
              %v524 = vld [vmem:[%s336 + $0x2e8] sm:$0xff]
              %525 = vst [vmem:[%s337 + $0x2e8] sm:$0xff] %v524
              %v526 = vld [vmem:[%s336 + $0x2f0] sm:$0xff]
              %527 = vst [vmem:[%s337 + $0x2f0] sm:$0xff] %v526
              %v528 = vld [vmem:[%s336 + $0x2f8] sm:$0xff]
              %529 = vst [vmem:[%s337 + $0x2f8] sm:$0xff] %v528
              %v530 = vld [vmem:[%s336 + $0x300] sm:$0xff]
              %531 = vst [vmem:[%s337 + $0x300] sm:$0xff] %v530
              %v532 = vld [vmem:[%s336 + $0x308] sm:$0xff]
              %533 = vst [vmem:[%s337 + $0x308] sm:$0xff] %v532
              %v534 = vld [vmem:[%s336 + $0x310] sm:$0xff]
              %535 = vst [vmem:[%s337 + $0x310] sm:$0xff] %v534
              %v536 = vld [vmem:[%s336 + $0x318] sm:$0xff]
              %537 = vst [vmem:[%s337 + $0x318] sm:$0xff] %v536
              %v538 = vld [vmem:[%s336 + $0x320] sm:$0xff]
              %539 = vst [vmem:[%s337 + $0x320] sm:$0xff] %v538
              %v540 = vld [vmem:[%s336 + $0x328] sm:$0xff]
              %541 = vst [vmem:[%s337 + $0x328] sm:$0xff] %v540
              %v542 = vld [vmem:[%s336 + $0x330] sm:$0xff]
              %543 = vst [vmem:[%s337 + $0x330] sm:$0xff] %v542
              %v544 = vld [vmem:[%s336 + $0x338] sm:$0xff]
              %545 = vst [vmem:[%s337 + $0x338] sm:$0xff] %v544
              %v546 = vld [vmem:[%s336 + $0x340] sm:$0xff]
              %547 = vst [vmem:[%s337 + $0x340] sm:$0xff] %v546
              %v548 = vld [vmem:[%s336 + $0x348] sm:$0xff]
              %549 = vst [vmem:[%s337 + $0x348] sm:$0xff] %v548
              %v550 = vld [vmem:[%s336 + $0x350] sm:$0xff]
              %551 = vst [vmem:[%s337 + $0x350] sm:$0xff] %v550
              %v552 = vld [vmem:[%s336 + $0x358] sm:$0xff]
              %553 = vst [vmem:[%s337 + $0x358] sm:$0xff] %v552
              %v554 = vld [vmem:[%s336 + $0x360] sm:$0xff]
              %555 = vst [vmem:[%s337 + $0x360] sm:$0xff] %v554
              %v556 = vld [vmem:[%s336 + $0x368] sm:$0xff]
              %557 = vst [vmem:[%s337 + $0x368] sm:$0xff] %v556
              %v558 = vld [vmem:[%s336 + $0x370] sm:$0xff]
              %559 = vst [vmem:[%s337 + $0x370] sm:$0xff] %v558
              %v560 = vld [vmem:[%s336 + $0x378] sm:$0xff]
              %561 = vst [vmem:[%s337 + $0x378] sm:$0xff] %v560
              %v562 = vld [vmem:[%s336 + $0x380] sm:$0xff]
              %563 = vst [vmem:[%s337 + $0x380] sm:$0xff] %v562
              %v564 = vld [vmem:[%s336 + $0x388] sm:$0xff]
              %565 = vst [vmem:[%s337 + $0x388] sm:$0xff] %v564
              %v566 = vld [vmem:[%s336 + $0x390] sm:$0xff]
              %567 = vst [vmem:[%s337 + $0x390] sm:$0xff] %v566
              %v568 = vld [vmem:[%s336 + $0x398] sm:$0xff]
              %569 = vst [vmem:[%s337 + $0x398] sm:$0xff] %v568
              %v570 = vld [vmem:[%s336 + $0x3a0] sm:$0xff]
              %571 = vst [vmem:[%s337 + $0x3a0] sm:$0xff] %v570
              %v572 = vld [vmem:[%s336 + $0x3a8] sm:$0xff]
              %573 = vst [vmem:[%s337 + $0x3a8] sm:$0xff] %v572
              %v574 = vld [vmem:[%s336 + $0x3b0] sm:$0xff]
              %575 = vst [vmem:[%s337 + $0x3b0] sm:$0xff] %v574
              %v576 = vld [vmem:[%s336 + $0x3b8] sm:$0xff]
              %577 = vst [vmem:[%s337 + $0x3b8] sm:$0xff] %v576
              %v578 = vld [vmem:[%s336 + $0x3c0] sm:$0xff]
              %579 = vst [vmem:[%s337 + $0x3c0] sm:$0xff] %v578
              %v580 = vld [vmem:[%s336 + $0x3c8] sm:$0xff]
              %581 = vst [vmem:[%s337 + $0x3c8] sm:$0xff] %v580
              %v582 = vld [vmem:[%s336 + $0x3d0] sm:$0xff]
              %583 = vst [vmem:[%s337 + $0x3d0] sm:$0xff] %v582
              %v584 = vld [vmem:[%s336 + $0x3d8] sm:$0xff]
              %585 = vst [vmem:[%s337 + $0x3d8] sm:$0xff] %v584
              %v586 = vld [vmem:[%s336 + $0x3e0] sm:$0xff]
              %587 = vst [vmem:[%s337 + $0x3e0] sm:$0xff] %v586
              %v588 = vld [vmem:[%s336 + $0x3e8] sm:$0xff]
              %589 = vst [vmem:[%s337 + $0x3e8] sm:$0xff] %v588
              %v590 = vld [vmem:[%s336 + $0x3f0] sm:$0xff]
              %591 = vst [vmem:[%s337 + $0x3f0] sm:$0xff] %v590
              %v592 = vld [vmem:[%s336 + $0x3f8] sm:$0xff]
              %593 = vst [vmem:[%s337 + $0x3f8] sm:$0xff] %v592
              %v594 = vld [vmem:[%s336 + $0x400] sm:$0xff]
              %595 = vst [vmem:[%s337 + $0x400] sm:$0xff] %v594
              %v596 = vld [vmem:[%s336 + $0x408] sm:$0xff]
              %597 = vst [vmem:[%s337 + $0x408] sm:$0xff] %v596
              %v598 = vld [vmem:[%s336 + $0x410] sm:$0xff]
              %599 = vst [vmem:[%s337 + $0x410] sm:$0xff] %v598
              %v600 = vld [vmem:[%s336 + $0x418] sm:$0xff]
              %601 = vst [vmem:[%s337 + $0x418] sm:$0xff] %v600
              %v602 = vld [vmem:[%s336 + $0x420] sm:$0xff]
              %603 = vst [vmem:[%s337 + $0x420] sm:$0xff] %v602
              %v604 = vld [vmem:[%s336 + $0x428] sm:$0xff]
              %605 = vst [vmem:[%s337 + $0x428] sm:$0xff] %v604
              %v606 = vld [vmem:[%s336 + $0x430] sm:$0xff]
              %607 = vst [vmem:[%s337 + $0x430] sm:$0xff] %v606
              %v608 = vld [vmem:[%s336 + $0x438] sm:$0xff]
              %609 = vst [vmem:[%s337 + $0x438] sm:$0xff] %v608
              %v610 = vld [vmem:[%s336 + $0x440] sm:$0xff]
              %611 = vst [vmem:[%s337 + $0x440] sm:$0xff] %v610
              %v612 = vld [vmem:[%s336 + $0x448] sm:$0xff]
              %613 = vst [vmem:[%s337 + $0x448] sm:$0xff] %v612
              %v614 = vld [vmem:[%s336 + $0x450] sm:$0xff]
              %615 = vst [vmem:[%s337 + $0x450] sm:$0xff] %v614
              %v616 = vld [vmem:[%s336 + $0x458] sm:$0xff]
              %617 = vst [vmem:[%s337 + $0x458] sm:$0xff] %v616
              %v618 = vld [vmem:[%s336 + $0x460] sm:$0xff]
              %619 = vst [vmem:[%s337 + $0x460] sm:$0xff] %v618
              %v620 = vld [vmem:[%s336 + $0x468] sm:$0xff]
              %621 = vst [vmem:[%s337 + $0x468] sm:$0xff] %v620
              %v622 = vld [vmem:[%s336 + $0x470] sm:$0xff]
              %623 = vst [vmem:[%s337 + $0x470] sm:$0xff] %v622
              %v624 = vld [vmem:[%s336 + $0x478] sm:$0xff]
              %625 = vst [vmem:[%s337 + $0x478] sm:$0xff] %v624
              %v626 = vld [vmem:[%s336 + $0x480] sm:$0xff]
              %627 = vst [vmem:[%s337 + $0x480] sm:$0xff] %v626
              %v628 = vld [vmem:[%s336 + $0x488] sm:$0xff]
              %629 = vst [vmem:[%s337 + $0x488] sm:$0xff] %v628
              %v630 = vld [vmem:[%s336 + $0x490] sm:$0xff]
              %631 = vst [vmem:[%s337 + $0x490] sm:$0xff] %v630
              %v632 = vld [vmem:[%s336 + $0x498] sm:$0xff]
              %633 = vst [vmem:[%s337 + $0x498] sm:$0xff] %v632
              %v634 = vld [vmem:[%s336 + $0x4a0] sm:$0xff]
              %635 = vst [vmem:[%s337 + $0x4a0] sm:$0xff] %v634
              %v636 = vld [vmem:[%s336 + $0x4a8] sm:$0xff]
              %637 = vst [vmem:[%s337 + $0x4a8] sm:$0xff] %v636
              %v638 = vld [vmem:[%s336 + $0x4b0] sm:$0xff]
              %639 = vst [vmem:[%s337 + $0x4b0] sm:$0xff] %v638
              %v640 = vld [vmem:[%s336 + $0x4b8] sm:$0xff]
              %641 = vst [vmem:[%s337 + $0x4b8] sm:$0xff] %v640
              %v642 = vld [vmem:[%s336 + $0x4c0] sm:$0xff]
              %643 = vst [vmem:[%s337 + $0x4c0] sm:$0xff] %v642
              %v644 = vld [vmem:[%s336 + $0x4c8] sm:$0xff]
              %645 = vst [vmem:[%s337 + $0x4c8] sm:$0xff] %v644
              %v646 = vld [vmem:[%s336 + $0x4d0] sm:$0xff]
              %647 = vst [vmem:[%s337 + $0x4d0] sm:$0xff] %v646
              %v648 = vld [vmem:[%s336 + $0x4d8] sm:$0xff]
              %649 = vst [vmem:[%s337 + $0x4d8] sm:$0xff] %v648
              %v650 = vld [vmem:[%s336 + $0x4e0] sm:$0xff]
              %651 = vst [vmem:[%s337 + $0x4e0] sm:$0xff] %v650
              %v652 = vld [vmem:[%s336 + $0x4e8] sm:$0xff]
              %653 = vst [vmem:[%s337 + $0x4e8] sm:$0xff] %v652
              %v654 = vld [vmem:[%s336 + $0x4f0] sm:$0xff]
              %655 = vst [vmem:[%s337 + $0x4f0] sm:$0xff] %v654
              %v656 = vld [vmem:[%s336 + $0x4f8] sm:$0xff]
              %657 = vst [vmem:[%s337 + $0x4f8] sm:$0xff] %v656
              %v658 = vld [vmem:[%s336 + $0x500] sm:$0xff]
              %659 = vst [vmem:[%s337 + $0x500] sm:$0xff] %v658
              %v660 = vld [vmem:[%s336 + $0x508] sm:$0xff]
              %661 = vst [vmem:[%s337 + $0x508] sm:$0xff] %v660
              %v662 = vld [vmem:[%s336 + $0x510] sm:$0xff]
              %663 = vst [vmem:[%s337 + $0x510] sm:$0xff] %v662
              %v664 = vld [vmem:[%s336 + $0x518] sm:$0xff]
              %665 = vst [vmem:[%s337 + $0x518] sm:$0xff] %v664
              %v666 = vld [vmem:[%s336 + $0x520] sm:$0xff]
              %667 = vst [vmem:[%s337 + $0x520] sm:$0xff] %v666
              %v668 = vld [vmem:[%s336 + $0x528] sm:$0xff]
              %669 = vst [vmem:[%s337 + $0x528] sm:$0xff] %v668
              %v670 = vld [vmem:[%s336 + $0x530] sm:$0xff]
              %671 = vst [vmem:[%s337 + $0x530] sm:$0xff] %v670
              %v672 = vld [vmem:[%s336 + $0x538] sm:$0xff]
              %673 = vst [vmem:[%s337 + $0x538] sm:$0xff] %v672
              %v674 = vld [vmem:[%s336 + $0x540] sm:$0xff]
              %675 = vst [vmem:[%s337 + $0x540] sm:$0xff] %v674
              %v676 = vld [vmem:[%s336 + $0x548] sm:$0xff]
              %677 = vst [vmem:[%s337 + $0x548] sm:$0xff] %v676
              %v678 = vld [vmem:[%s336 + $0x550] sm:$0xff]
              %679 = vst [vmem:[%s337 + $0x550] sm:$0xff] %v678
              %v680 = vld [vmem:[%s336 + $0x558] sm:$0xff]
              %681 = vst [vmem:[%s337 + $0x558] sm:$0xff] %v680
              %v682 = vld [vmem:[%s336 + $0x560] sm:$0xff]
              %683 = vst [vmem:[%s337 + $0x560] sm:$0xff] %v682
              %v684 = vld [vmem:[%s336 + $0x568] sm:$0xff]
              %685 = vst [vmem:[%s337 + $0x568] sm:$0xff] %v684
              %v686 = vld [vmem:[%s336 + $0x570] sm:$0xff]
              %687 = vst [vmem:[%s337 + $0x570] sm:$0xff] %v686
              %v688 = vld [vmem:[%s336 + $0x578] sm:$0xff]
              %689 = vst [vmem:[%s337 + $0x578] sm:$0xff] %v688
              %v690 = vld [vmem:[%s336 + $0x580] sm:$0xff]
              %691 = vst [vmem:[%s337 + $0x580] sm:$0xff] %v690
              %v692 = vld [vmem:[%s336 + $0x588] sm:$0xff]
              %693 = vst [vmem:[%s337 + $0x588] sm:$0xff] %v692
              %v694 = vld [vmem:[%s336 + $0x590] sm:$0xff]
              %695 = vst [vmem:[%s337 + $0x590] sm:$0xff] %v694
              %v696 = vld [vmem:[%s336 + $0x598] sm:$0xff]
              %697 = vst [vmem:[%s337 + $0x598] sm:$0xff] %v696
              %v698 = vld [vmem:[%s336 + $0x5a0] sm:$0xff]
              %699 = vst [vmem:[%s337 + $0x5a0] sm:$0xff] %v698
              %v700 = vld [vmem:[%s336 + $0x5a8] sm:$0xff]
              %701 = vst [vmem:[%s337 + $0x5a8] sm:$0xff] %v700
              %v702 = vld [vmem:[%s336 + $0x5b0] sm:$0xff]
              %703 = vst [vmem:[%s337 + $0x5b0] sm:$0xff] %v702
              %v704 = vld [vmem:[%s336 + $0x5b8] sm:$0xff]
              %705 = vst [vmem:[%s337 + $0x5b8] sm:$0xff] %v704
              %v706 = vld [vmem:[%s336 + $0x5c0] sm:$0xff]
              %707 = vst [vmem:[%s337 + $0x5c0] sm:$0xff] %v706
              %v708 = vld [vmem:[%s336 + $0x5c8] sm:$0xff]
              %709 = vst [vmem:[%s337 + $0x5c8] sm:$0xff] %v708
              %v710 = vld [vmem:[%s336 + $0x5d0] sm:$0xff]
              %711 = vst [vmem:[%s337 + $0x5d0] sm:$0xff] %v710
              %v712 = vld [vmem:[%s336 + $0x5d8] sm:$0xff]
              %713 = vst [vmem:[%s337 + $0x5d8] sm:$0xff] %v712
              %v714 = vld [vmem:[%s336 + $0x5e0] sm:$0xff]
              %715 = vst [vmem:[%s337 + $0x5e0] sm:$0xff] %v714
              %v716 = vld [vmem:[%s336 + $0x5e8] sm:$0xff]
              %717 = vst [vmem:[%s337 + $0x5e8] sm:$0xff] %v716
              %v718 = vld [vmem:[%s336 + $0x5f0] sm:$0xff]
              %719 = vst [vmem:[%s337 + $0x5f0] sm:$0xff] %v718
              %v720 = vld [vmem:[%s336 + $0x5f8] sm:$0xff]
              %721 = vst [vmem:[%s337 + $0x5f8] sm:$0xff] %v720
              %v722 = vld [vmem:[%s336 + $0x600] sm:$0xff]
              %723 = vst [vmem:[%s337 + $0x600] sm:$0xff] %v722
              %v724 = vld [vmem:[%s336 + $0x608] sm:$0xff]
              %725 = vst [vmem:[%s337 + $0x608] sm:$0xff] %v724
              %v726 = vld [vmem:[%s336 + $0x610] sm:$0xff]
              %727 = vst [vmem:[%s337 + $0x610] sm:$0xff] %v726
              %v728 = vld [vmem:[%s336 + $0x618] sm:$0xff]
              %729 = vst [vmem:[%s337 + $0x618] sm:$0xff] %v728
            $region76: #{cnn_forward.1} parent=70 // loop_footer
              %s335 = sadd.s32 1, %s331
            $region77: #{cnn_forward.1} parent=70 // loop_footer_branch
              %330 = sbr.rel target = $region73
            $region78: #{cnn_forward.1} parent=70 // loop_exit
              _
          $region71: #{cnn_forward.1} parent=55 // pred_fallthru
            _
          %p730 = pneg %p326
          // Predicated region
          $region79: #{cnn_forward.1} parent=55 // pred_check
            _
          $region80: #{cnn_forward.1} parent=55 // pred_check_branch
            %732 = sbr.rel (%p326) target = $region82
          $region81: #{cnn_forward.1} parent=55 // pred_region
            %s733 = sand.u32 1568, 7
          $region82: #{cnn_forward.1} parent=55 // pred_fallthru
            _
        $region56: #{cnn_forward.1} parent=51 // pred_fallthru
          _
        // Predicated region
        $region57: #{cnn_forward.1} parent=51 // pred_check
          %p310 = pneg %p306
        $region58: #{cnn_forward.1} parent=51 // pred_check_branch
          %312 = sbr.rel (%p310) target = $region60
        $region59: #{cnn_forward.1} parent=51 // pred_region
          %s313 = sshll.u32 1, 1568
          %s314 = ssub.s32 %s313, 1
          loop: start=0, step=1, limit=1
          $region61: #{cnn_forward.1} parent=59 // loop_pre_header
            _
          $region62: #{cnn_forward.1} parent=59 // loop_header
            %s316 = sphi 0, %s320
            %p317 = scmp.ge.s32.totalorder %s316, 1
            %s321 = sphi %s5, %s5
            %s322 = sphi [#allocation6], [#allocation6]
          $region63: #{cnn_forward.1} parent=59 // loop_header_branch
            %319 = sbr.rel (%p317) target = $region67
          $region64: #{cnn_forward.1} parent=59 // loop_body
            %v323 = vld [vmem:[%s321] sm:%s314]
            %324 = vst [vmem:[%s322] sm:%s314] %v323
          $region65: #{cnn_forward.1} parent=59 // loop_footer
            %s320 = sadd.s32 1, %s316
          $region66: #{cnn_forward.1} parent=59 // loop_footer_branch
            %315 = sbr.rel target = $region62
          $region67: #{cnn_forward.1} parent=59 // loop_exit
            _
        $region60: #{cnn_forward.1} parent=51 // pred_fallthru
          _
        // Predicated region
        $region83: #{cnn_forward.1} parent=51 // pred_check
          _
        $region84: #{cnn_forward.1} parent=51 // pred_check_branch
          %736 = sbr.rel (0) target = $region86
        $region85: #{cnn_forward.1} parent=51 // pred_region
          %737 = vsyncadd [#allocation7], 25088
        $region86: #{cnn_forward.1} parent=51 // pred_fallthru
          _
        %v738 = vld [vmem:[%s303] sm:$0xff]
        %v739 = vld [vmem:[%s303 + $0x8] sm:$0xff]
        %v740 = vld [vmem:[%s303 + $0x10] sm:$0xff]
        %v741 = vld [vmem:[%s303 + $0x18] sm:$0xff]
        %v742 = vld [vmem:[%s303 + $0x20] sm:$0xff]
        %v743 = vld [vmem:[%s303 + $0x28] sm:$0xff]
        %v744 = vld [vmem:[%s303 + $0x30] sm:$0xff]
        %v745 = vld [vmem:[%s303 + $0x38] sm:$0xff]
        %v746 = vld [vmem:[%s303 + $0x40] sm:$0xff]
        %v747 = vld [vmem:[%s303 + $0x48] sm:$0xff]
        %v748 = vld [vmem:[%s303 + $0x50] sm:$0xff]
        %v749 = vld [vmem:[%s303 + $0x58] sm:$0xff]
        %v750 = vld [vmem:[%s303 + $0x60] sm:$0xff]
        %v751 = vld [vmem:[%s303 + $0x68] sm:$0xff]
        %v752 = vld [vmem:[%s303 + $0x70] sm:$0xff]
        %v753 = vld [vmem:[%s303 + $0x78] sm:$0xff]
        %v754 = vld [vmem:[%s303 + $0x80] sm:$0xff]
        %v755 = vld [vmem:[%s303 + $0x88] sm:$0xff]
        %v756 = vld [vmem:[%s303 + $0x90] sm:$0xff]
        %v757 = vld [vmem:[%s303 + $0x98] sm:$0xff]
        %v758 = vld [vmem:[%s303 + $0xa0] sm:$0xff]
        %v759 = vld [vmem:[%s303 + $0xa8] sm:$0xff]
        %v760 = vld [vmem:[%s303 + $0xb0] sm:$0xff]
        %v761 = vld [vmem:[%s303 + $0xb8] sm:$0xff]
        %v762 = vld [vmem:[%s303 + $0xc0] sm:$0xff]
        %v763 = vld [vmem:[%s303 + $0xc8] sm:$0xff]
        %v764 = vld [vmem:[%s303 + $0xd0] sm:$0xff]
        %v765 = vld [vmem:[%s303 + $0xd8] sm:$0xff]
        %v766 = vld [vmem:[%s303 + $0xe0] sm:$0xff]
        %v767 = vld [vmem:[%s303 + $0xe8] sm:$0xff]
        %v768 = vld [vmem:[%s303 + $0xf0] sm:$0xff]
        %v769 = vld [vmem:[%s303 + $0xf8] sm:$0xff]
        %v770 = vld [vmem:[%s303 + $0x100] sm:$0xff]
        %v771 = vld [vmem:[%s303 + $0x108] sm:$0xff]
        %v772 = vld [vmem:[%s303 + $0x110] sm:$0xff]
        %v773 = vld [vmem:[%s303 + $0x118] sm:$0xff]
        %v774 = vld [vmem:[%s303 + $0x120] sm:$0xff]
        %v775 = vld [vmem:[%s303 + $0x128] sm:$0xff]
        %v776 = vld [vmem:[%s303 + $0x130] sm:$0xff]
        %v777 = vld [vmem:[%s303 + $0x138] sm:$0xff]
        %v778 = vld [vmem:[%s2] sm:$0xff]
        %v779 = vld [vmem:[%s2 + $0x8] sm:$0xff]
        %vm780 = vcmask 130048
        %v782 = vsel %vm780, %v738, 0
        %v785 = vsel %vm780, %v739, 0
        %v788 = vsel %vm780, %v740, 0
        %v791 = vsel %vm780, %v741, 0
        %v794 = vsel %vm780, %v742, 0
        %v797 = vsel %vm780, %v743, 0
        %v800 = vsel %vm780, %v744, 0
        %v803 = vsel %vm780, %v745, 0
        %v806 = vsel %vm780, %v746, 0
        %v809 = vsel %vm780, %v747, 0
        %v812 = vsel %vm780, %v748, 0
        %v815 = vsel %vm780, %v749, 0
        %v818 = vsel %vm780, %v750, 0
        %v821 = vsel %vm780, %v751, 0
        %v824 = vsel %vm780, %v752, 0
        %v827 = vsel %vm780, %v753, 0
        %v830 = vsel %vm780, %v754, 0
        %v833 = vsel %vm780, %v755, 0
        %v836 = vsel %vm780, %v756, 0
        %v839 = vsel %vm780, %v757, 0
        %v842 = vsel %vm780, %v758, 0
        %v845 = vsel %vm780, %v759, 0
        %v848 = vsel %vm780, %v760, 0
        %v851 = vsel %vm780, %v761, 0
        %v854 = vsel %vm780, %v762, 0
        %v857 = vsel %vm780, %v763, 0
        %v860 = vsel %vm780, %v764, 0
        %v863 = vsel %vm780, %v765, 0
        %v866 = vsel %vm780, %v766, 0
        %v869 = vsel %vm780, %v767, 0
        %v872 = vsel %vm780, %v768, 0
        %v875 = vsel %vm780, %v769, 0
        %v878 = vsel %vm780, %v770, 0
        %v881 = vsel %vm780, %v771, 0
        %v884 = vsel %vm780, %v772, 0
        %v887 = vsel %vm780, %v773, 0
        %v890 = vsel %vm780, %v774, 0
        %v893 = vsel %vm780, %v775, 0
        %v896 = vsel %vm780, %v776, 0
        %v899 = vsel %vm780, %v777, 0
        %901 = vmatprep.subr.mxu0 0.0
        %902 = vmatpush1.msra.mxu0 0.0
        %903 = vmatprep.subr.mxu0 0.0
        %904 = vmatpush1.msra.mxu0 0.0
        %905 = vmatprep.subr.mxu0 0.0
        %906 = vmatpush1.msra.mxu0 0.0
        %907 = vmatprep.subr.mxu0 0.0
        %908 = vmatpush1.msra.mxu0 0.0
        %909 = vmatprep.subr.mxu0 0.0
        %910 = vmatpush1.msra.mxu0 0.0
        %911 = vmatprep.subr.mxu0 0.0
        %912 = vmatpush1.msra.mxu0 0.0
        %913 = vmatprep.subr.mxu0 0.0
        %914 = vmatpush1.msra.mxu0 0.0
        %915 = vmatprep.subr.mxu0 0.0
        %916 = vmatpush1.msra.mxu0 0.0
        %917 = vmatprep.subr.mxu0 0.0
        %918 = vmatpush1.msra.mxu0 0.0
        %919 = vmatprep.subr.mxu0 0.0
        %920 = vmatpush1.msra.mxu0 0.0
        %921 = vmatprep.subr.mxu0 0.0
        %922 = vmatpush1.msra.mxu0 0.0
        %923 = vmatprep.subr.mxu0 0.0
        %924 = vmatpush1.msra.mxu0 0.0
        %925 = vmatprep.subr.mxu0 0.0
        %926 = vmatpush1.msra.mxu0 0.0
        %927 = vmatprep.subr.mxu0 0.0
        %928 = vmatpush1.msra.mxu0 0.0
        %929 = vmatprep.subr.mxu0 0.0
        %930 = vmatpush1.msra.mxu0 %v779
        %931 = vmatprep.subr.mxu0 0.0
        %932 = vmatpush1.msra.mxu0 %v778
        %933 = vmatprep.subr.mxu0 0.0
        %934 = vmatpush2.msra.mxu0 0.0
        %935 = vmatprep.subr.mxu0 0.0
        %936 = vmatpush2.msra.mxu0 0.0
        %937 = vmatprep.subr.mxu0 0.0
        %938 = vmatpush2.msra.mxu0 0.0
        %939 = vmatprep.subr.mxu0 0.0
        %940 = vmatpush2.msra.mxu0 0.0
        %941 = vmatprep.subr.mxu0 0.0
        %942 = vmatpush2.msra.mxu0 0.0
        %943 = vmatprep.subr.mxu0 0.0
        %944 = vmatpush2.msra.mxu0 0.0
        %945 = vmatprep.subr.mxu0 0.0
        %946 = vmatpush2.msra.mxu0 0.0
        %947 = vmatprep.subr.mxu0 0.0
        %948 = vmatpush2.msra.mxu0 0.0
        %949 = vmatprep.subr.mxu0 0.0
        %950 = vmatpush2.msra.mxu0 0.0
        %951 = vmatprep.subr.mxu0 0.0
        %952 = vmatpush2.msra.mxu0 0.0
        %953 = vmatprep.subr.mxu0 0.0
        %954 = vmatpush2.msra.mxu0 0.0
        %955 = vmatprep.subr.mxu0 0.0
        %956 = vmatpush2.msra.mxu0 0.0
        %957 = vmatprep.subr.mxu0 0.0
        %958 = vmatpush2.msra.mxu0 0.0
        %959 = vmatprep.subr.mxu0 0.0
        %960 = vmatpush2.msra.mxu0 0.0
        %961 = vmatprep.subr.mxu0 0.0
        %962 = vmatpush2.msra.mxu0 0.0
        %963 = vmatprep.subr.mxu0 0.0
        %964 = vmatpush2.msra.mxu0 0.0
        %965 = vmatprep.mubr.f32.mxu0 0.0
        %966 = vmatmul.mubr.f32.gmra.mxu0 %v782
        %v967 = vpop.f32.mrf.mxu0
        %v968 = vadd.f32 0.0, %v967
        %v969 = vpop.f32.mrf.mxu0
        %970 = vmatprep.mubr.f32.mxu0 0.0
        %971 = vmatmul.mubr.f32.gmra.mxu0 %v785
        %v972 = vpop.f32.mrf.mxu0
        %v973 = vadd.f32 0.0, %v972
        %v974 = vpop.f32.mrf.mxu0
        %975 = vmatprep.mubr.f32.mxu0 0.0
        %976 = vmatmul.mubr.f32.gmra.mxu0 %v788
        %v977 = vpop.f32.mrf.mxu0
        %v978 = vadd.f32 0.0, %v977
        %v979 = vpop.f32.mrf.mxu0
        %980 = vmatprep.mubr.f32.mxu0 0.0
        %981 = vmatmul.mubr.f32.gmra.mxu0 %v791
        %v982 = vpop.f32.mrf.mxu0
        %v983 = vadd.f32 0.0, %v982
        %v984 = vpop.f32.mrf.mxu0
        %985 = vmatprep.mubr.f32.mxu0 0.0
        %986 = vmatmul.mubr.f32.gmra.mxu0 %v794
        %v987 = vpop.f32.mrf.mxu0
        %v988 = vadd.f32 0.0, %v987
        %v989 = vpop.f32.mrf.mxu0
        %990 = vmatprep.mubr.f32.mxu0 0.0
        %991 = vmatmul.mubr.f32.gmra.mxu0 %v797
        %v992 = vpop.f32.mrf.mxu0
        %v993 = vadd.f32 0.0, %v992
        %v994 = vpop.f32.mrf.mxu0
        %995 = vmatprep.mubr.f32.mxu0 0.0
        %996 = vmatmul.mubr.f32.gmra.mxu0 %v800
        %v997 = vpop.f32.mrf.mxu0
        %v998 = vadd.f32 0.0, %v997
        %v999 = vpop.f32.mrf.mxu0
        %1000 = vmatprep.mubr.f32.mxu0 0.0
        %1001 = vmatmul.mubr.f32.gmra.mxu0 %v803
        %v1002 = vpop.f32.mrf.mxu0
        %v1003 = vadd.f32 0.0, %v1002
        %v1004 = vpop.f32.mrf.mxu0
        %1005 = vmatprep.mubr.f32.mxu0 0.0
        %1006 = vmatmul.mubr.f32.gmra.mxu0 %v806
        %v1007 = vpop.f32.mrf.mxu0
        %v1008 = vadd.f32 0.0, %v1007
        %v1009 = vpop.f32.mrf.mxu0
        %1010 = vmatprep.mubr.f32.mxu0 0.0
        %1011 = vmatmul.mubr.f32.gmra.mxu0 %v809
        %v1012 = vpop.f32.mrf.mxu0
        %v1013 = vadd.f32 0.0, %v1012
        %v1014 = vpop.f32.mrf.mxu0
        %1015 = vmatprep.mubr.f32.mxu0 0.0
        %1016 = vmatmul.mubr.f32.gmra.mxu0 %v812
        %v1017 = vpop.f32.mrf.mxu0
        %v1018 = vadd.f32 0.0, %v1017
        %v1019 = vpop.f32.mrf.mxu0
        %1020 = vmatprep.mubr.f32.mxu0 0.0
        %1021 = vmatmul.mubr.f32.gmra.mxu0 %v815
        %v1022 = vpop.f32.mrf.mxu0
        %v1023 = vadd.f32 0.0, %v1022
        %v1024 = vpop.f32.mrf.mxu0
        %1025 = vmatprep.mubr.f32.mxu0 0.0
        %1026 = vmatmul.mubr.f32.gmra.mxu0 %v818
        %v1027 = vpop.f32.mrf.mxu0
        %v1028 = vadd.f32 0.0, %v1027
        %v1029 = vpop.f32.mrf.mxu0
        %1030 = vmatprep.mubr.f32.mxu0 0.0
        %1031 = vmatmul.mubr.f32.gmra.mxu0 %v821
        %v1032 = vpop.f32.mrf.mxu0
        %v1033 = vadd.f32 0.0, %v1032
        %v1034 = vpop.f32.mrf.mxu0
        %1035 = vmatprep.mubr.f32.mxu0 0.0
        %1036 = vmatmul.mubr.f32.gmra.mxu0 %v824
        %v1037 = vpop.f32.mrf.mxu0
        %v1038 = vadd.f32 0.0, %v1037
        %v1039 = vpop.f32.mrf.mxu0
        %1040 = vmatprep.mubr.f32.mxu0 0.0
        %1041 = vmatmul.mubr.f32.gmra.mxu0 %v827
        %v1042 = vpop.f32.mrf.mxu0
        %v1043 = vadd.f32 0.0, %v1042
        %v1044 = vpop.f32.mrf.mxu0
        %1045 = vmatprep.mubr.f32.mxu0 0.0
        %1046 = vmatmul.mubr.f32.gmra.mxu0 %v830
        %v1047 = vpop.f32.mrf.mxu0
        %v1048 = vadd.f32 0.0, %v1047
        %v1049 = vpop.f32.mrf.mxu0
        %1050 = vmatprep.mubr.f32.mxu0 0.0
        %1051 = vmatmul.mubr.f32.gmra.mxu0 %v833
        %v1052 = vpop.f32.mrf.mxu0
        %v1053 = vadd.f32 0.0, %v1052
        %v1054 = vpop.f32.mrf.mxu0
        %1055 = vmatprep.mubr.f32.mxu0 0.0
        %1056 = vmatmul.mubr.f32.gmra.mxu0 %v836
        %v1057 = vpop.f32.mrf.mxu0
        %v1058 = vadd.f32 0.0, %v1057
        %v1059 = vpop.f32.mrf.mxu0
        %1060 = vmatprep.mubr.f32.mxu0 0.0
        %1061 = vmatmul.mubr.f32.gmra.mxu0 %v839
        %v1062 = vpop.f32.mrf.mxu0
        %v1063 = vadd.f32 0.0, %v1062
        %v1064 = vpop.f32.mrf.mxu0
        %1065 = vmatprep.mubr.f32.mxu0 0.0
        %1066 = vmatmul.mubr.f32.gmra.mxu0 %v842
        %v1067 = vpop.f32.mrf.mxu0
        %v1068 = vadd.f32 0.0, %v1067
        %v1069 = vpop.f32.mrf.mxu0
        %1070 = vmatprep.mubr.f32.mxu0 0.0
        %1071 = vmatmul.mubr.f32.gmra.mxu0 %v845
        %v1072 = vpop.f32.mrf.mxu0
        %v1073 = vadd.f32 0.0, %v1072
        %v1074 = vpop.f32.mrf.mxu0
        %1075 = vmatprep.mubr.f32.mxu0 0.0
        %1076 = vmatmul.mubr.f32.gmra.mxu0 %v848
        %v1077 = vpop.f32.mrf.mxu0
        %v1078 = vadd.f32 0.0, %v1077
        %v1079 = vpop.f32.mrf.mxu0
        %1080 = vmatprep.mubr.f32.mxu0 0.0
        %1081 = vmatmul.mubr.f32.gmra.mxu0 %v851
        %v1082 = vpop.f32.mrf.mxu0
        %v1083 = vadd.f32 0.0, %v1082
        %v1084 = vpop.f32.mrf.mxu0
        %1085 = vmatprep.mubr.f32.mxu0 0.0
        %1086 = vmatmul.mubr.f32.gmra.mxu0 %v854
        %v1087 = vpop.f32.mrf.mxu0
        %v1088 = vadd.f32 0.0, %v1087
        %v1089 = vpop.f32.mrf.mxu0
        %1090 = vmatprep.mubr.f32.mxu0 0.0
        %1091 = vmatmul.mubr.f32.gmra.mxu0 %v857
        %v1092 = vpop.f32.mrf.mxu0
        %v1093 = vadd.f32 0.0, %v1092
        %v1094 = vpop.f32.mrf.mxu0
        %1095 = vmatprep.mubr.f32.mxu0 0.0
        %1096 = vmatmul.mubr.f32.gmra.mxu0 %v860
        %v1097 = vpop.f32.mrf.mxu0
        %v1098 = vadd.f32 0.0, %v1097
        %v1099 = vpop.f32.mrf.mxu0
        %1100 = vmatprep.mubr.f32.mxu0 0.0
        %1101 = vmatmul.mubr.f32.gmra.mxu0 %v863
        %v1102 = vpop.f32.mrf.mxu0
        %v1103 = vadd.f32 0.0, %v1102
        %v1104 = vpop.f32.mrf.mxu0
        %1105 = vmatprep.mubr.f32.mxu0 0.0
        %1106 = vmatmul.mubr.f32.gmra.mxu0 %v866
        %v1107 = vpop.f32.mrf.mxu0
        %v1108 = vadd.f32 0.0, %v1107
        %v1109 = vpop.f32.mrf.mxu0
        %1110 = vmatprep.mubr.f32.mxu0 0.0
        %1111 = vmatmul.mubr.f32.gmra.mxu0 %v869
        %v1112 = vpop.f32.mrf.mxu0
        %v1113 = vadd.f32 0.0, %v1112
        %v1114 = vpop.f32.mrf.mxu0
        %1115 = vmatprep.mubr.f32.mxu0 0.0
        %1116 = vmatmul.mubr.f32.gmra.mxu0 %v872
        %v1117 = vpop.f32.mrf.mxu0
        %v1118 = vadd.f32 0.0, %v1117
        %v1119 = vpop.f32.mrf.mxu0
        %1120 = vmatprep.mubr.f32.mxu0 0.0
        %1121 = vmatmul.mubr.f32.gmra.mxu0 %v875
        %v1122 = vpop.f32.mrf.mxu0
        %v1123 = vadd.f32 0.0, %v1122
        %v1124 = vpop.f32.mrf.mxu0
        %1125 = vmatprep.mubr.f32.mxu0 0.0
        %1126 = vmatmul.mubr.f32.gmra.mxu0 %v878
        %v1127 = vpop.f32.mrf.mxu0
        %v1128 = vadd.f32 0.0, %v1127
        %v1129 = vpop.f32.mrf.mxu0
        %1130 = vmatprep.mubr.f32.mxu0 0.0
        %1131 = vmatmul.mubr.f32.gmra.mxu0 %v881
        %v1132 = vpop.f32.mrf.mxu0
        %v1133 = vadd.f32 0.0, %v1132
        %v1134 = vpop.f32.mrf.mxu0
        %1135 = vmatprep.mubr.f32.mxu0 0.0
        %1136 = vmatmul.mubr.f32.gmra.mxu0 %v884
        %v1137 = vpop.f32.mrf.mxu0
        %v1138 = vadd.f32 0.0, %v1137
        %v1139 = vpop.f32.mrf.mxu0
        %1140 = vmatprep.mubr.f32.mxu0 0.0
        %1141 = vmatmul.mubr.f32.gmra.mxu0 %v887
        %v1142 = vpop.f32.mrf.mxu0
        %v1143 = vadd.f32 0.0, %v1142
        %v1144 = vpop.f32.mrf.mxu0
        %1145 = vmatprep.mubr.f32.mxu0 0.0
        %1146 = vmatmul.mubr.f32.gmra.mxu0 %v890
        %v1147 = vpop.f32.mrf.mxu0
        %v1148 = vadd.f32 0.0, %v1147
        %v1149 = vpop.f32.mrf.mxu0
        %1150 = vmatprep.mubr.f32.mxu0 0.0
        %1151 = vmatmul.mubr.f32.gmra.mxu0 %v893
        %v1152 = vpop.f32.mrf.mxu0
        %v1153 = vadd.f32 0.0, %v1152
        %v1154 = vpop.f32.mrf.mxu0
        %1155 = vmatprep.mubr.f32.mxu0 0.0
        %1156 = vmatmul.mubr.f32.gmra.mxu0 %v896
        %v1157 = vpop.f32.mrf.mxu0
        %v1158 = vadd.f32 0.0, %v1157
        %v1159 = vpop.f32.mrf.mxu0
        %1160 = vmatprep.mubr.f32.mxu0 0.0
        %1161 = vmatmul.mubr.f32.gmra.mxu0 %v899
        %v1162 = vpop.f32.mrf.mxu0
        %v1163 = vadd.f32 0.0, %v1162
        %v1164 = vpop.f32.mrf.mxu0
        %1165 = vdwg.mxu0
        %1206 = vrot.lane.b32.xlu0 %v968, 96
        %v1207 = vpop.permute.xlu0 %1206
        %1208 = vrot.lane.b32.xlu0 %v973, 96
        %v1209 = vpop.permute.xlu0 %1208
        %1210 = vrot.lane.b32.xlu0 %v978, 96
        %v1211 = vpop.permute.xlu0 %1210
        %1212 = vrot.lane.b32.xlu0 %v983, 96
        %v1213 = vpop.permute.xlu0 %1212
        %1214 = vrot.lane.b32.xlu0 %v988, 96
        %v1215 = vpop.permute.xlu0 %1214
        %1216 = vrot.lane.b32.xlu0 %v993, 96
        %v1217 = vpop.permute.xlu0 %1216
        %1218 = vrot.lane.b32.xlu0 %v998, 96
        %v1219 = vpop.permute.xlu0 %1218
        %1220 = vrot.lane.b32.xlu0 %v1003, 96
        %v1221 = vpop.permute.xlu0 %1220
        %1222 = vrot.lane.b32.xlu0 %v1008, 96
        %v1223 = vpop.permute.xlu0 %1222
        %1224 = vrot.lane.b32.xlu0 %v1013, 96
        %v1225 = vpop.permute.xlu0 %1224
        %1226 = vrot.lane.b32.xlu0 %v1018, 96
        %v1227 = vpop.permute.xlu0 %1226
        %1228 = vrot.lane.b32.xlu0 %v1023, 96
        %v1229 = vpop.permute.xlu0 %1228
        %1230 = vrot.lane.b32.xlu0 %v1028, 96
        %v1231 = vpop.permute.xlu0 %1230
        %1232 = vrot.lane.b32.xlu0 %v1033, 96
        %v1233 = vpop.permute.xlu0 %1232
        %1234 = vrot.lane.b32.xlu0 %v1038, 96
        %v1235 = vpop.permute.xlu0 %1234
        %1236 = vrot.lane.b32.xlu0 %v1043, 96
        %v1237 = vpop.permute.xlu0 %1236
        %1238 = vrot.lane.b32.xlu0 %v1048, 96
        %v1239 = vpop.permute.xlu0 %1238
        %1240 = vrot.lane.b32.xlu0 %v1053, 96
        %v1241 = vpop.permute.xlu0 %1240
        %1242 = vrot.lane.b32.xlu0 %v1058, 96
        %v1243 = vpop.permute.xlu0 %1242
        %1244 = vrot.lane.b32.xlu0 %v1063, 96
        %v1245 = vpop.permute.xlu0 %1244
        %1246 = vrot.lane.b32.xlu0 %v1068, 96
        %v1247 = vpop.permute.xlu0 %1246
        %1248 = vrot.lane.b32.xlu0 %v1073, 96
        %v1249 = vpop.permute.xlu0 %1248
        %1250 = vrot.lane.b32.xlu0 %v1078, 96
        %v1251 = vpop.permute.xlu0 %1250
        %1252 = vrot.lane.b32.xlu0 %v1083, 96
        %v1253 = vpop.permute.xlu0 %1252
        %1254 = vrot.lane.b32.xlu0 %v1088, 96
        %v1255 = vpop.permute.xlu0 %1254
        %1256 = vrot.lane.b32.xlu0 %v1093, 96
        %v1257 = vpop.permute.xlu0 %1256
        %1258 = vrot.lane.b32.xlu0 %v1098, 96
        %v1259 = vpop.permute.xlu0 %1258
        %1260 = vrot.lane.b32.xlu0 %v1103, 96
        %v1261 = vpop.permute.xlu0 %1260
        %1262 = vrot.lane.b32.xlu0 %v1108, 96
        %v1263 = vpop.permute.xlu0 %1262
        %1264 = vrot.lane.b32.xlu0 %v1113, 96
        %v1265 = vpop.permute.xlu0 %1264
        %1266 = vrot.lane.b32.xlu0 %v1118, 96
        %v1267 = vpop.permute.xlu0 %1266
        %1268 = vrot.lane.b32.xlu0 %v1123, 96
        %v1269 = vpop.permute.xlu0 %1268
        %1270 = vrot.lane.b32.xlu0 %v1128, 96
        %v1271 = vpop.permute.xlu0 %1270
        %1272 = vrot.lane.b32.xlu0 %v1133, 96
        %v1273 = vpop.permute.xlu0 %1272
        %1274 = vrot.lane.b32.xlu0 %v1138, 96
        %v1275 = vpop.permute.xlu0 %1274
        %1276 = vrot.lane.b32.xlu0 %v1143, 96
        %v1277 = vpop.permute.xlu0 %1276
        %1278 = vrot.lane.b32.xlu0 %v1148, 96
        %v1279 = vpop.permute.xlu0 %1278
        %1280 = vrot.lane.b32.xlu0 %v1153, 96
        %v1281 = vpop.permute.xlu0 %1280
        %1282 = vrot.lane.b32.xlu0 %v1158, 96
        %v1283 = vpop.permute.xlu0 %1282
        %1284 = vrot.lane.b32.xlu0 %v1163, 96
        %v1285 = vpop.permute.xlu0 %1284
        %v1326 = vmax.f32 %v968, %v1207
        %v1327 = vmax.f32 %v973, %v1209
        %v1328 = vmax.f32 %v978, %v1211
        %v1329 = vmax.f32 %v983, %v1213
        %v1330 = vmax.f32 %v988, %v1215
        %v1331 = vmax.f32 %v993, %v1217
        %v1332 = vmax.f32 %v998, %v1219
        %v1333 = vmax.f32 %v1003, %v1221
        %v1334 = vmax.f32 %v1008, %v1223
        %v1335 = vmax.f32 %v1013, %v1225
        %v1336 = vmax.f32 %v1018, %v1227
        %v1337 = vmax.f32 %v1023, %v1229
        %v1338 = vmax.f32 %v1028, %v1231
        %v1339 = vmax.f32 %v1033, %v1233
        %v1340 = vmax.f32 %v1038, %v1235
        %v1341 = vmax.f32 %v1043, %v1237
        %v1342 = vmax.f32 %v1048, %v1239
        %v1343 = vmax.f32 %v1053, %v1241
        %v1344 = vmax.f32 %v1058, %v1243
        %v1345 = vmax.f32 %v1063, %v1245
        %v1346 = vmax.f32 %v1068, %v1247
        %v1347 = vmax.f32 %v1073, %v1249
        %v1348 = vmax.f32 %v1078, %v1251
        %v1349 = vmax.f32 %v1083, %v1253
        %v1350 = vmax.f32 %v1088, %v1255
        %v1351 = vmax.f32 %v1093, %v1257
        %v1352 = vmax.f32 %v1098, %v1259
        %v1353 = vmax.f32 %v1103, %v1261
        %v1354 = vmax.f32 %v1108, %v1263
        %v1355 = vmax.f32 %v1113, %v1265
        %v1356 = vmax.f32 %v1118, %v1267
        %v1357 = vmax.f32 %v1123, %v1269
        %v1358 = vmax.f32 %v1128, %v1271
        %v1359 = vmax.f32 %v1133, %v1273
        %v1360 = vmax.f32 %v1138, %v1275
        %v1361 = vmax.f32 %v1143, %v1277
        %v1362 = vmax.f32 %v1148, %v1279
        %v1363 = vmax.f32 %v1153, %v1281
        %v1364 = vmax.f32 %v1158, %v1283
        %v1365 = vmax.f32 %v1163, %v1285
        %1406 = vrot.lane.b32.xlu0 %v1326, 64
        %v1407 = vpop.permute.xlu0 %1406
        %1408 = vrot.lane.b32.xlu0 %v1327, 64
        %v1409 = vpop.permute.xlu0 %1408
        %1410 = vrot.lane.b32.xlu0 %v1328, 64
        %v1411 = vpop.permute.xlu0 %1410
        %1412 = vrot.lane.b32.xlu0 %v1329, 64
        %v1413 = vpop.permute.xlu0 %1412
        %1414 = vrot.lane.b32.xlu0 %v1330, 64
        %v1415 = vpop.permute.xlu0 %1414
        %1416 = vrot.lane.b32.xlu0 %v1331, 64
        %v1417 = vpop.permute.xlu0 %1416
        %1418 = vrot.lane.b32.xlu0 %v1332, 64
        %v1419 = vpop.permute.xlu0 %1418
        %1420 = vrot.lane.b32.xlu0 %v1333, 64
        %v1421 = vpop.permute.xlu0 %1420
        %1422 = vrot.lane.b32.xlu0 %v1334, 64
        %v1423 = vpop.permute.xlu0 %1422
        %1424 = vrot.lane.b32.xlu0 %v1335, 64
        %v1425 = vpop.permute.xlu0 %1424
        %1426 = vrot.lane.b32.xlu0 %v1336, 64
        %v1427 = vpop.permute.xlu0 %1426
        %1428 = vrot.lane.b32.xlu0 %v1337, 64
        %v1429 = vpop.permute.xlu0 %1428
        %1430 = vrot.lane.b32.xlu0 %v1338, 64
        %v1431 = vpop.permute.xlu0 %1430
        %1432 = vrot.lane.b32.xlu0 %v1339, 64
        %v1433 = vpop.permute.xlu0 %1432
        %1434 = vrot.lane.b32.xlu0 %v1340, 64
        %v1435 = vpop.permute.xlu0 %1434
        %1436 = vrot.lane.b32.xlu0 %v1341, 64
        %v1437 = vpop.permute.xlu0 %1436
        %1438 = vrot.lane.b32.xlu0 %v1342, 64
        %v1439 = vpop.permute.xlu0 %1438
        %1440 = vrot.lane.b32.xlu0 %v1343, 64
        %v1441 = vpop.permute.xlu0 %1440
        %1442 = vrot.lane.b32.xlu0 %v1344, 64
        %v1443 = vpop.permute.xlu0 %1442
        %1444 = vrot.lane.b32.xlu0 %v1345, 64
        %v1445 = vpop.permute.xlu0 %1444
        %1446 = vrot.lane.b32.xlu0 %v1346, 64
        %v1447 = vpop.permute.xlu0 %1446
        %1448 = vrot.lane.b32.xlu0 %v1347, 64
        %v1449 = vpop.permute.xlu0 %1448
        %1450 = vrot.lane.b32.xlu0 %v1348, 64
        %v1451 = vpop.permute.xlu0 %1450
        %1452 = vrot.lane.b32.xlu0 %v1349, 64
        %v1453 = vpop.permute.xlu0 %1452
        %1454 = vrot.lane.b32.xlu0 %v1350, 64
        %v1455 = vpop.permute.xlu0 %1454
        %1456 = vrot.lane.b32.xlu0 %v1351, 64
        %v1457 = vpop.permute.xlu0 %1456
        %1458 = vrot.lane.b32.xlu0 %v1352, 64
        %v1459 = vpop.permute.xlu0 %1458
        %1460 = vrot.lane.b32.xlu0 %v1353, 64
        %v1461 = vpop.permute.xlu0 %1460
        %1462 = vrot.lane.b32.xlu0 %v1354, 64
        %v1463 = vpop.permute.xlu0 %1462
        %1464 = vrot.lane.b32.xlu0 %v1355, 64
        %v1465 = vpop.permute.xlu0 %1464
        %1466 = vrot.lane.b32.xlu0 %v1356, 64
        %v1467 = vpop.permute.xlu0 %1466
        %1468 = vrot.lane.b32.xlu0 %v1357, 64
        %v1469 = vpop.permute.xlu0 %1468
        %1470 = vrot.lane.b32.xlu0 %v1358, 64
        %v1471 = vpop.permute.xlu0 %1470
        %1472 = vrot.lane.b32.xlu0 %v1359, 64
        %v1473 = vpop.permute.xlu0 %1472
        %1474 = vrot.lane.b32.xlu0 %v1360, 64
        %v1475 = vpop.permute.xlu0 %1474
        %1476 = vrot.lane.b32.xlu0 %v1361, 64
        %v1477 = vpop.permute.xlu0 %1476
        %1478 = vrot.lane.b32.xlu0 %v1362, 64
        %v1479 = vpop.permute.xlu0 %1478
        %1480 = vrot.lane.b32.xlu0 %v1363, 64
        %v1481 = vpop.permute.xlu0 %1480
        %1482 = vrot.lane.b32.xlu0 %v1364, 64
        %v1483 = vpop.permute.xlu0 %1482
        %1484 = vrot.lane.b32.xlu0 %v1365, 64
        %v1485 = vpop.permute.xlu0 %1484
        %v1526 = vmax.f32 %v1326, %v1407
        %v1527 = vmax.f32 %v1327, %v1409
        %v1528 = vmax.f32 %v1328, %v1411
        %v1529 = vmax.f32 %v1329, %v1413
        %v1530 = vmax.f32 %v1330, %v1415
        %v1531 = vmax.f32 %v1331, %v1417
        %v1532 = vmax.f32 %v1332, %v1419
        %v1533 = vmax.f32 %v1333, %v1421
        %v1534 = vmax.f32 %v1334, %v1423
        %v1535 = vmax.f32 %v1335, %v1425
        %v1536 = vmax.f32 %v1336, %v1427
        %v1537 = vmax.f32 %v1337, %v1429
        %v1538 = vmax.f32 %v1338, %v1431
        %v1539 = vmax.f32 %v1339, %v1433
        %v1540 = vmax.f32 %v1340, %v1435
        %v1541 = vmax.f32 %v1341, %v1437
        %v1542 = vmax.f32 %v1342, %v1439
        %v1543 = vmax.f32 %v1343, %v1441
        %v1544 = vmax.f32 %v1344, %v1443
        %v1545 = vmax.f32 %v1345, %v1445
        %v1546 = vmax.f32 %v1346, %v1447
        %v1547 = vmax.f32 %v1347, %v1449
        %v1548 = vmax.f32 %v1348, %v1451
        %v1549 = vmax.f32 %v1349, %v1453
        %v1550 = vmax.f32 %v1350, %v1455
        %v1551 = vmax.f32 %v1351, %v1457
        %v1552 = vmax.f32 %v1352, %v1459
        %v1553 = vmax.f32 %v1353, %v1461
        %v1554 = vmax.f32 %v1354, %v1463
        %v1555 = vmax.f32 %v1355, %v1465
        %v1556 = vmax.f32 %v1356, %v1467
        %v1557 = vmax.f32 %v1357, %v1469
        %v1558 = vmax.f32 %v1358, %v1471
        %v1559 = vmax.f32 %v1359, %v1473
        %v1560 = vmax.f32 %v1360, %v1475
        %v1561 = vmax.f32 %v1361, %v1477
        %v1562 = vmax.f32 %v1362, %v1479
        %v1563 = vmax.f32 %v1363, %v1481
        %v1564 = vmax.f32 %v1364, %v1483
        %v1565 = vmax.f32 %v1365, %v1485
        %v1566 = vld [vmem:[%s1] sm:$0xff]
        %v1567 = vld [vmem:[%s1 + $0x8] sm:$0xff]
        %v1568 = vld [vmem:[%s1 + $0x10] sm:$0xff]
        %v1569 = vld [vmem:[%s1 + $0x18] sm:$0xff]
        %v1570 = vld [vmem:[%s1 + $0x20] sm:$0xff]
        %v1571 = vld [vmem:[%s1 + $0x28] sm:$0xff]
        %v1572 = vld [vmem:[%s1 + $0x30] sm:$0xff]
        %v1573 = vld [vmem:[%s1 + $0x38] sm:$0xff]
        %v1574 = vld [vmem:[%s1 + $0x40] sm:$0xff]
        %v1575 = vld [vmem:[%s1 + $0x48] sm:$0xff]
        %v1576 = vld [vmem:[%s1 + $0x50] sm:$0xff]
        %v1577 = vld [vmem:[%s1 + $0x58] sm:$0xff]
        %v1578 = vld [vmem:[%s1 + $0x60] sm:$0xff]
        %v1579 = vld [vmem:[%s1 + $0x68] sm:$0xff]
        %v1580 = vld [vmem:[%s1 + $0x70] sm:$0xff]
        %v1581 = vld [vmem:[%s1 + $0x78] sm:$0xff]
        %v1582 = vld [vmem:[%s1 + $0x80] sm:$0xff]
        %v1583 = vld [vmem:[%s1 + $0x88] sm:$0xff]
        %v1584 = vld [vmem:[%s1 + $0x90] sm:$0xff]
        %v1585 = vld [vmem:[%s1 + $0x98] sm:$0xff]
        %v1586 = vld [vmem:[%s1 + $0xa0] sm:$0xff]
        %v1587 = vld [vmem:[%s1 + $0xa8] sm:$0xff]
        %v1588 = vld [vmem:[%s1 + $0xb0] sm:$0xff]
        %v1589 = vld [vmem:[%s1 + $0xb8] sm:$0xff]
        %v1590 = vld [vmem:[%s1 + $0xc0] sm:$0xff]
        %v1591 = vld [vmem:[%s1 + $0xc8] sm:$0xff]
        %v1592 = vld [vmem:[%s1 + $0xd0] sm:$0xff]
        %v1593 = vld [vmem:[%s1 + $0xd8] sm:$0xff]
        %v1594 = vld [vmem:[%s1 + $0xe0] sm:$0xff]
        %v1595 = vld [vmem:[%s1 + $0xe8] sm:$0xff]
        %v1596 = vld [vmem:[%s1 + $0xf0] sm:$0xff]
        %v1597 = vld [vmem:[%s1 + $0xf8] sm:$0xff]
        %v1598 = vld [vmem:[%s1 + $0x100] sm:$0xff]
        %v1599 = vld [vmem:[%s1 + $0x108] sm:$0xff]
        %v1600 = vld [vmem:[%s1 + $0x110] sm:$0xff]
        %v1601 = vld [vmem:[%s1 + $0x118] sm:$0xff]
        %v1602 = vld [vmem:[%s1 + $0x120] sm:$0xff]
        %v1603 = vld [vmem:[%s1 + $0x128] sm:$0xff]
        %v1604 = vld [vmem:[%s1 + $0x130] sm:$0xff]
        %v1605 = vld [vmem:[%s1 + $0x138] sm:$0xff]
        %v1606 = vadd.f32 %v1526, %v1566
        %v1607 = vadd.f32 %v1527, %v1567
        %v1608 = vadd.f32 %v1528, %v1568
        %v1609 = vadd.f32 %v1529, %v1569
        %v1610 = vadd.f32 %v1530, %v1570
        %v1611 = vadd.f32 %v1531, %v1571
        %v1612 = vadd.f32 %v1532, %v1572
        %v1613 = vadd.f32 %v1533, %v1573
        %v1614 = vadd.f32 %v1534, %v1574
        %v1615 = vadd.f32 %v1535, %v1575
        %v1616 = vadd.f32 %v1536, %v1576
        %v1617 = vadd.f32 %v1537, %v1577
        %v1618 = vadd.f32 %v1538, %v1578
        %v1619 = vadd.f32 %v1539, %v1579
        %v1620 = vadd.f32 %v1540, %v1580
        %v1621 = vadd.f32 %v1541, %v1581
        %v1622 = vadd.f32 %v1542, %v1582
        %v1623 = vadd.f32 %v1543, %v1583
        %v1624 = vadd.f32 %v1544, %v1584
        %v1625 = vadd.f32 %v1545, %v1585
        %v1626 = vadd.f32 %v1546, %v1586
        %v1627 = vadd.f32 %v1547, %v1587
        %v1628 = vadd.f32 %v1548, %v1588
        %v1629 = vadd.f32 %v1549, %v1589
        %v1630 = vadd.f32 %v1550, %v1590
        %v1631 = vadd.f32 %v1551, %v1591
        %v1632 = vadd.f32 %v1552, %v1592
        %v1633 = vadd.f32 %v1553, %v1593
        %v1634 = vadd.f32 %v1554, %v1594
        %v1635 = vadd.f32 %v1555, %v1595
        %v1636 = vadd.f32 %v1556, %v1596
        %v1637 = vadd.f32 %v1557, %v1597
        %v1638 = vadd.f32 %v1558, %v1598
        %v1639 = vadd.f32 %v1559, %v1599
        %v1640 = vadd.f32 %v1560, %v1600
        %v1641 = vadd.f32 %v1561, %v1601
        %v1642 = vadd.f32 %v1562, %v1602
        %v1643 = vadd.f32 %v1563, %v1603
        %v1644 = vadd.f32 %v1564, %v1604
        %v1645 = vadd.f32 %v1565, %v1605
        %v1646 = vmax.f32 %v1606, 0.0
        %v1647 = vmax.f32 %v1607, 0.0
        %v1648 = vmax.f32 %v1608, 0.0
        %v1649 = vmax.f32 %v1609, 0.0
        %v1650 = vmax.f32 %v1610, 0.0
        %v1651 = vmax.f32 %v1611, 0.0
        %v1652 = vmax.f32 %v1612, 0.0
        %v1653 = vmax.f32 %v1613, 0.0
        %v1654 = vmax.f32 %v1614, 0.0
        %v1655 = vmax.f32 %v1615, 0.0
        %v1656 = vmax.f32 %v1616, 0.0
        %v1657 = vmax.f32 %v1617, 0.0
        %v1658 = vmax.f32 %v1618, 0.0
        %v1659 = vmax.f32 %v1619, 0.0
        %v1660 = vmax.f32 %v1620, 0.0
        %v1661 = vmax.f32 %v1621, 0.0
        %v1662 = vmax.f32 %v1622, 0.0
        %v1663 = vmax.f32 %v1623, 0.0
        %v1664 = vmax.f32 %v1624, 0.0
        %v1665 = vmax.f32 %v1625, 0.0
        %v1666 = vmax.f32 %v1626, 0.0
        %v1667 = vmax.f32 %v1627, 0.0
        %v1668 = vmax.f32 %v1628, 0.0
        %v1669 = vmax.f32 %v1629, 0.0
        %v1670 = vmax.f32 %v1630, 0.0
        %v1671 = vmax.f32 %v1631, 0.0
        %v1672 = vmax.f32 %v1632, 0.0
        %v1673 = vmax.f32 %v1633, 0.0
        %v1674 = vmax.f32 %v1634, 0.0
        %v1675 = vmax.f32 %v1635, 0.0
        %v1676 = vmax.f32 %v1636, 0.0
        %v1677 = vmax.f32 %v1637, 0.0
        %v1678 = vmax.f32 %v1638, 0.0
        %v1679 = vmax.f32 %v1639, 0.0
        %v1680 = vmax.f32 %v1640, 0.0
        %v1681 = vmax.f32 %v1641, 0.0
        %v1682 = vmax.f32 %v1642, 0.0
        %v1683 = vmax.f32 %v1643, 0.0
        %v1684 = vmax.f32 %v1644, 0.0
        %v1685 = vmax.f32 %v1645, 0.0
        %vm1686 = vcmask 261120
        %1687 = vst.msk [vmem:[#allocation2] sm:$0xff] %vm1686, %v1646
        %1688 = vst.msk [vmem:[#allocation2 + $0x8] sm:$0xff] %vm1686, %v1647
        %1689 = vst.msk [vmem:[#allocation2 + $0x10] sm:$0xff] %vm1686, %v1648
        %1690 = vst.msk [vmem:[#allocation2 + $0x18] sm:$0xff] %vm1686, %v1649
        %1691 = vst.msk [vmem:[#allocation2 + $0x20] sm:$0xff] %vm1686, %v1650
        %1692 = vst.msk [vmem:[#allocation2 + $0x28] sm:$0xff] %vm1686, %v1651
        %1693 = vst.msk [vmem:[#allocation2 + $0x30] sm:$0xff] %vm1686, %v1652
        %1694 = vst.msk [vmem:[#allocation2 + $0x38] sm:$0xff] %vm1686, %v1653
        %1695 = vst.msk [vmem:[#allocation2 + $0x40] sm:$0xff] %vm1686, %v1654
        %1696 = vst.msk [vmem:[#allocation2 + $0x48] sm:$0xff] %vm1686, %v1655
        %1697 = vst.msk [vmem:[#allocation2 + $0x50] sm:$0xff] %vm1686, %v1656
        %1698 = vst.msk [vmem:[#allocation2 + $0x58] sm:$0xff] %vm1686, %v1657
        %1699 = vst.msk [vmem:[#allocation2 + $0x60] sm:$0xff] %vm1686, %v1658
        %1700 = vst.msk [vmem:[#allocation2 + $0x68] sm:$0xff] %vm1686, %v1659
        %1701 = vst.msk [vmem:[#allocation2 + $0x70] sm:$0xff] %vm1686, %v1660
        %1702 = vst.msk [vmem:[#allocation2 + $0x78] sm:$0xff] %vm1686, %v1661
        %1703 = vst.msk [vmem:[#allocation2 + $0x80] sm:$0xff] %vm1686, %v1662
        %1704 = vst.msk [vmem:[#allocation2 + $0x88] sm:$0xff] %vm1686, %v1663
        %1705 = vst.msk [vmem:[#allocation2 + $0x90] sm:$0xff] %vm1686, %v1664
        %1706 = vst.msk [vmem:[#allocation2 + $0x98] sm:$0xff] %vm1686, %v1665
        %1707 = vst.msk [vmem:[#allocation2 + $0xa0] sm:$0xff] %vm1686, %v1666
        %1708 = vst.msk [vmem:[#allocation2 + $0xa8] sm:$0xff] %vm1686, %v1667
        %1709 = vst.msk [vmem:[#allocation2 + $0xb0] sm:$0xff] %vm1686, %v1668
        %1710 = vst.msk [vmem:[#allocation2 + $0xb8] sm:$0xff] %vm1686, %v1669
        %1711 = vst.msk [vmem:[#allocation2 + $0xc0] sm:$0xff] %vm1686, %v1670
        %1712 = vst.msk [vmem:[#allocation2 + $0xc8] sm:$0xff] %vm1686, %v1671
        %1713 = vst.msk [vmem:[#allocation2 + $0xd0] sm:$0xff] %vm1686, %v1672
        %1714 = vst.msk [vmem:[#allocation2 + $0xd8] sm:$0xff] %vm1686, %v1673
        %1715 = vst.msk [vmem:[#allocation2 + $0xe0] sm:$0xff] %vm1686, %v1674
        %1716 = vst.msk [vmem:[#allocation2 + $0xe8] sm:$0xff] %vm1686, %v1675
        %1717 = vst.msk [vmem:[#allocation2 + $0xf0] sm:$0xff] %vm1686, %v1676
        %1718 = vst.msk [vmem:[#allocation2 + $0xf8] sm:$0xff] %vm1686, %v1677
        %1719 = vst.msk [vmem:[#allocation2 + $0x100] sm:$0xff] %vm1686, %v1678
        %1720 = vst.msk [vmem:[#allocation2 + $0x108] sm:$0xff] %vm1686, %v1679
        %1721 = vst.msk [vmem:[#allocation2 + $0x110] sm:$0xff] %vm1686, %v1680
        %1722 = vst.msk [vmem:[#allocation2 + $0x118] sm:$0xff] %vm1686, %v1681
        %1723 = vst.msk [vmem:[#allocation2 + $0x120] sm:$0xff] %vm1686, %v1682
        %1724 = vst.msk [vmem:[#allocation2 + $0x128] sm:$0xff] %vm1686, %v1683
        %1725 = vst.msk [vmem:[#allocation2 + $0x130] sm:$0xff] %vm1686, %v1684
        %1726 = vst.msk [vmem:[#allocation2 + $0x138] sm:$0xff] %vm1686, %v1685
        %v1727 = vld [vmem:[#allocation2 + $0xf0] sm:$0xff]
        %v1728 = vld [vmem:[#allocation2 + $0xf8] sm:$0xff]
        %v1729 = vld [vmem:[#allocation2 + $0x100] sm:$0xff]
        %v1730 = vld [vmem:[#allocation2 + $0x108] sm:$0xff]
        %v1731 = vld [vmem:[#allocation2 + $0x110] sm:$0xff]
        %v1732 = vld [vmem:[#allocation2 + $0x118] sm:$0xff]
        %v1733 = vld [vmem:[#allocation2 + $0x120] sm:$0xff]
        %1734 = vst.msk [vmem:[#allocation3] sm:$0xff] %vm1686, %v1727
        %1735 = vst.msk [vmem:[#allocation3 + $0x18] sm:$0xff] %vm1686, %v1728
        %1736 = vst.msk [vmem:[#allocation3 + $0x30] sm:$0xff] %vm1686, %v1729
        %1737 = vst.msk [vmem:[#allocation3 + $0x48] sm:$0xff] %vm1686, %v1730
        %1738 = vst.msk [vmem:[#allocation3 + $0x60] sm:$0xff] %vm1686, %v1731
        %1739 = vst.msk [vmem:[#allocation3 + $0x78] sm:$0xff] %vm1686, %v1732
        %1740 = vst.msk [vmem:[#allocation3 + $0x90] sm:$0xff] %vm1686, %v1733
        %v1741 = vld [vmem:[#allocation2 + $0xa1] sm:$0xff]
        %v1742 = vld [vmem:[#allocation2 + $0xa9] sm:$0xff]
        %v1743 = vld [vmem:[#allocation2 + $0xb1] sm:$0xff]
        %v1744 = vld [vmem:[#allocation2 + $0xb9] sm:$0xff]
        %v1745 = vld [vmem:[#allocation2 + $0xc1] sm:$0xff]
        %v1746 = vld [vmem:[#allocation2 + $0xc9] sm:$0xff]
        %v1747 = vld [vmem:[#allocation2 + $0xd1] sm:$0xff]
        %1755 = vrot.lane.b32.xlu0 %v1741, 32
        %v1756 = vpop.permute.xlu0 %1755
        %1757 = vrot.lane.b32.xlu0 %v1742, 32
        %v1758 = vpop.permute.xlu0 %1757
        %1759 = vrot.lane.b32.xlu0 %v1743, 32
        %v1760 = vpop.permute.xlu0 %1759
        %1761 = vrot.lane.b32.xlu0 %v1744, 32
        %v1762 = vpop.permute.xlu0 %1761
        %1763 = vrot.lane.b32.xlu0 %v1745, 32
        %v1764 = vpop.permute.xlu0 %1763
        %1765 = vrot.lane.b32.xlu0 %v1746, 32
        %v1766 = vpop.permute.xlu0 %1765
        %1767 = vrot.lane.b32.xlu0 %v1747, 32
        %v1768 = vpop.permute.xlu0 %1767
        %vm1776 = vcmask 523520
        %1777 = vst.msk [vmem:[#allocation3] sm:$0xff] %vm1776, %v1756
        %1778 = vst.msk [vmem:[#allocation3 + $0x18] sm:$0xff] %vm1776, %v1758
        %1779 = vst.msk [vmem:[#allocation3 + $0x30] sm:$0xff] %vm1776, %v1760
        %1780 = vst.msk [vmem:[#allocation3 + $0x48] sm:$0xff] %vm1776, %v1762
        %1781 = vst.msk [vmem:[#allocation3 + $0x60] sm:$0xff] %vm1776, %v1764
        %1782 = vst.msk [vmem:[#allocation3 + $0x78] sm:$0xff] %vm1776, %v1766
        %1783 = vst.msk [vmem:[#allocation3 + $0x90] sm:$0xff] %vm1776, %v1768
        %v1784 = vld [vmem:[#allocation2 + $0xf1] sm:$0xff]
        %v1785 = vld [vmem:[#allocation2 + $0xf9] sm:$0xff]
        %v1786 = vld [vmem:[#allocation2 + $0x101] sm:$0xff]
        %v1787 = vld [vmem:[#allocation2 + $0x109] sm:$0xff]
        %v1788 = vld [vmem:[#allocation2 + $0x111] sm:$0xff]
        %v1789 = vld [vmem:[#allocation2 + $0x119] sm:$0xff]
        %v1790 = vld [vmem:[#allocation2 + $0x121] sm:$0xff]
        %1798 = vrot.lane.b32.xlu0 %v1784, 64
        %v1799 = vpop.permute.xlu0 %1798
        %1800 = vrot.lane.b32.xlu0 %v1785, 64
        %v1801 = vpop.permute.xlu0 %1800
        %1802 = vrot.lane.b32.xlu0 %v1786, 64
        %v1803 = vpop.permute.xlu0 %1802
        %1804 = vrot.lane.b32.xlu0 %v1787, 64
        %v1805 = vpop.permute.xlu0 %1804
        %1806 = vrot.lane.b32.xlu0 %v1788, 64
        %v1807 = vpop.permute.xlu0 %1806
        %1808 = vrot.lane.b32.xlu0 %v1789, 64
        %v1809 = vpop.permute.xlu0 %1808
        %1810 = vrot.lane.b32.xlu0 %v1790, 64
        %v1811 = vpop.permute.xlu0 %1810
        %vm1819 = vcmask 785920
        %1820 = vst.msk [vmem:[#allocation3] sm:$0xff] %vm1819, %v1799
        %1821 = vst.msk [vmem:[#allocation3 + $0x18] sm:$0xff] %vm1819, %v1801
        %1822 = vst.msk [vmem:[#allocation3 + $0x30] sm:$0xff] %vm1819, %v1803
        %1823 = vst.msk [vmem:[#allocation3 + $0x48] sm:$0xff] %vm1819, %v1805
        %1824 = vst.msk [vmem:[#allocation3 + $0x60] sm:$0xff] %vm1819, %v1807
        %1825 = vst.msk [vmem:[#allocation3 + $0x78] sm:$0xff] %vm1819, %v1809
        %1826 = vst.msk [vmem:[#allocation3 + $0x90] sm:$0xff] %vm1819, %v1811
        %v1827 = vld [vmem:[#allocation2 + $0x58] sm:$0xff]
        %v1828 = vld [vmem:[#allocation2 + $0x60] sm:$0xff]
        %v1829 = vld [vmem:[#allocation2 + $0x68] sm:$0xff]
        %v1830 = vld [vmem:[#allocation2 + $0x70] sm:$0xff]
        %v1831 = vld [vmem:[#allocation2 + $0x78] sm:$0xff]
        %v1832 = vld [vmem:[#allocation2 + $0x80] sm:$0xff]
        %v1833 = vld [vmem:[#allocation2 + $0x88] sm:$0xff]
        %1841 = vrot.lane.b32.xlu0 %v1827, 96
        %v1842 = vpop.permute.xlu0 %1841
        %1843 = vrot.lane.b32.xlu0 %v1828, 96
        %v1844 = vpop.permute.xlu0 %1843
        %1845 = vrot.lane.b32.xlu0 %v1829, 96
        %v1846 = vpop.permute.xlu0 %1845
        %1847 = vrot.lane.b32.xlu0 %v1830, 96
        %v1848 = vpop.permute.xlu0 %1847
        %1849 = vrot.lane.b32.xlu0 %v1831, 96
        %v1850 = vpop.permute.xlu0 %1849
        %1851 = vrot.lane.b32.xlu0 %v1832, 96
        %v1852 = vpop.permute.xlu0 %1851
        %1853 = vrot.lane.b32.xlu0 %v1833, 96
        %v1854 = vpop.permute.xlu0 %1853
        %vm1862 = vcmask 1048320
        %1863 = vst.msk [vmem:[#allocation3] sm:$0xff] %vm1862, %v1842
        %1864 = vst.msk [vmem:[#allocation3 + $0x18] sm:$0xff] %vm1862, %v1844
        %1865 = vst.msk [vmem:[#allocation3 + $0x30] sm:$0xff] %vm1862, %v1846
        %1866 = vst.msk [vmem:[#allocation3 + $0x48] sm:$0xff] %vm1862, %v1848
        %1867 = vst.msk [vmem:[#allocation3 + $0x60] sm:$0xff] %vm1862, %v1850
        %1868 = vst.msk [vmem:[#allocation3 + $0x78] sm:$0xff] %vm1862, %v1852
        %1869 = vst.msk [vmem:[#allocation3 + $0x90] sm:$0xff] %vm1862, %v1854
        %v1870 = vld [vmem:[#allocation2 + $0x9] sm:$0xff]
        %v1871 = vld [vmem:[#allocation2 + $0x11] sm:$0xff]
        %v1872 = vld [vmem:[#allocation2 + $0x19] sm:$0xff]
        %v1873 = vld [vmem:[#allocation2 + $0x21] sm:$0xff]
        %v1874 = vld [vmem:[#allocation2 + $0x29] sm:$0xff]
        %v1875 = vld [vmem:[#allocation2 + $0x31] sm:$0xff]
        %v1876 = vld [vmem:[#allocation2 + $0x39] sm:$0xff]
        %1877 = vst.msk [vmem:[#allocation3 + $0x8] sm:$0xff] %vm1686, %v1870
        %1878 = vst.msk [vmem:[#allocation3 + $0x20] sm:$0xff] %vm1686, %v1871
        %1879 = vst.msk [vmem:[#allocation3 + $0x38] sm:$0xff] %vm1686, %v1872
        %1880 = vst.msk [vmem:[#allocation3 + $0x50] sm:$0xff] %vm1686, %v1873
        %1881 = vst.msk [vmem:[#allocation3 + $0x68] sm:$0xff] %vm1686, %v1874
        %1882 = vst.msk [vmem:[#allocation3 + $0x80] sm:$0xff] %vm1686, %v1875
        %1883 = vst.msk [vmem:[#allocation3 + $0x98] sm:$0xff] %vm1686, %v1876
        %v1884 = vld [vmem:[#allocation2 + $0x59] sm:$0xff]
        %v1885 = vld [vmem:[#allocation2 + $0x61] sm:$0xff]
        %v1886 = vld [vmem:[#allocation2 + $0x69] sm:$0xff]
        %v1887 = vld [vmem:[#allocation2 + $0x71] sm:$0xff]
        %v1888 = vld [vmem:[#allocation2 + $0x79] sm:$0xff]
        %v1889 = vld [vmem:[#allocation2 + $0x81] sm:$0xff]
        %v1890 = vld [vmem:[#allocation2 + $0x89] sm:$0xff]
        %1898 = vrot.lane.b32.xlu0 %v1884, 32
        %v1899 = vpop.permute.xlu0 %1898
        %1900 = vrot.lane.b32.xlu0 %v1885, 32
        %v1901 = vpop.permute.xlu0 %1900
        %1902 = vrot.lane.b32.xlu0 %v1886, 32
        %v1903 = vpop.permute.xlu0 %1902
        %1904 = vrot.lane.b32.xlu0 %v1887, 32
        %v1905 = vpop.permute.xlu0 %1904
        %1906 = vrot.lane.b32.xlu0 %v1888, 32
        %v1907 = vpop.permute.xlu0 %1906
        %1908 = vrot.lane.b32.xlu0 %v1889, 32
        %v1909 = vpop.permute.xlu0 %1908
        %1910 = vrot.lane.b32.xlu0 %v1890, 32
        %v1911 = vpop.permute.xlu0 %1910
        %1919 = vst.msk [vmem:[#allocation3 + $0x8] sm:$0xff] %vm1776, %v1899
        %1920 = vst.msk [vmem:[#allocation3 + $0x20] sm:$0xff] %vm1776, %v1901
        %1921 = vst.msk [vmem:[#allocation3 + $0x38] sm:$0xff] %vm1776, %v1903
        %1922 = vst.msk [vmem:[#allocation3 + $0x50] sm:$0xff] %vm1776, %v1905
        %1923 = vst.msk [vmem:[#allocation3 + $0x68] sm:$0xff] %vm1776, %v1907
        %1924 = vst.msk [vmem:[#allocation3 + $0x80] sm:$0xff] %vm1776, %v1909
        %1925 = vst.msk [vmem:[#allocation3 + $0x98] sm:$0xff] %vm1776, %v1911
        %v1926 = vld [vmem:[#allocation2 + $0xf8] sm:$0xff]
        %v1927 = vld [vmem:[#allocation2 + $0x100] sm:$0xff]
        %v1928 = vld [vmem:[#allocation2 + $0x108] sm:$0xff]
        %v1929 = vld [vmem:[#allocation2 + $0x110] sm:$0xff]
        %v1930 = vld [vmem:[#allocation2 + $0x118] sm:$0xff]
        %v1931 = vld [vmem:[#allocation2 + $0x120] sm:$0xff]
        %v1932 = vld [vmem:[#allocation2 + $0x128] sm:$0xff]
        %1940 = vrot.lane.b32.xlu0 %v1926, 64
        %v1941 = vpop.permute.xlu0 %1940
        %1942 = vrot.lane.b32.xlu0 %v1927, 64
        %v1943 = vpop.permute.xlu0 %1942
        %1944 = vrot.lane.b32.xlu0 %v1928, 64
        %v1945 = vpop.permute.xlu0 %1944
        %1946 = vrot.lane.b32.xlu0 %v1929, 64
        %v1947 = vpop.permute.xlu0 %1946
        %1948 = vrot.lane.b32.xlu0 %v1930, 64
        %v1949 = vpop.permute.xlu0 %1948
        %1950 = vrot.lane.b32.xlu0 %v1931, 64
        %v1951 = vpop.permute.xlu0 %1950
        %1952 = vrot.lane.b32.xlu0 %v1932, 64
        %v1953 = vpop.permute.xlu0 %1952
        %1961 = vst.msk [vmem:[#allocation3 + $0x8] sm:$0xff] %vm1819, %v1941
        %1962 = vst.msk [vmem:[#allocation3 + $0x20] sm:$0xff] %vm1819, %v1943
        %1963 = vst.msk [vmem:[#allocation3 + $0x38] sm:$0xff] %vm1819, %v1945
        %1964 = vst.msk [vmem:[#allocation3 + $0x50] sm:$0xff] %vm1819, %v1947
        %1965 = vst.msk [vmem:[#allocation3 + $0x68] sm:$0xff] %vm1819, %v1949
        %1966 = vst.msk [vmem:[#allocation3 + $0x80] sm:$0xff] %vm1819, %v1951
        %1967 = vst.msk [vmem:[#allocation3 + $0x98] sm:$0xff] %vm1819, %v1953
        %v1968 = vld [vmem:[#allocation2 + $0xa9] sm:$0xff]
        %v1969 = vld [vmem:[#allocation2 + $0xb1] sm:$0xff]
        %v1970 = vld [vmem:[#allocation2 + $0xb9] sm:$0xff]
        %v1971 = vld [vmem:[#allocation2 + $0xc1] sm:$0xff]
        %v1972 = vld [vmem:[#allocation2 + $0xc9] sm:$0xff]
        %v1973 = vld [vmem:[#allocation2 + $0xd1] sm:$0xff]
        %v1974 = vld [vmem:[#allocation2 + $0xd9] sm:$0xff]
        %1982 = vrot.lane.b32.xlu0 %v1968, 96
        %v1983 = vpop.permute.xlu0 %1982
        %1984 = vrot.lane.b32.xlu0 %v1969, 96
        %v1985 = vpop.permute.xlu0 %1984
        %1986 = vrot.lane.b32.xlu0 %v1970, 96
        %v1987 = vpop.permute.xlu0 %1986
        %1988 = vrot.lane.b32.xlu0 %v1971, 96
        %v1989 = vpop.permute.xlu0 %1988
        %1990 = vrot.lane.b32.xlu0 %v1972, 96
        %v1991 = vpop.permute.xlu0 %1990
        %1992 = vrot.lane.b32.xlu0 %v1973, 96
        %v1993 = vpop.permute.xlu0 %1992
        %1994 = vrot.lane.b32.xlu0 %v1974, 96
        %v1995 = vpop.permute.xlu0 %1994
        %2003 = vst.msk [vmem:[#allocation3 + $0x8] sm:$0xff] %vm1862, %v1983
        %2004 = vst.msk [vmem:[#allocation3 + $0x20] sm:$0xff] %vm1862, %v1985
        %2005 = vst.msk [vmem:[#allocation3 + $0x38] sm:$0xff] %vm1862, %v1987
        %2006 = vst.msk [vmem:[#allocation3 + $0x50] sm:$0xff] %vm1862, %v1989
        %2007 = vst.msk [vmem:[#allocation3 + $0x68] sm:$0xff] %vm1862, %v1991
        %2008 = vst.msk [vmem:[#allocation3 + $0x80] sm:$0xff] %vm1862, %v1993
        %2009 = vst.msk [vmem:[#allocation3 + $0x98] sm:$0xff] %vm1862, %v1995
        %v2010 = vld [vmem:[#allocation2 + $0xf9] sm:$0xff]
        %v2011 = vld [vmem:[#allocation2 + $0x101] sm:$0xff]
        %v2012 = vld [vmem:[#allocation2 + $0x109] sm:$0xff]
        %v2013 = vld [vmem:[#allocation2 + $0x111] sm:$0xff]
        %v2014 = vld [vmem:[#allocation2 + $0x119] sm:$0xff]
        %v2015 = vld [vmem:[#allocation2 + $0x121] sm:$0xff]
        %v2016 = vld [vmem:[#allocation2 + $0x129] sm:$0xff]
        %2017 = vst.msk [vmem:[#allocation3 + $0x10] sm:$0xff] %vm1686, %v2010
        %2018 = vst.msk [vmem:[#allocation3 + $0x28] sm:$0xff] %vm1686, %v2011
        %2019 = vst.msk [vmem:[#allocation3 + $0x40] sm:$0xff] %vm1686, %v2012
        %2020 = vst.msk [vmem:[#allocation3 + $0x58] sm:$0xff] %vm1686, %v2013
        %2021 = vst.msk [vmem:[#allocation3 + $0x70] sm:$0xff] %vm1686, %v2014
        %2022 = vst.msk [vmem:[#allocation3 + $0x88] sm:$0xff] %vm1686, %v2015
        %2023 = vst.msk [vmem:[#allocation3 + $0xa0] sm:$0xff] %vm1686, %v2016
        %v2024 = vld [vmem:[#allocation2 + $0xa1] sm:$0xff]
        %v2025 = vld [vmem:[#allocation2 + $0xa9] sm:$0xff]
        %v2026 = vld [vmem:[#allocation2 + $0xb1] sm:$0xff]
        %v2027 = vld [vmem:[#allocation2 + $0xb9] sm:$0xff]
        %v2028 = vld [vmem:[#allocation2 + $0xc1] sm:$0xff]
        %v2029 = vld [vmem:[#allocation2 + $0xc9] sm:$0xff]
        %v2030 = vld [vmem:[#allocation2 + $0xd1] sm:$0xff]
        %2031 = vst.msk [vmem:[#allocation3 + $0xa8] sm:$0xff] %vm1686, %v2024
        %2032 = vst.msk [vmem:[#allocation3 + $0xc0] sm:$0xff] %vm1686, %v2025
        %2033 = vst.msk [vmem:[#allocation3 + $0xd8] sm:$0xff] %vm1686, %v2026
        %2034 = vst.msk [vmem:[#allocation3 + $0xf0] sm:$0xff] %vm1686, %v2027
        %2035 = vst.msk [vmem:[#allocation3 + $0x108] sm:$0xff] %vm1686, %v2028
        %2036 = vst.msk [vmem:[#allocation3 + $0x120] sm:$0xff] %vm1686, %v2029
        %2037 = vst.msk [vmem:[#allocation3 + $0x138] sm:$0xff] %vm1686, %v2030
        %v2038 = vld [vmem:[#allocation2 + $0xf1] sm:$0xff]
        %v2039 = vld [vmem:[#allocation2 + $0xf9] sm:$0xff]
        %v2040 = vld [vmem:[#allocation2 + $0x101] sm:$0xff]
        %v2041 = vld [vmem:[#allocation2 + $0x109] sm:$0xff]
        %v2042 = vld [vmem:[#allocation2 + $0x111] sm:$0xff]
        %v2043 = vld [vmem:[#allocation2 + $0x119] sm:$0xff]
        %v2044 = vld [vmem:[#allocation2 + $0x121] sm:$0xff]
        %2052 = vrot.lane.b32.xlu0 %v2038, 32
        %v2053 = vpop.permute.xlu0 %2052
        %2054 = vrot.lane.b32.xlu0 %v2039, 32
        %v2055 = vpop.permute.xlu0 %2054
        %2056 = vrot.lane.b32.xlu0 %v2040, 32
        %v2057 = vpop.permute.xlu0 %2056
        %2058 = vrot.lane.b32.xlu0 %v2041, 32
        %v2059 = vpop.permute.xlu0 %2058
        %2060 = vrot.lane.b32.xlu0 %v2042, 32
        %v2061 = vpop.permute.xlu0 %2060
        %2062 = vrot.lane.b32.xlu0 %v2043, 32
        %v2063 = vpop.permute.xlu0 %2062
        %2064 = vrot.lane.b32.xlu0 %v2044, 32
        %v2065 = vpop.permute.xlu0 %2064
        %2073 = vst.msk [vmem:[#allocation3 + $0xa8] sm:$0xff] %vm1776, %v2053
        %2074 = vst.msk [vmem:[#allocation3 + $0xc0] sm:$0xff] %vm1776, %v2055
        %2075 = vst.msk [vmem:[#allocation3 + $0xd8] sm:$0xff] %vm1776, %v2057
        %2076 = vst.msk [vmem:[#allocation3 + $0xf0] sm:$0xff] %vm1776, %v2059
        %2077 = vst.msk [vmem:[#allocation3 + $0x108] sm:$0xff] %vm1776, %v2061
        %2078 = vst.msk [vmem:[#allocation3 + $0x120] sm:$0xff] %vm1776, %v2063
        %2079 = vst.msk [vmem:[#allocation3 + $0x138] sm:$0xff] %vm1776, %v2065
        %v2080 = vld [vmem:[#allocation2 + $0xa2] sm:$0xff]
        %v2081 = vld [vmem:[#allocation2 + $0xaa] sm:$0xff]
        %v2082 = vld [vmem:[#allocation2 + $0xb2] sm:$0xff]
        %v2083 = vld [vmem:[#allocation2 + $0xba] sm:$0xff]
        %v2084 = vld [vmem:[#allocation2 + $0xc2] sm:$0xff]
        %v2085 = vld [vmem:[#allocation2 + $0xca] sm:$0xff]
        %v2086 = vld [vmem:[#allocation2 + $0xd2] sm:$0xff]
        %2094 = vrot.lane.b32.xlu0 %v2080, 64
        %v2095 = vpop.permute.xlu0 %2094
        %2096 = vrot.lane.b32.xlu0 %v2081, 64
        %v2097 = vpop.permute.xlu0 %2096
        %2098 = vrot.lane.b32.xlu0 %v2082, 64
        %v2099 = vpop.permute.xlu0 %2098
        %2100 = vrot.lane.b32.xlu0 %v2083, 64
        %v2101 = vpop.permute.xlu0 %2100
        %2102 = vrot.lane.b32.xlu0 %v2084, 64
        %v2103 = vpop.permute.xlu0 %2102
        %2104 = vrot.lane.b32.xlu0 %v2085, 64
        %v2105 = vpop.permute.xlu0 %2104
        %2106 = vrot.lane.b32.xlu0 %v2086, 64
        %v2107 = vpop.permute.xlu0 %2106
        %2115 = vst.msk [vmem:[#allocation3 + $0xa8] sm:$0xff] %vm1819, %v2095
        %2116 = vst.msk [vmem:[#allocation3 + $0xc0] sm:$0xff] %vm1819, %v2097
        %2117 = vst.msk [vmem:[#allocation3 + $0xd8] sm:$0xff] %vm1819, %v2099
        %2118 = vst.msk [vmem:[#allocation3 + $0xf0] sm:$0xff] %vm1819, %v2101
        %2119 = vst.msk [vmem:[#allocation3 + $0x108] sm:$0xff] %vm1819, %v2103
        %2120 = vst.msk [vmem:[#allocation3 + $0x120] sm:$0xff] %vm1819, %v2105
        %2121 = vst.msk [vmem:[#allocation3 + $0x138] sm:$0xff] %vm1819, %v2107
        %v2122 = vld [vmem:[#allocation2 + $0x9] sm:$0xff]
        %v2123 = vld [vmem:[#allocation2 + $0x11] sm:$0xff]
        %v2124 = vld [vmem:[#allocation2 + $0x19] sm:$0xff]
        %v2125 = vld [vmem:[#allocation2 + $0x21] sm:$0xff]
        %v2126 = vld [vmem:[#allocation2 + $0x29] sm:$0xff]
        %v2127 = vld [vmem:[#allocation2 + $0x31] sm:$0xff]
        %v2128 = vld [vmem:[#allocation2 + $0x39] sm:$0xff]
        %2136 = vrot.lane.b32.xlu0 %v2122, 96
        %v2137 = vpop.permute.xlu0 %2136
        %2138 = vrot.lane.b32.xlu0 %v2123, 96
        %v2139 = vpop.permute.xlu0 %2138
        %2140 = vrot.lane.b32.xlu0 %v2124, 96
        %v2141 = vpop.permute.xlu0 %2140
        %2142 = vrot.lane.b32.xlu0 %v2125, 96
        %v2143 = vpop.permute.xlu0 %2142
        %2144 = vrot.lane.b32.xlu0 %v2126, 96
        %v2145 = vpop.permute.xlu0 %2144
        %2146 = vrot.lane.b32.xlu0 %v2127, 96
        %v2147 = vpop.permute.xlu0 %2146
        %2148 = vrot.lane.b32.xlu0 %v2128, 96
        %v2149 = vpop.permute.xlu0 %2148
        %2157 = vst.msk [vmem:[#allocation3 + $0xa8] sm:$0xff] %vm1862, %v2137
        %2158 = vst.msk [vmem:[#allocation3 + $0xc0] sm:$0xff] %vm1862, %v2139
        %2159 = vst.msk [vmem:[#allocation3 + $0xd8] sm:$0xff] %vm1862, %v2141
        %2160 = vst.msk [vmem:[#allocation3 + $0xf0] sm:$0xff] %vm1862, %v2143
        %2161 = vst.msk [vmem:[#allocation3 + $0x108] sm:$0xff] %vm1862, %v2145
        %2162 = vst.msk [vmem:[#allocation3 + $0x120] sm:$0xff] %vm1862, %v2147
        %2163 = vst.msk [vmem:[#allocation3 + $0x138] sm:$0xff] %vm1862, %v2149
        %v2164 = vld [vmem:[#allocation2 + $0x59] sm:$0xff]
        %v2165 = vld [vmem:[#allocation2 + $0x61] sm:$0xff]
        %v2166 = vld [vmem:[#allocation2 + $0x69] sm:$0xff]
        %v2167 = vld [vmem:[#allocation2 + $0x71] sm:$0xff]
        %v2168 = vld [vmem:[#allocation2 + $0x79] sm:$0xff]
        %v2169 = vld [vmem:[#allocation2 + $0x81] sm:$0xff]
        %v2170 = vld [vmem:[#allocation2 + $0x89] sm:$0xff]
        %2171 = vst.msk [vmem:[#allocation3 + $0xb0] sm:$0xff] %vm1686, %v2164
        %2172 = vst.msk [vmem:[#allocation3 + $0xc8] sm:$0xff] %vm1686, %v2165
        %2173 = vst.msk [vmem:[#allocation3 + $0xe0] sm:$0xff] %vm1686, %v2166
        %2174 = vst.msk [vmem:[#allocation3 + $0xf8] sm:$0xff] %vm1686, %v2167
        %2175 = vst.msk [vmem:[#allocation3 + $0x110] sm:$0xff] %vm1686, %v2168
        %2176 = vst.msk [vmem:[#allocation3 + $0x128] sm:$0xff] %vm1686, %v2169
        %2177 = vst.msk [vmem:[#allocation3 + $0x140] sm:$0xff] %vm1686, %v2170
        %v2178 = vld [vmem:[#allocation2 + $0xa] sm:$0xff]
        %v2179 = vld [vmem:[#allocation2 + $0x12] sm:$0xff]
        %v2180 = vld [vmem:[#allocation2 + $0x1a] sm:$0xff]
        %v2181 = vld [vmem:[#allocation2 + $0x22] sm:$0xff]
        %v2182 = vld [vmem:[#allocation2 + $0x2a] sm:$0xff]
        %v2183 = vld [vmem:[#allocation2 + $0x32] sm:$0xff]
        %v2184 = vld [vmem:[#allocation2 + $0x3a] sm:$0xff]
        %2192 = vrot.lane.b32.xlu0 %v2178, 32
        %v2193 = vpop.permute.xlu0 %2192
        %2194 = vrot.lane.b32.xlu0 %v2179, 32
        %v2195 = vpop.permute.xlu0 %2194
        %2196 = vrot.lane.b32.xlu0 %v2180, 32
        %v2197 = vpop.permute.xlu0 %2196
        %2198 = vrot.lane.b32.xlu0 %v2181, 32
        %v2199 = vpop.permute.xlu0 %2198
        %2200 = vrot.lane.b32.xlu0 %v2182, 32
        %v2201 = vpop.permute.xlu0 %2200
        %2202 = vrot.lane.b32.xlu0 %v2183, 32
        %v2203 = vpop.permute.xlu0 %2202
        %2204 = vrot.lane.b32.xlu0 %v2184, 32
        %v2205 = vpop.permute.xlu0 %2204
        %2213 = vst.msk [vmem:[#allocation3 + $0xb0] sm:$0xff] %vm1776, %v2193
        %2214 = vst.msk [vmem:[#allocation3 + $0xc8] sm:$0xff] %vm1776, %v2195
        %2215 = vst.msk [vmem:[#allocation3 + $0xe0] sm:$0xff] %vm1776, %v2197
        %2216 = vst.msk [vmem:[#allocation3 + $0xf8] sm:$0xff] %vm1776, %v2199
        %2217 = vst.msk [vmem:[#allocation3 + $0x110] sm:$0xff] %vm1776, %v2201
        %2218 = vst.msk [vmem:[#allocation3 + $0x128] sm:$0xff] %vm1776, %v2203
        %2219 = vst.msk [vmem:[#allocation3 + $0x140] sm:$0xff] %vm1776, %v2205
        %v2220 = vld [vmem:[#allocation2 + $0xa9] sm:$0xff]
        %v2221 = vld [vmem:[#allocation2 + $0xb1] sm:$0xff]
        %v2222 = vld [vmem:[#allocation2 + $0xb9] sm:$0xff]
        %v2223 = vld [vmem:[#allocation2 + $0xc1] sm:$0xff]
        %v2224 = vld [vmem:[#allocation2 + $0xc9] sm:$0xff]
        %v2225 = vld [vmem:[#allocation2 + $0xd1] sm:$0xff]
        %v2226 = vld [vmem:[#allocation2 + $0xd9] sm:$0xff]
        %2234 = vrot.lane.b32.xlu0 %v2220, 64
        %v2235 = vpop.permute.xlu0 %2234
        %2236 = vrot.lane.b32.xlu0 %v2221, 64
        %v2237 = vpop.permute.xlu0 %2236
        %2238 = vrot.lane.b32.xlu0 %v2222, 64
        %v2239 = vpop.permute.xlu0 %2238
        %2240 = vrot.lane.b32.xlu0 %v2223, 64
        %v2241 = vpop.permute.xlu0 %2240
        %2242 = vrot.lane.b32.xlu0 %v2224, 64
        %v2243 = vpop.permute.xlu0 %2242
        %2244 = vrot.lane.b32.xlu0 %v2225, 64
        %v2245 = vpop.permute.xlu0 %2244
        %2246 = vrot.lane.b32.xlu0 %v2226, 64
        %v2247 = vpop.permute.xlu0 %2246
        %2255 = vst.msk [vmem:[#allocation3 + $0xb0] sm:$0xff] %vm1819, %v2235
        %2256 = vst.msk [vmem:[#allocation3 + $0xc8] sm:$0xff] %vm1819, %v2237
        %2257 = vst.msk [vmem:[#allocation3 + $0xe0] sm:$0xff] %vm1819, %v2239
        %2258 = vst.msk [vmem:[#allocation3 + $0xf8] sm:$0xff] %vm1819, %v2241
        %2259 = vst.msk [vmem:[#allocation3 + $0x110] sm:$0xff] %vm1819, %v2243
        %2260 = vst.msk [vmem:[#allocation3 + $0x128] sm:$0xff] %vm1819, %v2245
        %2261 = vst.msk [vmem:[#allocation3 + $0x140] sm:$0xff] %vm1819, %v2247
        %v2262 = vld [vmem:[#allocation2 + $0xf9] sm:$0xff]
        %v2263 = vld [vmem:[#allocation2 + $0x101] sm:$0xff]
        %v2264 = vld [vmem:[#allocation2 + $0x109] sm:$0xff]
        %v2265 = vld [vmem:[#allocation2 + $0x111] sm:$0xff]
        %v2266 = vld [vmem:[#allocation2 + $0x119] sm:$0xff]
        %v2267 = vld [vmem:[#allocation2 + $0x121] sm:$0xff]
        %v2268 = vld [vmem:[#allocation2 + $0x129] sm:$0xff]
        %2276 = vrot.lane.b32.xlu0 %v2262, 96
        %v2277 = vpop.permute.xlu0 %2276
        %2278 = vrot.lane.b32.xlu0 %v2263, 96
        %v2279 = vpop.permute.xlu0 %2278
        %2280 = vrot.lane.b32.xlu0 %v2264, 96
        %v2281 = vpop.permute.xlu0 %2280
        %2282 = vrot.lane.b32.xlu0 %v2265, 96
        %v2283 = vpop.permute.xlu0 %2282
        %2284 = vrot.lane.b32.xlu0 %v2266, 96
        %v2285 = vpop.permute.xlu0 %2284
        %2286 = vrot.lane.b32.xlu0 %v2267, 96
        %v2287 = vpop.permute.xlu0 %2286
        %2288 = vrot.lane.b32.xlu0 %v2268, 96
        %v2289 = vpop.permute.xlu0 %2288
        %2297 = vst.msk [vmem:[#allocation3 + $0xb0] sm:$0xff] %vm1862, %v2277
        %2298 = vst.msk [vmem:[#allocation3 + $0xc8] sm:$0xff] %vm1862, %v2279
        %2299 = vst.msk [vmem:[#allocation3 + $0xe0] sm:$0xff] %vm1862, %v2281
        %2300 = vst.msk [vmem:[#allocation3 + $0xf8] sm:$0xff] %vm1862, %v2283
        %2301 = vst.msk [vmem:[#allocation3 + $0x110] sm:$0xff] %vm1862, %v2285
        %2302 = vst.msk [vmem:[#allocation3 + $0x128] sm:$0xff] %vm1862, %v2287
        %2303 = vst.msk [vmem:[#allocation3 + $0x140] sm:$0xff] %vm1862, %v2289
        %v2304 = vld [vmem:[#allocation2 + $0xaa] sm:$0xff]
        %v2305 = vld [vmem:[#allocation2 + $0xb2] sm:$0xff]
        %v2306 = vld [vmem:[#allocation2 + $0xba] sm:$0xff]
        %v2307 = vld [vmem:[#allocation2 + $0xc2] sm:$0xff]
        %v2308 = vld [vmem:[#allocation2 + $0xca] sm:$0xff]
        %v2309 = vld [vmem:[#allocation2 + $0xd2] sm:$0xff]
        %v2310 = vld [vmem:[#allocation2 + $0xda] sm:$0xff]
        %2311 = vst.msk [vmem:[#allocation3 + $0xb8] sm:$0xff] %vm1686, %v2304
        %2312 = vst.msk [vmem:[#allocation3 + $0xd0] sm:$0xff] %vm1686, %v2305
        %2313 = vst.msk [vmem:[#allocation3 + $0xe8] sm:$0xff] %vm1686, %v2306
        %2314 = vst.msk [vmem:[#allocation3 + $0x100] sm:$0xff] %vm1686, %v2307
        %2315 = vst.msk [vmem:[#allocation3 + $0x118] sm:$0xff] %vm1686, %v2308
        %2316 = vst.msk [vmem:[#allocation3 + $0x130] sm:$0xff] %vm1686, %v2309
        %2317 = vst.msk [vmem:[#allocation3 + $0x148] sm:$0xff] %vm1686, %v2310
        %v2318 = vld [vmem:[#allocation2 + $0x58] sm:$0xff]
        %v2319 = vld [vmem:[#allocation2 + $0x60] sm:$0xff]
        %v2320 = vld [vmem:[#allocation2 + $0x68] sm:$0xff]
        %v2321 = vld [vmem:[#allocation2 + $0x70] sm:$0xff]
        %v2322 = vld [vmem:[#allocation2 + $0x78] sm:$0xff]
        %v2323 = vld [vmem:[#allocation2 + $0x80] sm:$0xff]
        %v2324 = vld [vmem:[#allocation2 + $0x88] sm:$0xff]
        %2325 = vst.msk [vmem:[#allocation3 + $0x150] sm:$0xff] %vm1686, %v2318
        %2326 = vst.msk [vmem:[#allocation3 + $0x168] sm:$0xff] %vm1686, %v2319
        %2327 = vst.msk [vmem:[#allocation3 + $0x180] sm:$0xff] %vm1686, %v2320
        %2328 = vst.msk [vmem:[#allocation3 + $0x198] sm:$0xff] %vm1686, %v2321
        %2329 = vst.msk [vmem:[#allocation3 + $0x1b0] sm:$0xff] %vm1686, %v2322
        %2330 = vst.msk [vmem:[#allocation3 + $0x1c8] sm:$0xff] %vm1686, %v2323
        %2331 = vst.msk [vmem:[#allocation3 + $0x1e0] sm:$0xff] %vm1686, %v2324
        %v2332 = vld [vmem:[#allocation2 + $0x9] sm:$0xff]
        %v2333 = vld [vmem:[#allocation2 + $0x11] sm:$0xff]
        %v2334 = vld [vmem:[#allocation2 + $0x19] sm:$0xff]
        %v2335 = vld [vmem:[#allocation2 + $0x21] sm:$0xff]
        %v2336 = vld [vmem:[#allocation2 + $0x29] sm:$0xff]
        %v2337 = vld [vmem:[#allocation2 + $0x31] sm:$0xff]
        %v2338 = vld [vmem:[#allocation2 + $0x39] sm:$0xff]
        %2346 = vrot.lane.b32.xlu0 %v2332, 32
        %v2347 = vpop.permute.xlu0 %2346
        %2348 = vrot.lane.b32.xlu0 %v2333, 32
        %v2349 = vpop.permute.xlu0 %2348
        %2350 = vrot.lane.b32.xlu0 %v2334, 32
        %v2351 = vpop.permute.xlu0 %2350
        %2352 = vrot.lane.b32.xlu0 %v2335, 32
        %v2353 = vpop.permute.xlu0 %2352
        %2354 = vrot.lane.b32.xlu0 %v2336, 32
        %v2355 = vpop.permute.xlu0 %2354
        %2356 = vrot.lane.b32.xlu0 %v2337, 32
        %v2357 = vpop.permute.xlu0 %2356
        %2358 = vrot.lane.b32.xlu0 %v2338, 32
        %v2359 = vpop.permute.xlu0 %2358
        %2367 = vst.msk [vmem:[#allocation3 + $0x150] sm:$0xff] %vm1776, %v2347
        %2368 = vst.msk [vmem:[#allocation3 + $0x168] sm:$0xff] %vm1776, %v2349
        %2369 = vst.msk [vmem:[#allocation3 + $0x180] sm:$0xff] %vm1776, %v2351
        %2370 = vst.msk [vmem:[#allocation3 + $0x198] sm:$0xff] %vm1776, %v2353
        %2371 = vst.msk [vmem:[#allocation3 + $0x1b0] sm:$0xff] %vm1776, %v2355
        %2372 = vst.msk [vmem:[#allocation3 + $0x1c8] sm:$0xff] %vm1776, %v2357
        %2373 = vst.msk [vmem:[#allocation3 + $0x1e0] sm:$0xff] %vm1776, %v2359
        %v2374 = vld [vmem:[#allocation2 + $0x59] sm:$0xff]
        %v2375 = vld [vmem:[#allocation2 + $0x61] sm:$0xff]
        %v2376 = vld [vmem:[#allocation2 + $0x69] sm:$0xff]
        %v2377 = vld [vmem:[#allocation2 + $0x71] sm:$0xff]
        %v2378 = vld [vmem:[#allocation2 + $0x79] sm:$0xff]
        %v2379 = vld [vmem:[#allocation2 + $0x81] sm:$0xff]
        %v2380 = vld [vmem:[#allocation2 + $0x89] sm:$0xff]
        %2388 = vrot.lane.b32.xlu0 %v2374, 64
        %v2389 = vpop.permute.xlu0 %2388
        %2390 = vrot.lane.b32.xlu0 %v2375, 64
        %v2391 = vpop.permute.xlu0 %2390
        %2392 = vrot.lane.b32.xlu0 %v2376, 64
        %v2393 = vpop.permute.xlu0 %2392
        %2394 = vrot.lane.b32.xlu0 %v2377, 64
        %v2395 = vpop.permute.xlu0 %2394
        %2396 = vrot.lane.b32.xlu0 %v2378, 64
        %v2397 = vpop.permute.xlu0 %2396
        %2398 = vrot.lane.b32.xlu0 %v2379, 64
        %v2399 = vpop.permute.xlu0 %2398
        %2400 = vrot.lane.b32.xlu0 %v2380, 64
        %v2401 = vpop.permute.xlu0 %2400
        %2409 = vst.msk [vmem:[#allocation3 + $0x150] sm:$0xff] %vm1819, %v2389
        %2410 = vst.msk [vmem:[#allocation3 + $0x168] sm:$0xff] %vm1819, %v2391
        %2411 = vst.msk [vmem:[#allocation3 + $0x180] sm:$0xff] %vm1819, %v2393
        %2412 = vst.msk [vmem:[#allocation3 + $0x198] sm:$0xff] %vm1819, %v2395
        %2413 = vst.msk [vmem:[#allocation3 + $0x1b0] sm:$0xff] %vm1819, %v2397
        %2414 = vst.msk [vmem:[#allocation3 + $0x1c8] sm:$0xff] %vm1819, %v2399
        %2415 = vst.msk [vmem:[#allocation3 + $0x1e0] sm:$0xff] %vm1819, %v2401
        %v2416 = vld [vmem:[#allocation2 + $0xf8] sm:$0xff]
        %v2417 = vld [vmem:[#allocation2 + $0x100] sm:$0xff]
        %v2418 = vld [vmem:[#allocation2 + $0x108] sm:$0xff]
        %v2419 = vld [vmem:[#allocation2 + $0x110] sm:$0xff]
        %v2420 = vld [vmem:[#allocation2 + $0x118] sm:$0xff]
        %v2421 = vld [vmem:[#allocation2 + $0x120] sm:$0xff]
        %v2422 = vld [vmem:[#allocation2 + $0x128] sm:$0xff]
        %2430 = vrot.lane.b32.xlu0 %v2416, 96
        %v2431 = vpop.permute.xlu0 %2430
        %2432 = vrot.lane.b32.xlu0 %v2417, 96
        %v2433 = vpop.permute.xlu0 %2432
        %2434 = vrot.lane.b32.xlu0 %v2418, 96
        %v2435 = vpop.permute.xlu0 %2434
        %2436 = vrot.lane.b32.xlu0 %v2419, 96
        %v2437 = vpop.permute.xlu0 %2436
        %2438 = vrot.lane.b32.xlu0 %v2420, 96
        %v2439 = vpop.permute.xlu0 %2438
        %2440 = vrot.lane.b32.xlu0 %v2421, 96
        %v2441 = vpop.permute.xlu0 %2440
        %2442 = vrot.lane.b32.xlu0 %v2422, 96
        %v2443 = vpop.permute.xlu0 %2442
        %2451 = vst.msk [vmem:[#allocation3 + $0x150] sm:$0xff] %vm1862, %v2431
        %2452 = vst.msk [vmem:[#allocation3 + $0x168] sm:$0xff] %vm1862, %v2433
        %2453 = vst.msk [vmem:[#allocation3 + $0x180] sm:$0xff] %vm1862, %v2435
        %2454 = vst.msk [vmem:[#allocation3 + $0x198] sm:$0xff] %vm1862, %v2437
        %2455 = vst.msk [vmem:[#allocation3 + $0x1b0] sm:$0xff] %vm1862, %v2439
        %2456 = vst.msk [vmem:[#allocation3 + $0x1c8] sm:$0xff] %vm1862, %v2441
        %2457 = vst.msk [vmem:[#allocation3 + $0x1e0] sm:$0xff] %vm1862, %v2443
        %v2458 = vld [vmem:[#allocation2 + $0xa9] sm:$0xff]
        %v2459 = vld [vmem:[#allocation2 + $0xb1] sm:$0xff]
        %v2460 = vld [vmem:[#allocation2 + $0xb9] sm:$0xff]
        %v2461 = vld [vmem:[#allocation2 + $0xc1] sm:$0xff]
        %v2462 = vld [vmem:[#allocation2 + $0xc9] sm:$0xff]
        %v2463 = vld [vmem:[#allocation2 + $0xd1] sm:$0xff]
        %v2464 = vld [vmem:[#allocation2 + $0xd9] sm:$0xff]
        %2465 = vst.msk [vmem:[#allocation3 + $0x158] sm:$0xff] %vm1686, %v2458
        %2466 = vst.msk [vmem:[#allocation3 + $0x170] sm:$0xff] %vm1686, %v2459
        %2467 = vst.msk [vmem:[#allocation3 + $0x188] sm:$0xff] %vm1686, %v2460
        %2468 = vst.msk [vmem:[#allocation3 + $0x1a0] sm:$0xff] %vm1686, %v2461
        %2469 = vst.msk [vmem:[#allocation3 + $0x1b8] sm:$0xff] %vm1686, %v2462
        %2470 = vst.msk [vmem:[#allocation3 + $0x1d0] sm:$0xff] %vm1686, %v2463
        %2471 = vst.msk [vmem:[#allocation3 + $0x1e8] sm:$0xff] %vm1686, %v2464
        %v2472 = vld [vmem:[#allocation2 + $0xf9] sm:$0xff]
        %v2473 = vld [vmem:[#allocation2 + $0x101] sm:$0xff]
        %v2474 = vld [vmem:[#allocation2 + $0x109] sm:$0xff]
        %v2475 = vld [vmem:[#allocation2 + $0x111] sm:$0xff]
        %v2476 = vld [vmem:[#allocation2 + $0x119] sm:$0xff]
        %v2477 = vld [vmem:[#allocation2 + $0x121] sm:$0xff]
        %v2478 = vld [vmem:[#allocation2 + $0x129] sm:$0xff]
        %2486 = vrot.lane.b32.xlu0 %v2472, 32
        %v2487 = vpop.permute.xlu0 %2486
        %2488 = vrot.lane.b32.xlu0 %v2473, 32
        %v2489 = vpop.permute.xlu0 %2488
        %2490 = vrot.lane.b32.xlu0 %v2474, 32
        %v2491 = vpop.permute.xlu0 %2490
        %2492 = vrot.lane.b32.xlu0 %v2475, 32
        %v2493 = vpop.permute.xlu0 %2492
        %2494 = vrot.lane.b32.xlu0 %v2476, 32
        %v2495 = vpop.permute.xlu0 %2494
        %2496 = vrot.lane.b32.xlu0 %v2477, 32
        %v2497 = vpop.permute.xlu0 %2496
        %2498 = vrot.lane.b32.xlu0 %v2478, 32
        %v2499 = vpop.permute.xlu0 %2498
        %2507 = vst.msk [vmem:[#allocation3 + $0x158] sm:$0xff] %vm1776, %v2487
        %2508 = vst.msk [vmem:[#allocation3 + $0x170] sm:$0xff] %vm1776, %v2489
        %2509 = vst.msk [vmem:[#allocation3 + $0x188] sm:$0xff] %vm1776, %v2491
        %2510 = vst.msk [vmem:[#allocation3 + $0x1a0] sm:$0xff] %vm1776, %v2493
        %2511 = vst.msk [vmem:[#allocation3 + $0x1b8] sm:$0xff] %vm1776, %v2495
        %2512 = vst.msk [vmem:[#allocation3 + $0x1d0] sm:$0xff] %vm1776, %v2497
        %2513 = vst.msk [vmem:[#allocation3 + $0x1e8] sm:$0xff] %vm1776, %v2499
        %v2514 = vld [vmem:[#allocation2 + $0x60] sm:$0xff]
        %v2515 = vld [vmem:[#allocation2 + $0x68] sm:$0xff]
        %v2516 = vld [vmem:[#allocation2 + $0x70] sm:$0xff]
        %v2517 = vld [vmem:[#allocation2 + $0x78] sm:$0xff]
        %v2518 = vld [vmem:[#allocation2 + $0x80] sm:$0xff]
        %v2519 = vld [vmem:[#allocation2 + $0x88] sm:$0xff]
        %v2520 = vld [vmem:[#allocation2 + $0x90] sm:$0xff]
        %2528 = vrot.lane.b32.xlu0 %v2514, 64
        %v2529 = vpop.permute.xlu0 %2528
        %2530 = vrot.lane.b32.xlu0 %v2515, 64
        %v2531 = vpop.permute.xlu0 %2530
        %2532 = vrot.lane.b32.xlu0 %v2516, 64
        %v2533 = vpop.permute.xlu0 %2532
        %2534 = vrot.lane.b32.xlu0 %v2517, 64
        %v2535 = vpop.permute.xlu0 %2534
        %2536 = vrot.lane.b32.xlu0 %v2518, 64
        %v2537 = vpop.permute.xlu0 %2536
        %2538 = vrot.lane.b32.xlu0 %v2519, 64
        %v2539 = vpop.permute.xlu0 %2538
        %2540 = vrot.lane.b32.xlu0 %v2520, 64
        %v2541 = vpop.permute.xlu0 %2540
        %2549 = vst.msk [vmem:[#allocation3 + $0x158] sm:$0xff] %vm1819, %v2529
        %2550 = vst.msk [vmem:[#allocation3 + $0x170] sm:$0xff] %vm1819, %v2531
        %2551 = vst.msk [vmem:[#allocation3 + $0x188] sm:$0xff] %vm1819, %v2533
        %2552 = vst.msk [vmem:[#allocation3 + $0x1a0] sm:$0xff] %vm1819, %v2535
        %2553 = vst.msk [vmem:[#allocation3 + $0x1b8] sm:$0xff] %vm1819, %v2537
        %2554 = vst.msk [vmem:[#allocation3 + $0x1d0] sm:$0xff] %vm1819, %v2539
        %2555 = vst.msk [vmem:[#allocation3 + $0x1e8] sm:$0xff] %vm1819, %v2541
        %v2556 = vld [vmem:[#allocation2 + $0x11] sm:$0xff]
        %v2557 = vld [vmem:[#allocation2 + $0x19] sm:$0xff]
        %v2558 = vld [vmem:[#allocation2 + $0x21] sm:$0xff]
        %v2559 = vld [vmem:[#allocation2 + $0x29] sm:$0xff]
        %v2560 = vld [vmem:[#allocation2 + $0x31] sm:$0xff]
        %v2561 = vld [vmem:[#allocation2 + $0x39] sm:$0xff]
        %v2562 = vld [vmem:[#allocation2 + $0x41] sm:$0xff]
        %2570 = vrot.lane.b32.xlu0 %v2556, 96
        %v2571 = vpop.permute.xlu0 %2570
        %2572 = vrot.lane.b32.xlu0 %v2557, 96
        %v2573 = vpop.permute.xlu0 %2572
        %2574 = vrot.lane.b32.xlu0 %v2558, 96
        %v2575 = vpop.permute.xlu0 %2574
        %2576 = vrot.lane.b32.xlu0 %v2559, 96
        %v2577 = vpop.permute.xlu0 %2576
        %2578 = vrot.lane.b32.xlu0 %v2560, 96
        %v2579 = vpop.permute.xlu0 %2578
        %2580 = vrot.lane.b32.xlu0 %v2561, 96
        %v2581 = vpop.permute.xlu0 %2580
        %2582 = vrot.lane.b32.xlu0 %v2562, 96
        %v2583 = vpop.permute.xlu0 %2582
        %2591 = vst.msk [vmem:[#allocation3 + $0x158] sm:$0xff] %vm1862, %v2571
        %2592 = vst.msk [vmem:[#allocation3 + $0x170] sm:$0xff] %vm1862, %v2573
        %2593 = vst.msk [vmem:[#allocation3 + $0x188] sm:$0xff] %vm1862, %v2575
        %2594 = vst.msk [vmem:[#allocation3 + $0x1a0] sm:$0xff] %vm1862, %v2577
        %2595 = vst.msk [vmem:[#allocation3 + $0x1b8] sm:$0xff] %vm1862, %v2579
        %2596 = vst.msk [vmem:[#allocation3 + $0x1d0] sm:$0xff] %vm1862, %v2581
        %2597 = vst.msk [vmem:[#allocation3 + $0x1e8] sm:$0xff] %vm1862, %v2583
        %v2598 = vld [vmem:[#allocation2 + $0x61] sm:$0xff]
        %v2599 = vld [vmem:[#allocation2 + $0x69] sm:$0xff]
        %v2600 = vld [vmem:[#allocation2 + $0x71] sm:$0xff]
        %v2601 = vld [vmem:[#allocation2 + $0x79] sm:$0xff]
        %v2602 = vld [vmem:[#allocation2 + $0x81] sm:$0xff]
        %v2603 = vld [vmem:[#allocation2 + $0x89] sm:$0xff]
        %v2604 = vld [vmem:[#allocation2 + $0x91] sm:$0xff]
        %2605 = vst.msk [vmem:[#allocation3 + $0x160] sm:$0xff] %vm1686, %v2598
        %2606 = vst.msk [vmem:[#allocation3 + $0x178] sm:$0xff] %vm1686, %v2599
        %2607 = vst.msk [vmem:[#allocation3 + $0x190] sm:$0xff] %vm1686, %v2600
        %2608 = vst.msk [vmem:[#allocation3 + $0x1a8] sm:$0xff] %vm1686, %v2601
        %2609 = vst.msk [vmem:[#allocation3 + $0x1c0] sm:$0xff] %vm1686, %v2602
        %2610 = vst.msk [vmem:[#allocation3 + $0x1d8] sm:$0xff] %vm1686, %v2603
        %2611 = vst.msk [vmem:[#allocation3 + $0x1f0] sm:$0xff] %vm1686, %v2604
        %v2612 = vld [vmem:[#allocation2 + $0x9] sm:$0xff]
        %v2613 = vld [vmem:[#allocation2 + $0x11] sm:$0xff]
        %v2614 = vld [vmem:[#allocation2 + $0x19] sm:$0xff]
        %v2615 = vld [vmem:[#allocation2 + $0x21] sm:$0xff]
        %v2616 = vld [vmem:[#allocation2 + $0x29] sm:$0xff]
        %v2617 = vld [vmem:[#allocation2 + $0x31] sm:$0xff]
        %v2618 = vld [vmem:[#allocation2 + $0x39] sm:$0xff]
        %2619 = vst.msk [vmem:[#allocation3 + $0x1f8] sm:$0xff] %vm1686, %v2612
        %2620 = vst.msk [vmem:[#allocation3 + $0x210] sm:$0xff] %vm1686, %v2613
        %2621 = vst.msk [vmem:[#allocation3 + $0x228] sm:$0xff] %vm1686, %v2614
        %2622 = vst.msk [vmem:[#allocation3 + $0x240] sm:$0xff] %vm1686, %v2615
        %2623 = vst.msk [vmem:[#allocation3 + $0x258] sm:$0xff] %vm1686, %v2616
        %2624 = vst.msk [vmem:[#allocation3 + $0x270] sm:$0xff] %vm1686, %v2617
        %2625 = vst.msk [vmem:[#allocation3 + $0x288] sm:$0xff] %vm1686, %v2618
        %v2626 = vld [vmem:[#allocation2 + $0x59] sm:$0xff]
        %v2627 = vld [vmem:[#allocation2 + $0x61] sm:$0xff]
        %v2628 = vld [vmem:[#allocation2 + $0x69] sm:$0xff]
        %v2629 = vld [vmem:[#allocation2 + $0x71] sm:$0xff]
        %v2630 = vld [vmem:[#allocation2 + $0x79] sm:$0xff]
        %v2631 = vld [vmem:[#allocation2 + $0x81] sm:$0xff]
        %v2632 = vld [vmem:[#allocation2 + $0x89] sm:$0xff]
        %2640 = vrot.lane.b32.xlu0 %v2626, 32
        %v2641 = vpop.permute.xlu0 %2640
        %2642 = vrot.lane.b32.xlu0 %v2627, 32
        %v2643 = vpop.permute.xlu0 %2642
        %2644 = vrot.lane.b32.xlu0 %v2628, 32
        %v2645 = vpop.permute.xlu0 %2644
        %2646 = vrot.lane.b32.xlu0 %v2629, 32
        %v2647 = vpop.permute.xlu0 %2646
        %2648 = vrot.lane.b32.xlu0 %v2630, 32
        %v2649 = vpop.permute.xlu0 %2648
        %2650 = vrot.lane.b32.xlu0 %v2631, 32
        %v2651 = vpop.permute.xlu0 %2650
        %2652 = vrot.lane.b32.xlu0 %v2632, 32
        %v2653 = vpop.permute.xlu0 %2652
        %2661 = vst.msk [vmem:[#allocation3 + $0x1f8] sm:$0xff] %vm1776, %v2641
        %2662 = vst.msk [vmem:[#allocation3 + $0x210] sm:$0xff] %vm1776, %v2643
        %2663 = vst.msk [vmem:[#allocation3 + $0x228] sm:$0xff] %vm1776, %v2645
        %2664 = vst.msk [vmem:[#allocation3 + $0x240] sm:$0xff] %vm1776, %v2647
        %2665 = vst.msk [vmem:[#allocation3 + $0x258] sm:$0xff] %vm1776, %v2649
        %2666 = vst.msk [vmem:[#allocation3 + $0x270] sm:$0xff] %vm1776, %v2651
        %2667 = vst.msk [vmem:[#allocation3 + $0x288] sm:$0xff] %vm1776, %v2653
        %v2668 = vld [vmem:[#allocation2 + $0xa] sm:$0xff]
        %v2669 = vld [vmem:[#allocation2 + $0x12] sm:$0xff]
        %v2670 = vld [vmem:[#allocation2 + $0x1a] sm:$0xff]
        %v2671 = vld [vmem:[#allocation2 + $0x22] sm:$0xff]
        %v2672 = vld [vmem:[#allocation2 + $0x2a] sm:$0xff]
        %v2673 = vld [vmem:[#allocation2 + $0x32] sm:$0xff]
        %v2674 = vld [vmem:[#allocation2 + $0x3a] sm:$0xff]
        %2682 = vrot.lane.b32.xlu0 %v2668, 64
        %v2683 = vpop.permute.xlu0 %2682
        %2684 = vrot.lane.b32.xlu0 %v2669, 64
        %v2685 = vpop.permute.xlu0 %2684
        %2686 = vrot.lane.b32.xlu0 %v2670, 64
        %v2687 = vpop.permute.xlu0 %2686
        %2688 = vrot.lane.b32.xlu0 %v2671, 64
        %v2689 = vpop.permute.xlu0 %2688
        %2690 = vrot.lane.b32.xlu0 %v2672, 64
        %v2691 = vpop.permute.xlu0 %2690
        %2692 = vrot.lane.b32.xlu0 %v2673, 64
        %v2693 = vpop.permute.xlu0 %2692
        %2694 = vrot.lane.b32.xlu0 %v2674, 64
        %v2695 = vpop.permute.xlu0 %2694
        %2703 = vst.msk [vmem:[#allocation3 + $0x1f8] sm:$0xff] %vm1819, %v2683
        %2704 = vst.msk [vmem:[#allocation3 + $0x210] sm:$0xff] %vm1819, %v2685
        %2705 = vst.msk [vmem:[#allocation3 + $0x228] sm:$0xff] %vm1819, %v2687
        %2706 = vst.msk [vmem:[#allocation3 + $0x240] sm:$0xff] %vm1819, %v2689
        %2707 = vst.msk [vmem:[#allocation3 + $0x258] sm:$0xff] %vm1819, %v2691
        %2708 = vst.msk [vmem:[#allocation3 + $0x270] sm:$0xff] %vm1819, %v2693
        %2709 = vst.msk [vmem:[#allocation3 + $0x288] sm:$0xff] %vm1819, %v2695
        %v2710 = vld [vmem:[#allocation2 + $0xa9] sm:$0xff]
        %v2711 = vld [vmem:[#allocation2 + $0xb1] sm:$0xff]
        %v2712 = vld [vmem:[#allocation2 + $0xb9] sm:$0xff]
        %v2713 = vld [vmem:[#allocation2 + $0xc1] sm:$0xff]
        %v2714 = vld [vmem:[#allocation2 + $0xc9] sm:$0xff]
        %v2715 = vld [vmem:[#allocation2 + $0xd1] sm:$0xff]
        %v2716 = vld [vmem:[#allocation2 + $0xd9] sm:$0xff]
        %2724 = vrot.lane.b32.xlu0 %v2710, 96
        %v2725 = vpop.permute.xlu0 %2724
        %2726 = vrot.lane.b32.xlu0 %v2711, 96
        %v2727 = vpop.permute.xlu0 %2726
        %2728 = vrot.lane.b32.xlu0 %v2712, 96
        %v2729 = vpop.permute.xlu0 %2728
        %2730 = vrot.lane.b32.xlu0 %v2713, 96
        %v2731 = vpop.permute.xlu0 %2730
        %2732 = vrot.lane.b32.xlu0 %v2714, 96
        %v2733 = vpop.permute.xlu0 %2732
        %2734 = vrot.lane.b32.xlu0 %v2715, 96
        %v2735 = vpop.permute.xlu0 %2734
        %2736 = vrot.lane.b32.xlu0 %v2716, 96
        %v2737 = vpop.permute.xlu0 %2736
        %2745 = vst.msk [vmem:[#allocation3 + $0x1f8] sm:$0xff] %vm1862, %v2725
        %2746 = vst.msk [vmem:[#allocation3 + $0x210] sm:$0xff] %vm1862, %v2727
        %2747 = vst.msk [vmem:[#allocation3 + $0x228] sm:$0xff] %vm1862, %v2729
        %2748 = vst.msk [vmem:[#allocation3 + $0x240] sm:$0xff] %vm1862, %v2731
        %2749 = vst.msk [vmem:[#allocation3 + $0x258] sm:$0xff] %vm1862, %v2733
        %2750 = vst.msk [vmem:[#allocation3 + $0x270] sm:$0xff] %vm1862, %v2735
        %2751 = vst.msk [vmem:[#allocation3 + $0x288] sm:$0xff] %vm1862, %v2737
        %v2752 = vld [vmem:[#allocation2 + $0xf9] sm:$0xff]
        %v2753 = vld [vmem:[#allocation2 + $0x101] sm:$0xff]
        %v2754 = vld [vmem:[#allocation2 + $0x109] sm:$0xff]
        %v2755 = vld [vmem:[#allocation2 + $0x111] sm:$0xff]
        %v2756 = vld [vmem:[#allocation2 + $0x119] sm:$0xff]
        %v2757 = vld [vmem:[#allocation2 + $0x121] sm:$0xff]
        %v2758 = vld [vmem:[#allocation2 + $0x129] sm:$0xff]
        %2759 = vst.msk [vmem:[#allocation3 + $0x200] sm:$0xff] %vm1686, %v2752
        %2760 = vst.msk [vmem:[#allocation3 + $0x218] sm:$0xff] %vm1686, %v2753
        %2761 = vst.msk [vmem:[#allocation3 + $0x230] sm:$0xff] %vm1686, %v2754
        %2762 = vst.msk [vmem:[#allocation3 + $0x248] sm:$0xff] %vm1686, %v2755
        %2763 = vst.msk [vmem:[#allocation3 + $0x260] sm:$0xff] %vm1686, %v2756
        %2764 = vst.msk [vmem:[#allocation3 + $0x278] sm:$0xff] %vm1686, %v2757
        %2765 = vst.msk [vmem:[#allocation3 + $0x290] sm:$0xff] %vm1686, %v2758
        %v2766 = vld [vmem:[#allocation2 + $0xaa] sm:$0xff]
        %v2767 = vld [vmem:[#allocation2 + $0xb2] sm:$0xff]
        %v2768 = vld [vmem:[#allocation2 + $0xba] sm:$0xff]
        %v2769 = vld [vmem:[#allocation2 + $0xc2] sm:$0xff]
        %v2770 = vld [vmem:[#allocation2 + $0xca] sm:$0xff]
        %v2771 = vld [vmem:[#allocation2 + $0xd2] sm:$0xff]
        %v2772 = vld [vmem:[#allocation2 + $0xda] sm:$0xff]
        %2780 = vrot.lane.b32.xlu0 %v2766, 32
        %v2781 = vpop.permute.xlu0 %2780
        %2782 = vrot.lane.b32.xlu0 %v2767, 32
        %v2783 = vpop.permute.xlu0 %2782
        %2784 = vrot.lane.b32.xlu0 %v2768, 32
        %v2785 = vpop.permute.xlu0 %2784
        %2786 = vrot.lane.b32.xlu0 %v2769, 32
        %v2787 = vpop.permute.xlu0 %2786
        %2788 = vrot.lane.b32.xlu0 %v2770, 32
        %v2789 = vpop.permute.xlu0 %2788
        %2790 = vrot.lane.b32.xlu0 %v2771, 32
        %v2791 = vpop.permute.xlu0 %2790
        %2792 = vrot.lane.b32.xlu0 %v2772, 32
        %v2793 = vpop.permute.xlu0 %2792
        %2801 = vst.msk [vmem:[#allocation3 + $0x200] sm:$0xff] %vm1776, %v2781
        %2802 = vst.msk [vmem:[#allocation3 + $0x218] sm:$0xff] %vm1776, %v2783
        %2803 = vst.msk [vmem:[#allocation3 + $0x230] sm:$0xff] %vm1776, %v2785
        %2804 = vst.msk [vmem:[#allocation3 + $0x248] sm:$0xff] %vm1776, %v2787
        %2805 = vst.msk [vmem:[#allocation3 + $0x260] sm:$0xff] %vm1776, %v2789
        %2806 = vst.msk [vmem:[#allocation3 + $0x278] sm:$0xff] %vm1776, %v2791
        %2807 = vst.msk [vmem:[#allocation3 + $0x290] sm:$0xff] %vm1776, %v2793
        %v2808 = vld [vmem:[#allocation2 + $0x11] sm:$0xff]
        %v2809 = vld [vmem:[#allocation2 + $0x19] sm:$0xff]
        %v2810 = vld [vmem:[#allocation2 + $0x21] sm:$0xff]
        %v2811 = vld [vmem:[#allocation2 + $0x29] sm:$0xff]
        %v2812 = vld [vmem:[#allocation2 + $0x31] sm:$0xff]
        %v2813 = vld [vmem:[#allocation2 + $0x39] sm:$0xff]
        %v2814 = vld [vmem:[#allocation2 + $0x41] sm:$0xff]
        %2822 = vrot.lane.b32.xlu0 %v2808, 64
        %v2823 = vpop.permute.xlu0 %2822
        %2824 = vrot.lane.b32.xlu0 %v2809, 64
        %v2825 = vpop.permute.xlu0 %2824
        %2826 = vrot.lane.b32.xlu0 %v2810, 64
        %v2827 = vpop.permute.xlu0 %2826
        %2828 = vrot.lane.b32.xlu0 %v2811, 64
        %v2829 = vpop.permute.xlu0 %2828
        %2830 = vrot.lane.b32.xlu0 %v2812, 64
        %v2831 = vpop.permute.xlu0 %2830
        %2832 = vrot.lane.b32.xlu0 %v2813, 64
        %v2833 = vpop.permute.xlu0 %2832
        %2834 = vrot.lane.b32.xlu0 %v2814, 64
        %v2835 = vpop.permute.xlu0 %2834
        %2843 = vst.msk [vmem:[#allocation3 + $0x200] sm:$0xff] %vm1819, %v2823
        %2844 = vst.msk [vmem:[#allocation3 + $0x218] sm:$0xff] %vm1819, %v2825
        %2845 = vst.msk [vmem:[#allocation3 + $0x230] sm:$0xff] %vm1819, %v2827
        %2846 = vst.msk [vmem:[#allocation3 + $0x248] sm:$0xff] %vm1819, %v2829
        %2847 = vst.msk [vmem:[#allocation3 + $0x260] sm:$0xff] %vm1819, %v2831
        %2848 = vst.msk [vmem:[#allocation3 + $0x278] sm:$0xff] %vm1819, %v2833
        %2849 = vst.msk [vmem:[#allocation3 + $0x290] sm:$0xff] %vm1819, %v2835
        %v2850 = vld [vmem:[#allocation2 + $0x61] sm:$0xff]
        %v2851 = vld [vmem:[#allocation2 + $0x69] sm:$0xff]
        %v2852 = vld [vmem:[#allocation2 + $0x71] sm:$0xff]
        %v2853 = vld [vmem:[#allocation2 + $0x79] sm:$0xff]
        %v2854 = vld [vmem:[#allocation2 + $0x81] sm:$0xff]
        %v2855 = vld [vmem:[#allocation2 + $0x89] sm:$0xff]
        %v2856 = vld [vmem:[#allocation2 + $0x91] sm:$0xff]
        %2864 = vrot.lane.b32.xlu0 %v2850, 96
        %v2865 = vpop.permute.xlu0 %2864
        %2866 = vrot.lane.b32.xlu0 %v2851, 96
        %v2867 = vpop.permute.xlu0 %2866
        %2868 = vrot.lane.b32.xlu0 %v2852, 96
        %v2869 = vpop.permute.xlu0 %2868
        %2870 = vrot.lane.b32.xlu0 %v2853, 96
        %v2871 = vpop.permute.xlu0 %2870
        %2872 = vrot.lane.b32.xlu0 %v2854, 96
        %v2873 = vpop.permute.xlu0 %2872
        %2874 = vrot.lane.b32.xlu0 %v2855, 96
        %v2875 = vpop.permute.xlu0 %2874
        %2876 = vrot.lane.b32.xlu0 %v2856, 96
        %v2877 = vpop.permute.xlu0 %2876
        %2885 = vst.msk [vmem:[#allocation3 + $0x200] sm:$0xff] %vm1862, %v2865
        %2886 = vst.msk [vmem:[#allocation3 + $0x218] sm:$0xff] %vm1862, %v2867
        %2887 = vst.msk [vmem:[#allocation3 + $0x230] sm:$0xff] %vm1862, %v2869
        %2888 = vst.msk [vmem:[#allocation3 + $0x248] sm:$0xff] %vm1862, %v2871
        %2889 = vst.msk [vmem:[#allocation3 + $0x260] sm:$0xff] %vm1862, %v2873
        %2890 = vst.msk [vmem:[#allocation3 + $0x278] sm:$0xff] %vm1862, %v2875
        %2891 = vst.msk [vmem:[#allocation3 + $0x290] sm:$0xff] %vm1862, %v2877
        %v2892 = vld [vmem:[#allocation2 + $0x12] sm:$0xff]
        %v2893 = vld [vmem:[#allocation2 + $0x1a] sm:$0xff]
        %v2894 = vld [vmem:[#allocation2 + $0x22] sm:$0xff]
        %v2895 = vld [vmem:[#allocation2 + $0x2a] sm:$0xff]
        %v2896 = vld [vmem:[#allocation2 + $0x32] sm:$0xff]
        %v2897 = vld [vmem:[#allocation2 + $0x3a] sm:$0xff]
        %v2898 = vld [vmem:[#allocation2 + $0x42] sm:$0xff]
        %2899 = vst.msk [vmem:[#allocation3 + $0x208] sm:$0xff] %vm1686, %v2892
        %2900 = vst.msk [vmem:[#allocation3 + $0x220] sm:$0xff] %vm1686, %v2893
        %2901 = vst.msk [vmem:[#allocation3 + $0x238] sm:$0xff] %vm1686, %v2894
        %2902 = vst.msk [vmem:[#allocation3 + $0x250] sm:$0xff] %vm1686, %v2895
        %2903 = vst.msk [vmem:[#allocation3 + $0x268] sm:$0xff] %vm1686, %v2896
        %2904 = vst.msk [vmem:[#allocation3 + $0x280] sm:$0xff] %vm1686, %v2897
        %2905 = vst.msk [vmem:[#allocation3 + $0x298] sm:$0xff] %vm1686, %v2898
        %v2906 = vld [vmem:[#allocation3] sm:$0xff]
        %v2907 = vld [vmem:[#allocation3 + $0x8] sm:$0xff]
        %v2908 = vld [vmem:[#allocation3 + $0x10] sm:$0xff]
        %v2909 = vld [vmem:[#allocation3 + $0x18] sm:$0xff]
        %v2910 = vld [vmem:[#allocation3 + $0x20] sm:$0xff]
        %v2911 = vld [vmem:[#allocation3 + $0x28] sm:$0xff]
        %v2912 = vld [vmem:[#allocation3 + $0x30] sm:$0xff]
        %v2913 = vld [vmem:[#allocation3 + $0x38] sm:$0xff]
        %v2914 = vld [vmem:[#allocation3 + $0x40] sm:$0xff]
        %v2915 = vld [vmem:[#allocation3 + $0x48] sm:$0xff]
        %v2916 = vld [vmem:[#allocation3 + $0x50] sm:$0xff]
        %v2917 = vld [vmem:[#allocation3 + $0x58] sm:$0xff]
        %v2918 = vld [vmem:[#allocation3 + $0x60] sm:$0xff]
        %v2919 = vld [vmem:[#allocation3 + $0x68] sm:$0xff]
        %v2920 = vld [vmem:[#allocation3 + $0x70] sm:$0xff]
        %v2921 = vld [vmem:[#allocation3 + $0x78] sm:$0xff]
        %v2922 = vld [vmem:[#allocation3 + $0x80] sm:$0xff]
        %v2923 = vld [vmem:[#allocation3 + $0x88] sm:$0xff]
        %v2924 = vld [vmem:[#allocation3 + $0x90] sm:$0xff]
        %v2925 = vld [vmem:[#allocation3 + $0x98] sm:$0xff]
        %v2926 = vld [vmem:[#allocation3 + $0xa0] sm:$0xff]
        %v2927 = vld [vmem:[#allocation3 + $0xa8] sm:$0xff]
        %v2928 = vld [vmem:[#allocation3 + $0xb0] sm:$0xff]
        %v2929 = vld [vmem:[#allocation3 + $0xb8] sm:$0xff]
        %v2930 = vld [vmem:[#allocation3 + $0xc0] sm:$0xff]
        %v2931 = vld [vmem:[#allocation3 + $0xc8] sm:$0xff]
        %v2932 = vld [vmem:[#allocation3 + $0xd0] sm:$0xff]
        %v2933 = vld [vmem:[#allocation3 + $0xd8] sm:$0xff]
        %v2934 = vld [vmem:[#allocation3 + $0xe0] sm:$0xff]
        %v2935 = vld [vmem:[#allocation3 + $0xe8] sm:$0xff]
        %v2936 = vld [vmem:[#allocation3 + $0xf0] sm:$0xff]
        %v2937 = vld [vmem:[#allocation3 + $0xf8] sm:$0xff]
        %v2938 = vld [vmem:[#allocation3 + $0x100] sm:$0xff]
        %v2939 = vld [vmem:[#allocation3 + $0x108] sm:$0xff]
        %v2940 = vld [vmem:[#allocation3 + $0x110] sm:$0xff]
        %v2941 = vld [vmem:[#allocation3 + $0x118] sm:$0xff]
        %v2942 = vld [vmem:[#allocation3 + $0x120] sm:$0xff]
        %v2943 = vld [vmem:[#allocation3 + $0x128] sm:$0xff]
        %v2944 = vld [vmem:[#allocation3 + $0x130] sm:$0xff]
        %v2945 = vld [vmem:[#allocation3 + $0x138] sm:$0xff]
        %v2946 = vld [vmem:[#allocation3 + $0x140] sm:$0xff]
        %v2947 = vld [vmem:[#allocation3 + $0x148] sm:$0xff]
        %v2948 = vld [vmem:[#allocation3 + $0x150] sm:$0xff]
        %v2949 = vld [vmem:[#allocation3 + $0x158] sm:$0xff]
        %v2950 = vld [vmem:[#allocation3 + $0x160] sm:$0xff]
        %v2951 = vld [vmem:[#allocation3 + $0x168] sm:$0xff]
        %v2952 = vld [vmem:[#allocation3 + $0x170] sm:$0xff]
        %v2953 = vld [vmem:[#allocation3 + $0x178] sm:$0xff]
        %v2954 = vld [vmem:[#allocation3 + $0x180] sm:$0xff]
        %v2955 = vld [vmem:[#allocation3 + $0x188] sm:$0xff]
        %v2956 = vld [vmem:[#allocation3 + $0x190] sm:$0xff]
        %v2957 = vld [vmem:[#allocation3 + $0x198] sm:$0xff]
        %v2958 = vld [vmem:[#allocation3 + $0x1a0] sm:$0xff]
        %v2959 = vld [vmem:[#allocation3 + $0x1a8] sm:$0xff]
        %v2960 = vld [vmem:[#allocation3 + $0x1b0] sm:$0xff]
        %v2961 = vld [vmem:[#allocation3 + $0x1b8] sm:$0xff]
        %v2962 = vld [vmem:[#allocation3 + $0x1c0] sm:$0xff]
        %v2963 = vld [vmem:[#allocation3 + $0x1c8] sm:$0xff]
        %v2964 = vld [vmem:[#allocation3 + $0x1d0] sm:$0xff]
        %v2965 = vld [vmem:[#allocation3 + $0x1d8] sm:$0xff]
        %v2966 = vld [vmem:[#allocation3 + $0x1e0] sm:$0xff]
        %v2967 = vld [vmem:[#allocation3 + $0x1e8] sm:$0xff]
        %v2968 = vld [vmem:[#allocation3 + $0x1f0] sm:$0xff]
        %v2969 = vld [vmem:[#allocation3 + $0x1f8] sm:$0xff]
        %v2970 = vld [vmem:[#allocation3 + $0x200] sm:$0xff]
        %v2971 = vld [vmem:[#allocation3 + $0x208] sm:$0xff]
        %v2972 = vld [vmem:[#allocation3 + $0x210] sm:$0xff]
        %v2973 = vld [vmem:[#allocation3 + $0x218] sm:$0xff]
        %v2974 = vld [vmem:[#allocation3 + $0x220] sm:$0xff]
        %v2975 = vld [vmem:[#allocation3 + $0x228] sm:$0xff]
        %v2976 = vld [vmem:[#allocation3 + $0x230] sm:$0xff]
        %v2977 = vld [vmem:[#allocation3 + $0x238] sm:$0xff]
        %v2978 = vld [vmem:[#allocation3 + $0x240] sm:$0xff]
        %v2979 = vld [vmem:[#allocation3 + $0x248] sm:$0xff]
        %v2980 = vld [vmem:[#allocation3 + $0x250] sm:$0xff]
        %v2981 = vld [vmem:[#allocation3 + $0x258] sm:$0xff]
        %v2982 = vld [vmem:[#allocation3 + $0x260] sm:$0xff]
        %v2983 = vld [vmem:[#allocation3 + $0x268] sm:$0xff]
        %v2984 = vld [vmem:[#allocation3 + $0x270] sm:$0xff]
        %v2985 = vld [vmem:[#allocation3 + $0x278] sm:$0xff]
        %v2986 = vld [vmem:[#allocation3 + $0x280] sm:$0xff]
        %v2987 = vld [vmem:[#allocation3 + $0x288] sm:$0xff]
        %v2988 = vld [vmem:[#allocation3 + $0x290] sm:$0xff]
        %v2989 = vld [vmem:[#allocation3 + $0x298] sm:$0xff]
        %v2990 = vld [vmem:[%s3] sm:$0xff]
        %v2991 = vld [vmem:[%s3 + $0x8] sm:$0xff]
        %v2992 = vld [vmem:[%s3 + $0x10] sm:$0xff]
        %v2993 = vld [vmem:[%s3 + $0x18] sm:$0xff]
        %v2994 = vld [vmem:[%s3 + $0x20] sm:$0xff]
        %v2995 = vld [vmem:[%s3 + $0x28] sm:$0xff]
        %v2996 = vld [vmem:[%s3 + $0x30] sm:$0xff]
        %v2997 = vld [vmem:[%s3 + $0x38] sm:$0xff]
        %v2998 = vld [vmem:[%s3 + $0x40] sm:$0xff]
        %v2999 = vld [vmem:[%s3 + $0x48] sm:$0xff]
        %v3000 = vld [vmem:[%s3 + $0x50] sm:$0xff]
        %v3001 = vld [vmem:[%s3 + $0x58] sm:$0xff]
        %v3002 = vld [vmem:[%s3 + $0x60] sm:$0xff]
        %v3003 = vld [vmem:[%s3 + $0x68] sm:$0xff]
        %v3004 = vld [vmem:[%s3 + $0x70] sm:$0xff]
        %v3005 = vld [vmem:[%s3 + $0x78] sm:$0xff]
        %v3006 = vld [vmem:[%s3 + $0x80] sm:$0xff]
        %v3007 = vld [vmem:[%s3 + $0x88] sm:$0xff]
        %v3008 = vld [vmem:[%s3 + $0x90] sm:$0xff]
        %v3009 = vld [vmem:[%s3 + $0x98] sm:$0xff]
        %v3010 = vld [vmem:[%s3 + $0xa0] sm:$0xff]
        %v3011 = vld [vmem:[%s3 + $0xa8] sm:$0xff]
        %v3012 = vld [vmem:[%s3 + $0xb0] sm:$0xff]
        %v3013 = vld [vmem:[%s3 + $0xb8] sm:$0xff]
        %v3014 = vld [vmem:[%s3 + $0xc0] sm:$0xff]
        %v3015 = vld [vmem:[%s3 + $0xc8] sm:$0xff]
        %v3016 = vld [vmem:[%s3 + $0xd0] sm:$0xff]
        %v3017 = vld [vmem:[%s3 + $0xd8] sm:$0xff]
        %v3018 = vld [vmem:[%s3 + $0xe0] sm:$0xff]
        %v3019 = vld [vmem:[%s3 + $0xe8] sm:$0xff]
        %v3020 = vld [vmem:[%s3 + $0xf0] sm:$0xff]
        %v3021 = vld [vmem:[%s3 + $0xf8] sm:$0xff]
        %v3022 = vld [vmem:[%s3 + $0x100] sm:$0xff]
        %v3023 = vld [vmem:[%s3 + $0x108] sm:$0xff]
        %v3024 = vld [vmem:[%s3 + $0x110] sm:$0xff]
        %v3025 = vld [vmem:[%s3 + $0x118] sm:$0xff]
        %v3027 = vsel %vm1686, %v2908, 0
        %v3030 = vsel %vm1686, %v2911, 0
        %v3033 = vsel %vm1686, %v2914, 0
        %v3036 = vsel %vm1686, %v2917, 0
        %v3039 = vsel %vm1686, %v2920, 0
        %v3042 = vsel %vm1686, %v2923, 0
        %v3045 = vsel %vm1686, %v2926, 0
        %v3048 = vsel %vm1686, %v2929, 0
        %v3051 = vsel %vm1686, %v2932, 0
        %v3054 = vsel %vm1686, %v2935, 0
        %v3057 = vsel %vm1686, %v2938, 0
        %v3060 = vsel %vm1686, %v2941, 0
        %v3063 = vsel %vm1686, %v2944, 0
        %v3066 = vsel %vm1686, %v2947, 0
        %v3069 = vsel %vm1686, %v2950, 0
        %v3072 = vsel %vm1686, %v2953, 0
        %v3075 = vsel %vm1686, %v2956, 0
        %v3078 = vsel %vm1686, %v2959, 0
        %v3081 = vsel %vm1686, %v2962, 0
        %v3084 = vsel %vm1686, %v2965, 0
        %v3087 = vsel %vm1686, %v2968, 0
        %v3090 = vsel %vm1686, %v2971, 0
        %v3093 = vsel %vm1686, %v2974, 0
        %v3096 = vsel %vm1686, %v2977, 0
        %v3099 = vsel %vm1686, %v2980, 0
        %v3102 = vsel %vm1686, %v2983, 0
        %v3105 = vsel %vm1686, %v2986, 0
        %v3108 = vsel %vm1686, %v2989, 0
        %3110 = vmatprep.subr.mxu0 0.0
        %3111 = vmatpush1.msra.mxu0 %v3005
        %3112 = vmatprep.subr.mxu0 0.0
        %3113 = vmatpush1.msra.mxu0 %v3004
        %3114 = vmatprep.subr.mxu0 0.0
        %3115 = vmatpush1.msra.mxu0 %v3003
        %3116 = vmatprep.subr.mxu0 0.0
        %3117 = vmatpush1.msra.mxu0 %v3002
        %3118 = vmatprep.subr.mxu0 0.0
        %3119 = vmatpush1.msra.mxu0 %v3001
        %3120 = vmatprep.subr.mxu0 0.0
        %3121 = vmatpush1.msra.mxu0 %v3000
        %3122 = vmatprep.subr.mxu0 0.0
        %3123 = vmatpush1.msra.mxu0 %v2999
        %3124 = vmatprep.subr.mxu0 0.0
        %3125 = vmatpush1.msra.mxu0 %v2998
        %3126 = vmatprep.subr.mxu0 0.0
        %3127 = vmatpush1.msra.mxu0 %v2997
        %3128 = vmatprep.subr.mxu0 0.0
        %3129 = vmatpush1.msra.mxu0 %v2996
        %3130 = vmatprep.subr.mxu0 0.0
        %3131 = vmatpush1.msra.mxu0 %v2995
        %3132 = vmatprep.subr.mxu0 0.0
        %3133 = vmatpush1.msra.mxu0 %v2994
        %3134 = vmatprep.subr.mxu0 0.0
        %3135 = vmatpush1.msra.mxu0 %v2993
        %3136 = vmatprep.subr.mxu0 0.0
        %3137 = vmatpush1.msra.mxu0 %v2992
        %3138 = vmatprep.subr.mxu0 0.0
        %3139 = vmatpush1.msra.mxu0 %v2991
        %3140 = vmatprep.subr.mxu0 0.0
        %3141 = vmatpush1.msra.mxu0 %v2990
        %3142 = vmatprep.subr.mxu0 0.0
        %3143 = vmatpush2.msra.mxu0 %v3021
        %3144 = vmatprep.subr.mxu0 0.0
        %3145 = vmatpush2.msra.mxu0 %v3020
        %3146 = vmatprep.subr.mxu0 0.0
        %3147 = vmatpush2.msra.mxu0 %v3019
        %3148 = vmatprep.subr.mxu0 0.0
        %3149 = vmatpush2.msra.mxu0 %v3018
        %3150 = vmatprep.subr.mxu0 0.0
        %3151 = vmatpush2.msra.mxu0 %v3017
        %3152 = vmatprep.subr.mxu0 0.0
        %3153 = vmatpush2.msra.mxu0 %v3016
        %3154 = vmatprep.subr.mxu0 0.0
        %3155 = vmatpush2.msra.mxu0 %v3015
        %3156 = vmatprep.subr.mxu0 0.0
        %3157 = vmatpush2.msra.mxu0 %v3014
        %3158 = vmatprep.subr.mxu0 0.0
        %3159 = vmatpush2.msra.mxu0 %v3013
        %3160 = vmatprep.subr.mxu0 0.0
        %3161 = vmatpush2.msra.mxu0 %v3012
        %3162 = vmatprep.subr.mxu0 0.0
        %3163 = vmatpush2.msra.mxu0 %v3011
        %3164 = vmatprep.subr.mxu0 0.0
        %3165 = vmatpush2.msra.mxu0 %v3010
        %3166 = vmatprep.subr.mxu0 0.0
        %3167 = vmatpush2.msra.mxu0 %v3009
        %3168 = vmatprep.subr.mxu0 0.0
        %3169 = vmatpush2.msra.mxu0 %v3008
        %3170 = vmatprep.subr.mxu0 0.0
        %3171 = vmatpush2.msra.mxu0 %v3007
        %3172 = vmatprep.subr.mxu0 0.0
        %3173 = vmatpush2.msra.mxu0 %v3006
        %3174 = vmatprep.mubr.f32.mxu0 %v2907
        %3175 = vmatmul.mubr.f32.gmra.mxu0 %v2906
        %v3176 = vpop.f32.mrf.mxu0
        %v3177 = vadd.f32 0.0, %v3176
        %v3178 = vpop.f32.mrf.mxu0
        %3179 = vmatprep.mubr.f32.mxu0 %v2910
        %3180 = vmatmul.mubr.f32.gmra.mxu0 %v2909
        %v3181 = vpop.f32.mrf.mxu0
        %v3182 = vadd.f32 0.0, %v3181
        %v3183 = vpop.f32.mrf.mxu0
        %3184 = vmatprep.mubr.f32.mxu0 %v2913
        %3185 = vmatmul.mubr.f32.gmra.mxu0 %v2912
        %v3186 = vpop.f32.mrf.mxu0
        %v3187 = vadd.f32 0.0, %v3186
        %v3188 = vpop.f32.mrf.mxu0
        %3189 = vmatprep.mubr.f32.mxu0 %v2916
        %3190 = vmatmul.mubr.f32.gmra.mxu0 %v2915
        %v3191 = vpop.f32.mrf.mxu0
        %v3192 = vadd.f32 0.0, %v3191
        %v3193 = vpop.f32.mrf.mxu0
        %3194 = vmatprep.mubr.f32.mxu0 %v2919
        %3195 = vmatmul.mubr.f32.gmra.mxu0 %v2918
        %v3196 = vpop.f32.mrf.mxu0
        %v3197 = vadd.f32 0.0, %v3196
        %v3198 = vpop.f32.mrf.mxu0
        %3199 = vmatprep.mubr.f32.mxu0 %v2922
        %3200 = vmatmul.mubr.f32.gmra.mxu0 %v2921
        %v3201 = vpop.f32.mrf.mxu0
        %v3202 = vadd.f32 0.0, %v3201
        %v3203 = vpop.f32.mrf.mxu0
        %3204 = vmatprep.mubr.f32.mxu0 %v2925
        %3205 = vmatmul.mubr.f32.gmra.mxu0 %v2924
        %v3206 = vpop.f32.mrf.mxu0
        %v3207 = vadd.f32 0.0, %v3206
        %v3208 = vpop.f32.mrf.mxu0
        %3209 = vmatprep.mubr.f32.mxu0 %v2928
        %3210 = vmatmul.mubr.f32.gmra.mxu0 %v2927
        %v3211 = vpop.f32.mrf.mxu0
        %v3212 = vadd.f32 0.0, %v3211
        %v3213 = vpop.f32.mrf.mxu0
        %3214 = vmatprep.mubr.f32.mxu0 %v2931
        %3215 = vmatmul.mubr.f32.gmra.mxu0 %v2930
        %v3216 = vpop.f32.mrf.mxu0
        %v3217 = vadd.f32 0.0, %v3216
        %v3218 = vpop.f32.mrf.mxu0
        %3219 = vmatprep.mubr.f32.mxu0 %v2934
        %3220 = vmatmul.mubr.f32.gmra.mxu0 %v2933
        %v3221 = vpop.f32.mrf.mxu0
        %v3222 = vadd.f32 0.0, %v3221
        %v3223 = vpop.f32.mrf.mxu0
        %3224 = vmatprep.mubr.f32.mxu0 %v2937
        %3225 = vmatmul.mubr.f32.gmra.mxu0 %v2936
        %v3226 = vpop.f32.mrf.mxu0
        %v3227 = vadd.f32 0.0, %v3226
        %v3228 = vpop.f32.mrf.mxu0
        %3229 = vmatprep.mubr.f32.mxu0 %v2940
        %3230 = vmatmul.mubr.f32.gmra.mxu0 %v2939
        %v3231 = vpop.f32.mrf.mxu0
        %v3232 = vadd.f32 0.0, %v3231
        %v3233 = vpop.f32.mrf.mxu0
        %3234 = vmatprep.mubr.f32.mxu0 %v2943
        %3235 = vmatmul.mubr.f32.gmra.mxu0 %v2942
        %v3236 = vpop.f32.mrf.mxu0
        %v3237 = vadd.f32 0.0, %v3236
        %v3238 = vpop.f32.mrf.mxu0
        %3239 = vmatprep.mubr.f32.mxu0 %v2946
        %3240 = vmatmul.mubr.f32.gmra.mxu0 %v2945
        %v3241 = vpop.f32.mrf.mxu0
        %v3242 = vadd.f32 0.0, %v3241
        %v3243 = vpop.f32.mrf.mxu0
        %3244 = vmatprep.mubr.f32.mxu0 %v2949
        %3245 = vmatmul.mubr.f32.gmra.mxu0 %v2948
        %v3246 = vpop.f32.mrf.mxu0
        %v3247 = vadd.f32 0.0, %v3246
        %v3248 = vpop.f32.mrf.mxu0
        %3249 = vmatprep.mubr.f32.mxu0 %v2952
        %3250 = vmatmul.mubr.f32.gmra.mxu0 %v2951
        %v3251 = vpop.f32.mrf.mxu0
        %v3252 = vadd.f32 0.0, %v3251
        %v3253 = vpop.f32.mrf.mxu0
        %3254 = vmatprep.mubr.f32.mxu0 %v2955
        %3255 = vmatmul.mubr.f32.gmra.mxu0 %v2954
        %v3256 = vpop.f32.mrf.mxu0
        %v3257 = vadd.f32 0.0, %v3256
        %v3258 = vpop.f32.mrf.mxu0
        %3259 = vmatprep.mubr.f32.mxu0 %v2958
        %3260 = vmatmul.mubr.f32.gmra.mxu0 %v2957
        %v3261 = vpop.f32.mrf.mxu0
        %v3262 = vadd.f32 0.0, %v3261
        %v3263 = vpop.f32.mrf.mxu0
        %3264 = vmatprep.mubr.f32.mxu0 %v2961
        %3265 = vmatmul.mubr.f32.gmra.mxu0 %v2960
        %v3266 = vpop.f32.mrf.mxu0
        %v3267 = vadd.f32 0.0, %v3266
        %v3268 = vpop.f32.mrf.mxu0
        %3269 = vmatprep.mubr.f32.mxu0 %v2964
        %3270 = vmatmul.mubr.f32.gmra.mxu0 %v2963
        %v3271 = vpop.f32.mrf.mxu0
        %v3272 = vadd.f32 0.0, %v3271
        %v3273 = vpop.f32.mrf.mxu0
        %3274 = vmatprep.mubr.f32.mxu0 %v2967
        %3275 = vmatmul.mubr.f32.gmra.mxu0 %v2966
        %v3276 = vpop.f32.mrf.mxu0
        %v3277 = vadd.f32 0.0, %v3276
        %v3278 = vpop.f32.mrf.mxu0
        %3279 = vmatprep.mubr.f32.mxu0 %v2970
        %3280 = vmatmul.mubr.f32.gmra.mxu0 %v2969
        %v3281 = vpop.f32.mrf.mxu0
        %v3282 = vadd.f32 0.0, %v3281
        %v3283 = vpop.f32.mrf.mxu0
        %3284 = vmatprep.mubr.f32.mxu0 %v2973
        %3285 = vmatmul.mubr.f32.gmra.mxu0 %v2972
        %v3286 = vpop.f32.mrf.mxu0
        %v3287 = vadd.f32 0.0, %v3286
        %v3288 = vpop.f32.mrf.mxu0
        %3289 = vmatprep.mubr.f32.mxu0 %v2976
        %3290 = vmatmul.mubr.f32.gmra.mxu0 %v2975
        %v3291 = vpop.f32.mrf.mxu0
        %v3292 = vadd.f32 0.0, %v3291
        %v3293 = vpop.f32.mrf.mxu0
        %3294 = vmatprep.mubr.f32.mxu0 %v2979
        %3295 = vmatmul.mubr.f32.gmra.mxu0 %v2978
        %v3296 = vpop.f32.mrf.mxu0
        %v3297 = vadd.f32 0.0, %v3296
        %v3298 = vpop.f32.mrf.mxu0
        %3299 = vmatprep.mubr.f32.mxu0 %v2982
        %3300 = vmatmul.mubr.f32.gmra.mxu0 %v2981
        %v3301 = vpop.f32.mrf.mxu0
        %v3302 = vadd.f32 0.0, %v3301
        %v3303 = vpop.f32.mrf.mxu0
        %3304 = vmatprep.mubr.f32.mxu0 %v2985
        %3305 = vmatmul.mubr.f32.gmra.mxu0 %v2984
        %v3306 = vpop.f32.mrf.mxu0
        %v3307 = vadd.f32 0.0, %v3306
        %v3308 = vpop.f32.mrf.mxu0
        %3309 = vmatprep.mubr.f32.mxu0 %v2988
        %3310 = vmatmul.mubr.f32.gmra.mxu0 %v2987
        %v3311 = vpop.f32.mrf.mxu0
        %v3312 = vadd.f32 0.0, %v3311
        %v3313 = vpop.f32.mrf.mxu0
        %3314 = vdwg.mxu0
        %3315 = vmatprep.subr.mxu0 0.0
        %3316 = vmatpush1.msra.mxu0 0.0
        %3317 = vmatprep.subr.mxu0 0.0
        %3318 = vmatpush1.msra.mxu0 0.0
        %3319 = vmatprep.subr.mxu0 0.0
        %3320 = vmatpush1.msra.mxu0 0.0
        %3321 = vmatprep.subr.mxu0 0.0
        %3322 = vmatpush1.msra.mxu0 0.0
        %3323 = vmatprep.subr.mxu0 0.0
        %3324 = vmatpush1.msra.mxu0 0.0
        %3325 = vmatprep.subr.mxu0 0.0
        %3326 = vmatpush1.msra.mxu0 0.0
        %3327 = vmatprep.subr.mxu0 0.0
        %3328 = vmatpush1.msra.mxu0 0.0
        %3329 = vmatprep.subr.mxu0 0.0
        %3330 = vmatpush1.msra.mxu0 0.0
        %3331 = vmatprep.subr.mxu0 0.0
        %3332 = vmatpush1.msra.mxu0 0.0
        %3333 = vmatprep.subr.mxu0 0.0
        %3334 = vmatpush1.msra.mxu0 0.0
        %3335 = vmatprep.subr.mxu0 0.0
        %3336 = vmatpush1.msra.mxu0 0.0
        %3337 = vmatprep.subr.mxu0 0.0
        %3338 = vmatpush1.msra.mxu0 0.0
        %3339 = vmatprep.subr.mxu0 0.0
        %3340 = vmatpush1.msra.mxu0 %v3025
        %3341 = vmatprep.subr.mxu0 0.0
        %3342 = vmatpush1.msra.mxu0 %v3024
        %3343 = vmatprep.subr.mxu0 0.0
        %3344 = vmatpush1.msra.mxu0 %v3023
        %3345 = vmatprep.subr.mxu0 0.0
        %3346 = vmatpush1.msra.mxu0 %v3022
        %3347 = vmatprep.subr.mxu0 0.0
        %3348 = vmatpush2.msra.mxu0 0.0
        %3349 = vmatprep.subr.mxu0 0.0
        %3350 = vmatpush2.msra.mxu0 0.0
        %3351 = vmatprep.subr.mxu0 0.0
        %3352 = vmatpush2.msra.mxu0 0.0
        %3353 = vmatprep.subr.mxu0 0.0
        %3354 = vmatpush2.msra.mxu0 0.0
        %3355 = vmatprep.subr.mxu0 0.0
        %3356 = vmatpush2.msra.mxu0 0.0
        %3357 = vmatprep.subr.mxu0 0.0
        %3358 = vmatpush2.msra.mxu0 0.0
        %3359 = vmatprep.subr.mxu0 0.0
        %3360 = vmatpush2.msra.mxu0 0.0
        %3361 = vmatprep.subr.mxu0 0.0
        %3362 = vmatpush2.msra.mxu0 0.0
        %3363 = vmatprep.subr.mxu0 0.0
        %3364 = vmatpush2.msra.mxu0 0.0
        %3365 = vmatprep.subr.mxu0 0.0
        %3366 = vmatpush2.msra.mxu0 0.0
        %3367 = vmatprep.subr.mxu0 0.0
        %3368 = vmatpush2.msra.mxu0 0.0
        %3369 = vmatprep.subr.mxu0 0.0
        %3370 = vmatpush2.msra.mxu0 0.0
        %3371 = vmatprep.subr.mxu0 0.0
        %3372 = vmatpush2.msra.mxu0 0.0
        %3373 = vmatprep.subr.mxu0 0.0
        %3374 = vmatpush2.msra.mxu0 0.0
        %3375 = vmatprep.subr.mxu0 0.0
        %3376 = vmatpush2.msra.mxu0 0.0
        %3377 = vmatprep.subr.mxu0 0.0
        %3378 = vmatpush2.msra.mxu0 0.0
        %3379 = vmatprep.mubr.f32.mxu0 0.0
        %3380 = vmatmul.mubr.f32.gmra.mxu0 %v3027
        %v3381 = vpop.f32.mrf.mxu0
        %v3382 = vadd.f32 %v3177, %v3381
        %v3383 = vpop.f32.mrf.mxu0
        %3384 = vmatprep.mubr.f32.mxu0 0.0
        %3385 = vmatmul.mubr.f32.gmra.mxu0 %v3030
        %v3386 = vpop.f32.mrf.mxu0
        %v3387 = vadd.f32 %v3182, %v3386
        %v3388 = vpop.f32.mrf.mxu0
        %3389 = vmatprep.mubr.f32.mxu0 0.0
        %3390 = vmatmul.mubr.f32.gmra.mxu0 %v3033
        %v3391 = vpop.f32.mrf.mxu0
        %v3392 = vadd.f32 %v3187, %v3391
        %v3393 = vpop.f32.mrf.mxu0
        %3394 = vmatprep.mubr.f32.mxu0 0.0
        %3395 = vmatmul.mubr.f32.gmra.mxu0 %v3036
        %v3396 = vpop.f32.mrf.mxu0
        %v3397 = vadd.f32 %v3192, %v3396
        %v3398 = vpop.f32.mrf.mxu0
        %3399 = vmatprep.mubr.f32.mxu0 0.0
        %3400 = vmatmul.mubr.f32.gmra.mxu0 %v3039
        %v3401 = vpop.f32.mrf.mxu0
        %v3402 = vadd.f32 %v3197, %v3401
        %v3403 = vpop.f32.mrf.mxu0
        %3404 = vmatprep.mubr.f32.mxu0 0.0
        %3405 = vmatmul.mubr.f32.gmra.mxu0 %v3042
        %v3406 = vpop.f32.mrf.mxu0
        %v3407 = vadd.f32 %v3202, %v3406
        %v3408 = vpop.f32.mrf.mxu0
        %3409 = vmatprep.mubr.f32.mxu0 0.0
        %3410 = vmatmul.mubr.f32.gmra.mxu0 %v3045
        %v3411 = vpop.f32.mrf.mxu0
        %v3412 = vadd.f32 %v3207, %v3411
        %v3413 = vpop.f32.mrf.mxu0
        %3414 = vmatprep.mubr.f32.mxu0 0.0
        %3415 = vmatmul.mubr.f32.gmra.mxu0 %v3048
        %v3416 = vpop.f32.mrf.mxu0
        %v3417 = vadd.f32 %v3212, %v3416
        %v3418 = vpop.f32.mrf.mxu0
        %3419 = vmatprep.mubr.f32.mxu0 0.0
        %3420 = vmatmul.mubr.f32.gmra.mxu0 %v3051
        %v3421 = vpop.f32.mrf.mxu0
        %v3422 = vadd.f32 %v3217, %v3421
        %v3423 = vpop.f32.mrf.mxu0
        %3424 = vmatprep.mubr.f32.mxu0 0.0
        %3425 = vmatmul.mubr.f32.gmra.mxu0 %v3054
        %v3426 = vpop.f32.mrf.mxu0
        %v3427 = vadd.f32 %v3222, %v3426
        %v3428 = vpop.f32.mrf.mxu0
        %3429 = vmatprep.mubr.f32.mxu0 0.0
        %3430 = vmatmul.mubr.f32.gmra.mxu0 %v3057
        %v3431 = vpop.f32.mrf.mxu0
        %v3432 = vadd.f32 %v3227, %v3431
        %v3433 = vpop.f32.mrf.mxu0
        %3434 = vmatprep.mubr.f32.mxu0 0.0
        %3435 = vmatmul.mubr.f32.gmra.mxu0 %v3060
        %v3436 = vpop.f32.mrf.mxu0
        %v3437 = vadd.f32 %v3232, %v3436
        %v3438 = vpop.f32.mrf.mxu0
        %3439 = vmatprep.mubr.f32.mxu0 0.0
        %3440 = vmatmul.mubr.f32.gmra.mxu0 %v3063
        %v3441 = vpop.f32.mrf.mxu0
        %v3442 = vadd.f32 %v3237, %v3441
        %v3443 = vpop.f32.mrf.mxu0
        %3444 = vmatprep.mubr.f32.mxu0 0.0
        %3445 = vmatmul.mubr.f32.gmra.mxu0 %v3066
        %v3446 = vpop.f32.mrf.mxu0
        %v3447 = vadd.f32 %v3242, %v3446
        %v3448 = vpop.f32.mrf.mxu0
        %3449 = vmatprep.mubr.f32.mxu0 0.0
        %3450 = vmatmul.mubr.f32.gmra.mxu0 %v3069
        %v3451 = vpop.f32.mrf.mxu0
        %v3452 = vadd.f32 %v3247, %v3451
        %v3453 = vpop.f32.mrf.mxu0
        %3454 = vmatprep.mubr.f32.mxu0 0.0
        %3455 = vmatmul.mubr.f32.gmra.mxu0 %v3072
        %v3456 = vpop.f32.mrf.mxu0
        %v3457 = vadd.f32 %v3252, %v3456
        %v3458 = vpop.f32.mrf.mxu0
        %3459 = vmatprep.mubr.f32.mxu0 0.0
        %3460 = vmatmul.mubr.f32.gmra.mxu0 %v3075
        %v3461 = vpop.f32.mrf.mxu0
        %v3462 = vadd.f32 %v3257, %v3461
        %v3463 = vpop.f32.mrf.mxu0
        %3464 = vmatprep.mubr.f32.mxu0 0.0
        %3465 = vmatmul.mubr.f32.gmra.mxu0 %v3078
        %v3466 = vpop.f32.mrf.mxu0
        %v3467 = vadd.f32 %v3262, %v3466
        %v3468 = vpop.f32.mrf.mxu0
        %3469 = vmatprep.mubr.f32.mxu0 0.0
        %3470 = vmatmul.mubr.f32.gmra.mxu0 %v3081
        %v3471 = vpop.f32.mrf.mxu0
        %v3472 = vadd.f32 %v3267, %v3471
        %v3473 = vpop.f32.mrf.mxu0
        %3474 = vmatprep.mubr.f32.mxu0 0.0
        %3475 = vmatmul.mubr.f32.gmra.mxu0 %v3084
        %v3476 = vpop.f32.mrf.mxu0
        %v3477 = vadd.f32 %v3272, %v3476
        %v3478 = vpop.f32.mrf.mxu0
        %3479 = vmatprep.mubr.f32.mxu0 0.0
        %3480 = vmatmul.mubr.f32.gmra.mxu0 %v3087
        %v3481 = vpop.f32.mrf.mxu0
        %v3482 = vadd.f32 %v3277, %v3481
        %v3483 = vpop.f32.mrf.mxu0
        %3484 = vmatprep.mubr.f32.mxu0 0.0
        %3485 = vmatmul.mubr.f32.gmra.mxu0 %v3090
        %v3486 = vpop.f32.mrf.mxu0
        %v3487 = vadd.f32 %v3282, %v3486
        %v3488 = vpop.f32.mrf.mxu0
        %3489 = vmatprep.mubr.f32.mxu0 0.0
        %3490 = vmatmul.mubr.f32.gmra.mxu0 %v3093
        %v3491 = vpop.f32.mrf.mxu0
        %v3492 = vadd.f32 %v3287, %v3491
        %v3493 = vpop.f32.mrf.mxu0
        %3494 = vmatprep.mubr.f32.mxu0 0.0
        %3495 = vmatmul.mubr.f32.gmra.mxu0 %v3096
        %v3496 = vpop.f32.mrf.mxu0
        %v3497 = vadd.f32 %v3292, %v3496
        %v3498 = vpop.f32.mrf.mxu0
        %3499 = vmatprep.mubr.f32.mxu0 0.0
        %3500 = vmatmul.mubr.f32.gmra.mxu0 %v3099
        %v3501 = vpop.f32.mrf.mxu0
        %v3502 = vadd.f32 %v3297, %v3501
        %v3503 = vpop.f32.mrf.mxu0
        %3504 = vmatprep.mubr.f32.mxu0 0.0
        %3505 = vmatmul.mubr.f32.gmra.mxu0 %v3102
        %v3506 = vpop.f32.mrf.mxu0
        %v3507 = vadd.f32 %v3302, %v3506
        %v3508 = vpop.f32.mrf.mxu0
        %3509 = vmatprep.mubr.f32.mxu0 0.0
        %3510 = vmatmul.mubr.f32.gmra.mxu0 %v3105
        %v3511 = vpop.f32.mrf.mxu0
        %v3512 = vadd.f32 %v3307, %v3511
        %v3513 = vpop.f32.mrf.mxu0
        %3514 = vmatprep.mubr.f32.mxu0 0.0
        %3515 = vmatmul.mubr.f32.gmra.mxu0 %v3108
        %v3516 = vpop.f32.mrf.mxu0
        %v3517 = vadd.f32 %v3312, %v3516
        %v3518 = vpop.f32.mrf.mxu0
        %3519 = vdwg.mxu0
        %v3520 = vmax.f32 %v3382, %v3417
        %v3521 = vmax.f32 %v3387, %v3422
        %v3522 = vmax.f32 %v3392, %v3427
        %v3523 = vmax.f32 %v3397, %v3432
        %v3524 = vmax.f32 %v3402, %v3437
        %v3525 = vmax.f32 %v3407, %v3442
        %v3526 = vmax.f32 %v3412, %v3447
        %v3527 = vmax.f32 %v3452, %v3487
        %v3528 = vmax.f32 %v3457, %v3492
        %v3529 = vmax.f32 %v3462, %v3497
        %v3530 = vmax.f32 %v3467, %v3502
        %v3531 = vmax.f32 %v3472, %v3507
        %v3532 = vmax.f32 %v3477, %v3512
        %v3533 = vmax.f32 %v3482, %v3517
        %v3534 = vmax.f32 %v3520, %v3527
        %v3535 = vmax.f32 %v3521, %v3528
        %v3536 = vmax.f32 %v3522, %v3529
        %v3537 = vmax.f32 %v3523, %v3530
        %v3538 = vmax.f32 %v3524, %v3531
        %v3539 = vmax.f32 %v3525, %v3532
        %v3540 = vmax.f32 %v3526, %v3533
        %v3541 = vld [vmem:[%s4] sm:$0x1]
        %v3543 = vlaneseq
        %v3544 = vshrl.u32 %v3543, 7
        %v3545 = vsub.s32 0, %v3544
        %v3546 = vrot.slane %v3541, %v3545
        %v3548 = vadd.f32 %v3534, %v3546
        %v3549 = vadd.f32 %v3535, %v3546
        %v3550 = vadd.f32 %v3536, %v3546
        %v3551 = vadd.f32 %v3537, %v3546
        %v3552 = vadd.f32 %v3538, %v3546
        %v3553 = vadd.f32 %v3539, %v3546
        %v3554 = vadd.f32 %v3540, %v3546
        %v3555 = vmax.f32 %v3548, 0.0
        %v3556 = vmax.f32 %v3549, 0.0
        %v3557 = vmax.f32 %v3550, 0.0
        %v3558 = vmax.f32 %v3551, 0.0
        %v3559 = vmax.f32 %v3552, 0.0
        %v3560 = vmax.f32 %v3553, 0.0
        %v3561 = vmax.f32 %v3554, 0.0
        %vm3562 = vcmask 523264
        %3563 = vst.msk [vmem:[#allocation4] sm:$0xff] %vm3562, %v3555
        %3564 = vst.msk [vmem:[#allocation4 + $0x8] sm:$0xff] %vm3562, %v3556
        %3565 = vst.msk [vmem:[#allocation4 + $0x10] sm:$0xff] %vm3562, %v3557
        %3566 = vst.msk [vmem:[#allocation4 + $0x18] sm:$0xff] %vm3562, %v3558
        %3567 = vst.msk [vmem:[#allocation4 + $0x20] sm:$0xff] %vm3562, %v3559
        %3568 = vst.msk [vmem:[#allocation4 + $0x28] sm:$0xff] %vm3562, %v3560
        %3569 = vst.msk [vmem:[#allocation4 + $0x30] sm:$0xff] %vm3562, %v3561
        %v3570 = vld [vmem:[#allocation4] sm:$0x1]
        %v3571 = vlaneseq
        %vm3572 = vcmp.ge.s32.totalorder %v3571, 0
        %vm3573 = vcmp.lt.s32.totalorder %v3571, 64
        %vm3574 = vmand %vm3572, %vm3573
        %3575 = vst.msk [vmem:[#allocation5] sm:$0x1] %vm3574, %v3570
        %v3576 = vld [vmem:[#allocation4 + $0x1] sm:$0x1]
        %v3579 = vunpack.c.l.s4 1966171168
        %v3580 = vunpack.c.0.s8 %v3579
        %v3581 = vlaneseq
        %v3582 = vshrl.u32 %v3581, 7
        %v3583 = vsub.s32 %v3580, %v3582
        %v3584 = vrot.slane %v3576, %v3583
        %v3586 = vunpack.c.l.s4 1966171168
        %v3587 = vunpack.c.0.s8 %v3586
        %v3588 = vlaneseq
        %v3589 = vshrl.u32 %v3588, 7
        %v3590 = vsub.s32 %v3587, %v3589
        %v3591 = vrot.slane %v3584, %v3590
        %3592 = vrot.lane.b32.xlu0 %v3591, 64
        %v3593 = vpop.permute.xlu0 %3592
        %vm3595 = vcmp.ge.s32.totalorder %v3571, 64
        %vm3596 = vcmp.lt.s32.totalorder %v3571, 128
        %vm3597 = vmand %vm3595, %vm3596
        %3598 = vst.msk [vmem:[#allocation5] sm:$0x1] %vm3597, %v3593
        %v3599 = vld [vmem:[#allocation4 + $0x2] sm:$0x1]
        %3600 = vst.msk [vmem:[#allocation5 + $0x1] sm:$0x1] %vm3574, %v3599
        %v3601 = vld [vmem:[#allocation4 + $0x3] sm:$0x1]
        %v3604 = vunpack.c.l.s4 1966171168
        %v3605 = vunpack.c.0.s8 %v3604
        %v3606 = vlaneseq
        %v3607 = vshrl.u32 %v3606, 7
        %v3608 = vsub.s32 %v3605, %v3607
        %v3609 = vrot.slane %v3601, %v3608
        %v3611 = vunpack.c.l.s4 1966171168
        %v3612 = vunpack.c.0.s8 %v3611
        %v3613 = vlaneseq
        %v3614 = vshrl.u32 %v3613, 7
        %v3615 = vsub.s32 %v3612, %v3614
        %v3616 = vrot.slane %v3609, %v3615
        %3617 = vrot.lane.b32.xlu0 %v3616, 64
        %v3618 = vpop.permute.xlu0 %3617
        %3620 = vst.msk [vmem:[#allocation5 + $0x1] sm:$0x1] %vm3597, %v3618
        %v3621 = vld [vmem:[#allocation4 + $0x4] sm:$0x1]
        %3622 = vst.msk [vmem:[#allocation5 + $0x2] sm:$0x1] %vm3574, %v3621
        %v3623 = vld [vmem:[#allocation4 + $0x5] sm:$0x1]
        %v3626 = vunpack.c.l.s4 1966171168
        %v3627 = vunpack.c.0.s8 %v3626
        %v3628 = vlaneseq
        %v3629 = vshrl.u32 %v3628, 7
        %v3630 = vsub.s32 %v3627, %v3629
        %v3631 = vrot.slane %v3623, %v3630
        %v3633 = vunpack.c.l.s4 1966171168
        %v3634 = vunpack.c.0.s8 %v3633
        %v3635 = vlaneseq
        %v3636 = vshrl.u32 %v3635, 7
        %v3637 = vsub.s32 %v3634, %v3636
        %v3638 = vrot.slane %v3631, %v3637
        %3639 = vrot.lane.b32.xlu0 %v3638, 64
        %v3640 = vpop.permute.xlu0 %3639
        %3642 = vst.msk [vmem:[#allocation5 + $0x2] sm:$0x1] %vm3597, %v3640
        %v3643 = vld [vmem:[#allocation4 + $0x6] sm:$0x1]
        %3644 = vst.msk [vmem:[#allocation5 + $0x3] sm:$0x1] %vm3574, %v3643
        %v3645 = vld [vmem:[#allocation4 + $0x8] sm:$0x1]
        %v3648 = vunpack.c.l.s4 1966171168
        %v3649 = vunpack.c.0.s8 %v3648
        %v3650 = vlaneseq
        %v3651 = vshrl.u32 %v3650, 7
        %v3652 = vsub.s32 %v3649, %v3651
        %v3653 = vrot.slane %v3645, %v3652
        %v3655 = vunpack.c.l.s4 1966171168
        %v3656 = vunpack.c.0.s8 %v3655
        %v3657 = vlaneseq
        %v3658 = vshrl.u32 %v3657, 7
        %v3659 = vsub.s32 %v3656, %v3658
        %v3660 = vrot.slane %v3653, %v3659
        %3661 = vrot.lane.b32.xlu0 %v3660, 64
        %v3662 = vpop.permute.xlu0 %3661
        %3664 = vst.msk [vmem:[#allocation5 + $0x3] sm:$0x1] %vm3597, %v3662
        %v3665 = vld [vmem:[#allocation4 + $0x9] sm:$0x1]
        %3666 = vst.msk [vmem:[#allocation5 + $0x4] sm:$0x1] %vm3574, %v3665
        %v3667 = vld [vmem:[#allocation4 + $0xa] sm:$0x1]
        %v3670 = vunpack.c.l.s4 1966171168
        %v3671 = vunpack.c.0.s8 %v3670
        %v3672 = vlaneseq
        %v3673 = vshrl.u32 %v3672, 7
        %v3674 = vsub.s32 %v3671, %v3673
        %v3675 = vrot.slane %v3667, %v3674
        %v3677 = vunpack.c.l.s4 1966171168
        %v3678 = vunpack.c.0.s8 %v3677
        %v3679 = vlaneseq
        %v3680 = vshrl.u32 %v3679, 7
        %v3681 = vsub.s32 %v3678, %v3680
        %v3682 = vrot.slane %v3675, %v3681
        %3683 = vrot.lane.b32.xlu0 %v3682, 64
        %v3684 = vpop.permute.xlu0 %3683
        %3686 = vst.msk [vmem:[#allocation5 + $0x4] sm:$0x1] %vm3597, %v3684
        %v3687 = vld [vmem:[#allocation4 + $0xb] sm:$0x1]
        %3688 = vst.msk [vmem:[#allocation5 + $0x5] sm:$0x1] %vm3574, %v3687
        %v3689 = vld [vmem:[#allocation4 + $0xc] sm:$0x1]
        %v3692 = vunpack.c.l.s4 1966171168
        %v3693 = vunpack.c.0.s8 %v3692
        %v3694 = vlaneseq
        %v3695 = vshrl.u32 %v3694, 7
        %v3696 = vsub.s32 %v3693, %v3695
        %v3697 = vrot.slane %v3689, %v3696
        %v3699 = vunpack.c.l.s4 1966171168
        %v3700 = vunpack.c.0.s8 %v3699
        %v3701 = vlaneseq
        %v3702 = vshrl.u32 %v3701, 7
        %v3703 = vsub.s32 %v3700, %v3702
        %v3704 = vrot.slane %v3697, %v3703
        %3705 = vrot.lane.b32.xlu0 %v3704, 64
        %v3706 = vpop.permute.xlu0 %3705
        %3708 = vst.msk [vmem:[#allocation5 + $0x5] sm:$0x1] %vm3597, %v3706
        %v3709 = vld [vmem:[#allocation4 + $0xd] sm:$0x1]
        %3710 = vst.msk [vmem:[#allocation5 + $0x6] sm:$0x1] %vm3574, %v3709
        %v3711 = vld [vmem:[#allocation4 + $0xe] sm:$0x1]
        %v3714 = vunpack.c.l.s4 1966171168
        %v3715 = vunpack.c.0.s8 %v3714
        %v3716 = vlaneseq
        %v3717 = vshrl.u32 %v3716, 7
        %v3718 = vsub.s32 %v3715, %v3717
        %v3719 = vrot.slane %v3711, %v3718
        %v3721 = vunpack.c.l.s4 1966171168
        %v3722 = vunpack.c.0.s8 %v3721
        %v3723 = vlaneseq
        %v3724 = vshrl.u32 %v3723, 7
        %v3725 = vsub.s32 %v3722, %v3724
        %v3726 = vrot.slane %v3719, %v3725
        %3727 = vrot.lane.b32.xlu0 %v3726, 64
        %v3728 = vpop.permute.xlu0 %3727
        %3730 = vst.msk [vmem:[#allocation5 + $0x6] sm:$0x1] %vm3597, %v3728
        %v3731 = vld [vmem:[#allocation4 + $0x10] sm:$0x1]
        %3732 = vst.msk [vmem:[#allocation5 + $0x7] sm:$0x1] %vm3574, %v3731
        %v3733 = vld [vmem:[#allocation4 + $0x11] sm:$0x1]
        %v3736 = vunpack.c.l.s4 1966171168
        %v3737 = vunpack.c.0.s8 %v3736
        %v3738 = vlaneseq
        %v3739 = vshrl.u32 %v3738, 7
        %v3740 = vsub.s32 %v3737, %v3739
        %v3741 = vrot.slane %v3733, %v3740
        %v3743 = vunpack.c.l.s4 1966171168
        %v3744 = vunpack.c.0.s8 %v3743
        %v3745 = vlaneseq
        %v3746 = vshrl.u32 %v3745, 7
        %v3747 = vsub.s32 %v3744, %v3746
        %v3748 = vrot.slane %v3741, %v3747
        %3749 = vrot.lane.b32.xlu0 %v3748, 64
        %v3750 = vpop.permute.xlu0 %3749
        %3752 = vst.msk [vmem:[#allocation5 + $0x7] sm:$0x1] %vm3597, %v3750
        %v3753 = vld [vmem:[#allocation4 + $0x12] sm:$0x1]
        %3754 = vst.msk [vmem:[#allocation5 + $0x8] sm:$0x1] %vm3574, %v3753
        %v3755 = vld [vmem:[#allocation4 + $0x13] sm:$0x1]
        %v3758 = vunpack.c.l.s4 1966171168
        %v3759 = vunpack.c.0.s8 %v3758
        %v3760 = vlaneseq
        %v3761 = vshrl.u32 %v3760, 7
        %v3762 = vsub.s32 %v3759, %v3761
        %v3763 = vrot.slane %v3755, %v3762
        %v3765 = vunpack.c.l.s4 1966171168
        %v3766 = vunpack.c.0.s8 %v3765
        %v3767 = vlaneseq
        %v3768 = vshrl.u32 %v3767, 7
        %v3769 = vsub.s32 %v3766, %v3768
        %v3770 = vrot.slane %v3763, %v3769
        %3771 = vrot.lane.b32.xlu0 %v3770, 64
        %v3772 = vpop.permute.xlu0 %3771
        %3774 = vst.msk [vmem:[#allocation5 + $0x8] sm:$0x1] %vm3597, %v3772
        %v3775 = vld [vmem:[#allocation4 + $0x14] sm:$0x1]
        %3776 = vst.msk [vmem:[#allocation5 + $0x9] sm:$0x1] %vm3574, %v3775
        %v3777 = vld [vmem:[#allocation4 + $0x15] sm:$0x1]
        %v3780 = vunpack.c.l.s4 1966171168
        %v3781 = vunpack.c.0.s8 %v3780
        %v3782 = vlaneseq
        %v3783 = vshrl.u32 %v3782, 7
        %v3784 = vsub.s32 %v3781, %v3783
        %v3785 = vrot.slane %v3777, %v3784
        %v3787 = vunpack.c.l.s4 1966171168
        %v3788 = vunpack.c.0.s8 %v3787
        %v3789 = vlaneseq
        %v3790 = vshrl.u32 %v3789, 7
        %v3791 = vsub.s32 %v3788, %v3790
        %v3792 = vrot.slane %v3785, %v3791
        %3793 = vrot.lane.b32.xlu0 %v3792, 64
        %v3794 = vpop.permute.xlu0 %3793
        %3796 = vst.msk [vmem:[#allocation5 + $0x9] sm:$0x1] %vm3597, %v3794
        %v3797 = vld [vmem:[#allocation4 + $0x16] sm:$0x1]
        %3798 = vst.msk [vmem:[#allocation5 + $0xa] sm:$0x1] %vm3574, %v3797
        %v3799 = vld [vmem:[#allocation4 + $0x18] sm:$0x1]
        %v3802 = vunpack.c.l.s4 1966171168
        %v3803 = vunpack.c.0.s8 %v3802
        %v3804 = vlaneseq
        %v3805 = vshrl.u32 %v3804, 7
        %v3806 = vsub.s32 %v3803, %v3805
        %v3807 = vrot.slane %v3799, %v3806
        %v3809 = vunpack.c.l.s4 1966171168
        %v3810 = vunpack.c.0.s8 %v3809
        %v3811 = vlaneseq
        %v3812 = vshrl.u32 %v3811, 7
        %v3813 = vsub.s32 %v3810, %v3812
        %v3814 = vrot.slane %v3807, %v3813
        %3815 = vrot.lane.b32.xlu0 %v3814, 64
        %v3816 = vpop.permute.xlu0 %3815
        %3818 = vst.msk [vmem:[#allocation5 + $0xa] sm:$0x1] %vm3597, %v3816
        %v3819 = vld [vmem:[#allocation4 + $0x19] sm:$0x1]
        %3820 = vst.msk [vmem:[#allocation5 + $0xb] sm:$0x1] %vm3574, %v3819
        %v3821 = vld [vmem:[#allocation4 + $0x1a] sm:$0x1]
        %v3824 = vunpack.c.l.s4 1966171168
        %v3825 = vunpack.c.0.s8 %v3824
        %v3826 = vlaneseq
        %v3827 = vshrl.u32 %v3826, 7
        %v3828 = vsub.s32 %v3825, %v3827
        %v3829 = vrot.slane %v3821, %v3828
        %v3831 = vunpack.c.l.s4 1966171168
        %v3832 = vunpack.c.0.s8 %v3831
        %v3833 = vlaneseq
        %v3834 = vshrl.u32 %v3833, 7
        %v3835 = vsub.s32 %v3832, %v3834
        %v3836 = vrot.slane %v3829, %v3835
        %3837 = vrot.lane.b32.xlu0 %v3836, 64
        %v3838 = vpop.permute.xlu0 %3837
        %3840 = vst.msk [vmem:[#allocation5 + $0xb] sm:$0x1] %vm3597, %v3838
        %v3841 = vld [vmem:[#allocation4 + $0x1b] sm:$0x1]
        %3842 = vst.msk [vmem:[#allocation5 + $0xc] sm:$0x1] %vm3574, %v3841
        %v3843 = vld [vmem:[#allocation4 + $0x1c] sm:$0x1]
        %v3846 = vunpack.c.l.s4 1966171168
        %v3847 = vunpack.c.0.s8 %v3846
        %v3848 = vlaneseq
        %v3849 = vshrl.u32 %v3848, 7
        %v3850 = vsub.s32 %v3847, %v3849
        %v3851 = vrot.slane %v3843, %v3850
        %v3853 = vunpack.c.l.s4 1966171168
        %v3854 = vunpack.c.0.s8 %v3853
        %v3855 = vlaneseq
        %v3856 = vshrl.u32 %v3855, 7
        %v3857 = vsub.s32 %v3854, %v3856
        %v3858 = vrot.slane %v3851, %v3857
        %3859 = vrot.lane.b32.xlu0 %v3858, 64
        %v3860 = vpop.permute.xlu0 %3859
        %3862 = vst.msk [vmem:[#allocation5 + $0xc] sm:$0x1] %vm3597, %v3860
        %v3863 = vld [vmem:[#allocation4 + $0x1d] sm:$0x1]
        %3864 = vst.msk [vmem:[#allocation5 + $0xd] sm:$0x1] %vm3574, %v3863
        %v3865 = vld [vmem:[#allocation4 + $0x1e] sm:$0x1]
        %v3868 = vunpack.c.l.s4 1966171168
        %v3869 = vunpack.c.0.s8 %v3868
        %v3870 = vlaneseq
        %v3871 = vshrl.u32 %v3870, 7
        %v3872 = vsub.s32 %v3869, %v3871
        %v3873 = vrot.slane %v3865, %v3872
        %v3875 = vunpack.c.l.s4 1966171168
        %v3876 = vunpack.c.0.s8 %v3875
        %v3877 = vlaneseq
        %v3878 = vshrl.u32 %v3877, 7
        %v3879 = vsub.s32 %v3876, %v3878
        %v3880 = vrot.slane %v3873, %v3879
        %3881 = vrot.lane.b32.xlu0 %v3880, 64
        %v3882 = vpop.permute.xlu0 %3881
        %3884 = vst.msk [vmem:[#allocation5 + $0xd] sm:$0x1] %vm3597, %v3882
        %v3885 = vld [vmem:[#allocation4 + $0x20] sm:$0x1]
        %3886 = vst.msk [vmem:[#allocation5 + $0xe] sm:$0x1] %vm3574, %v3885
        %v3887 = vld [vmem:[#allocation4 + $0x21] sm:$0x1]
        %v3890 = vunpack.c.l.s4 1966171168
        %v3891 = vunpack.c.0.s8 %v3890
        %v3892 = vlaneseq
        %v3893 = vshrl.u32 %v3892, 7
        %v3894 = vsub.s32 %v3891, %v3893
        %v3895 = vrot.slane %v3887, %v3894
        %v3897 = vunpack.c.l.s4 1966171168
        %v3898 = vunpack.c.0.s8 %v3897
        %v3899 = vlaneseq
        %v3900 = vshrl.u32 %v3899, 7
        %v3901 = vsub.s32 %v3898, %v3900
        %v3902 = vrot.slane %v3895, %v3901
        %3903 = vrot.lane.b32.xlu0 %v3902, 64
        %v3904 = vpop.permute.xlu0 %3903
        %3906 = vst.msk [vmem:[#allocation5 + $0xe] sm:$0x1] %vm3597, %v3904
        %v3907 = vld [vmem:[#allocation4 + $0x22] sm:$0x1]
        %3908 = vst.msk [vmem:[#allocation5 + $0xf] sm:$0x1] %vm3574, %v3907
        %v3909 = vld [vmem:[#allocation4 + $0x23] sm:$0x1]
        %v3912 = vunpack.c.l.s4 1966171168
        %v3913 = vunpack.c.0.s8 %v3912
        %v3914 = vlaneseq
        %v3915 = vshrl.u32 %v3914, 7
        %v3916 = vsub.s32 %v3913, %v3915
        %v3917 = vrot.slane %v3909, %v3916
        %v3919 = vunpack.c.l.s4 1966171168
        %v3920 = vunpack.c.0.s8 %v3919
        %v3921 = vlaneseq
        %v3922 = vshrl.u32 %v3921, 7
        %v3923 = vsub.s32 %v3920, %v3922
        %v3924 = vrot.slane %v3917, %v3923
        %3925 = vrot.lane.b32.xlu0 %v3924, 64
        %v3926 = vpop.permute.xlu0 %3925
        %3928 = vst.msk [vmem:[#allocation5 + $0xf] sm:$0x1] %vm3597, %v3926
        %v3929 = vld [vmem:[#allocation4 + $0x24] sm:$0x1]
        %3930 = vst.msk [vmem:[#allocation5 + $0x10] sm:$0x1] %vm3574, %v3929
        %v3931 = vld [vmem:[#allocation4 + $0x25] sm:$0x1]
        %v3934 = vunpack.c.l.s4 1966171168
        %v3935 = vunpack.c.0.s8 %v3934
        %v3936 = vlaneseq
        %v3937 = vshrl.u32 %v3936, 7
        %v3938 = vsub.s32 %v3935, %v3937
        %v3939 = vrot.slane %v3931, %v3938
        %v3941 = vunpack.c.l.s4 1966171168
        %v3942 = vunpack.c.0.s8 %v3941
        %v3943 = vlaneseq
        %v3944 = vshrl.u32 %v3943, 7
        %v3945 = vsub.s32 %v3942, %v3944
        %v3946 = vrot.slane %v3939, %v3945
        %3947 = vrot.lane.b32.xlu0 %v3946, 64
        %v3948 = vpop.permute.xlu0 %3947
        %3950 = vst.msk [vmem:[#allocation5 + $0x10] sm:$0x1] %vm3597, %v3948
        %v3951 = vld [vmem:[#allocation4 + $0x26] sm:$0x1]
        %3952 = vst.msk [vmem:[#allocation5 + $0x11] sm:$0x1] %vm3574, %v3951
        %v3953 = vld [vmem:[#allocation4 + $0x28] sm:$0x1]
        %v3956 = vunpack.c.l.s4 1966171168
        %v3957 = vunpack.c.0.s8 %v3956
        %v3958 = vlaneseq
        %v3959 = vshrl.u32 %v3958, 7
        %v3960 = vsub.s32 %v3957, %v3959
        %v3961 = vrot.slane %v3953, %v3960
        %v3963 = vunpack.c.l.s4 1966171168
        %v3964 = vunpack.c.0.s8 %v3963
        %v3965 = vlaneseq
        %v3966 = vshrl.u32 %v3965, 7
        %v3967 = vsub.s32 %v3964, %v3966
        %v3968 = vrot.slane %v3961, %v3967
        %3969 = vrot.lane.b32.xlu0 %v3968, 64
        %v3970 = vpop.permute.xlu0 %3969
        %3972 = vst.msk [vmem:[#allocation5 + $0x11] sm:$0x1] %vm3597, %v3970
        %v3973 = vld [vmem:[#allocation4 + $0x29] sm:$0x1]
        %3974 = vst.msk [vmem:[#allocation5 + $0x12] sm:$0x1] %vm3574, %v3973
        %v3975 = vld [vmem:[#allocation4 + $0x2a] sm:$0x1]
        %v3978 = vunpack.c.l.s4 1966171168
        %v3979 = vunpack.c.0.s8 %v3978
        %v3980 = vlaneseq
        %v3981 = vshrl.u32 %v3980, 7
        %v3982 = vsub.s32 %v3979, %v3981
        %v3983 = vrot.slane %v3975, %v3982
        %v3985 = vunpack.c.l.s4 1966171168
        %v3986 = vunpack.c.0.s8 %v3985
        %v3987 = vlaneseq
        %v3988 = vshrl.u32 %v3987, 7
        %v3989 = vsub.s32 %v3986, %v3988
        %v3990 = vrot.slane %v3983, %v3989
        %3991 = vrot.lane.b32.xlu0 %v3990, 64
        %v3992 = vpop.permute.xlu0 %3991
        %3994 = vst.msk [vmem:[#allocation5 + $0x12] sm:$0x1] %vm3597, %v3992
        %v3995 = vld [vmem:[#allocation4 + $0x2b] sm:$0x1]
        %3996 = vst.msk [vmem:[#allocation5 + $0x13] sm:$0x1] %vm3574, %v3995
        %v3997 = vld [vmem:[#allocation4 + $0x2c] sm:$0x1]
        %v4000 = vunpack.c.l.s4 1966171168
        %v4001 = vunpack.c.0.s8 %v4000
        %v4002 = vlaneseq
        %v4003 = vshrl.u32 %v4002, 7
        %v4004 = vsub.s32 %v4001, %v4003
        %v4005 = vrot.slane %v3997, %v4004
        %v4007 = vunpack.c.l.s4 1966171168
        %v4008 = vunpack.c.0.s8 %v4007
        %v4009 = vlaneseq
        %v4010 = vshrl.u32 %v4009, 7
        %v4011 = vsub.s32 %v4008, %v4010
        %v4012 = vrot.slane %v4005, %v4011
        %4013 = vrot.lane.b32.xlu0 %v4012, 64
        %v4014 = vpop.permute.xlu0 %4013
        %4016 = vst.msk [vmem:[#allocation5 + $0x13] sm:$0x1] %vm3597, %v4014
        %v4017 = vld [vmem:[#allocation4 + $0x2d] sm:$0x1]
        %4018 = vst.msk [vmem:[#allocation5 + $0x14] sm:$0x1] %vm3574, %v4017
        %v4019 = vld [vmem:[#allocation4 + $0x2e] sm:$0x1]
        %v4022 = vunpack.c.l.s4 1966171168
        %v4023 = vunpack.c.0.s8 %v4022
        %v4024 = vlaneseq
        %v4025 = vshrl.u32 %v4024, 7
        %v4026 = vsub.s32 %v4023, %v4025
        %v4027 = vrot.slane %v4019, %v4026
        %v4029 = vunpack.c.l.s4 1966171168
        %v4030 = vunpack.c.0.s8 %v4029
        %v4031 = vlaneseq
        %v4032 = vshrl.u32 %v4031, 7
        %v4033 = vsub.s32 %v4030, %v4032
        %v4034 = vrot.slane %v4027, %v4033
        %4035 = vrot.lane.b32.xlu0 %v4034, 64
        %v4036 = vpop.permute.xlu0 %4035
        %4038 = vst.msk [vmem:[#allocation5 + $0x14] sm:$0x1] %vm3597, %v4036
        %v4039 = vld [vmem:[#allocation4 + $0x30] sm:$0x1]
        %4040 = vst.msk [vmem:[#allocation5 + $0x15] sm:$0x1] %vm3574, %v4039
        %v4041 = vld [vmem:[#allocation4 + $0x31] sm:$0x1]
        %v4044 = vunpack.c.l.s4 1966171168
        %v4045 = vunpack.c.0.s8 %v4044
        %v4046 = vlaneseq
        %v4047 = vshrl.u32 %v4046, 7
        %v4048 = vsub.s32 %v4045, %v4047
        %v4049 = vrot.slane %v4041, %v4048
        %v4051 = vunpack.c.l.s4 1966171168
        %v4052 = vunpack.c.0.s8 %v4051
        %v4053 = vlaneseq
        %v4054 = vshrl.u32 %v4053, 7
        %v4055 = vsub.s32 %v4052, %v4054
        %v4056 = vrot.slane %v4049, %v4055
        %4057 = vrot.lane.b32.xlu0 %v4056, 64
        %v4058 = vpop.permute.xlu0 %4057
        %4060 = vst.msk [vmem:[#allocation5 + $0x15] sm:$0x1] %vm3597, %v4058
        %v4061 = vld [vmem:[#allocation4 + $0x32] sm:$0x1]
        %4062 = vst.msk [vmem:[#allocation5 + $0x16] sm:$0x1] %vm3574, %v4061
        %v4063 = vld [vmem:[#allocation4 + $0x33] sm:$0x1]
        %v4066 = vunpack.c.l.s4 1966171168
        %v4067 = vunpack.c.0.s8 %v4066
        %v4068 = vlaneseq
        %v4069 = vshrl.u32 %v4068, 7
        %v4070 = vsub.s32 %v4067, %v4069
        %v4071 = vrot.slane %v4063, %v4070
        %v4073 = vunpack.c.l.s4 1966171168
        %v4074 = vunpack.c.0.s8 %v4073
        %v4075 = vlaneseq
        %v4076 = vshrl.u32 %v4075, 7
        %v4077 = vsub.s32 %v4074, %v4076
        %v4078 = vrot.slane %v4071, %v4077
        %4079 = vrot.lane.b32.xlu0 %v4078, 64
        %v4080 = vpop.permute.xlu0 %4079
        %4082 = vst.msk [vmem:[#allocation5 + $0x16] sm:$0x1] %vm3597, %v4080
        %v4083 = vld [vmem:[#allocation4 + $0x34] sm:$0x1]
        %4084 = vst.msk [vmem:[#allocation5 + $0x17] sm:$0x1] %vm3574, %v4083
        %v4085 = vld [vmem:[#allocation4 + $0x35] sm:$0x1]
        %v4088 = vunpack.c.l.s4 1966171168
        %v4089 = vunpack.c.0.s8 %v4088
        %v4090 = vlaneseq
        %v4091 = vshrl.u32 %v4090, 7
        %v4092 = vsub.s32 %v4089, %v4091
        %v4093 = vrot.slane %v4085, %v4092
        %v4095 = vunpack.c.l.s4 1966171168
        %v4096 = vunpack.c.0.s8 %v4095
        %v4097 = vlaneseq
        %v4098 = vshrl.u32 %v4097, 7
        %v4099 = vsub.s32 %v4096, %v4098
        %v4100 = vrot.slane %v4093, %v4099
        %4101 = vrot.lane.b32.xlu0 %v4100, 64
        %v4102 = vpop.permute.xlu0 %4101
        %4104 = vst.msk [vmem:[#allocation5 + $0x17] sm:$0x1] %vm3597, %v4102
        %v4105 = vld [vmem:[#allocation4 + $0x36] sm:$0x1]
        %4106 = vst.msk [vmem:[#allocation5 + $0x18] sm:$0x1] %vm3574, %v4105
        %s4107 = smul.u32 4, 392
        %s4108 = smul.u32 %s4107, 1
        %s4109 = sshll.u32 %s4108, 4
        %4110 = dma.done [#allocation7], %s4109
        %v4111 = vld [vmem:[#allocation5] sm:$0xff]
        %v4112 = vld [vmem:[#allocation5 + $0x8] sm:$0xff]
        %v4113 = vld [vmem:[#allocation5 + $0x10] sm:$0xff]
        %v4114 = vld [vmem:[#allocation5 + $0x18] sm:$0x1]
        %v4119 = vlaneseq
        %v4120 = vshrl.u32 %v4119, 7
        %v4121 = vsub.s32 0, %v4120
        %v4122 = vrot.slane %v4111, %v4121
        %v4123 = vlaneseq
        %v4124 = vshrl.u32 %v4123, 7
        %v4125 = vsub.s32 1, %v4124
        %v4126 = vrot.slane %v4111, %v4125
        %v4127 = vlaneseq
        %v4128 = vshrl.u32 %v4127, 7
        %v4129 = vsub.s32 2, %v4128
        %v4130 = vrot.slane %v4111, %v4129
        %v4131 = vlaneseq
        %v4132 = vshrl.u32 %v4131, 7
        %v4133 = vsub.s32 3, %v4132
        %v4134 = vrot.slane %v4111, %v4133
        %v4135 = vlaneseq
        %v4136 = vshrl.u32 %v4135, 7
        %v4137 = vsub.s32 4, %v4136
        %v4138 = vrot.slane %v4111, %v4137
        %v4139 = vlaneseq
        %v4140 = vshrl.u32 %v4139, 7
        %v4141 = vsub.s32 5, %v4140
        %v4142 = vrot.slane %v4111, %v4141
        %v4143 = vlaneseq
        %v4144 = vshrl.u32 %v4143, 7
        %v4145 = vsub.s32 6, %v4144
        %v4146 = vrot.slane %v4111, %v4145
        %v4147 = vlaneseq
        %v4148 = vshrl.u32 %v4147, 7
        %v4149 = vsub.s32 7, %v4148
        %v4150 = vrot.slane %v4111, %v4149
        %v4151 = vlaneseq
        %v4152 = vshrl.u32 %v4151, 7
        %v4153 = vsub.s32 0, %v4152
        %v4154 = vrot.slane %v4112, %v4153
        %v4155 = vlaneseq
        %v4156 = vshrl.u32 %v4155, 7
        %v4157 = vsub.s32 1, %v4156
        %v4158 = vrot.slane %v4112, %v4157
        %v4159 = vlaneseq
        %v4160 = vshrl.u32 %v4159, 7
        %v4161 = vsub.s32 2, %v4160
        %v4162 = vrot.slane %v4112, %v4161
        %v4163 = vlaneseq
        %v4164 = vshrl.u32 %v4163, 7
        %v4165 = vsub.s32 3, %v4164
        %v4166 = vrot.slane %v4112, %v4165
        %v4167 = vlaneseq
        %v4168 = vshrl.u32 %v4167, 7
        %v4169 = vsub.s32 4, %v4168
        %v4170 = vrot.slane %v4112, %v4169
        %v4171 = vlaneseq
        %v4172 = vshrl.u32 %v4171, 7
        %v4173 = vsub.s32 5, %v4172
        %v4174 = vrot.slane %v4112, %v4173
        %v4175 = vlaneseq
        %v4176 = vshrl.u32 %v4175, 7
        %v4177 = vsub.s32 6, %v4176
        %v4178 = vrot.slane %v4112, %v4177
        %v4179 = vlaneseq
        %v4180 = vshrl.u32 %v4179, 7
        %v4181 = vsub.s32 7, %v4180
        %v4182 = vrot.slane %v4112, %v4181
        %v4183 = vlaneseq
        %v4184 = vshrl.u32 %v4183, 7
        %v4185 = vsub.s32 0, %v4184
        %v4186 = vrot.slane %v4113, %v4185
        %v4187 = vlaneseq
        %v4188 = vshrl.u32 %v4187, 7
        %v4189 = vsub.s32 1, %v4188
        %v4190 = vrot.slane %v4113, %v4189
        %v4191 = vlaneseq
        %v4192 = vshrl.u32 %v4191, 7
        %v4193 = vsub.s32 2, %v4192
        %v4194 = vrot.slane %v4113, %v4193
        %v4195 = vlaneseq
        %v4196 = vshrl.u32 %v4195, 7
        %v4197 = vsub.s32 3, %v4196
        %v4198 = vrot.slane %v4113, %v4197
        %v4199 = vlaneseq
        %v4200 = vshrl.u32 %v4199, 7
        %v4201 = vsub.s32 4, %v4200
        %v4202 = vrot.slane %v4113, %v4201
        %v4203 = vlaneseq
        %v4204 = vshrl.u32 %v4203, 7
        %v4205 = vsub.s32 5, %v4204
        %v4206 = vrot.slane %v4113, %v4205
        %v4207 = vlaneseq
        %v4208 = vshrl.u32 %v4207, 7
        %v4209 = vsub.s32 6, %v4208
        %v4210 = vrot.slane %v4113, %v4209
        %v4211 = vlaneseq
        %v4212 = vshrl.u32 %v4211, 7
        %v4213 = vsub.s32 7, %v4212
        %v4214 = vrot.slane %v4113, %v4213
        %v4215 = vlaneseq
        %v4216 = vshrl.u32 %v4215, 7
        %v4217 = vsub.s32 0, %v4216
        %v4218 = vrot.slane %v4114, %v4217
        %v4244 = vpack.c.bf16 %v4122, %v4122
        %v4245 = vpack.c.bf16 %v4126, %v4126
        %v4246 = vpack.c.bf16 %v4130, %v4130
        %v4247 = vpack.c.bf16 %v4134, %v4134
        %v4248 = vpack.c.bf16 %v4138, %v4138
        %v4249 = vpack.c.bf16 %v4142, %v4142
        %v4250 = vpack.c.bf16 %v4146, %v4146
        %v4251 = vpack.c.bf16 %v4150, %v4150
        %v4252 = vpack.c.bf16 %v4154, %v4154
        %v4253 = vpack.c.bf16 %v4158, %v4158
        %v4254 = vpack.c.bf16 %v4162, %v4162
        %v4255 = vpack.c.bf16 %v4166, %v4166
        %v4256 = vpack.c.bf16 %v4170, %v4170
        %v4257 = vpack.c.bf16 %v4174, %v4174
        %v4258 = vpack.c.bf16 %v4178, %v4178
        %v4259 = vpack.c.bf16 %v4182, %v4182
        %v4260 = vpack.c.bf16 %v4186, %v4186
        %v4261 = vpack.c.bf16 %v4190, %v4190
        %v4262 = vpack.c.bf16 %v4194, %v4194
        %v4263 = vpack.c.bf16 %v4198, %v4198
        %v4264 = vpack.c.bf16 %v4202, %v4202
        %v4265 = vpack.c.bf16 %v4206, %v4206
        %v4266 = vpack.c.bf16 %v4210, %v4210
        %v4267 = vpack.c.bf16 %v4214, %v4214
        %v4268 = vpack.c.bf16 %v4218, %v4218
        %v4269 = vld [vmem:[#allocation6] sm:$0xf]
        %v4270 = vld [vmem:[#allocation6 + $0x4] sm:$0xf]
        %v4271 = vld [vmem:[#allocation6 + $0x8] sm:$0xf]
        %v4272 = vld [vmem:[#allocation6 + $0xc] sm:$0xf]
        %v4273 = vld [vmem:[#allocation6 + $0x10] sm:$0xf]
        %v4274 = vld [vmem:[#allocation6 + $0x14] sm:$0xf]
        %v4275 = vld [vmem:[#allocation6 + $0x18] sm:$0xf]
        %v4276 = vld [vmem:[#allocation6 + $0x1c] sm:$0xf]
        %v4277 = vld [vmem:[#allocation6 + $0x20] sm:$0xf]
        %v4278 = vld [vmem:[#allocation6 + $0x24] sm:$0xf]
        %v4279 = vld [vmem:[#allocation6 + $0x28] sm:$0xf]
        %v4280 = vld [vmem:[#allocation6 + $0x2c] sm:$0xf]
        %v4281 = vld [vmem:[#allocation6 + $0x30] sm:$0xf]
        %v4282 = vld [vmem:[#allocation6 + $0x34] sm:$0xf]
        %v4283 = vld [vmem:[#allocation6 + $0x38] sm:$0xf]
        %v4284 = vld [vmem:[#allocation6 + $0x3c] sm:$0xf]
        %v4285 = vld [vmem:[#allocation6 + $0x40] sm:$0xf]
        %v4286 = vld [vmem:[#allocation6 + $0x44] sm:$0xf]
        %v4287 = vld [vmem:[#allocation6 + $0x48] sm:$0xf]
        %v4288 = vld [vmem:[#allocation6 + $0x4c] sm:$0xf]
        %v4289 = vld [vmem:[#allocation6 + $0x50] sm:$0xf]
        %v4290 = vld [vmem:[#allocation6 + $0x54] sm:$0xf]
        %v4291 = vld [vmem:[#allocation6 + $0x58] sm:$0xf]
        %v4292 = vld [vmem:[#allocation6 + $0x5c] sm:$0xf]
        %v4293 = vld [vmem:[#allocation6 + $0x60] sm:$0xf]
        %v4294 = vld [vmem:[#allocation6 + $0x64] sm:$0xf]
        %v4295 = vld [vmem:[#allocation6 + $0x68] sm:$0xf]
        %v4296 = vld [vmem:[#allocation6 + $0x6c] sm:$0xf]
        %v4297 = vld [vmem:[#allocation6 + $0x70] sm:$0xf]
        %v4298 = vld [vmem:[#allocation6 + $0x74] sm:$0xf]
        %v4299 = vld [vmem:[#allocation6 + $0x78] sm:$0xf]
        %v4300 = vld [vmem:[#allocation6 + $0x7c] sm:$0xf]
        %v4301 = vld [vmem:[#allocation6 + $0x80] sm:$0xf]
        %v4302 = vld [vmem:[#allocation6 + $0x84] sm:$0xf]
        %v4303 = vld [vmem:[#allocation6 + $0x88] sm:$0xf]
        %v4304 = vld [vmem:[#allocation6 + $0x8c] sm:$0xf]
        %v4305 = vld [vmem:[#allocation6 + $0x90] sm:$0xf]
        %v4306 = vld [vmem:[#allocation6 + $0x94] sm:$0xf]
        %v4307 = vld [vmem:[#allocation6 + $0x98] sm:$0xf]
        %v4308 = vld [vmem:[#allocation6 + $0x9c] sm:$0xf]
        %v4309 = vld [vmem:[#allocation6 + $0xa0] sm:$0xf]
        %v4310 = vld [vmem:[#allocation6 + $0xa4] sm:$0xf]
        %v4311 = vld [vmem:[#allocation6 + $0xa8] sm:$0xf]
        %v4312 = vld [vmem:[#allocation6 + $0xac] sm:$0xf]
        %v4313 = vld [vmem:[#allocation6 + $0xb0] sm:$0xf]
        %v4314 = vld [vmem:[#allocation6 + $0xb4] sm:$0xf]
        %v4315 = vld [vmem:[#allocation6 + $0xb8] sm:$0xf]
        %v4316 = vld [vmem:[#allocation6 + $0xbc] sm:$0xf]
        %v4317 = vld [vmem:[#allocation6 + $0xc0] sm:$0xf]
        %v4318 = vld [vmem:[#allocation6 + $0xc4] sm:$0xf]
        %v4319 = vld [vmem:[#allocation6 + $0xc8] sm:$0xf]
        %v4320 = vld [vmem:[#allocation6 + $0xcc] sm:$0xf]
        %v4321 = vld [vmem:[#allocation6 + $0xd0] sm:$0xf]
        %v4322 = vld [vmem:[#allocation6 + $0xd4] sm:$0xf]
        %v4323 = vld [vmem:[#allocation6 + $0xd8] sm:$0xf]
        %v4324 = vld [vmem:[#allocation6 + $0xdc] sm:$0xf]
        %v4325 = vld [vmem:[#allocation6 + $0xe0] sm:$0xf]
        %v4326 = vld [vmem:[#allocation6 + $0xe4] sm:$0xf]
        %v4327 = vld [vmem:[#allocation6 + $0xe8] sm:$0xf]
        %v4328 = vld [vmem:[#allocation6 + $0xec] sm:$0xf]
        %v4329 = vld [vmem:[#allocation6 + $0xf0] sm:$0xf]
        %v4330 = vld [vmem:[#allocation6 + $0xf4] sm:$0xf]
        %v4331 = vld [vmem:[#allocation6 + $0xf8] sm:$0xf]
        %v4332 = vld [vmem:[#allocation6 + $0xfc] sm:$0xf]
        %v4333 = vld [vmem:[#allocation6 + $0x100] sm:$0xf]
        %v4334 = vld [vmem:[#allocation6 + $0x104] sm:$0xf]
        %v4335 = vld [vmem:[#allocation6 + $0x108] sm:$0xf]
        %v4336 = vld [vmem:[#allocation6 + $0x10c] sm:$0xf]
        %v4337 = vld [vmem:[#allocation6 + $0x110] sm:$0xf]
        %v4338 = vld [vmem:[#allocation6 + $0x114] sm:$0xf]
        %v4339 = vld [vmem:[#allocation6 + $0x118] sm:$0xf]
        %v4340 = vld [vmem:[#allocation6 + $0x11c] sm:$0xf]
        %v4341 = vld [vmem:[#allocation6 + $0x120] sm:$0xf]
        %v4342 = vld [vmem:[#allocation6 + $0x124] sm:$0xf]
        %v4343 = vld [vmem:[#allocation6 + $0x128] sm:$0xf]
        %v4344 = vld [vmem:[#allocation6 + $0x12c] sm:$0xf]
        %v4345 = vld [vmem:[#allocation6 + $0x130] sm:$0xf]
        %v4346 = vld [vmem:[#allocation6 + $0x134] sm:$0xf]
        %v4347 = vld [vmem:[#allocation6 + $0x138] sm:$0xf]
        %v4348 = vld [vmem:[#allocation6 + $0x13c] sm:$0xf]
        %v4349 = vld [vmem:[#allocation6 + $0x140] sm:$0xf]
        %v4350 = vld [vmem:[#allocation6 + $0x144] sm:$0xf]
        %v4351 = vld [vmem:[#allocation6 + $0x148] sm:$0xf]
        %v4352 = vld [vmem:[#allocation6 + $0x14c] sm:$0xf]
        %v4353 = vld [vmem:[#allocation6 + $0x150] sm:$0xf]
        %v4354 = vld [vmem:[#allocation6 + $0x154] sm:$0xf]
        %v4355 = vld [vmem:[#allocation6 + $0x158] sm:$0xf]
        %v4356 = vld [vmem:[#allocation6 + $0x15c] sm:$0xf]
        %v4357 = vld [vmem:[#allocation6 + $0x160] sm:$0xf]
        %v4358 = vld [vmem:[#allocation6 + $0x164] sm:$0xf]
        %v4359 = vld [vmem:[#allocation6 + $0x168] sm:$0xf]
        %v4360 = vld [vmem:[#allocation6 + $0x16c] sm:$0xf]
        %v4361 = vld [vmem:[#allocation6 + $0x170] sm:$0xf]
        %v4362 = vld [vmem:[#allocation6 + $0x174] sm:$0xf]
        %v4363 = vld [vmem:[#allocation6 + $0x178] sm:$0xf]
        %v4364 = vld [vmem:[#allocation6 + $0x17c] sm:$0xf]
        %v4365 = vld [vmem:[#allocation6 + $0x180] sm:$0xf]
        %v4366 = vld [vmem:[#allocation6 + $0x184] sm:$0xf]
        %v4367 = vld [vmem:[#allocation6 + $0x188] sm:$0xf]
        %v4368 = vld [vmem:[#allocation6 + $0x18c] sm:$0xf]
        %v4369 = vld [vmem:[#allocation6 + $0x190] sm:$0xf]
        %v4370 = vld [vmem:[#allocation6 + $0x194] sm:$0xf]
        %v4371 = vld [vmem:[#allocation6 + $0x198] sm:$0xf]
        %v4372 = vld [vmem:[#allocation6 + $0x19c] sm:$0xf]
        %v4373 = vld [vmem:[#allocation6 + $0x1a0] sm:$0xf]
        %v4374 = vld [vmem:[#allocation6 + $0x1a4] sm:$0xf]
        %v4375 = vld [vmem:[#allocation6 + $0x1a8] sm:$0xf]
        %v4376 = vld [vmem:[#allocation6 + $0x1ac] sm:$0xf]
        %v4377 = vld [vmem:[#allocation6 + $0x1b0] sm:$0xf]
        %v4378 = vld [vmem:[#allocation6 + $0x1b4] sm:$0xf]
        %v4379 = vld [vmem:[#allocation6 + $0x1b8] sm:$0xf]
        %v4380 = vld [vmem:[#allocation6 + $0x1bc] sm:$0xf]
        %v4381 = vld [vmem:[#allocation6 + $0x1c0] sm:$0xf]
        %v4382 = vld [vmem:[#allocation6 + $0x1c4] sm:$0xf]
        %v4383 = vld [vmem:[#allocation6 + $0x1c8] sm:$0xf]
        %v4384 = vld [vmem:[#allocation6 + $0x1cc] sm:$0xf]
        %v4385 = vld [vmem:[#allocation6 + $0x1d0] sm:$0xf]
        %v4386 = vld [vmem:[#allocation6 + $0x1d4] sm:$0xf]
        %v4387 = vld [vmem:[#allocation6 + $0x1d8] sm:$0xf]
        %v4388 = vld [vmem:[#allocation6 + $0x1dc] sm:$0xf]
        %v4389 = vld [vmem:[#allocation6 + $0x1e0] sm:$0xf]
        %v4390 = vld [vmem:[#allocation6 + $0x1e4] sm:$0xf]
        %v4391 = vld [vmem:[#allocation6 + $0x1e8] sm:$0xf]
        %v4392 = vld [vmem:[#allocation6 + $0x1ec] sm:$0xf]
        %v4393 = vld [vmem:[#allocation6 + $0x1f0] sm:$0xf]
        %v4394 = vld [vmem:[#allocation6 + $0x1f4] sm:$0xf]
        %v4395 = vld [vmem:[#allocation6 + $0x1f8] sm:$0xf]
        %v4396 = vld [vmem:[#allocation6 + $0x1fc] sm:$0xf]
        %v4397 = vld [vmem:[#allocation6 + $0x200] sm:$0xf]
        %v4398 = vld [vmem:[#allocation6 + $0x204] sm:$0xf]
        %v4399 = vld [vmem:[#allocation6 + $0x208] sm:$0xf]
        %v4400 = vld [vmem:[#allocation6 + $0x20c] sm:$0xf]
        %v4401 = vld [vmem:[#allocation6 + $0x210] sm:$0xf]
        %v4402 = vld [vmem:[#allocation6 + $0x214] sm:$0xf]
        %v4403 = vld [vmem:[#allocation6 + $0x218] sm:$0xf]
        %v4404 = vld [vmem:[#allocation6 + $0x21c] sm:$0xf]
        %v4405 = vld [vmem:[#allocation6 + $0x220] sm:$0xf]
        %v4406 = vld [vmem:[#allocation6 + $0x224] sm:$0xf]
        %v4407 = vld [vmem:[#allocation6 + $0x228] sm:$0xf]
        %v4408 = vld [vmem:[#allocation6 + $0x22c] sm:$0xf]
        %v4409 = vld [vmem:[#allocation6 + $0x230] sm:$0xf]
        %v4410 = vld [vmem:[#allocation6 + $0x234] sm:$0xf]
        %v4411 = vld [vmem:[#allocation6 + $0x238] sm:$0xf]
        %v4412 = vld [vmem:[#allocation6 + $0x23c] sm:$0xf]
        %v4413 = vld [vmem:[#allocation6 + $0x240] sm:$0xf]
        %v4414 = vld [vmem:[#allocation6 + $0x244] sm:$0xf]
        %v4415 = vld [vmem:[#allocation6 + $0x248] sm:$0xf]
        %v4416 = vld [vmem:[#allocation6 + $0x24c] sm:$0xf]
        %v4417 = vld [vmem:[#allocation6 + $0x250] sm:$0xf]
        %v4418 = vld [vmem:[#allocation6 + $0x254] sm:$0xf]
        %v4419 = vld [vmem:[#allocation6 + $0x258] sm:$0xf]
        %v4420 = vld [vmem:[#allocation6 + $0x25c] sm:$0xf]
        %v4421 = vld [vmem:[#allocation6 + $0x260] sm:$0xf]
        %v4422 = vld [vmem:[#allocation6 + $0x264] sm:$0xf]
        %v4423 = vld [vmem:[#allocation6 + $0x268] sm:$0xf]
        %v4424 = vld [vmem:[#allocation6 + $0x26c] sm:$0xf]
        %v4425 = vld [vmem:[#allocation6 + $0x270] sm:$0xf]
        %v4426 = vld [vmem:[#allocation6 + $0x274] sm:$0xf]
        %v4427 = vld [vmem:[#allocation6 + $0x278] sm:$0xf]
        %v4428 = vld [vmem:[#allocation6 + $0x27c] sm:$0xf]
        %v4429 = vld [vmem:[#allocation6 + $0x280] sm:$0xf]
        %v4430 = vld [vmem:[#allocation6 + $0x284] sm:$0xf]
        %v4431 = vld [vmem:[#allocation6 + $0x288] sm:$0xf]
        %v4432 = vld [vmem:[#allocation6 + $0x28c] sm:$0xf]
        %v4433 = vld [vmem:[#allocation6 + $0x290] sm:$0xf]
        %v4434 = vld [vmem:[#allocation6 + $0x294] sm:$0xf]
        %v4435 = vld [vmem:[#allocation6 + $0x298] sm:$0xf]
        %v4436 = vld [vmem:[#allocation6 + $0x29c] sm:$0xf]
        %v4437 = vld [vmem:[#allocation6 + $0x2a0] sm:$0xf]
        %v4438 = vld [vmem:[#allocation6 + $0x2a4] sm:$0xf]
        %v4439 = vld [vmem:[#allocation6 + $0x2a8] sm:$0xf]
        %v4440 = vld [vmem:[#allocation6 + $0x2ac] sm:$0xf]
        %v4441 = vld [vmem:[#allocation6 + $0x2b0] sm:$0xf]
        %v4442 = vld [vmem:[#allocation6 + $0x2b4] sm:$0xf]
        %v4443 = vld [vmem:[#allocation6 + $0x2b8] sm:$0xf]
        %v4444 = vld [vmem:[#allocation6 + $0x2bc] sm:$0xf]
        %v4445 = vld [vmem:[#allocation6 + $0x2c0] sm:$0xf]
        %v4446 = vld [vmem:[#allocation6 + $0x2c4] sm:$0xf]
        %v4447 = vld [vmem:[#allocation6 + $0x2c8] sm:$0xf]
        %v4448 = vld [vmem:[#allocation6 + $0x2cc] sm:$0xf]
        %v4449 = vld [vmem:[#allocation6 + $0x2d0] sm:$0xf]
        %v4450 = vld [vmem:[#allocation6 + $0x2d4] sm:$0xf]
        %v4451 = vld [vmem:[#allocation6 + $0x2d8] sm:$0xf]
        %v4452 = vld [vmem:[#allocation6 + $0x2dc] sm:$0xf]
        %v4453 = vld [vmem:[#allocation6 + $0x2e0] sm:$0xf]
        %v4454 = vld [vmem:[#allocation6 + $0x2e4] sm:$0xf]
        %v4455 = vld [vmem:[#allocation6 + $0x2e8] sm:$0xf]
        %v4456 = vld [vmem:[#allocation6 + $0x2ec] sm:$0xf]
        %v4457 = vld [vmem:[#allocation6 + $0x2f0] sm:$0xf]
        %v4458 = vld [vmem:[#allocation6 + $0x2f4] sm:$0xf]
        %v4459 = vld [vmem:[#allocation6 + $0x2f8] sm:$0xf]
        %v4460 = vld [vmem:[#allocation6 + $0x2fc] sm:$0xf]
        %v4461 = vld [vmem:[#allocation6 + $0x300] sm:$0xf]
        %v4462 = vld [vmem:[#allocation6 + $0x304] sm:$0xf]
        %v4463 = vld [vmem:[#allocation6 + $0x308] sm:$0xf]
        %v4464 = vld [vmem:[#allocation6 + $0x30c] sm:$0xf]
        %v4465 = vld [vmem:[#allocation6 + $0x310] sm:$0xf]
        %v4466 = vld [vmem:[#allocation6 + $0x314] sm:$0xf]
        %v4467 = vld [vmem:[#allocation6 + $0x318] sm:$0xf]
        %v4468 = vld [vmem:[#allocation6 + $0x31c] sm:$0xf]
        %v4469 = vld [vmem:[#allocation6 + $0x320] sm:$0xf]
        %v4470 = vld [vmem:[#allocation6 + $0x324] sm:$0xf]
        %v4471 = vld [vmem:[#allocation6 + $0x328] sm:$0xf]
        %v4472 = vld [vmem:[#allocation6 + $0x32c] sm:$0xf]
        %v4473 = vld [vmem:[#allocation6 + $0x330] sm:$0xf]
        %v4474 = vld [vmem:[#allocation6 + $0x334] sm:$0xf]
        %v4475 = vld [vmem:[#allocation6 + $0x338] sm:$0xf]
        %v4476 = vld [vmem:[#allocation6 + $0x33c] sm:$0xf]
        %v4477 = vld [vmem:[#allocation6 + $0x340] sm:$0xf]
        %v4478 = vld [vmem:[#allocation6 + $0x344] sm:$0xf]
        %v4479 = vld [vmem:[#allocation6 + $0x348] sm:$0xf]
        %v4480 = vld [vmem:[#allocation6 + $0x34c] sm:$0xf]
        %v4481 = vld [vmem:[#allocation6 + $0x350] sm:$0xf]
        %v4482 = vld [vmem:[#allocation6 + $0x354] sm:$0xf]
        %v4483 = vld [vmem:[#allocation6 + $0x358] sm:$0xf]
        %v4484 = vld [vmem:[#allocation6 + $0x35c] sm:$0xf]
        %v4485 = vld [vmem:[#allocation6 + $0x360] sm:$0xf]
        %v4486 = vld [vmem:[#allocation6 + $0x364] sm:$0xf]
        %v4487 = vld [vmem:[#allocation6 + $0x368] sm:$0xf]
        %v4488 = vld [vmem:[#allocation6 + $0x36c] sm:$0xf]
        %v4489 = vld [vmem:[#allocation6 + $0x370] sm:$0xf]
        %v4490 = vld [vmem:[#allocation6 + $0x374] sm:$0xf]
        %v4491 = vld [vmem:[#allocation6 + $0x378] sm:$0xf]
        %v4492 = vld [vmem:[#allocation6 + $0x37c] sm:$0xf]
        %v4493 = vld [vmem:[#allocation6 + $0x380] sm:$0xf]
        %v4494 = vld [vmem:[#allocation6 + $0x384] sm:$0xf]
        %v4495 = vld [vmem:[#allocation6 + $0x388] sm:$0xf]
        %v4496 = vld [vmem:[#allocation6 + $0x38c] sm:$0xf]
        %v4497 = vld [vmem:[#allocation6 + $0x390] sm:$0xf]
        %v4498 = vld [vmem:[#allocation6 + $0x394] sm:$0xf]
        %v4499 = vld [vmem:[#allocation6 + $0x398] sm:$0xf]
        %v4500 = vld [vmem:[#allocation6 + $0x39c] sm:$0xf]
        %v4501 = vld [vmem:[#allocation6 + $0x3a0] sm:$0xf]
        %v4502 = vld [vmem:[#allocation6 + $0x3a4] sm:$0xf]
        %v4503 = vld [vmem:[#allocation6 + $0x3a8] sm:$0xf]
        %v4504 = vld [vmem:[#allocation6 + $0x3ac] sm:$0xf]
        %v4505 = vld [vmem:[#allocation6 + $0x3b0] sm:$0xf]
        %v4506 = vld [vmem:[#allocation6 + $0x3b4] sm:$0xf]
        %v4507 = vld [vmem:[#allocation6 + $0x3b8] sm:$0xf]
        %v4508 = vld [vmem:[#allocation6 + $0x3bc] sm:$0xf]
        %v4509 = vld [vmem:[#allocation6 + $0x3c0] sm:$0xf]
        %v4510 = vld [vmem:[#allocation6 + $0x3c4] sm:$0xf]
        %v4511 = vld [vmem:[#allocation6 + $0x3c8] sm:$0xf]
        %v4512 = vld [vmem:[#allocation6 + $0x3cc] sm:$0xf]
        %v4513 = vld [vmem:[#allocation6 + $0x3d0] sm:$0xf]
        %v4514 = vld [vmem:[#allocation6 + $0x3d4] sm:$0xf]
        %v4515 = vld [vmem:[#allocation6 + $0x3d8] sm:$0xf]
        %v4516 = vld [vmem:[#allocation6 + $0x3dc] sm:$0xf]
        %v4517 = vld [vmem:[#allocation6 + $0x3e0] sm:$0xf]
        %v4518 = vld [vmem:[#allocation6 + $0x3e4] sm:$0xf]
        %v4519 = vld [vmem:[#allocation6 + $0x3e8] sm:$0xf]
        %v4520 = vld [vmem:[#allocation6 + $0x3ec] sm:$0xf]
        %v4521 = vld [vmem:[#allocation6 + $0x3f0] sm:$0xf]
        %v4522 = vld [vmem:[#allocation6 + $0x3f4] sm:$0xf]
        %v4523 = vld [vmem:[#allocation6 + $0x3f8] sm:$0xf]
        %v4524 = vld [vmem:[#allocation6 + $0x3fc] sm:$0xf]
        %v4525 = vld [vmem:[#allocation6 + $0x400] sm:$0xf]
        %v4526 = vld [vmem:[#allocation6 + $0x404] sm:$0xf]
        %v4527 = vld [vmem:[#allocation6 + $0x408] sm:$0xf]
        %v4528 = vld [vmem:[#allocation6 + $0x40c] sm:$0xf]
        %v4529 = vld [vmem:[#allocation6 + $0x410] sm:$0xf]
        %v4530 = vld [vmem:[#allocation6 + $0x414] sm:$0xf]
        %v4531 = vld [vmem:[#allocation6 + $0x418] sm:$0xf]
        %v4532 = vld [vmem:[#allocation6 + $0x41c] sm:$0xf]
        %v4533 = vld [vmem:[#allocation6 + $0x420] sm:$0xf]
        %v4534 = vld [vmem:[#allocation6 + $0x424] sm:$0xf]
        %v4535 = vld [vmem:[#allocation6 + $0x428] sm:$0xf]
        %v4536 = vld [vmem:[#allocation6 + $0x42c] sm:$0xf]
        %v4537 = vld [vmem:[#allocation6 + $0x430] sm:$0xf]
        %v4538 = vld [vmem:[#allocation6 + $0x434] sm:$0xf]
        %v4539 = vld [vmem:[#allocation6 + $0x438] sm:$0xf]
        %v4540 = vld [vmem:[#allocation6 + $0x43c] sm:$0xf]
        %v4541 = vld [vmem:[#allocation6 + $0x440] sm:$0xf]
        %v4542 = vld [vmem:[#allocation6 + $0x444] sm:$0xf]
        %v4543 = vld [vmem:[#allocation6 + $0x448] sm:$0xf]
        %v4544 = vld [vmem:[#allocation6 + $0x44c] sm:$0xf]
        %v4545 = vld [vmem:[#allocation6 + $0x450] sm:$0xf]
        %v4546 = vld [vmem:[#allocation6 + $0x454] sm:$0xf]
        %v4547 = vld [vmem:[#allocation6 + $0x458] sm:$0xf]
        %v4548 = vld [vmem:[#allocation6 + $0x45c] sm:$0xf]
        %v4549 = vld [vmem:[#allocation6 + $0x460] sm:$0xf]
        %v4550 = vld [vmem:[#allocation6 + $0x464] sm:$0xf]
        %v4551 = vld [vmem:[#allocation6 + $0x468] sm:$0xf]
        %v4552 = vld [vmem:[#allocation6 + $0x46c] sm:$0xf]
        %v4553 = vld [vmem:[#allocation6 + $0x470] sm:$0xf]
        %v4554 = vld [vmem:[#allocation6 + $0x474] sm:$0xf]
        %v4555 = vld [vmem:[#allocation6 + $0x478] sm:$0xf]
        %v4556 = vld [vmem:[#allocation6 + $0x47c] sm:$0xf]
        %v4557 = vld [vmem:[#allocation6 + $0x480] sm:$0xf]
        %v4558 = vld [vmem:[#allocation6 + $0x484] sm:$0xf]
        %v4559 = vld [vmem:[#allocation6 + $0x488] sm:$0xf]
        %v4560 = vld [vmem:[#allocation6 + $0x48c] sm:$0xf]
        %v4561 = vld [vmem:[#allocation6 + $0x490] sm:$0xf]
        %v4562 = vld [vmem:[#allocation6 + $0x494] sm:$0xf]
        %v4563 = vld [vmem:[#allocation6 + $0x498] sm:$0xf]
        %v4564 = vld [vmem:[#allocation6 + $0x49c] sm:$0xf]
        %v4565 = vld [vmem:[#allocation6 + $0x4a0] sm:$0xf]
        %v4566 = vld [vmem:[#allocation6 + $0x4a4] sm:$0xf]
        %v4567 = vld [vmem:[#allocation6 + $0x4a8] sm:$0xf]
        %v4568 = vld [vmem:[#allocation6 + $0x4ac] sm:$0xf]
        %v4569 = vld [vmem:[#allocation6 + $0x4b0] sm:$0xf]
        %v4570 = vld [vmem:[#allocation6 + $0x4b4] sm:$0xf]
        %v4571 = vld [vmem:[#allocation6 + $0x4b8] sm:$0xf]
        %v4572 = vld [vmem:[#allocation6 + $0x4bc] sm:$0xf]
        %v4573 = vld [vmem:[#allocation6 + $0x4c0] sm:$0xf]
        %v4574 = vld [vmem:[#allocation6 + $0x4c4] sm:$0xf]
        %v4575 = vld [vmem:[#allocation6 + $0x4c8] sm:$0xf]
        %v4576 = vld [vmem:[#allocation6 + $0x4cc] sm:$0xf]
        %v4577 = vld [vmem:[#allocation6 + $0x4d0] sm:$0xf]
        %v4578 = vld [vmem:[#allocation6 + $0x4d4] sm:$0xf]
        %v4579 = vld [vmem:[#allocation6 + $0x4d8] sm:$0xf]
        %v4580 = vld [vmem:[#allocation6 + $0x4dc] sm:$0xf]
        %v4581 = vld [vmem:[#allocation6 + $0x4e0] sm:$0xf]
        %v4582 = vld [vmem:[#allocation6 + $0x4e4] sm:$0xf]
        %v4583 = vld [vmem:[#allocation6 + $0x4e8] sm:$0xf]
        %v4584 = vld [vmem:[#allocation6 + $0x4ec] sm:$0xf]
        %v4585 = vld [vmem:[#allocation6 + $0x4f0] sm:$0xf]
        %v4586 = vld [vmem:[#allocation6 + $0x4f4] sm:$0xf]
        %v4587 = vld [vmem:[#allocation6 + $0x4f8] sm:$0xf]
        %v4588 = vld [vmem:[#allocation6 + $0x4fc] sm:$0xf]
        %v4589 = vld [vmem:[#allocation6 + $0x500] sm:$0xf]
        %v4590 = vld [vmem:[#allocation6 + $0x504] sm:$0xf]
        %v4591 = vld [vmem:[#allocation6 + $0x508] sm:$0xf]
        %v4592 = vld [vmem:[#allocation6 + $0x50c] sm:$0xf]
        %v4593 = vld [vmem:[#allocation6 + $0x510] sm:$0xf]
        %v4594 = vld [vmem:[#allocation6 + $0x514] sm:$0xf]
        %v4595 = vld [vmem:[#allocation6 + $0x518] sm:$0xf]
        %v4596 = vld [vmem:[#allocation6 + $0x51c] sm:$0xf]
        %v4597 = vld [vmem:[#allocation6 + $0x520] sm:$0xf]
        %v4598 = vld [vmem:[#allocation6 + $0x524] sm:$0xf]
        %v4599 = vld [vmem:[#allocation6 + $0x528] sm:$0xf]
        %v4600 = vld [vmem:[#allocation6 + $0x52c] sm:$0xf]
        %v4601 = vld [vmem:[#allocation6 + $0x530] sm:$0xf]
        %v4602 = vld [vmem:[#allocation6 + $0x534] sm:$0xf]
        %v4603 = vld [vmem:[#allocation6 + $0x538] sm:$0xf]
        %v4604 = vld [vmem:[#allocation6 + $0x53c] sm:$0xf]
        %v4605 = vld [vmem:[#allocation6 + $0x540] sm:$0xf]
        %v4606 = vld [vmem:[#allocation6 + $0x544] sm:$0xf]
        %v4607 = vld [vmem:[#allocation6 + $0x548] sm:$0xf]
        %v4608 = vld [vmem:[#allocation6 + $0x54c] sm:$0xf]
        %v4609 = vld [vmem:[#allocation6 + $0x550] sm:$0xf]
        %v4610 = vld [vmem:[#allocation6 + $0x554] sm:$0xf]
        %v4611 = vld [vmem:[#allocation6 + $0x558] sm:$0xf]
        %v4612 = vld [vmem:[#allocation6 + $0x55c] sm:$0xf]
        %v4613 = vld [vmem:[#allocation6 + $0x560] sm:$0xf]
        %v4614 = vld [vmem:[#allocation6 + $0x564] sm:$0xf]
        %v4615 = vld [vmem:[#allocation6 + $0x568] sm:$0xf]
        %v4616 = vld [vmem:[#allocation6 + $0x56c] sm:$0xf]
        %v4617 = vld [vmem:[#allocation6 + $0x570] sm:$0xf]
        %v4618 = vld [vmem:[#allocation6 + $0x574] sm:$0xf]
        %v4619 = vld [vmem:[#allocation6 + $0x578] sm:$0xf]
        %v4620 = vld [vmem:[#allocation6 + $0x57c] sm:$0xf]
        %v4621 = vld [vmem:[#allocation6 + $0x580] sm:$0xf]
        %v4622 = vld [vmem:[#allocation6 + $0x584] sm:$0xf]
        %v4623 = vld [vmem:[#allocation6 + $0x588] sm:$0xf]
        %v4624 = vld [vmem:[#allocation6 + $0x58c] sm:$0xf]
        %v4625 = vld [vmem:[#allocation6 + $0x590] sm:$0xf]
        %v4626 = vld [vmem:[#allocation6 + $0x594] sm:$0xf]
        %v4627 = vld [vmem:[#allocation6 + $0x598] sm:$0xf]
        %v4628 = vld [vmem:[#allocation6 + $0x59c] sm:$0xf]
        %v4629 = vld [vmem:[#allocation6 + $0x5a0] sm:$0xf]
        %v4630 = vld [vmem:[#allocation6 + $0x5a4] sm:$0xf]
        %v4631 = vld [vmem:[#allocation6 + $0x5a8] sm:$0xf]
        %v4632 = vld [vmem:[#allocation6 + $0x5ac] sm:$0xf]
        %v4633 = vld [vmem:[#allocation6 + $0x5b0] sm:$0xf]
        %v4634 = vld [vmem:[#allocation6 + $0x5b4] sm:$0xf]
        %v4635 = vld [vmem:[#allocation6 + $0x5b8] sm:$0xf]
        %v4636 = vld [vmem:[#allocation6 + $0x5bc] sm:$0xf]
        %v4637 = vld [vmem:[#allocation6 + $0x5c0] sm:$0xf]
        %v4638 = vld [vmem:[#allocation6 + $0x5c4] sm:$0xf]
        %v4639 = vld [vmem:[#allocation6 + $0x5c8] sm:$0xf]
        %v4640 = vld [vmem:[#allocation6 + $0x5cc] sm:$0xf]
        %v4641 = vld [vmem:[#allocation6 + $0x5d0] sm:$0xf]
        %v4642 = vld [vmem:[#allocation6 + $0x5d4] sm:$0xf]
        %v4643 = vld [vmem:[#allocation6 + $0x5d8] sm:$0xf]
        %v4644 = vld [vmem:[#allocation6 + $0x5dc] sm:$0xf]
        %v4645 = vld [vmem:[#allocation6 + $0x5e0] sm:$0xf]
        %v4646 = vld [vmem:[#allocation6 + $0x5e4] sm:$0xf]
        %v4647 = vld [vmem:[#allocation6 + $0x5e8] sm:$0xf]
        %v4648 = vld [vmem:[#allocation6 + $0x5ec] sm:$0xf]
        %v4649 = vld [vmem:[#allocation6 + $0x5f0] sm:$0xf]
        %v4650 = vld [vmem:[#allocation6 + $0x5f4] sm:$0xf]
        %v4651 = vld [vmem:[#allocation6 + $0x5f8] sm:$0xf]
        %v4652 = vld [vmem:[#allocation6 + $0x5fc] sm:$0xf]
        %v4653 = vld [vmem:[#allocation6 + $0x600] sm:$0xf]
        %v4654 = vld [vmem:[#allocation6 + $0x604] sm:$0xf]
        %v4655 = vld [vmem:[#allocation6 + $0x608] sm:$0xf]
        %v4656 = vld [vmem:[#allocation6 + $0x60c] sm:$0xf]
        %v4657 = vld [vmem:[#allocation6 + $0x610] sm:$0xf]
        %v4658 = vld [vmem:[#allocation6 + $0x614] sm:$0xf]
        %v4659 = vld [vmem:[#allocation6 + $0x618] sm:$0xf]
        %v4660 = vld [vmem:[#allocation6 + $0x61c] sm:$0xf]
        %v4661 = vld [vmem:[%s6] sm:$0x1]
        %v5054 = vunpack.c.l.b16 %v4269
        %v5055 = vunpack.c.l.b16 %v4270
        %v5056 = vunpack.c.l.b16 %v4271
        %v5057 = vunpack.c.l.b16 %v4272
        %v5058 = vunpack.c.l.b16 %v4273
        %v5059 = vunpack.c.l.b16 %v4274
        %v5060 = vunpack.c.l.b16 %v4275
        %v5061 = vunpack.c.l.b16 %v4276
        %v5062 = vunpack.c.l.b16 %v4277
        %v5063 = vunpack.c.l.b16 %v4278
        %v5064 = vunpack.c.l.b16 %v4279
        %v5065 = vunpack.c.l.b16 %v4280
        %v5066 = vunpack.c.l.b16 %v4281
        %v5067 = vunpack.c.l.b16 %v4282
        %v5068 = vunpack.c.l.b16 %v4283
        %v5069 = vunpack.c.l.b16 %v4284
        %v5070 = vunpack.c.l.b16 %v4285
        %v5071 = vunpack.c.l.b16 %v4286
        %v5072 = vunpack.c.l.b16 %v4287
        %v5073 = vunpack.c.l.b16 %v4288
        %v5074 = vunpack.c.l.b16 %v4289
        %v5075 = vunpack.c.l.b16 %v4290
        %v5076 = vunpack.c.l.b16 %v4291
        %v5077 = vunpack.c.l.b16 %v4292
        %v5078 = vunpack.c.l.b16 %v4293
        %v5079 = vunpack.c.l.b16 %v4294
        %v5080 = vunpack.c.l.b16 %v4295
        %v5081 = vunpack.c.l.b16 %v4296
        %v5082 = vunpack.c.l.b16 %v4297
        %v5083 = vunpack.c.l.b16 %v4298
        %v5084 = vunpack.c.l.b16 %v4299
        %v5085 = vunpack.c.l.b16 %v4300
        %v5086 = vunpack.c.l.b16 %v4301
        %v5087 = vunpack.c.l.b16 %v4302
        %v5088 = vunpack.c.l.b16 %v4303
        %v5089 = vunpack.c.l.b16 %v4304
        %v5090 = vunpack.c.l.b16 %v4305
        %v5091 = vunpack.c.l.b16 %v4306
        %v5092 = vunpack.c.l.b16 %v4307
        %v5093 = vunpack.c.l.b16 %v4308
        %v5094 = vunpack.c.l.b16 %v4309
        %v5095 = vunpack.c.l.b16 %v4310
        %v5096 = vunpack.c.l.b16 %v4311
        %v5097 = vunpack.c.l.b16 %v4312
        %v5098 = vunpack.c.l.b16 %v4313
        %v5099 = vunpack.c.l.b16 %v4314
        %v5100 = vunpack.c.l.b16 %v4315
        %v5101 = vunpack.c.l.b16 %v4316
        %v5102 = vunpack.c.l.b16 %v4317
        %v5103 = vunpack.c.l.b16 %v4318
        %v5104 = vunpack.c.l.b16 %v4319
        %v5105 = vunpack.c.l.b16 %v4320
        %v5106 = vunpack.c.l.b16 %v4321
        %v5107 = vunpack.c.l.b16 %v4322
        %v5108 = vunpack.c.l.b16 %v4323
        %v5109 = vunpack.c.l.b16 %v4324
        %v5110 = vunpack.c.l.b16 %v4325
        %v5111 = vunpack.c.l.b16 %v4326
        %v5112 = vunpack.c.l.b16 %v4327
        %v5113 = vunpack.c.l.b16 %v4328
        %v5114 = vunpack.c.l.b16 %v4329
        %v5115 = vunpack.c.l.b16 %v4330
        %v5116 = vunpack.c.l.b16 %v4331
        %v5117 = vunpack.c.l.b16 %v4332
        %v5118 = vunpack.c.l.b16 %v4333
        %v5119 = vunpack.c.l.b16 %v4334
        %v5120 = vunpack.c.l.b16 %v4335
        %v5121 = vunpack.c.l.b16 %v4336
        %v5122 = vunpack.c.l.b16 %v4337
        %v5123 = vunpack.c.l.b16 %v4338
        %v5124 = vunpack.c.l.b16 %v4339
        %v5125 = vunpack.c.l.b16 %v4340
        %v5126 = vunpack.c.l.b16 %v4341
        %v5127 = vunpack.c.l.b16 %v4342
        %v5128 = vunpack.c.l.b16 %v4343
        %v5129 = vunpack.c.l.b16 %v4344
        %v5130 = vunpack.c.l.b16 %v4345
        %v5131 = vunpack.c.l.b16 %v4346
        %v5132 = vunpack.c.l.b16 %v4347
        %v5133 = vunpack.c.l.b16 %v4348
        %v5134 = vunpack.c.l.b16 %v4349
        %v5135 = vunpack.c.l.b16 %v4350
        %v5136 = vunpack.c.l.b16 %v4351
        %v5137 = vunpack.c.l.b16 %v4352
        %v5138 = vunpack.c.l.b16 %v4353
        %v5139 = vunpack.c.l.b16 %v4354
        %v5140 = vunpack.c.l.b16 %v4355
        %v5141 = vunpack.c.l.b16 %v4356
        %v5142 = vunpack.c.l.b16 %v4357
        %v5143 = vunpack.c.l.b16 %v4358
        %v5144 = vunpack.c.l.b16 %v4359
        %v5145 = vunpack.c.l.b16 %v4360
        %v5146 = vunpack.c.l.b16 %v4361
        %v5147 = vunpack.c.l.b16 %v4362
        %v5148 = vunpack.c.l.b16 %v4363
        %v5149 = vunpack.c.l.b16 %v4364
        %v5150 = vunpack.c.l.b16 %v4365
        %v5151 = vunpack.c.l.b16 %v4366
        %v5152 = vunpack.c.l.b16 %v4367
        %v5153 = vunpack.c.l.b16 %v4368
        %v5154 = vunpack.c.l.b16 %v4369
        %v5155 = vunpack.c.l.b16 %v4370
        %v5156 = vunpack.c.l.b16 %v4371
        %v5157 = vunpack.c.l.b16 %v4372
        %v5158 = vunpack.c.l.b16 %v4373
        %v5159 = vunpack.c.l.b16 %v4374
        %v5160 = vunpack.c.l.b16 %v4375
        %v5161 = vunpack.c.l.b16 %v4376
        %v5162 = vunpack.c.l.b16 %v4377
        %v5163 = vunpack.c.l.b16 %v4378
        %v5164 = vunpack.c.l.b16 %v4379
        %v5165 = vunpack.c.l.b16 %v4380
        %v5166 = vunpack.c.l.b16 %v4381
        %v5167 = vunpack.c.l.b16 %v4382
        %v5168 = vunpack.c.l.b16 %v4383
        %v5169 = vunpack.c.l.b16 %v4384
        %v5170 = vunpack.c.l.b16 %v4385
        %v5171 = vunpack.c.l.b16 %v4386
        %v5172 = vunpack.c.l.b16 %v4387
        %v5173 = vunpack.c.l.b16 %v4388
        %v5174 = vunpack.c.l.b16 %v4389
        %v5175 = vunpack.c.l.b16 %v4390
        %v5176 = vunpack.c.l.b16 %v4391
        %v5177 = vunpack.c.l.b16 %v4392
        %v5178 = vunpack.c.l.b16 %v4393
        %v5179 = vunpack.c.l.b16 %v4394
        %v5180 = vunpack.c.l.b16 %v4395
        %v5181 = vunpack.c.l.b16 %v4396
        %v5182 = vunpack.c.l.b16 %v4397
        %v5183 = vunpack.c.l.b16 %v4398
        %v5184 = vunpack.c.l.b16 %v4399
        %v5185 = vunpack.c.l.b16 %v4400
        %v5186 = vunpack.c.l.b16 %v4401
        %v5187 = vunpack.c.l.b16 %v4402
        %v5188 = vunpack.c.l.b16 %v4403
        %v5189 = vunpack.c.l.b16 %v4404
        %v5190 = vunpack.c.l.b16 %v4405
        %v5191 = vunpack.c.l.b16 %v4406
        %v5192 = vunpack.c.l.b16 %v4407
        %v5193 = vunpack.c.l.b16 %v4408
        %v5194 = vunpack.c.l.b16 %v4409
        %v5195 = vunpack.c.l.b16 %v4410
        %v5196 = vunpack.c.l.b16 %v4411
        %v5197 = vunpack.c.l.b16 %v4412
        %v5198 = vunpack.c.l.b16 %v4413
        %v5199 = vunpack.c.l.b16 %v4414
        %v5200 = vunpack.c.l.b16 %v4415
        %v5201 = vunpack.c.l.b16 %v4416
        %v5202 = vunpack.c.l.b16 %v4417
        %v5203 = vunpack.c.l.b16 %v4418
        %v5204 = vunpack.c.l.b16 %v4419
        %v5205 = vunpack.c.l.b16 %v4420
        %v5206 = vunpack.c.l.b16 %v4421
        %v5207 = vunpack.c.l.b16 %v4422
        %v5208 = vunpack.c.l.b16 %v4423
        %v5209 = vunpack.c.l.b16 %v4424
        %v5210 = vunpack.c.l.b16 %v4425
        %v5211 = vunpack.c.l.b16 %v4426
        %v5212 = vunpack.c.l.b16 %v4427
        %v5213 = vunpack.c.l.b16 %v4428
        %v5214 = vunpack.c.l.b16 %v4429
        %v5215 = vunpack.c.l.b16 %v4430
        %v5216 = vunpack.c.l.b16 %v4431
        %v5217 = vunpack.c.l.b16 %v4432
        %v5218 = vunpack.c.l.b16 %v4433
        %v5219 = vunpack.c.l.b16 %v4434
        %v5220 = vunpack.c.l.b16 %v4435
        %v5221 = vunpack.c.l.b16 %v4436
        %v5222 = vunpack.c.l.b16 %v4437
        %v5223 = vunpack.c.l.b16 %v4438
        %v5224 = vunpack.c.l.b16 %v4439
        %v5225 = vunpack.c.l.b16 %v4440
        %v5226 = vunpack.c.l.b16 %v4441
        %v5227 = vunpack.c.l.b16 %v4442
        %v5228 = vunpack.c.l.b16 %v4443
        %v5229 = vunpack.c.l.b16 %v4444
        %v5230 = vunpack.c.l.b16 %v4445
        %v5231 = vunpack.c.l.b16 %v4446
        %v5232 = vunpack.c.l.b16 %v4447
        %v5233 = vunpack.c.l.b16 %v4448
        %v5234 = vunpack.c.l.b16 %v4449
        %v5235 = vunpack.c.l.b16 %v4450
        %v5236 = vunpack.c.l.b16 %v4451
        %v5237 = vunpack.c.l.b16 %v4452
        %v5238 = vunpack.c.l.b16 %v4453
        %v5239 = vunpack.c.l.b16 %v4454
        %v5240 = vunpack.c.l.b16 %v4455
        %v5241 = vunpack.c.l.b16 %v4456
        %v5242 = vunpack.c.l.b16 %v4457
        %v5243 = vunpack.c.l.b16 %v4458
        %v5244 = vunpack.c.l.b16 %v4459
        %v5245 = vunpack.c.l.b16 %v4460
        %v5246 = vunpack.c.l.b16 %v4461
        %v5247 = vunpack.c.l.b16 %v4462
        %v5248 = vunpack.c.l.b16 %v4463
        %v5249 = vunpack.c.l.b16 %v4464
        %v5250 = vunpack.c.l.b16 %v4465
        %v5251 = vunpack.c.l.b16 %v4466
        %v5252 = vunpack.c.l.b16 %v4467
        %v5253 = vunpack.c.l.b16 %v4468
        %v5254 = vunpack.c.l.b16 %v4469
        %v5255 = vunpack.c.l.b16 %v4470
        %v5256 = vunpack.c.l.b16 %v4471
        %v5257 = vunpack.c.l.b16 %v4472
        %v5258 = vunpack.c.l.b16 %v4473
        %v5259 = vunpack.c.l.b16 %v4474
        %v5260 = vunpack.c.l.b16 %v4475
        %v5261 = vunpack.c.l.b16 %v4476
        %v5262 = vunpack.c.l.b16 %v4477
        %v5263 = vunpack.c.l.b16 %v4478
        %v5264 = vunpack.c.l.b16 %v4479
        %v5265 = vunpack.c.l.b16 %v4480
        %v5266 = vunpack.c.l.b16 %v4481
        %v5267 = vunpack.c.l.b16 %v4482
        %v5268 = vunpack.c.l.b16 %v4483
        %v5269 = vunpack.c.l.b16 %v4484
        %v5270 = vunpack.c.l.b16 %v4485
        %v5271 = vunpack.c.l.b16 %v4486
        %v5272 = vunpack.c.l.b16 %v4487
        %v5273 = vunpack.c.l.b16 %v4488
        %v5274 = vunpack.c.l.b16 %v4489
        %v5275 = vunpack.c.l.b16 %v4490
        %v5276 = vunpack.c.l.b16 %v4491
        %v5277 = vunpack.c.l.b16 %v4492
        %v5278 = vunpack.c.l.b16 %v4493
        %v5279 = vunpack.c.l.b16 %v4494
        %v5280 = vunpack.c.l.b16 %v4495
        %v5281 = vunpack.c.l.b16 %v4496
        %v5282 = vunpack.c.l.b16 %v4497
        %v5283 = vunpack.c.l.b16 %v4498
        %v5284 = vunpack.c.l.b16 %v4499
        %v5285 = vunpack.c.l.b16 %v4500
        %v5286 = vunpack.c.l.b16 %v4501
        %v5287 = vunpack.c.l.b16 %v4502
        %v5288 = vunpack.c.l.b16 %v4503
        %v5289 = vunpack.c.l.b16 %v4504
        %v5290 = vunpack.c.l.b16 %v4505
        %v5291 = vunpack.c.l.b16 %v4506
        %v5292 = vunpack.c.l.b16 %v4507
        %v5293 = vunpack.c.l.b16 %v4508
        %v5294 = vunpack.c.l.b16 %v4509
        %v5295 = vunpack.c.l.b16 %v4510
        %v5296 = vunpack.c.l.b16 %v4511
        %v5297 = vunpack.c.l.b16 %v4512
        %v5298 = vunpack.c.l.b16 %v4513
        %v5299 = vunpack.c.l.b16 %v4514
        %v5300 = vunpack.c.l.b16 %v4515
        %v5301 = vunpack.c.l.b16 %v4516
        %v5302 = vunpack.c.l.b16 %v4517
        %v5303 = vunpack.c.l.b16 %v4518
        %v5304 = vunpack.c.l.b16 %v4519
        %v5305 = vunpack.c.l.b16 %v4520
        %v5306 = vunpack.c.l.b16 %v4521
        %v5307 = vunpack.c.l.b16 %v4522
        %v5308 = vunpack.c.l.b16 %v4523
        %v5309 = vunpack.c.l.b16 %v4524
        %v5310 = vunpack.c.l.b16 %v4525
        %v5311 = vunpack.c.l.b16 %v4526
        %v5312 = vunpack.c.l.b16 %v4527
        %v5313 = vunpack.c.l.b16 %v4528
        %v5314 = vunpack.c.l.b16 %v4529
        %v5315 = vunpack.c.l.b16 %v4530
        %v5316 = vunpack.c.l.b16 %v4531
        %v5317 = vunpack.c.l.b16 %v4532
        %v5318 = vunpack.c.l.b16 %v4533
        %v5319 = vunpack.c.l.b16 %v4534
        %v5320 = vunpack.c.l.b16 %v4535
        %v5321 = vunpack.c.l.b16 %v4536
        %v5322 = vunpack.c.l.b16 %v4537
        %v5323 = vunpack.c.l.b16 %v4538
        %v5324 = vunpack.c.l.b16 %v4539
        %v5325 = vunpack.c.l.b16 %v4540
        %v5326 = vunpack.c.l.b16 %v4541
        %v5327 = vunpack.c.l.b16 %v4542
        %v5328 = vunpack.c.l.b16 %v4543
        %v5329 = vunpack.c.l.b16 %v4544
        %v5330 = vunpack.c.l.b16 %v4545
        %v5331 = vunpack.c.l.b16 %v4546
        %v5332 = vunpack.c.l.b16 %v4547
        %v5333 = vunpack.c.l.b16 %v4548
        %v5334 = vunpack.c.l.b16 %v4549
        %v5335 = vunpack.c.l.b16 %v4550
        %v5336 = vunpack.c.l.b16 %v4551
        %v5337 = vunpack.c.l.b16 %v4552
        %v5338 = vunpack.c.l.b16 %v4553
        %v5339 = vunpack.c.l.b16 %v4554
        %v5340 = vunpack.c.l.b16 %v4555
        %v5341 = vunpack.c.l.b16 %v4556
        %v5342 = vunpack.c.l.b16 %v4557
        %v5343 = vunpack.c.l.b16 %v4558
        %v5344 = vunpack.c.l.b16 %v4559
        %v5345 = vunpack.c.l.b16 %v4560
        %v5346 = vunpack.c.l.b16 %v4561
        %v5347 = vunpack.c.l.b16 %v4562
        %v5348 = vunpack.c.l.b16 %v4563
        %v5349 = vunpack.c.l.b16 %v4564
        %v5350 = vunpack.c.l.b16 %v4565
        %v5351 = vunpack.c.l.b16 %v4566
        %v5352 = vunpack.c.l.b16 %v4567
        %v5353 = vunpack.c.l.b16 %v4568
        %v5354 = vunpack.c.l.b16 %v4569
        %v5355 = vunpack.c.l.b16 %v4570
        %v5356 = vunpack.c.l.b16 %v4571
        %v5357 = vunpack.c.l.b16 %v4572
        %v5358 = vunpack.c.l.b16 %v4573
        %v5359 = vunpack.c.l.b16 %v4574
        %v5360 = vunpack.c.l.b16 %v4575
        %v5361 = vunpack.c.l.b16 %v4576
        %v5362 = vunpack.c.l.b16 %v4577
        %v5363 = vunpack.c.l.b16 %v4578
        %v5364 = vunpack.c.l.b16 %v4579
        %v5365 = vunpack.c.l.b16 %v4580
        %v5366 = vunpack.c.l.b16 %v4581
        %v5367 = vunpack.c.l.b16 %v4582
        %v5368 = vunpack.c.l.b16 %v4583
        %v5369 = vunpack.c.l.b16 %v4584
        %v5370 = vunpack.c.l.b16 %v4585
        %v5371 = vunpack.c.l.b16 %v4586
        %v5372 = vunpack.c.l.b16 %v4587
        %v5373 = vunpack.c.l.b16 %v4588
        %v5374 = vunpack.c.l.b16 %v4589
        %v5375 = vunpack.c.l.b16 %v4590
        %v5376 = vunpack.c.l.b16 %v4591
        %v5377 = vunpack.c.l.b16 %v4592
        %v5378 = vunpack.c.l.b16 %v4593
        %v5379 = vunpack.c.l.b16 %v4594
        %v5380 = vunpack.c.l.b16 %v4595
        %v5381 = vunpack.c.l.b16 %v4596
        %v5382 = vunpack.c.l.b16 %v4597
        %v5383 = vunpack.c.l.b16 %v4598
        %v5384 = vunpack.c.l.b16 %v4599
        %v5385 = vunpack.c.l.b16 %v4600
        %v5386 = vunpack.c.l.b16 %v4601
        %v5387 = vunpack.c.l.b16 %v4602
        %v5388 = vunpack.c.l.b16 %v4603
        %v5389 = vunpack.c.l.b16 %v4604
        %v5390 = vunpack.c.l.b16 %v4605
        %v5391 = vunpack.c.l.b16 %v4606
        %v5392 = vunpack.c.l.b16 %v4607
        %v5393 = vunpack.c.l.b16 %v4608
        %v5394 = vunpack.c.l.b16 %v4609
        %v5395 = vunpack.c.l.b16 %v4610
        %v5396 = vunpack.c.l.b16 %v4611
        %v5397 = vunpack.c.l.b16 %v4612
        %v5398 = vunpack.c.l.b16 %v4613
        %v5399 = vunpack.c.l.b16 %v4614
        %v5400 = vunpack.c.l.b16 %v4615
        %v5401 = vunpack.c.l.b16 %v4616
        %v5402 = vunpack.c.l.b16 %v4617
        %v5403 = vunpack.c.l.b16 %v4618
        %v5404 = vunpack.c.l.b16 %v4619
        %v5405 = vunpack.c.l.b16 %v4620
        %v5406 = vunpack.c.l.b16 %v4621
        %v5407 = vunpack.c.l.b16 %v4622
        %v5408 = vunpack.c.l.b16 %v4623
        %v5409 = vunpack.c.l.b16 %v4624
        %v5410 = vunpack.c.l.b16 %v4625
        %v5411 = vunpack.c.l.b16 %v4626
        %v5412 = vunpack.c.l.b16 %v4627
        %v5413 = vunpack.c.l.b16 %v4628
        %v5414 = vunpack.c.l.b16 %v4629
        %v5415 = vunpack.c.l.b16 %v4630
        %v5416 = vunpack.c.l.b16 %v4631
        %v5417 = vunpack.c.l.b16 %v4632
        %v5418 = vunpack.c.l.b16 %v4633
        %v5419 = vunpack.c.l.b16 %v4634
        %v5420 = vunpack.c.l.b16 %v4635
        %v5421 = vunpack.c.l.b16 %v4636
        %v5422 = vunpack.c.l.b16 %v4637
        %v5423 = vunpack.c.l.b16 %v4638
        %v5424 = vunpack.c.l.b16 %v4639
        %v5425 = vunpack.c.l.b16 %v4640
        %v5426 = vunpack.c.l.b16 %v4641
        %v5427 = vunpack.c.l.b16 %v4642
        %v5428 = vunpack.c.l.b16 %v4643
        %v5429 = vunpack.c.l.b16 %v4644
        %v5430 = vunpack.c.l.b16 %v4645
        %v5431 = vunpack.c.l.b16 %v4646
        %v5432 = vunpack.c.l.b16 %v4647
        %v5433 = vunpack.c.l.b16 %v4648
        %v5434 = vunpack.c.l.b16 %v4649
        %v5435 = vunpack.c.l.b16 %v4650
        %v5436 = vunpack.c.l.b16 %v4651
        %v5437 = vunpack.c.l.b16 %v4652
        %v5438 = vunpack.c.l.b16 %v4653
        %v5439 = vunpack.c.l.b16 %v4654
        %v5440 = vunpack.c.l.b16 %v4655
        %v5441 = vunpack.c.l.b16 %v4656
        %v5442 = vunpack.c.l.b16 %v4657
        %v5443 = vunpack.c.l.b16 %v4658
        %v5444 = vunpack.c.l.b16 %v4659
        %v5445 = vunpack.c.l.b16 %v4660
        %v5446 = vpack.c.b16 %v5055, %v5054
        %v5447 = vpack.c.b16 %v5057, %v5056
        %v5448 = vpack.c.b16 %v5059, %v5058
        %v5449 = vpack.c.b16 %v5061, %v5060
        %v5450 = vpack.c.b16 %v5063, %v5062
        %v5451 = vpack.c.b16 %v5065, %v5064
        %v5452 = vpack.c.b16 %v5067, %v5066
        %v5453 = vpack.c.b16 %v5069, %v5068
        %v5454 = vpack.c.b16 %v5071, %v5070
        %v5455 = vpack.c.b16 %v5073, %v5072
        %v5456 = vpack.c.b16 %v5075, %v5074
        %v5457 = vpack.c.b16 %v5077, %v5076
        %v5458 = vpack.c.b16 %v5079, %v5078
        %v5459 = vpack.c.b16 %v5081, %v5080
        %v5460 = vpack.c.b16 %v5083, %v5082
        %v5461 = vpack.c.b16 %v5085, %v5084
        %v5462 = vpack.c.b16 %v5087, %v5086
        %v5463 = vpack.c.b16 %v5089, %v5088
        %v5464 = vpack.c.b16 %v5091, %v5090
        %v5465 = vpack.c.b16 %v5093, %v5092
        %v5466 = vpack.c.b16 %v5095, %v5094
        %v5467 = vpack.c.b16 %v5097, %v5096
        %v5468 = vpack.c.b16 %v5099, %v5098
        %v5469 = vpack.c.b16 %v5101, %v5100
        %v5470 = vpack.c.b16 %v5103, %v5102
        %v5471 = vpack.c.b16 %v5105, %v5104
        %v5472 = vpack.c.b16 %v5107, %v5106
        %v5473 = vpack.c.b16 %v5109, %v5108
        %v5474 = vpack.c.b16 %v5111, %v5110
        %v5475 = vpack.c.b16 %v5113, %v5112
        %v5476 = vpack.c.b16 %v5115, %v5114
        %v5477 = vpack.c.b16 %v5117, %v5116
        %v5478 = vpack.c.b16 %v5119, %v5118
        %v5479 = vpack.c.b16 %v5121, %v5120
        %v5480 = vpack.c.b16 %v5123, %v5122
        %v5481 = vpack.c.b16 %v5125, %v5124
        %v5482 = vpack.c.b16 %v5127, %v5126
        %v5483 = vpack.c.b16 %v5129, %v5128
        %v5484 = vpack.c.b16 %v5131, %v5130
        %v5485 = vpack.c.b16 %v5133, %v5132
        %v5486 = vpack.c.b16 %v5135, %v5134
        %v5487 = vpack.c.b16 %v5137, %v5136
        %v5488 = vpack.c.b16 %v5139, %v5138
        %v5489 = vpack.c.b16 %v5141, %v5140
        %v5490 = vpack.c.b16 %v5143, %v5142
        %v5491 = vpack.c.b16 %v5145, %v5144
        %v5492 = vpack.c.b16 %v5147, %v5146
        %v5493 = vpack.c.b16 %v5149, %v5148
        %v5494 = vpack.c.b16 %v5151, %v5150
        %v5495 = vpack.c.b16 %v5153, %v5152
        %v5496 = vpack.c.b16 %v5155, %v5154
        %v5497 = vpack.c.b16 %v5157, %v5156
        %v5498 = vpack.c.b16 %v5159, %v5158
        %v5499 = vpack.c.b16 %v5161, %v5160
        %v5500 = vpack.c.b16 %v5163, %v5162
        %v5501 = vpack.c.b16 %v5165, %v5164
        %v5502 = vpack.c.b16 %v5167, %v5166
        %v5503 = vpack.c.b16 %v5169, %v5168
        %v5504 = vpack.c.b16 %v5171, %v5170
        %v5505 = vpack.c.b16 %v5173, %v5172
        %v5506 = vpack.c.b16 %v5175, %v5174
        %v5507 = vpack.c.b16 %v5177, %v5176
        %v5508 = vpack.c.b16 %v5179, %v5178
        %v5509 = vpack.c.b16 %v5181, %v5180
        %v5510 = vpack.c.b16 %v5183, %v5182
        %v5511 = vpack.c.b16 %v5185, %v5184
        %v5512 = vpack.c.b16 %v5187, %v5186
        %v5513 = vpack.c.b16 %v5189, %v5188
        %v5514 = vpack.c.b16 %v5191, %v5190
        %v5515 = vpack.c.b16 %v5193, %v5192
        %v5516 = vpack.c.b16 %v5195, %v5194
        %v5517 = vpack.c.b16 %v5197, %v5196
        %v5518 = vpack.c.b16 %v5199, %v5198
        %v5519 = vpack.c.b16 %v5201, %v5200
        %v5520 = vpack.c.b16 %v5203, %v5202
        %v5521 = vpack.c.b16 %v5205, %v5204
        %v5522 = vpack.c.b16 %v5207, %v5206
        %v5523 = vpack.c.b16 %v5209, %v5208
        %v5524 = vpack.c.b16 %v5211, %v5210
        %v5525 = vpack.c.b16 %v5213, %v5212
        %v5526 = vpack.c.b16 %v5215, %v5214
        %v5527 = vpack.c.b16 %v5217, %v5216
        %v5528 = vpack.c.b16 %v5219, %v5218
        %v5529 = vpack.c.b16 %v5221, %v5220
        %v5530 = vpack.c.b16 %v5223, %v5222
        %v5531 = vpack.c.b16 %v5225, %v5224
        %v5532 = vpack.c.b16 %v5227, %v5226
        %v5533 = vpack.c.b16 %v5229, %v5228
        %v5534 = vpack.c.b16 %v5231, %v5230
        %v5535 = vpack.c.b16 %v5233, %v5232
        %v5536 = vpack.c.b16 %v5235, %v5234
        %v5537 = vpack.c.b16 %v5237, %v5236
        %v5538 = vpack.c.b16 %v5239, %v5238
        %v5539 = vpack.c.b16 %v5241, %v5240
        %v5540 = vpack.c.b16 %v5243, %v5242
        %v5541 = vpack.c.b16 %v5245, %v5244
        %v5542 = vpack.c.b16 %v5247, %v5246
        %v5543 = vpack.c.b16 %v5249, %v5248
        %v5544 = vpack.c.b16 %v5251, %v5250
        %v5545 = vpack.c.b16 %v5253, %v5252
        %v5546 = vpack.c.b16 %v5255, %v5254
        %v5547 = vpack.c.b16 %v5257, %v5256
        %v5548 = vpack.c.b16 %v5259, %v5258
        %v5549 = vpack.c.b16 %v5261, %v5260
        %v5550 = vpack.c.b16 %v5263, %v5262
        %v5551 = vpack.c.b16 %v5265, %v5264
        %v5552 = vpack.c.b16 %v5267, %v5266
        %v5553 = vpack.c.b16 %v5269, %v5268
        %v5554 = vpack.c.b16 %v5271, %v5270
        %v5555 = vpack.c.b16 %v5273, %v5272
        %v5556 = vpack.c.b16 %v5275, %v5274
        %v5557 = vpack.c.b16 %v5277, %v5276
        %v5558 = vpack.c.b16 %v5279, %v5278
        %v5559 = vpack.c.b16 %v5281, %v5280
        %v5560 = vpack.c.b16 %v5283, %v5282
        %v5561 = vpack.c.b16 %v5285, %v5284
        %v5562 = vpack.c.b16 %v5287, %v5286
        %v5563 = vpack.c.b16 %v5289, %v5288
        %v5564 = vpack.c.b16 %v5291, %v5290
        %v5565 = vpack.c.b16 %v5293, %v5292
        %v5566 = vpack.c.b16 %v5295, %v5294
        %v5567 = vpack.c.b16 %v5297, %v5296
        %v5568 = vpack.c.b16 %v5299, %v5298
        %v5569 = vpack.c.b16 %v5301, %v5300
        %v5570 = vpack.c.b16 %v5303, %v5302
        %v5571 = vpack.c.b16 %v5305, %v5304
        %v5572 = vpack.c.b16 %v5307, %v5306
        %v5573 = vpack.c.b16 %v5309, %v5308
        %v5574 = vpack.c.b16 %v5311, %v5310
        %v5575 = vpack.c.b16 %v5313, %v5312
        %v5576 = vpack.c.b16 %v5315, %v5314
        %v5577 = vpack.c.b16 %v5317, %v5316
        %v5578 = vpack.c.b16 %v5319, %v5318
        %v5579 = vpack.c.b16 %v5321, %v5320
        %v5580 = vpack.c.b16 %v5323, %v5322
        %v5581 = vpack.c.b16 %v5325, %v5324
        %v5582 = vpack.c.b16 %v5327, %v5326
        %v5583 = vpack.c.b16 %v5329, %v5328
        %v5584 = vpack.c.b16 %v5331, %v5330
        %v5585 = vpack.c.b16 %v5333, %v5332
        %v5586 = vpack.c.b16 %v5335, %v5334
        %v5587 = vpack.c.b16 %v5337, %v5336
        %v5588 = vpack.c.b16 %v5339, %v5338
        %v5589 = vpack.c.b16 %v5341, %v5340
        %v5590 = vpack.c.b16 %v5343, %v5342
        %v5591 = vpack.c.b16 %v5345, %v5344
        %v5592 = vpack.c.b16 %v5347, %v5346
        %v5593 = vpack.c.b16 %v5349, %v5348
        %v5594 = vpack.c.b16 %v5351, %v5350
        %v5595 = vpack.c.b16 %v5353, %v5352
        %v5596 = vpack.c.b16 %v5355, %v5354
        %v5597 = vpack.c.b16 %v5357, %v5356
        %v5598 = vpack.c.b16 %v5359, %v5358
        %v5599 = vpack.c.b16 %v5361, %v5360
        %v5600 = vpack.c.b16 %v5363, %v5362
        %v5601 = vpack.c.b16 %v5365, %v5364
        %v5602 = vpack.c.b16 %v5367, %v5366
        %v5603 = vpack.c.b16 %v5369, %v5368
        %v5604 = vpack.c.b16 %v5371, %v5370
        %v5605 = vpack.c.b16 %v5373, %v5372
        %v5606 = vpack.c.b16 %v5375, %v5374
        %v5607 = vpack.c.b16 %v5377, %v5376
        %v5608 = vpack.c.b16 %v5379, %v5378
        %v5609 = vpack.c.b16 %v5381, %v5380
        %v5610 = vpack.c.b16 %v5383, %v5382
        %v5611 = vpack.c.b16 %v5385, %v5384
        %v5612 = vpack.c.b16 %v5387, %v5386
        %v5613 = vpack.c.b16 %v5389, %v5388
        %v5614 = vpack.c.b16 %v5391, %v5390
        %v5615 = vpack.c.b16 %v5393, %v5392
        %v5616 = vpack.c.b16 %v5395, %v5394
        %v5617 = vpack.c.b16 %v5397, %v5396
        %v5618 = vpack.c.b16 %v5399, %v5398
        %v5619 = vpack.c.b16 %v5401, %v5400
        %v5620 = vpack.c.b16 %v5403, %v5402
        %v5621 = vpack.c.b16 %v5405, %v5404
        %v5622 = vpack.c.b16 %v5407, %v5406
        %v5623 = vpack.c.b16 %v5409, %v5408
        %v5624 = vpack.c.b16 %v5411, %v5410
        %v5625 = vpack.c.b16 %v5413, %v5412
        %v5626 = vpack.c.b16 %v5415, %v5414
        %v5627 = vpack.c.b16 %v5417, %v5416
        %v5628 = vpack.c.b16 %v5419, %v5418
        %v5629 = vpack.c.b16 %v5421, %v5420
        %v5630 = vpack.c.b16 %v5423, %v5422
        %v5631 = vpack.c.b16 %v5425, %v5424
        %v5632 = vpack.c.b16 %v5427, %v5426
        %v5633 = vpack.c.b16 %v5429, %v5428
        %v5634 = vpack.c.b16 %v5431, %v5430
        %v5635 = vpack.c.b16 %v5433, %v5432
        %v5636 = vpack.c.b16 %v5435, %v5434
        %v5637 = vpack.c.b16 %v5437, %v5436
        %v5638 = vpack.c.b16 %v5439, %v5438
        %v5639 = vpack.c.b16 %v5441, %v5440
        %v5640 = vpack.c.b16 %v5443, %v5442
        %v5641 = vpack.c.b16 %v5445, %v5444
        %v5839 = vsel %vm3562, %v4268, 0
        %5841 = vmatprep.subr.bf16.mxu0 0
        %5842 = vmatpush1.bf16.msra.mxu0 %v5453
        %5843 = vmatprep.subr.bf16.mxu0 0
        %5844 = vmatpush1.bf16.msra.mxu0 %v5452
        %5845 = vmatprep.subr.bf16.mxu0 0
        %5846 = vmatpush1.bf16.msra.mxu0 %v5451
        %5847 = vmatprep.subr.bf16.mxu0 0
        %5848 = vmatpush1.bf16.msra.mxu0 %v5450
        %5849 = vmatprep.subr.bf16.mxu0 0
        %5850 = vmatpush1.bf16.msra.mxu0 %v5449
        %5851 = vmatprep.subr.bf16.mxu0 0
        %5852 = vmatpush1.bf16.msra.mxu0 %v5448
        %5853 = vmatprep.subr.bf16.mxu0 0
        %5854 = vmatpush1.bf16.msra.mxu0 %v5447
        %5855 = vmatprep.subr.bf16.mxu0 0
        %5856 = vmatpush1.bf16.msra.mxu0 %v5446
        %5857 = vmatprep.subr.bf16.mxu0 0
        %5858 = vmatpush2.bf16.msra.mxu0 %v5461
        %5859 = vmatprep.subr.bf16.mxu0 0
        %5860 = vmatpush2.bf16.msra.mxu0 %v5460
        %5861 = vmatprep.subr.bf16.mxu0 0
        %5862 = vmatpush2.bf16.msra.mxu0 %v5459
        %5863 = vmatprep.subr.bf16.mxu0 0
        %5864 = vmatpush2.bf16.msra.mxu0 %v5458
        %5865 = vmatprep.subr.bf16.mxu0 0
        %5866 = vmatpush2.bf16.msra.mxu0 %v5457
        %5867 = vmatprep.subr.bf16.mxu0 0
        %5868 = vmatpush2.bf16.msra.mxu0 %v5456
        %5869 = vmatprep.subr.bf16.mxu0 0
        %5870 = vmatpush2.bf16.msra.mxu0 %v5455
        %5871 = vmatprep.subr.bf16.mxu0 0
        %5872 = vmatpush2.bf16.msra.mxu0 %v5454
        %5873 = vmatprep.mubr.bf16.mxu0 %v4245
        %5874 = vmatmul.mubr.bf16.gmra.mxu0 %v4244
        %v5875 = vpop.f32.mrf.mxu0
        %v5876 = vadd.f32 %v4661, %v5875
        %v5877 = vpop.f32.mrf.mxu0
        %v5878 = vpop.f32.mrf.mxu0
        %v5879 = vpop.f32.mrf.mxu0
        %5880 = vdwg.mxu0
        %5881 = vmatprep.subr.bf16.mxu0 0
        %5882 = vmatpush1.bf16.msra.mxu0 %v5469
        %5883 = vmatprep.subr.bf16.mxu0 0
        %5884 = vmatpush1.bf16.msra.mxu0 %v5468
        %5885 = vmatprep.subr.bf16.mxu0 0
        %5886 = vmatpush1.bf16.msra.mxu0 %v5467
        %5887 = vmatprep.subr.bf16.mxu0 0
        %5888 = vmatpush1.bf16.msra.mxu0 %v5466
        %5889 = vmatprep.subr.bf16.mxu0 0
        %5890 = vmatpush1.bf16.msra.mxu0 %v5465
        %5891 = vmatprep.subr.bf16.mxu0 0
        %5892 = vmatpush1.bf16.msra.mxu0 %v5464
        %5893 = vmatprep.subr.bf16.mxu0 0
        %5894 = vmatpush1.bf16.msra.mxu0 %v5463
        %5895 = vmatprep.subr.bf16.mxu0 0
        %5896 = vmatpush1.bf16.msra.mxu0 %v5462
        %5897 = vmatprep.subr.bf16.mxu0 0
        %5898 = vmatpush2.bf16.msra.mxu0 %v5477
        %5899 = vmatprep.subr.bf16.mxu0 0
        %5900 = vmatpush2.bf16.msra.mxu0 %v5476
        %5901 = vmatprep.subr.bf16.mxu0 0
        %5902 = vmatpush2.bf16.msra.mxu0 %v5475
        %5903 = vmatprep.subr.bf16.mxu0 0
        %5904 = vmatpush2.bf16.msra.mxu0 %v5474
        %5905 = vmatprep.subr.bf16.mxu0 0
        %5906 = vmatpush2.bf16.msra.mxu0 %v5473
        %5907 = vmatprep.subr.bf16.mxu0 0
        %5908 = vmatpush2.bf16.msra.mxu0 %v5472
        %5909 = vmatprep.subr.bf16.mxu0 0
        %5910 = vmatpush2.bf16.msra.mxu0 %v5471
        %5911 = vmatprep.subr.bf16.mxu0 0
        %5912 = vmatpush2.bf16.msra.mxu0 %v5470
        %5913 = vmatprep.mubr.bf16.mxu0 %v4247
        %5914 = vmatmul.mubr.bf16.gmra.mxu0 %v4246
        %v5915 = vpop.f32.mrf.mxu0
        %v5916 = vadd.f32 %v5876, %v5915
        %v5917 = vpop.f32.mrf.mxu0
        %v5918 = vpop.f32.mrf.mxu0
        %v5919 = vpop.f32.mrf.mxu0
        %5920 = vdwg.mxu0
        %5921 = vmatprep.subr.bf16.mxu0 0
        %5922 = vmatpush1.bf16.msra.mxu0 %v5485
        %5923 = vmatprep.subr.bf16.mxu0 0
        %5924 = vmatpush1.bf16.msra.mxu0 %v5484
        %5925 = vmatprep.subr.bf16.mxu0 0
        %5926 = vmatpush1.bf16.msra.mxu0 %v5483
        %5927 = vmatprep.subr.bf16.mxu0 0
        %5928 = vmatpush1.bf16.msra.mxu0 %v5482
        %5929 = vmatprep.subr.bf16.mxu0 0
        %5930 = vmatpush1.bf16.msra.mxu0 %v5481
        %5931 = vmatprep.subr.bf16.mxu0 0
        %5932 = vmatpush1.bf16.msra.mxu0 %v5480
        %5933 = vmatprep.subr.bf16.mxu0 0
        %5934 = vmatpush1.bf16.msra.mxu0 %v5479
        %5935 = vmatprep.subr.bf16.mxu0 0
        %5936 = vmatpush1.bf16.msra.mxu0 %v5478
        %5937 = vmatprep.subr.bf16.mxu0 0
        %5938 = vmatpush2.bf16.msra.mxu0 %v5493
        %5939 = vmatprep.subr.bf16.mxu0 0
        %5940 = vmatpush2.bf16.msra.mxu0 %v5492
        %5941 = vmatprep.subr.bf16.mxu0 0
        %5942 = vmatpush2.bf16.msra.mxu0 %v5491
        %5943 = vmatprep.subr.bf16.mxu0 0
        %5944 = vmatpush2.bf16.msra.mxu0 %v5490
        %5945 = vmatprep.subr.bf16.mxu0 0
        %5946 = vmatpush2.bf16.msra.mxu0 %v5489
        %5947 = vmatprep.subr.bf16.mxu0 0
        %5948 = vmatpush2.bf16.msra.mxu0 %v5488
        %5949 = vmatprep.subr.bf16.mxu0 0
        %5950 = vmatpush2.bf16.msra.mxu0 %v5487
        %5951 = vmatprep.subr.bf16.mxu0 0
        %5952 = vmatpush2.bf16.msra.mxu0 %v5486
        %5953 = vmatprep.mubr.bf16.mxu0 %v4249
        %5954 = vmatmul.mubr.bf16.gmra.mxu0 %v4248
        %v5955 = vpop.f32.mrf.mxu0
        %v5956 = vadd.f32 %v5916, %v5955
        %v5957 = vpop.f32.mrf.mxu0
        %v5958 = vpop.f32.mrf.mxu0
        %v5959 = vpop.f32.mrf.mxu0
        %5960 = vdwg.mxu0
        %5961 = vmatprep.subr.bf16.mxu0 0
        %5962 = vmatpush1.bf16.msra.mxu0 %v5501
        %5963 = vmatprep.subr.bf16.mxu0 0
        %5964 = vmatpush1.bf16.msra.mxu0 %v5500
        %5965 = vmatprep.subr.bf16.mxu0 0
        %5966 = vmatpush1.bf16.msra.mxu0 %v5499
        %5967 = vmatprep.subr.bf16.mxu0 0
        %5968 = vmatpush1.bf16.msra.mxu0 %v5498
        %5969 = vmatprep.subr.bf16.mxu0 0
        %5970 = vmatpush1.bf16.msra.mxu0 %v5497
        %5971 = vmatprep.subr.bf16.mxu0 0
        %5972 = vmatpush1.bf16.msra.mxu0 %v5496
        %5973 = vmatprep.subr.bf16.mxu0 0
        %5974 = vmatpush1.bf16.msra.mxu0 %v5495
        %5975 = vmatprep.subr.bf16.mxu0 0
        %5976 = vmatpush1.bf16.msra.mxu0 %v5494
        %5977 = vmatprep.subr.bf16.mxu0 0
        %5978 = vmatpush2.bf16.msra.mxu0 %v5509
        %5979 = vmatprep.subr.bf16.mxu0 0
        %5980 = vmatpush2.bf16.msra.mxu0 %v5508
        %5981 = vmatprep.subr.bf16.mxu0 0
        %5982 = vmatpush2.bf16.msra.mxu0 %v5507
        %5983 = vmatprep.subr.bf16.mxu0 0
        %5984 = vmatpush2.bf16.msra.mxu0 %v5506
        %5985 = vmatprep.subr.bf16.mxu0 0
        %5986 = vmatpush2.bf16.msra.mxu0 %v5505
        %5987 = vmatprep.subr.bf16.mxu0 0
        %5988 = vmatpush2.bf16.msra.mxu0 %v5504
        %5989 = vmatprep.subr.bf16.mxu0 0
        %5990 = vmatpush2.bf16.msra.mxu0 %v5503
        %5991 = vmatprep.subr.bf16.mxu0 0
        %5992 = vmatpush2.bf16.msra.mxu0 %v5502
        %5993 = vmatprep.mubr.bf16.mxu0 %v4251
        %5994 = vmatmul.mubr.bf16.gmra.mxu0 %v4250
        %v5995 = vpop.f32.mrf.mxu0
        %v5996 = vadd.f32 %v5956, %v5995
        %v5997 = vpop.f32.mrf.mxu0
        %v5998 = vpop.f32.mrf.mxu0
        %v5999 = vpop.f32.mrf.mxu0
        %6000 = vdwg.mxu0
        %6001 = vmatprep.subr.bf16.mxu0 0
        %6002 = vmatpush1.bf16.msra.mxu0 %v5517
        %6003 = vmatprep.subr.bf16.mxu0 0
        %6004 = vmatpush1.bf16.msra.mxu0 %v5516
        %6005 = vmatprep.subr.bf16.mxu0 0
        %6006 = vmatpush1.bf16.msra.mxu0 %v5515
        %6007 = vmatprep.subr.bf16.mxu0 0
        %6008 = vmatpush1.bf16.msra.mxu0 %v5514
        %6009 = vmatprep.subr.bf16.mxu0 0
        %6010 = vmatpush1.bf16.msra.mxu0 %v5513
        %6011 = vmatprep.subr.bf16.mxu0 0
        %6012 = vmatpush1.bf16.msra.mxu0 %v5512
        %6013 = vmatprep.subr.bf16.mxu0 0
        %6014 = vmatpush1.bf16.msra.mxu0 %v5511
        %6015 = vmatprep.subr.bf16.mxu0 0
        %6016 = vmatpush1.bf16.msra.mxu0 %v5510
        %6017 = vmatprep.subr.bf16.mxu0 0
        %6018 = vmatpush2.bf16.msra.mxu0 %v5525
        %6019 = vmatprep.subr.bf16.mxu0 0
        %6020 = vmatpush2.bf16.msra.mxu0 %v5524
        %6021 = vmatprep.subr.bf16.mxu0 0
        %6022 = vmatpush2.bf16.msra.mxu0 %v5523
        %6023 = vmatprep.subr.bf16.mxu0 0
        %6024 = vmatpush2.bf16.msra.mxu0 %v5522
        %6025 = vmatprep.subr.bf16.mxu0 0
        %6026 = vmatpush2.bf16.msra.mxu0 %v5521
        %6027 = vmatprep.subr.bf16.mxu0 0
        %6028 = vmatpush2.bf16.msra.mxu0 %v5520
        %6029 = vmatprep.subr.bf16.mxu0 0
        %6030 = vmatpush2.bf16.msra.mxu0 %v5519
        %6031 = vmatprep.subr.bf16.mxu0 0
        %6032 = vmatpush2.bf16.msra.mxu0 %v5518
        %6033 = vmatprep.mubr.bf16.mxu0 %v4253
        %6034 = vmatmul.mubr.bf16.gmra.mxu0 %v4252
        %v6035 = vpop.f32.mrf.mxu0
        %v6036 = vadd.f32 %v5996, %v6035
        %v6037 = vpop.f32.mrf.mxu0
        %v6038 = vpop.f32.mrf.mxu0
        %v6039 = vpop.f32.mrf.mxu0
        %6040 = vdwg.mxu0
        %6041 = vmatprep.subr.bf16.mxu0 0
        %6042 = vmatpush1.bf16.msra.mxu0 %v5533
        %6043 = vmatprep.subr.bf16.mxu0 0
        %6044 = vmatpush1.bf16.msra.mxu0 %v5532
        %6045 = vmatprep.subr.bf16.mxu0 0
        %6046 = vmatpush1.bf16.msra.mxu0 %v5531
        %6047 = vmatprep.subr.bf16.mxu0 0
        %6048 = vmatpush1.bf16.msra.mxu0 %v5530
        %6049 = vmatprep.subr.bf16.mxu0 0
        %6050 = vmatpush1.bf16.msra.mxu0 %v5529
        %6051 = vmatprep.subr.bf16.mxu0 0
        %6052 = vmatpush1.bf16.msra.mxu0 %v5528
        %6053 = vmatprep.subr.bf16.mxu0 0
        %6054 = vmatpush1.bf16.msra.mxu0 %v5527
        %6055 = vmatprep.subr.bf16.mxu0 0
        %6056 = vmatpush1.bf16.msra.mxu0 %v5526
        %6057 = vmatprep.subr.bf16.mxu0 0
        %6058 = vmatpush2.bf16.msra.mxu0 %v5541
        %6059 = vmatprep.subr.bf16.mxu0 0
        %6060 = vmatpush2.bf16.msra.mxu0 %v5540
        %6061 = vmatprep.subr.bf16.mxu0 0
        %6062 = vmatpush2.bf16.msra.mxu0 %v5539
        %6063 = vmatprep.subr.bf16.mxu0 0
        %6064 = vmatpush2.bf16.msra.mxu0 %v5538
        %6065 = vmatprep.subr.bf16.mxu0 0
        %6066 = vmatpush2.bf16.msra.mxu0 %v5537
        %6067 = vmatprep.subr.bf16.mxu0 0
        %6068 = vmatpush2.bf16.msra.mxu0 %v5536
        %6069 = vmatprep.subr.bf16.mxu0 0
        %6070 = vmatpush2.bf16.msra.mxu0 %v5535
        %6071 = vmatprep.subr.bf16.mxu0 0
        %6072 = vmatpush2.bf16.msra.mxu0 %v5534
        %6073 = vmatprep.mubr.bf16.mxu0 %v4255
        %6074 = vmatmul.mubr.bf16.gmra.mxu0 %v4254
        %v6075 = vpop.f32.mrf.mxu0
        %v6076 = vadd.f32 %v6036, %v6075
        %v6077 = vpop.f32.mrf.mxu0
        %v6078 = vpop.f32.mrf.mxu0
        %v6079 = vpop.f32.mrf.mxu0
        %6080 = vdwg.mxu0
        %6081 = vmatprep.subr.bf16.mxu0 0
        %6082 = vmatpush1.bf16.msra.mxu0 %v5549
        %6083 = vmatprep.subr.bf16.mxu0 0
        %6084 = vmatpush1.bf16.msra.mxu0 %v5548
        %6085 = vmatprep.subr.bf16.mxu0 0
        %6086 = vmatpush1.bf16.msra.mxu0 %v5547
        %6087 = vmatprep.subr.bf16.mxu0 0
        %6088 = vmatpush1.bf16.msra.mxu0 %v5546
        %6089 = vmatprep.subr.bf16.mxu0 0
        %6090 = vmatpush1.bf16.msra.mxu0 %v5545
        %6091 = vmatprep.subr.bf16.mxu0 0
        %6092 = vmatpush1.bf16.msra.mxu0 %v5544
        %6093 = vmatprep.subr.bf16.mxu0 0
        %6094 = vmatpush1.bf16.msra.mxu0 %v5543
        %6095 = vmatprep.subr.bf16.mxu0 0
        %6096 = vmatpush1.bf16.msra.mxu0 %v5542
        %6097 = vmatprep.subr.bf16.mxu0 0
        %6098 = vmatpush2.bf16.msra.mxu0 %v5557
        %6099 = vmatprep.subr.bf16.mxu0 0
        %6100 = vmatpush2.bf16.msra.mxu0 %v5556
        %6101 = vmatprep.subr.bf16.mxu0 0
        %6102 = vmatpush2.bf16.msra.mxu0 %v5555
        %6103 = vmatprep.subr.bf16.mxu0 0
        %6104 = vmatpush2.bf16.msra.mxu0 %v5554
        %6105 = vmatprep.subr.bf16.mxu0 0
        %6106 = vmatpush2.bf16.msra.mxu0 %v5553
        %6107 = vmatprep.subr.bf16.mxu0 0
        %6108 = vmatpush2.bf16.msra.mxu0 %v5552
        %6109 = vmatprep.subr.bf16.mxu0 0
        %6110 = vmatpush2.bf16.msra.mxu0 %v5551
        %6111 = vmatprep.subr.bf16.mxu0 0
        %6112 = vmatpush2.bf16.msra.mxu0 %v5550
        %6113 = vmatprep.mubr.bf16.mxu0 %v4257
        %6114 = vmatmul.mubr.bf16.gmra.mxu0 %v4256
        %v6115 = vpop.f32.mrf.mxu0
        %v6116 = vadd.f32 %v6076, %v6115
        %v6117 = vpop.f32.mrf.mxu0
        %v6118 = vpop.f32.mrf.mxu0
        %v6119 = vpop.f32.mrf.mxu0
        %6120 = vdwg.mxu0
        %6121 = vmatprep.subr.bf16.mxu0 0
        %6122 = vmatpush1.bf16.msra.mxu0 %v5565
        %6123 = vmatprep.subr.bf16.mxu0 0
        %6124 = vmatpush1.bf16.msra.mxu0 %v5564
        %6125 = vmatprep.subr.bf16.mxu0 0
        %6126 = vmatpush1.bf16.msra.mxu0 %v5563
        %6127 = vmatprep.subr.bf16.mxu0 0
        %6128 = vmatpush1.bf16.msra.mxu0 %v5562
        %6129 = vmatprep.subr.bf16.mxu0 0
        %6130 = vmatpush1.bf16.msra.mxu0 %v5561
        %6131 = vmatprep.subr.bf16.mxu0 0
        %6132 = vmatpush1.bf16.msra.mxu0 %v5560
        %6133 = vmatprep.subr.bf16.mxu0 0
        %6134 = vmatpush1.bf16.msra.mxu0 %v5559
        %6135 = vmatprep.subr.bf16.mxu0 0
        %6136 = vmatpush1.bf16.msra.mxu0 %v5558
        %6137 = vmatprep.subr.bf16.mxu0 0
        %6138 = vmatpush2.bf16.msra.mxu0 %v5573
        %6139 = vmatprep.subr.bf16.mxu0 0
        %6140 = vmatpush2.bf16.msra.mxu0 %v5572
        %6141 = vmatprep.subr.bf16.mxu0 0
        %6142 = vmatpush2.bf16.msra.mxu0 %v5571
        %6143 = vmatprep.subr.bf16.mxu0 0
        %6144 = vmatpush2.bf16.msra.mxu0 %v5570
        %6145 = vmatprep.subr.bf16.mxu0 0
        %6146 = vmatpush2.bf16.msra.mxu0 %v5569
        %6147 = vmatprep.subr.bf16.mxu0 0
        %6148 = vmatpush2.bf16.msra.mxu0 %v5568
        %6149 = vmatprep.subr.bf16.mxu0 0
        %6150 = vmatpush2.bf16.msra.mxu0 %v5567
        %6151 = vmatprep.subr.bf16.mxu0 0
        %6152 = vmatpush2.bf16.msra.mxu0 %v5566
        %6153 = vmatprep.mubr.bf16.mxu0 %v4259
        %6154 = vmatmul.mubr.bf16.gmra.mxu0 %v4258
        %v6155 = vpop.f32.mrf.mxu0
        %v6156 = vadd.f32 %v6116, %v6155
        %v6157 = vpop.f32.mrf.mxu0
        %v6158 = vpop.f32.mrf.mxu0
        %v6159 = vpop.f32.mrf.mxu0
        %6160 = vdwg.mxu0
        %6161 = vmatprep.subr.bf16.mxu0 0
        %6162 = vmatpush1.bf16.msra.mxu0 %v5581
        %6163 = vmatprep.subr.bf16.mxu0 0
        %6164 = vmatpush1.bf16.msra.mxu0 %v5580
        %6165 = vmatprep.subr.bf16.mxu0 0
        %6166 = vmatpush1.bf16.msra.mxu0 %v5579
        %6167 = vmatprep.subr.bf16.mxu0 0
        %6168 = vmatpush1.bf16.msra.mxu0 %v5578
        %6169 = vmatprep.subr.bf16.mxu0 0
        %6170 = vmatpush1.bf16.msra.mxu0 %v5577
        %6171 = vmatprep.subr.bf16.mxu0 0
        %6172 = vmatpush1.bf16.msra.mxu0 %v5576
        %6173 = vmatprep.subr.bf16.mxu0 0
        %6174 = vmatpush1.bf16.msra.mxu0 %v5575
        %6175 = vmatprep.subr.bf16.mxu0 0
        %6176 = vmatpush1.bf16.msra.mxu0 %v5574
        %6177 = vmatprep.subr.bf16.mxu0 0
        %6178 = vmatpush2.bf16.msra.mxu0 %v5589
        %6179 = vmatprep.subr.bf16.mxu0 0
        %6180 = vmatpush2.bf16.msra.mxu0 %v5588
        %6181 = vmatprep.subr.bf16.mxu0 0
        %6182 = vmatpush2.bf16.msra.mxu0 %v5587
        %6183 = vmatprep.subr.bf16.mxu0 0
        %6184 = vmatpush2.bf16.msra.mxu0 %v5586
        %6185 = vmatprep.subr.bf16.mxu0 0
        %6186 = vmatpush2.bf16.msra.mxu0 %v5585
        %6187 = vmatprep.subr.bf16.mxu0 0
        %6188 = vmatpush2.bf16.msra.mxu0 %v5584
        %6189 = vmatprep.subr.bf16.mxu0 0
        %6190 = vmatpush2.bf16.msra.mxu0 %v5583
        %6191 = vmatprep.subr.bf16.mxu0 0
        %6192 = vmatpush2.bf16.msra.mxu0 %v5582
        %6193 = vmatprep.mubr.bf16.mxu0 %v4261
        %6194 = vmatmul.mubr.bf16.gmra.mxu0 %v4260
        %v6195 = vpop.f32.mrf.mxu0
        %v6196 = vadd.f32 %v6156, %v6195
        %v6197 = vpop.f32.mrf.mxu0
        %v6198 = vpop.f32.mrf.mxu0
        %v6199 = vpop.f32.mrf.mxu0
        %6200 = vdwg.mxu0
        %6201 = vmatprep.subr.bf16.mxu0 0
        %6202 = vmatpush1.bf16.msra.mxu0 %v5597
        %6203 = vmatprep.subr.bf16.mxu0 0
        %6204 = vmatpush1.bf16.msra.mxu0 %v5596
        %6205 = vmatprep.subr.bf16.mxu0 0
        %6206 = vmatpush1.bf16.msra.mxu0 %v5595
        %6207 = vmatprep.subr.bf16.mxu0 0
        %6208 = vmatpush1.bf16.msra.mxu0 %v5594
        %6209 = vmatprep.subr.bf16.mxu0 0
        %6210 = vmatpush1.bf16.msra.mxu0 %v5593
        %6211 = vmatprep.subr.bf16.mxu0 0
        %6212 = vmatpush1.bf16.msra.mxu0 %v5592
        %6213 = vmatprep.subr.bf16.mxu0 0
        %6214 = vmatpush1.bf16.msra.mxu0 %v5591
        %6215 = vmatprep.subr.bf16.mxu0 0
        %6216 = vmatpush1.bf16.msra.mxu0 %v5590
        %6217 = vmatprep.subr.bf16.mxu0 0
        %6218 = vmatpush2.bf16.msra.mxu0 %v5605
        %6219 = vmatprep.subr.bf16.mxu0 0
        %6220 = vmatpush2.bf16.msra.mxu0 %v5604
        %6221 = vmatprep.subr.bf16.mxu0 0
        %6222 = vmatpush2.bf16.msra.mxu0 %v5603
        %6223 = vmatprep.subr.bf16.mxu0 0
        %6224 = vmatpush2.bf16.msra.mxu0 %v5602
        %6225 = vmatprep.subr.bf16.mxu0 0
        %6226 = vmatpush2.bf16.msra.mxu0 %v5601
        %6227 = vmatprep.subr.bf16.mxu0 0
        %6228 = vmatpush2.bf16.msra.mxu0 %v5600
        %6229 = vmatprep.subr.bf16.mxu0 0
        %6230 = vmatpush2.bf16.msra.mxu0 %v5599
        %6231 = vmatprep.subr.bf16.mxu0 0
        %6232 = vmatpush2.bf16.msra.mxu0 %v5598
        %6233 = vmatprep.mubr.bf16.mxu0 %v4263
        %6234 = vmatmul.mubr.bf16.gmra.mxu0 %v4262
        %v6235 = vpop.f32.mrf.mxu0
        %v6236 = vadd.f32 %v6196, %v6235
        %v6237 = vpop.f32.mrf.mxu0
        %v6238 = vpop.f32.mrf.mxu0
        %v6239 = vpop.f32.mrf.mxu0
        %6240 = vdwg.mxu0
        %6241 = vmatprep.subr.bf16.mxu0 0
        %6242 = vmatpush1.bf16.msra.mxu0 %v5613
        %6243 = vmatprep.subr.bf16.mxu0 0
        %6244 = vmatpush1.bf16.msra.mxu0 %v5612
        %6245 = vmatprep.subr.bf16.mxu0 0
        %6246 = vmatpush1.bf16.msra.mxu0 %v5611
        %6247 = vmatprep.subr.bf16.mxu0 0
        %6248 = vmatpush1.bf16.msra.mxu0 %v5610
        %6249 = vmatprep.subr.bf16.mxu0 0
        %6250 = vmatpush1.bf16.msra.mxu0 %v5609
        %6251 = vmatprep.subr.bf16.mxu0 0
        %6252 = vmatpush1.bf16.msra.mxu0 %v5608
        %6253 = vmatprep.subr.bf16.mxu0 0
        %6254 = vmatpush1.bf16.msra.mxu0 %v5607
        %6255 = vmatprep.subr.bf16.mxu0 0
        %6256 = vmatpush1.bf16.msra.mxu0 %v5606
        %6257 = vmatprep.subr.bf16.mxu0 0
        %6258 = vmatpush2.bf16.msra.mxu0 %v5621
        %6259 = vmatprep.subr.bf16.mxu0 0
        %6260 = vmatpush2.bf16.msra.mxu0 %v5620
        %6261 = vmatprep.subr.bf16.mxu0 0
        %6262 = vmatpush2.bf16.msra.mxu0 %v5619
        %6263 = vmatprep.subr.bf16.mxu0 0
        %6264 = vmatpush2.bf16.msra.mxu0 %v5618
        %6265 = vmatprep.subr.bf16.mxu0 0
        %6266 = vmatpush2.bf16.msra.mxu0 %v5617
        %6267 = vmatprep.subr.bf16.mxu0 0
        %6268 = vmatpush2.bf16.msra.mxu0 %v5616
        %6269 = vmatprep.subr.bf16.mxu0 0
        %6270 = vmatpush2.bf16.msra.mxu0 %v5615
        %6271 = vmatprep.subr.bf16.mxu0 0
        %6272 = vmatpush2.bf16.msra.mxu0 %v5614
        %6273 = vmatprep.mubr.bf16.mxu0 %v4265
        %6274 = vmatmul.mubr.bf16.gmra.mxu0 %v4264
        %v6275 = vpop.f32.mrf.mxu0
        %v6276 = vadd.f32 %v6236, %v6275
        %v6277 = vpop.f32.mrf.mxu0
        %v6278 = vpop.f32.mrf.mxu0
        %v6279 = vpop.f32.mrf.mxu0
        %6280 = vdwg.mxu0
        %6281 = vmatprep.subr.bf16.mxu0 0
        %6282 = vmatpush1.bf16.msra.mxu0 %v5629
        %6283 = vmatprep.subr.bf16.mxu0 0
        %6284 = vmatpush1.bf16.msra.mxu0 %v5628
        %6285 = vmatprep.subr.bf16.mxu0 0
        %6286 = vmatpush1.bf16.msra.mxu0 %v5627
        %6287 = vmatprep.subr.bf16.mxu0 0
        %6288 = vmatpush1.bf16.msra.mxu0 %v5626
        %6289 = vmatprep.subr.bf16.mxu0 0
        %6290 = vmatpush1.bf16.msra.mxu0 %v5625
        %6291 = vmatprep.subr.bf16.mxu0 0
        %6292 = vmatpush1.bf16.msra.mxu0 %v5624
        %6293 = vmatprep.subr.bf16.mxu0 0
        %6294 = vmatpush1.bf16.msra.mxu0 %v5623
        %6295 = vmatprep.subr.bf16.mxu0 0
        %6296 = vmatpush1.bf16.msra.mxu0 %v5622
        %6297 = vmatprep.subr.bf16.mxu0 0
        %6298 = vmatpush2.bf16.msra.mxu0 %v5637
        %6299 = vmatprep.subr.bf16.mxu0 0
        %6300 = vmatpush2.bf16.msra.mxu0 %v5636
        %6301 = vmatprep.subr.bf16.mxu0 0
        %6302 = vmatpush2.bf16.msra.mxu0 %v5635
        %6303 = vmatprep.subr.bf16.mxu0 0
        %6304 = vmatpush2.bf16.msra.mxu0 %v5634
        %6305 = vmatprep.subr.bf16.mxu0 0
        %6306 = vmatpush2.bf16.msra.mxu0 %v5633
        %6307 = vmatprep.subr.bf16.mxu0 0
        %6308 = vmatpush2.bf16.msra.mxu0 %v5632
        %6309 = vmatprep.subr.bf16.mxu0 0
        %6310 = vmatpush2.bf16.msra.mxu0 %v5631
        %6311 = vmatprep.subr.bf16.mxu0 0
        %6312 = vmatpush2.bf16.msra.mxu0 %v5630
        %6313 = vmatprep.mubr.bf16.mxu0 %v4267
        %6314 = vmatmul.mubr.bf16.gmra.mxu0 %v4266
        %v6315 = vpop.f32.mrf.mxu0
        %v6316 = vadd.f32 %v6276, %v6315
        %v6317 = vpop.f32.mrf.mxu0
        %v6318 = vpop.f32.mrf.mxu0
        %v6319 = vpop.f32.mrf.mxu0
        %6320 = vdwg.mxu0
        %6321 = vmatprep.subr.bf16.mxu0 0
        %6322 = vmatpush1.bf16.msra.mxu0 0
        %6323 = vmatprep.subr.bf16.mxu0 0
        %6324 = vmatpush1.bf16.msra.mxu0 0
        %6325 = vmatprep.subr.bf16.mxu0 0
        %6326 = vmatpush1.bf16.msra.mxu0 0
        %6327 = vmatprep.subr.bf16.mxu0 0
        %6328 = vmatpush1.bf16.msra.mxu0 0
        %6329 = vmatprep.subr.bf16.mxu0 0
        %6330 = vmatpush1.bf16.msra.mxu0 %v5641
        %6331 = vmatprep.subr.bf16.mxu0 0
        %6332 = vmatpush1.bf16.msra.mxu0 %v5640
        %6333 = vmatprep.subr.bf16.mxu0 0
        %6334 = vmatpush1.bf16.msra.mxu0 %v5639
        %6335 = vmatprep.subr.bf16.mxu0 0
        %6336 = vmatpush1.bf16.msra.mxu0 %v5638
        %6337 = vmatprep.subr.bf16.mxu0 0
        %6338 = vmatpush2.bf16.msra.mxu0 0
        %6339 = vmatprep.subr.bf16.mxu0 0
        %6340 = vmatpush2.bf16.msra.mxu0 0
        %6341 = vmatprep.subr.bf16.mxu0 0
        %6342 = vmatpush2.bf16.msra.mxu0 0
        %6343 = vmatprep.subr.bf16.mxu0 0
        %6344 = vmatpush2.bf16.msra.mxu0 0
        %6345 = vmatprep.subr.bf16.mxu0 0
        %6346 = vmatpush2.bf16.msra.mxu0 0
        %6347 = vmatprep.subr.bf16.mxu0 0
        %6348 = vmatpush2.bf16.msra.mxu0 0
        %6349 = vmatprep.subr.bf16.mxu0 0
        %6350 = vmatpush2.bf16.msra.mxu0 0
        %6351 = vmatprep.subr.bf16.mxu0 0
        %6352 = vmatpush2.bf16.msra.mxu0 0
        %6353 = vmatprep.mubr.bf16.mxu0 0
        %6354 = vmatmul.mubr.bf16.gmra.mxu0 %v5839
        %v6355 = vpop.f32.mrf.mxu0
        %v6356 = vadd.f32 %v6316, %v6355
        %v6357 = vpop.f32.mrf.mxu0
        %v6358 = vpop.f32.mrf.mxu0
        %v6359 = vpop.f32.mrf.mxu0
        %6360 = vdwg.mxu0
        %v6361 = vmax.f32 %v6356, 0.0
        %v6362 = vld [vmem:[%s7] sm:$0xff]
        %v6363 = vld [vmem:[%s7 + $0x8] sm:$0xff]
        %v6364 = vld [vmem:[%s7 + $0x10] sm:$0xff]
        %v6365 = vld [vmem:[%s7 + $0x18] sm:$0xff]
        %v6366 = vld [vmem:[%s7 + $0x20] sm:$0xff]
        %v6367 = vld [vmem:[%s7 + $0x28] sm:$0xff]
        %v6368 = vld [vmem:[%s7 + $0x30] sm:$0xff]
        %v6369 = vld [vmem:[%s7 + $0x38] sm:$0xff]
        %v6370 = vld [vmem:[%s7 + $0x40] sm:$0xff]
        %v6371 = vld [vmem:[%s7 + $0x48] sm:$0xff]
        %v6372 = vld [vmem:[%s7 + $0x50] sm:$0xff]
        %v6373 = vld [vmem:[%s7 + $0x58] sm:$0xff]
        %v6374 = vld [vmem:[%s7 + $0x60] sm:$0xff]
        %v6375 = vld [vmem:[%s7 + $0x68] sm:$0xff]
        %v6376 = vld [vmem:[%s7 + $0x70] sm:$0xff]
        %v6377 = vld [vmem:[%s7 + $0x78] sm:$0xff]
        %v6378 = vld [vmem:[%s8] sm:$0x1]
        %6379 = vmatprep.subr.mxu0 0.0
        %6380 = vmatpush1.msra.mxu0 %v6377
        %6381 = vmatprep.subr.mxu0 0.0
        %6382 = vmatpush1.msra.mxu0 %v6376
        %6383 = vmatprep.subr.mxu0 0.0
        %6384 = vmatpush1.msra.mxu0 %v6375
        %6385 = vmatprep.subr.mxu0 0.0
        %6386 = vmatpush1.msra.mxu0 %v6374
        %6387 = vmatprep.subr.mxu0 0.0
        %6388 = vmatpush1.msra.mxu0 %v6373
        %6389 = vmatprep.subr.mxu0 0.0
        %6390 = vmatpush1.msra.mxu0 %v6372
        %6391 = vmatprep.subr.mxu0 0.0
        %6392 = vmatpush1.msra.mxu0 %v6371
        %6393 = vmatprep.subr.mxu0 0.0
        %6394 = vmatpush1.msra.mxu0 %v6370
        %6395 = vmatprep.subr.mxu0 0.0
        %6396 = vmatpush1.msra.mxu0 %v6369
        %6397 = vmatprep.subr.mxu0 0.0
        %6398 = vmatpush1.msra.mxu0 %v6368
        %6399 = vmatprep.subr.mxu0 0.0
        %6400 = vmatpush1.msra.mxu0 %v6367
        %6401 = vmatprep.subr.mxu0 0.0
        %6402 = vmatpush1.msra.mxu0 %v6366
        %6403 = vmatprep.subr.mxu0 0.0
        %6404 = vmatpush1.msra.mxu0 %v6365
        %6405 = vmatprep.subr.mxu0 0.0
        %6406 = vmatpush1.msra.mxu0 %v6364
        %6407 = vmatprep.subr.mxu0 0.0
        %6408 = vmatpush1.msra.mxu0 %v6363
        %6409 = vmatprep.subr.mxu0 0.0
        %6410 = vmatpush1.msra.mxu0 %v6362
        %6411 = vmatprep.subr.mxu0 0.0
        %6412 = vmatpush2.msra.mxu0 0.0
        %6413 = vmatprep.subr.mxu0 0.0
        %6414 = vmatpush2.msra.mxu0 0.0
        %6415 = vmatprep.subr.mxu0 0.0
        %6416 = vmatpush2.msra.mxu0 0.0
        %6417 = vmatprep.subr.mxu0 0.0
        %6418 = vmatpush2.msra.mxu0 0.0
        %6419 = vmatprep.subr.mxu0 0.0
        %6420 = vmatpush2.msra.mxu0 0.0
        %6421 = vmatprep.subr.mxu0 0.0
        %6422 = vmatpush2.msra.mxu0 0.0
        %6423 = vmatprep.subr.mxu0 0.0
        %6424 = vmatpush2.msra.mxu0 0.0
        %6425 = vmatprep.subr.mxu0 0.0
        %6426 = vmatpush2.msra.mxu0 0.0
        %6427 = vmatprep.subr.mxu0 0.0
        %6428 = vmatpush2.msra.mxu0 0.0
        %6429 = vmatprep.subr.mxu0 0.0
        %6430 = vmatpush2.msra.mxu0 0.0
        %6431 = vmatprep.subr.mxu0 0.0
        %6432 = vmatpush2.msra.mxu0 0.0
        %6433 = vmatprep.subr.mxu0 0.0
        %6434 = vmatpush2.msra.mxu0 0.0
        %6435 = vmatprep.subr.mxu0 0.0
        %6436 = vmatpush2.msra.mxu0 0.0
        %6437 = vmatprep.subr.mxu0 0.0
        %6438 = vmatpush2.msra.mxu0 0.0
        %6439 = vmatprep.subr.mxu0 0.0
        %6440 = vmatpush2.msra.mxu0 0.0
        %6441 = vmatprep.subr.mxu0 0.0
        %6442 = vmatpush2.msra.mxu0 0.0
        %6443 = vmatprep.mubr.f32.mxu0 0.0
        %6444 = vmatmul.mubr.f32.gmra.mxu0 %v6361
        %v6445 = vpop.f32.mrf.mxu0
        %v6446 = vadd.f32 %v6378, %v6445
        %v6447 = vpop.f32.mrf.mxu0
        %6448 = vdwg.mxu0
        %vm6449 = vcmask 73728
        %6450 = vst.msk [vmem:[%s298] sm:$0x1] %vm6449, %v6446
        %s6451 = sand.u32 %s204, 1
        %s6452 = scalar_lea.sflag [#allocation9], %s6451
        %s6453 = sand.u32 %s204, 1
        %s6454 = scalar_lea.vmem [#allocation8], %s6453
        // Predicated region
        $region87: #{cnn_forward.1} parent=51 // pred_check
          %p6455 = pneg %p214
        $region88: #{cnn_forward.1} parent=51 // pred_check_branch
          %6457 = sbr.rel (%p6455) target = $region90
        $region89: #{cnn_forward.1} parent=51 // pred_region
          %s6459 = ssub.s32 16, 16
          %6460 = vsyncadd %s6452, %s6459
          %s6461 = smul.addr %s23, 16
          %s6462 = scalar_lea.hbm %s9, %s6461
          %s6464 = sshll.u32 %s6454, 4
          %s6465 = int_to_ptr.vmem [resolvable:$true] %s6464
          %6467 = dma.vmem_to_hbm [thread:$0]  %s6465, 16, %s6462, %s6452
        $region90: #{cnn_forward.1} parent=51 // pred_fallthru
          _
      $region52: #{cnn_forward.1} parent=5 // pred_fallthru
        _
      %p6468 = scmp.le.s32.totalorder 2, %s18
      // Predicated region
      $region91: #{cnn_forward.1} parent=5 // pred_check
        %p6469 = pneg %p6468
      $region92: #{cnn_forward.1} parent=5 // pred_check_branch
        %6471 = sbr.rel (%p6469) target = $region94
      $region93: #{cnn_forward.1} parent=5 // pred_region
        %s6472 = ssub.s32 %s18, 2
        // Predicated region
        $region95: #{cnn_forward.1} parent=93 // pred_check
          %p6473 = pneg %p220
        $region96: #{cnn_forward.1} parent=93 // pred_check_branch
          %6475 = sbr.rel (%p6473) target = $region98
        $region97: #{cnn_forward.1} parent=93 // pred_region
          %s6476 = sand.u32 %s205, 1
          %s6477 = scalar_lea.sflag [#allocation9], %s6476
          %s6478 = sand.u32 %s205, 1
          %s6479 = scalar_lea.vmem [#allocation8], %s6478
          %6480 = dma.done %s6477, 16
        $region98: #{cnn_forward.1} parent=93 // pred_fallthru
          _
      $region94: #{cnn_forward.1} parent=5 // pred_fallthru
        _
    $region6: #{cnn_forward.1} parent=1 // loop_footer
      %s22 = sadd.s32 1, %s18
    $region7: #{cnn_forward.1} parent=1 // loop_footer_branch
      %17 = sbr.rel target = $region3
    $region8: #{cnn_forward.1} parent=1 // loop_exit
      _
    %6481 = vsyncpa [#allocation9], 1
    %s6482 = scalar_lea.sflag [#allocation9], 1
    %6483 = vsyncpa %s6482, 1
  %6484 = vsyncmov [#allocation7]
  %s6485 = vpop.sfrf %6484
  %p6486 = scmp.eq.s32.totalorder %s6485, 0
  %p6487 = pneg %p6486
  %6489 = shalt.err (%p6487)

</llo_original>
